<compile_context>
chip_gen: v5e
topology: v5e:2x2
jax: 0.10.0
libtpu: 0.0.40
codegen_flags: <defaults>
</compile_context>

<pallas_src>
import jax
import jax.numpy as jnp
from jax import lax
from jax.experimental import pallas as pl
from jax.experimental.pallas import tpu as pltpu

# ----------------------------- synthetic config -----------------------------
B = 2                      # batch
T = 16                     # max_length analog ("77")
BT = B * T
VOCAB = 64                 # vocab analog ("49408")
D = 256                    # transformer width analog ("1024"), lane-dense
N_HEADS = 2
HEAD_DIM = D // N_HEADS    # 128 -> lane-tile aligned head slices
MLP = 4 * D
N_LAYERS = 3               # total resblocks
LAYER = "penultimate"      # module default
LAYER_IDX = 1              # 'penultimate' -> skip the last resblock
N_BLOCKS = N_LAYERS - LAYER_IDX
EPS = 1e-5
SCALE = 1.0 / float(HEAD_DIM) ** 0.5
NEG_INF = -1e9


# ------------------------------ in-kernel math -------------------------------
def _ln(x, g, b):
    mu = jnp.mean(x, axis=-1, keepdims=True)
    var = jnp.mean((x - mu) ** 2, axis=-1, keepdims=True)
    return (x - mu) * lax.rsqrt(var + EPS) * g + b


def encoder_kernel(tok_sref,                        # (BT,) int32 in SMEM (prefetch)
                   emb_hbm,                         # (VOCAB, D) f32, stays in HBM
                   pos_ref, mask_ref,               # (T, D) f32 / (T, T) f32
                   g1, b1, wqkv, bqkv, wo, bo,      # per-layer slices (lead dim 1)
                   g2, b2, wfc, bfc, wpr, bpr,
                   lnf_g, lnf_b,                    # (1, D) f32
                   o_ref,                           # (B, T, D) f32
                   x_scr, attn_scr, gsem):          # VMEM / VMEM / DMA sems
    """One grid step = one resblock applied to the whole (B*T, D) batch."""
    l = pl.program_id(0)

    # ---- layer step 0: DMA-gather token-embedding rows + add positional ----
    @pl.when(l == 0)
    def _():
        copies = []
        for i in range(BT):                          # row gather straight HBM->VMEM
            cp = pltpu.make_async_copy(
                emb_hbm.at[pl.ds(tok_sref[i], 1)],   # (1, D) source row
                x_scr.at[pl.ds(i, 1)],               # (1, D) destination row
                gsem.at[i])
            cp.start()
            copies.append(cp)
        for cp in copies:
            cp.wait()
        x0 = x_scr[...].reshape(B, T, D) + pos_ref[...][None]
        x_scr[...] = x0.reshape(BT, D)

    x = x_scr[...]                                   # (BT, D) f32 residual stream

    # ---- multi-head self-attention (pre-LN, causal) ----
    h = _ln(x, g1[0], b1[0])
    qkv = jnp.dot(h.astype(jnp.bfloat16), wqkv[0],
                  preferred_element_type=jnp.float32) + bqkv[0]      # (BT, 3D) f32

    # TODO(synk): at real N_HEADS=16 / HEAD_DIM=64 replace this unrolled loop by
    #             a batched einsum over a packed (two heads per 128-lane slab)
    #             layout; here HEAD_DIM=128 so every slice is lane-tile aligned
    #             and the loop is only B*N_HEADS = 4 iterations.
    for bb in range(B):
        r0 = bb * T
        for hh in range(N_HEADS):
            lo = hh * HEAD_DIM
            qs = qkv[r0:r0 + T, lo:lo + HEAD_DIM] * SCALE
            ks = qkv[r0:r0 + T, D + lo:D + lo + HEAD_DIM]
            vs = qkv[r0:r0 + T, 2 * D + lo:2 * D + lo + HEAD_DIM]
            s = lax.dot_general(qs.astype(jnp.bfloat16), ks.astype(jnp.bfloat16),
                                (((1,), (1,)), ((), ())),
                                preferred_element_type=jnp.float32)  # (T, T) f32
            s = s + mask_ref[...]                    # hoisted additive causal mask
            m = jnp.max(s, axis=-1, keepdims=True)   # softmax stats stay f32
            p = jnp.exp(s - m)
            p = p * pl.reciprocal(jnp.sum(p, axis=-1, keepdims=True), approx=True)
            attn_scr[pl.ds(r0, T), pl.ds(lo, HEAD_DIM)] = jnp.dot(
                p.astype(jnp.bfloat16), vs.astype(jnp.bfloat16),
                preferred_element_type=jnp.float32)

    x = x + jnp.dot(attn_scr[...].astype(jnp.bfloat16), wo[0],
                    preferred_element_type=jnp.float32) + bo[0]

    # ---- MLP (GELU) ----
    h2 = _ln(x, g2[0], b2[0])
    u = jnp.dot(h2.astype(jnp.bfloat16), wfc[0],
                preferred_element_type=jnp.float32) + bfc[0]
    u = jax.nn.gelu(u, approximate=True)
    u = jnp.dot(u.astype(jnp.bfloat16), wpr[0],
                preferred_element_type=jnp.float32) + bpr[0]
    x = x + u
    x_scr[...] = x                                   # carry residual in VMEM

    # ---- last executed block: fuse ln_final and emit the output ----
    @pl.when(l == pl.num_programs(0) - 1)
    def _():
        o_ref[...] = _ln(x, lnf_g[...], lnf_b[...]).reshape(B, T, D)


# ------------------------------ kernel wrapper --------------------------------
_WKEYS = ("ln1_g", "ln1_b", "wqkv", "bqkv", "wo", "bo",
          "ln2_g", "ln2_b", "wfc", "bfc", "wpr", "bpr")


def _layer_spec(arr):
    """Block = one layer slice; block index only depends on the layer step."""
    nz = arr.ndim - 1
    return pl.BlockSpec((1,) + arr.shape[1:],
                        lambda li, tok, nz=nz: (li,) + (0,) * nz)


def _const_spec(arr):
    """Tiny constant input: same block every step -> single-buffered."""
    nd = arr.ndim
    return pl.BlockSpec(arr.shape, lambda li, tok, nd=nd: (0,) * nd,
                        pipeline_mode=pl.Buffered(1))


def frozen_openclip_text_forward(tokens, params):
    b, t = tokens.shape
    assert (b, t) == (B, T)
    tok_flat = tokens.astype(jnp.int32).reshape(BT)   # -> SMEM via scalar prefetch

    # resblocks actually executed ('penultimate' stops before the last one),
    # stacked on a leading layer axis so one pallas_call streams them.
    stacked = {k: jnp.stack([lyr[k] for lyr in params["layers"][:N_BLOCKS]], 0)
               for k in _WKEYS}

    # additive causal mask, built once (0 on/below diagonal, -1e9 above).
    row = jnp.arange(T, dtype=jnp.int32)[:, None]
    col = jnp.arange(T, dtype=jnp.int32)[None, :]
    attn_mask = jnp.where(col <= row, 0.0, NEG_INF).astype(jnp.float32)

    in_specs = [
        pl.BlockSpec(memory_space=pl.ANY),             # embedding table in HBM
        _const_spec(params["pos"]),
        _const_spec(attn_mask),
        *[_layer_spec(stacked[k]) for k in _WKEYS],
        _const_spec(params["ln_f_g"]),
        _const_spec(params["ln_f_b"]),
    ]

    grid_spec = pltpu.PrefetchScalarGridSpec(
        num_scalar_prefetch=1,
        grid=(N_BLOCKS,),
        in_specs=in_specs,
        out_specs=pl.BlockSpec((B, T, D), lambda li, tok: (0, 0, 0)),
        scratch_shapes=[
            pltpu.VMEM((BT, D), jnp.float32),          # residual stream
            pltpu.VMEM((BT, D), jnp.float32),          # per-head attention out
            pltpu.SemaphoreType.DMA((BT,)),            # embedding-gather sems
        ])

    return pl.pallas_call(
        encoder_kernel,
        out_shape=jax.ShapeDtypeStruct((B, T, D), jnp.float32),
        grid_spec=grid_spec,
        compiler_params=pltpu.CompilerParams(
            dimension_semantics=("arbitrary",),        # residual carried over layers
            vmem_limit_bytes=48 * 1024 * 1024),        # headroom on v7x's 64 MiB
    )(tok_flat, params["tok_emb"], params["pos"], attn_mask,
      *(stacked[k] for k in _WKEYS),
      params["ln_f_g"], params["ln_f_b"])


# ------------------------------ parameter init --------------------------------
def init_params(key):
    ks = jax.random.split(key, 2 + N_LAYERS)
    p = {
        "tok_emb": jax.random.normal(ks[0], (VOCAB, D), jnp.float32) * 0.02,
        "pos": jax.random.normal(ks[1], (T, D), jnp.float32) * 0.01,
        "ln_f_g": jnp.ones((1, D), jnp.float32),
        "ln_f_b": jnp.zeros((1, D), jnp.float32),
    }
    layers = []
    for i in range(N_LAYERS):
        kk = jax.random.split(ks[2 + i], 4)
        layers.append(dict(
            ln1_g=jnp.ones((1, D), jnp.float32),
            ln1_b=jnp.zeros((1, D), jnp.float32),
            # large matmul weights stored (and streamed) in bf16
            wqkv=(jax.random.normal(kk[0], (D, 3 * D), jnp.float32) * 0.02
                  ).astype(jnp.bfloat16),
            bqkv=jnp.zeros((1, 3 * D), jnp.float32),
            wo=(jax.random.normal(kk[1], (D, D), jnp.float32) * 0.02
                ).astype(jnp.bfloat16),
            bo=jnp.zeros((1, D), jnp.float32),
            ln2_g=jnp.ones((1, D), jnp.float32),
            ln2_b=jnp.zeros((1, D), jnp.float32),
            wfc=(jax.random.normal(kk[2], (D, MLP), jnp.float32) * 0.02
                 ).astype(jnp.bfloat16),
            bfc=jnp.zeros((1, MLP), jnp.float32),
            wpr=(jax.random.normal(kk[3], (MLP, D), jnp.float32) * 0.02
                 ).astype(jnp.bfloat16),
            bpr=jnp.zeros((1, D), jnp.float32),
        ))
    p["layers"] = layers
    return p


if __name__ == "__main__":
    key = jax.random.PRNGKey(0)
    kt, kp = jax.random.split(key)
    # TODO(synk): open_clip.tokenize(text) replaced by synthetic token ids.
    tokens = jax.random.randint(kt, (B, T), 0, VOCAB, dtype=jnp.int32)
    params = init_params(kp)

    z = frozen_openclip_text_forward(tokens, params)
    z = jax.block_until_ready(z)

    assert z.shape == (B, T, D), z.shape
    assert z.dtype == jnp.float32
    assert bool(jnp.all(jnp.isfinite(z)))
    print("KERNEL_OK")
</pallas_src>

<mosaic_0001>
module attributes {stable_mosaic.version = 11 : i64} {
  func.func @encoder_kernel(%arg0: i32, %arg1: memref<32xi32, #tpu.memory_space<smem>>, %arg2: memref<64x256xf32, #tpu.memory_space<any>>, %arg3: memref<16x256xf32, #tpu.memory_space<vmem>>, %arg4: memref<16x16xf32, #tpu.memory_space<vmem>>, %arg5: memref<1x1x256xf32, #tpu.memory_space<vmem>>, %arg6: memref<1x1x256xf32, #tpu.memory_space<vmem>>, %arg7: memref<1x256x768xbf16, #tpu.memory_space<vmem>>, %arg8: memref<1x1x768xf32, #tpu.memory_space<vmem>>, %arg9: memref<1x256x256xbf16, #tpu.memory_space<vmem>>, %arg10: memref<1x1x256xf32, #tpu.memory_space<vmem>>, %arg11: memref<1x1x256xf32, #tpu.memory_space<vmem>>, %arg12: memref<1x1x256xf32, #tpu.memory_space<vmem>>, %arg13: memref<1x256x1024xbf16, #tpu.memory_space<vmem>>, %arg14: memref<1x1x1024xf32, #tpu.memory_space<vmem>>, %arg15: memref<1x1024x256xbf16, #tpu.memory_space<vmem>>, %arg16: memref<1x1x256xf32, #tpu.memory_space<vmem>>, %arg17: memref<1x256xf32, #tpu.memory_space<vmem>>, %arg18: memref<1x256xf32, #tpu.memory_space<vmem>>, %arg19: memref<2x16x256xf32, #tpu.memory_space<vmem>>, %arg20: memref<32x256xf32, #tpu.memory_space<vmem>>, %arg21: memref<32x256xf32, #tpu.memory_space<vmem>>, %arg22: memref<32x!tpu.dma_semaphore, #tpu.memory_space<semaphore_mem>>) attributes {dimension_semantics = [#tpu.dimension_semantics<arbitrary>], iteration_bounds = array<i64: 2>, scalar_prefetch = 1 : i64, scratch_operands = 3 : i64, tpu.core_type = #tpu.core_type<tc>, window_params = [{}, {pipeline_mode = #tpu.pipeline_mode<synchronous>, transform_indices = @transform_1, window_bounds = array<i64: 16, 256>}, {pipeline_mode = #tpu.pipeline_mode<synchronous>, transform_indices = @transform_2, window_bounds = array<i64: 16, 16>}, {transform_indices = @transform_3, window_bounds = array<i64: 1, 1, 256>}, {transform_indices = @transform_4, window_bounds = array<i64: 1, 1, 256>}, {transform_indices = @transform_5, window_bounds = array<i64: 1, 256, 768>}, {transform_indices = @transform_6, window_bounds = array<i64: 1, 1, 768>}, {transform_indices = @transform_7, window_bounds = array<i64: 1, 256, 256>}, {transform_indices = @transform_8, window_bounds = array<i64: 1, 1, 256>}, {transform_indices = @transform_9, window_bounds = array<i64: 1, 1, 256>}, {transform_indices = @transform_10, window_bounds = array<i64: 1, 1, 256>}, {transform_indices = @transform_11, window_bounds = array<i64: 1, 256, 1024>}, {transform_indices = @transform_12, window_bounds = array<i64: 1, 1, 1024>}, {transform_indices = @transform_13, window_bounds = array<i64: 1, 1024, 256>}, {transform_indices = @transform_14, window_bounds = array<i64: 1, 1, 256>}, {pipeline_mode = #tpu.pipeline_mode<synchronous>, transform_indices = @transform_15, window_bounds = array<i64: 1, 256>}, {pipeline_mode = #tpu.pipeline_mode<synchronous>, transform_indices = @transform_16, window_bounds = array<i64: 1, 256>}, {pipeline_mode = #tpu.pipeline_mode<synchronous>, transform_indices = @transform_17, window_bounds = array<i64: 2, 16, 256>}]} {
    %c0_i32 = arith.constant 0 : i32
    %0 = arith.cmpi eq, %arg0, %c0_i32 : i32
    %1 = arith.extui %0 : i1 to i32
    %c0_i32_0 = arith.constant 0 : i32
    %2 = arith.cmpi ne, %1, %c0_i32_0 : i32
    scf.if %2 {
      %c0_94 = arith.constant 0 : index
      %204 = memref.load %arg1[%c0_94] : memref<32xi32, #tpu.memory_space<smem>>
      %c0_i32_95 = arith.constant 0 : i32
      %c0_i32_96 = arith.constant 0 : i32
      %205 = tpu.memref_slice %arg2[%204, %c0_i32_96] : memref<64x256xf32, #tpu.memory_space<any>> -> memref<1x256xf32, #tpu.memory_space<any>>
      %c0_i32_97 = arith.constant 0 : i32
      %c0_i32_98 = arith.constant 0 : i32
      %206 = tpu.memref_slice %arg20[%c0_i32_97, %c0_i32_98] : memref<32x256xf32, #tpu.memory_space<vmem>> -> memref<1x256xf32, #tpu.memory_space<vmem>>
      %207 = tpu.memref_slice %arg22[%c0_i32_95] : memref<32x!tpu.dma_semaphore, #tpu.memory_space<semaphore_mem>> -> memref<1x!tpu.dma_semaphore, #tpu.memory_space<semaphore_mem>>
      %208 = tpu.memref_squeeze %207 : memref<1x!tpu.dma_semaphore, #tpu.memory_space<semaphore_mem>> -> memref<!tpu.dma_semaphore, #tpu.memory_space<semaphore_mem>>
      tpu.enqueue_dma source(%205 : memref<1x256xf32, #tpu.memory_space<any>>) target(%206 : memref<1x256xf32, #tpu.memory_space<vmem>>) target_semaphore(%208 : memref<!tpu.dma_semaphore, #tpu.memory_space<semaphore_mem>>)
      %c1 = arith.constant 1 : index
      %209 = memref.load %arg1[%c1] : memref<32xi32, #tpu.memory_space<smem>>
      %c1_i32_99 = arith.constant 1 : i32
      %c0_i32_100 = arith.constant 0 : i32
      %210 = tpu.memref_slice %arg2[%209, %c0_i32_100] : memref<64x256xf32, #tpu.memory_space<any>> -> memref<1x256xf32, #tpu.memory_space<any>>
      %c1_i32_101 = arith.constant 1 : i32
      %c0_i32_102 = arith.constant 0 : i32
      %211 = tpu.memref_slice %arg20[%c1_i32_101, %c0_i32_102] : memref<32x256xf32, #tpu.memory_space<vmem>> -> memref<1x256xf32, #tpu.memory_space<vmem>>
      %212 = tpu.memref_slice %arg22[%c1_i32_99] : memref<32x!tpu.dma_semaphore, #tpu.memory_space<semaphore_mem>> -> memref<1x!tpu.dma_semaphore, #tpu.memory_space<semaphore_mem>>
      %213 = tpu.memref_squeeze %212 : memref<1x!tpu.dma_semaphore, #tpu.memory_space<semaphore_mem>> -> memref<!tpu.dma_semaphore, #tpu.memory_space<semaphore_mem>>
      tpu.enqueue_dma source(%210 : memref<1x256xf32, #tpu.memory_space<any>>) target(%211 : memref<1x256xf32, #tpu.memory_space<vmem>>) target_semaphore(%213 : memref<!tpu.dma_semaphore, #tpu.memory_space<semaphore_mem>>)
      %c2 = arith.constant 2 : index
      %214 = memref.load %arg1[%c2] : memref<32xi32, #tpu.memory_space<smem>>
      %c2_i32 = arith.constant 2 : i32
      %c0_i32_103 = arith.constant 0 : i32
      %215 = tpu.memref_slice %arg2[%214, %c0_i32_103] : memref<64x256xf32, #tpu.memory_space<any>> -> memref<1x256xf32, #tpu.memory_space<any>>
      %c2_i32_104 = arith.constant 2 : i32
      %c0_i32_105 = arith.constant 0 : i32
      %216 = tpu.memref_slice %arg20[%c2_i32_104, %c0_i32_105] : memref<32x256xf32, #tpu.memory_space<vmem>> -> memref<1x256xf32, #tpu.memory_space<vmem>>
      %217 = tpu.memref_slice %arg22[%c2_i32] : memref<32x!tpu.dma_semaphore, #tpu.memory_space<semaphore_mem>> -> memref<1x!tpu.dma_semaphore, #tpu.memory_space<semaphore_mem>>
      %218 = tpu.memref_squeeze %217 : memref<1x!tpu.dma_semaphore, #tpu.memory_space<semaphore_mem>> -> memref<!tpu.dma_semaphore, #tpu.memory_space<semaphore_mem>>
      tpu.enqueue_dma source(%215 : memref<1x256xf32, #tpu.memory_space<any>>) target(%216 : memref<1x256xf32, #tpu.memory_space<vmem>>) target_semaphore(%218 : memref<!tpu.dma_semaphore, #tpu.memory_space<semaphore_mem>>)
      %c3 = arith.constant 3 : index
      %219 = memref.load %arg1[%c3] : memref<32xi32, #tpu.memory_space<smem>>
      %c3_i32 = arith.constant 3 : i32
      %c0_i32_106 = arith.constant 0 : i32
      %220 = tpu.memref_slice %arg2[%219, %c0_i32_106] : memref<64x256xf32, #tpu.memory_space<any>> -> memref<1x256xf32, #tpu.memory_space<any>>
      %c3_i32_107 = arith.constant 3 : i32
      %c0_i32_108 = arith.constant 0 : i32
      %221 = tpu.memref_slice %arg20[%c3_i32_107, %c0_i32_108] : memref<32x256xf32, #tpu.memory_space<vmem>> -> memref<1x256xf32, #tpu.memory_space<vmem>>
      %222 = tpu.memref_slice %arg22[%c3_i32] : memref<32x!tpu.dma_semaphore, #tpu.memory_space<semaphore_mem>> -> memref<1x!tpu.dma_semaphore, #tpu.memory_space<semaphore_mem>>
      %223 = tpu.memref_squeeze %222 : memref<1x!tpu.dma_semaphore, #tpu.memory_space<semaphore_mem>> -> memref<!tpu.dma_semaphore, #tpu.memory_space<semaphore_mem>>
      tpu.enqueue_dma source(%220 : memref<1x256xf32, #tpu.memory_space<any>>) target(%221 : memref<1x256xf32, #tpu.memory_space<vmem>>) target_semaphore(%223 : memref<!tpu.dma_semaphore, #tpu.memory_space<semaphore_mem>>)
      %c4 = arith.constant 4 : index
      %224 = memref.load %arg1[%c4] : memref<32xi32, #tpu.memory_space<smem>>
      %c4_i32 = arith.constant 4 : i32
      %c0_i32_109 = arith.constant 0 : i32
      %225 = tpu.memref_slice %arg2[%224, %c0_i32_109] : memref<64x256xf32, #tpu.memory_space<any>> -> memref<1x256xf32, #tpu.memory_space<any>>
      %c4_i32_110 = arith.constant 4 : i32
      %c0_i32_111 = arith.constant 0 : i32
      %226 = tpu.memref_slice %arg20[%c4_i32_110, %c0_i32_111] : memref<32x256xf32, #tpu.memory_space<vmem>> -> memref<1x256xf32, #tpu.memory_space<vmem>>
      %227 = tpu.memref_slice %arg22[%c4_i32] : memref<32x!tpu.dma_semaphore, #tpu.memory_space<semaphore_mem>> -> memref<1x!tpu.dma_semaphore, #tpu.memory_space<semaphore_mem>>
      %228 = tpu.memref_squeeze %227 : memref<1x!tpu.dma_semaphore, #tpu.memory_space<semaphore_mem>> -> memref<!tpu.dma_semaphore, #tpu.memory_space<semaphore_mem>>
      tpu.enqueue_dma source(%225 : memref<1x256xf32, #tpu.memory_space<any>>) target(%226 : memref<1x256xf32, #tpu.memory_space<vmem>>) target_semaphore(%228 : memref<!tpu.dma_semaphore, #tpu.memory_space<semaphore_mem>>)
      %c5 = arith.constant 5 : index
      %229 = memref.load %arg1[%c5] : memref<32xi32, #tpu.memory_space<smem>>
      %c5_i32 = arith.constant 5 : i32
      %c0_i32_112 = arith.constant 0 : i32
      %230 = tpu.memref_slice %arg2[%229, %c0_i32_112] : memref<64x256xf32, #tpu.memory_space<any>> -> memref<1x256xf32, #tpu.memory_space<any>>
      %c5_i32_113 = arith.constant 5 : i32
      %c0_i32_114 = arith.constant 0 : i32
      %231 = tpu.memref_slice %arg20[%c5_i32_113, %c0_i32_114] : memref<32x256xf32, #tpu.memory_space<vmem>> -> memref<1x256xf32, #tpu.memory_space<vmem>>
      %232 = tpu.memref_slice %arg22[%c5_i32] : memref<32x!tpu.dma_semaphore, #tpu.memory_space<semaphore_mem>> -> memref<1x!tpu.dma_semaphore, #tpu.memory_space<semaphore_mem>>
      %233 = tpu.memref_squeeze %232 : memref<1x!tpu.dma_semaphore, #tpu.memory_space<semaphore_mem>> -> memref<!tpu.dma_semaphore, #tpu.memory_space<semaphore_mem>>
      tpu.enqueue_dma source(%230 : memref<1x256xf32, #tpu.memory_space<any>>) target(%231 : memref<1x256xf32, #tpu.memory_space<vmem>>) target_semaphore(%233 : memref<!tpu.dma_semaphore, #tpu.memory_space<semaphore_mem>>)
      %c6 = arith.constant 6 : index
      %234 = memref.load %arg1[%c6] : memref<32xi32, #tpu.memory_space<smem>>
      %c6_i32 = arith.constant 6 : i32
      %c0_i32_115 = arith.constant 0 : i32
      %235 = tpu.memref_slice %arg2[%234, %c0_i32_115] : memref<64x256xf32, #tpu.memory_space<any>> -> memref<1x256xf32, #tpu.memory_space<any>>
      %c6_i32_116 = arith.constant 6 : i32
      %c0_i32_117 = arith.constant 0 : i32
      %236 = tpu.memref_slice %arg20[%c6_i32_116, %c0_i32_117] : memref<32x256xf32, #tpu.memory_space<vmem>> -> memref<1x256xf32, #tpu.memory_space<vmem>>
      %237 = tpu.memref_slice %arg22[%c6_i32] : memref<32x!tpu.dma_semaphore, #tpu.memory_space<semaphore_mem>> -> memref<1x!tpu.dma_semaphore, #tpu.memory_space<semaphore_mem>>
      %238 = tpu.memref_squeeze %237 : memref<1x!tpu.dma_semaphore, #tpu.memory_space<semaphore_mem>> -> memref<!tpu.dma_semaphore, #tpu.memory_space<semaphore_mem>>
      tpu.enqueue_dma source(%235 : memref<1x256xf32, #tpu.memory_space<any>>) target(%236 : memref<1x256xf32, #tpu.memory_space<vmem>>) target_semaphore(%238 : memref<!tpu.dma_semaphore, #tpu.memory_space<semaphore_mem>>)
      %c7 = arith.constant 7 : index
      %239 = memref.load %arg1[%c7] : memref<32xi32, #tpu.memory_space<smem>>
      %c7_i32 = arith.constant 7 : i32
      %c0_i32_118 = arith.constant 0 : i32
      %240 = tpu.memref_slice %arg2[%239, %c0_i32_118] : memref<64x256xf32, #tpu.memory_space<any>> -> memref<1x256xf32, #tpu.memory_space<any>>
      %c7_i32_119 = arith.constant 7 : i32
      %c0_i32_120 = arith.constant 0 : i32
      %241 = tpu.memref_slice %arg20[%c7_i32_119, %c0_i32_120] : memref<32x256xf32, #tpu.memory_space<vmem>> -> memref<1x256xf32, #tpu.memory_space<vmem>>
      %242 = tpu.memref_slice %arg22[%c7_i32] : memref<32x!tpu.dma_semaphore, #tpu.memory_space<semaphore_mem>> -> memref<1x!tpu.dma_semaphore, #tpu.memory_space<semaphore_mem>>
      %243 = tpu.memref_squeeze %242 : memref<1x!tpu.dma_semaphore, #tpu.memory_space<semaphore_mem>> -> memref<!tpu.dma_semaphore, #tpu.memory_space<semaphore_mem>>
      tpu.enqueue_dma source(%240 : memref<1x256xf32, #tpu.memory_space<any>>) target(%241 : memref<1x256xf32, #tpu.memory_space<vmem>>) target_semaphore(%243 : memref<!tpu.dma_semaphore, #tpu.memory_space<semaphore_mem>>)
      %c8 = arith.constant 8 : index
      %244 = memref.load %arg1[%c8] : memref<32xi32, #tpu.memory_space<smem>>
      %c8_i32 = arith.constant 8 : i32
      %c0_i32_121 = arith.constant 0 : i32
      %245 = tpu.memref_slice %arg2[%244, %c0_i32_121] : memref<64x256xf32, #tpu.memory_space<any>> -> memref<1x256xf32, #tpu.memory_space<any>>
      %c8_i32_122 = arith.constant 8 : i32
      %c0_i32_123 = arith.constant 0 : i32
      %246 = tpu.memref_slice %arg20[%c8_i32_122, %c0_i32_123] : memref<32x256xf32, #tpu.memory_space<vmem>> -> memref<1x256xf32, #tpu.memory_space<vmem>>
      %247 = tpu.memref_slice %arg22[%c8_i32] : memref<32x!tpu.dma_semaphore, #tpu.memory_space<semaphore_mem>> -> memref<1x!tpu.dma_semaphore, #tpu.memory_space<semaphore_mem>>
      %248 = tpu.memref_squeeze %247 : memref<1x!tpu.dma_semaphore, #tpu.memory_space<semaphore_mem>> -> memref<!tpu.dma_semaphore, #tpu.memory_space<semaphore_mem>>
      tpu.enqueue_dma source(%245 : memref<1x256xf32, #tpu.memory_space<any>>) target(%246 : memref<1x256xf32, #tpu.memory_space<vmem>>) target_semaphore(%248 : memref<!tpu.dma_semaphore, #tpu.memory_space<semaphore_mem>>)
      %c9 = arith.constant 9 : index
      %249 = memref.load %arg1[%c9] : memref<32xi32, #tpu.memory_space<smem>>
      %c9_i32 = arith.constant 9 : i32
      %c0_i32_124 = arith.constant 0 : i32
      %250 = tpu.memref_slice %arg2[%249, %c0_i32_124] : memref<64x256xf32, #tpu.memory_space<any>> -> memref<1x256xf32, #tpu.memory_space<any>>
      %c9_i32_125 = arith.constant 9 : i32
      %c0_i32_126 = arith.constant 0 : i32
      %251 = tpu.memref_slice %arg20[%c9_i32_125, %c0_i32_126] : memref<32x256xf32, #tpu.memory_space<vmem>> -> memref<1x256xf32, #tpu.memory_space<vmem>>
      %252 = tpu.memref_slice %arg22[%c9_i32] : memref<32x!tpu.dma_semaphore, #tpu.memory_space<semaphore_mem>> -> memref<1x!tpu.dma_semaphore, #tpu.memory_space<semaphore_mem>>
      %253 = tpu.memref_squeeze %252 : memref<1x!tpu.dma_semaphore, #tpu.memory_space<semaphore_mem>> -> memref<!tpu.dma_semaphore, #tpu.memory_space<semaphore_mem>>
      tpu.enqueue_dma source(%250 : memref<1x256xf32, #tpu.memory_space<any>>) target(%251 : memref<1x256xf32, #tpu.memory_space<vmem>>) target_semaphore(%253 : memref<!tpu.dma_semaphore, #tpu.memory_space<semaphore_mem>>)
      %c10 = arith.constant 10 : index
      %254 = memref.load %arg1[%c10] : memref<32xi32, #tpu.memory_space<smem>>
      %c10_i32 = arith.constant 10 : i32
      %c0_i32_127 = arith.constant 0 : i32
      %255 = tpu.memref_slice %arg2[%254, %c0_i32_127] : memref<64x256xf32, #tpu.memory_space<any>> -> memref<1x256xf32, #tpu.memory_space<any>>
      %c10_i32_128 = arith.constant 10 : i32
      %c0_i32_129 = arith.constant 0 : i32
      %256 = tpu.memref_slice %arg20[%c10_i32_128, %c0_i32_129] : memref<32x256xf32, #tpu.memory_space<vmem>> -> memref<1x256xf32, #tpu.memory_space<vmem>>
      %257 = tpu.memref_slice %arg22[%c10_i32] : memref<32x!tpu.dma_semaphore, #tpu.memory_space<semaphore_mem>> -> memref<1x!tpu.dma_semaphore, #tpu.memory_space<semaphore_mem>>
      %258 = tpu.memref_squeeze %257 : memref<1x!tpu.dma_semaphore, #tpu.memory_space<semaphore_mem>> -> memref<!tpu.dma_semaphore, #tpu.memory_space<semaphore_mem>>
      tpu.enqueue_dma source(%255 : memref<1x256xf32, #tpu.memory_space<any>>) target(%256 : memref<1x256xf32, #tpu.memory_space<vmem>>) target_semaphore(%258 : memref<!tpu.dma_semaphore, #tpu.memory_space<semaphore_mem>>)
      %c11 = arith.constant 11 : index
      %259 = memref.load %arg1[%c11] : memref<32xi32, #tpu.memory_space<smem>>
      %c11_i32 = arith.constant 11 : i32
      %c0_i32_130 = arith.constant 0 : i32
      %260 = tpu.memref_slice %arg2[%259, %c0_i32_130] : memref<64x256xf32, #tpu.memory_space<any>> -> memref<1x256xf32, #tpu.memory_space<any>>
      %c11_i32_131 = arith.constant 11 : i32
      %c0_i32_132 = arith.constant 0 : i32
      %261 = tpu.memref_slice %arg20[%c11_i32_131, %c0_i32_132] : memref<32x256xf32, #tpu.memory_space<vmem>> -> memref<1x256xf32, #tpu.memory_space<vmem>>
      %262 = tpu.memref_slice %arg22[%c11_i32] : memref<32x!tpu.dma_semaphore, #tpu.memory_space<semaphore_mem>> -> memref<1x!tpu.dma_semaphore, #tpu.memory_space<semaphore_mem>>
      %263 = tpu.memref_squeeze %262 : memref<1x!tpu.dma_semaphore, #tpu.memory_space<semaphore_mem>> -> memref<!tpu.dma_semaphore, #tpu.memory_space<semaphore_mem>>
      tpu.enqueue_dma source(%260 : memref<1x256xf32, #tpu.memory_space<any>>) target(%261 : memref<1x256xf32, #tpu.memory_space<vmem>>) target_semaphore(%263 : memref<!tpu.dma_semaphore, #tpu.memory_space<semaphore_mem>>)
      %c12 = arith.constant 12 : index
      %264 = memref.load %arg1[%c12] : memref<32xi32, #tpu.memory_space<smem>>
      %c12_i32 = arith.constant 12 : i32
      %c0_i32_133 = arith.constant 0 : i32
      %265 = tpu.memref_slice %arg2[%264, %c0_i32_133] : memref<64x256xf32, #tpu.memory_space<any>> -> memref<1x256xf32, #tpu.memory_space<any>>
      %c12_i32_134 = arith.constant 12 : i32
      %c0_i32_135 = arith.constant 0 : i32
      %266 = tpu.memref_slice %arg20[%c12_i32_134, %c0_i32_135] : memref<32x256xf32, #tpu.memory_space<vmem>> -> memref<1x256xf32, #tpu.memory_space<vmem>>
      %267 = tpu.memref_slice %arg22[%c12_i32] : memref<32x!tpu.dma_semaphore, #tpu.memory_space<semaphore_mem>> -> memref<1x!tpu.dma_semaphore, #tpu.memory_space<semaphore_mem>>
      %268 = tpu.memref_squeeze %267 : memref<1x!tpu.dma_semaphore, #tpu.memory_space<semaphore_mem>> -> memref<!tpu.dma_semaphore, #tpu.memory_space<semaphore_mem>>
      tpu.enqueue_dma source(%265 : memref<1x256xf32, #tpu.memory_space<any>>) target(%266 : memref<1x256xf32, #tpu.memory_space<vmem>>) target_semaphore(%268 : memref<!tpu.dma_semaphore, #tpu.memory_space<semaphore_mem>>)
      %c13 = arith.constant 13 : index
      %269 = memref.load %arg1[%c13] : memref<32xi32, #tpu.memory_space<smem>>
      %c13_i32 = arith.constant 13 : i32
      %c0_i32_136 = arith.constant 0 : i32
      %270 = tpu.memref_slice %arg2[%269, %c0_i32_136] : memref<64x256xf32, #tpu.memory_space<any>> -> memref<1x256xf32, #tpu.memory_space<any>>
      %c13_i32_137 = arith.constant 13 : i32
      %c0_i32_138 = arith.constant 0 : i32
      %271 = tpu.memref_slice %arg20[%c13_i32_137, %c0_i32_138] : memref<32x256xf32, #tpu.memory_space<vmem>> -> memref<1x256xf32, #tpu.memory_space<vmem>>
      %272 = tpu.memref_slice %arg22[%c13_i32] : memref<32x!tpu.dma_semaphore, #tpu.memory_space<semaphore_mem>> -> memref<1x!tpu.dma_semaphore, #tpu.memory_space<semaphore_mem>>
      %273 = tpu.memref_squeeze %272 : memref<1x!tpu.dma_semaphore, #tpu.memory_space<semaphore_mem>> -> memref<!tpu.dma_semaphore, #tpu.memory_space<semaphore_mem>>
      tpu.enqueue_dma source(%270 : memref<1x256xf32, #tpu.memory_space<any>>) target(%271 : memref<1x256xf32, #tpu.memory_space<vmem>>) target_semaphore(%273 : memref<!tpu.dma_semaphore, #tpu.memory_space<semaphore_mem>>)
      %c14 = arith.constant 14 : index
      %274 = memref.load %arg1[%c14] : memref<32xi32, #tpu.memory_space<smem>>
      %c14_i32 = arith.constant 14 : i32
      %c0_i32_139 = arith.constant 0 : i32
      %275 = tpu.memref_slice %arg2[%274, %c0_i32_139] : memref<64x256xf32, #tpu.memory_space<any>> -> memref<1x256xf32, #tpu.memory_space<any>>
      %c14_i32_140 = arith.constant 14 : i32
      %c0_i32_141 = arith.constant 0 : i32
      %276 = tpu.memref_slice %arg20[%c14_i32_140, %c0_i32_141] : memref<32x256xf32, #tpu.memory_space<vmem>> -> memref<1x256xf32, #tpu.memory_space<vmem>>
      %277 = tpu.memref_slice %arg22[%c14_i32] : memref<32x!tpu.dma_semaphore, #tpu.memory_space<semaphore_mem>> -> memref<1x!tpu.dma_semaphore, #tpu.memory_space<semaphore_mem>>
      %278 = tpu.memref_squeeze %277 : memref<1x!tpu.dma_semaphore, #tpu.memory_space<semaphore_mem>> -> memref<!tpu.dma_semaphore, #tpu.memory_space<semaphore_mem>>
      tpu.enqueue_dma source(%275 : memref<1x256xf32, #tpu.memory_space<any>>) target(%276 : memref<1x256xf32, #tpu.memory_space<vmem>>) target_semaphore(%278 : memref<!tpu.dma_semaphore, #tpu.memory_space<semaphore_mem>>)
      %c15 = arith.constant 15 : index
      %279 = memref.load %arg1[%c15] : memref<32xi32, #tpu.memory_space<smem>>
      %c15_i32 = arith.constant 15 : i32
      %c0_i32_142 = arith.constant 0 : i32
      %280 = tpu.memref_slice %arg2[%279, %c0_i32_142] : memref<64x256xf32, #tpu.memory_space<any>> -> memref<1x256xf32, #tpu.memory_space<any>>
      %c15_i32_143 = arith.constant 15 : i32
      %c0_i32_144 = arith.constant 0 : i32
      %281 = tpu.memref_slice %arg20[%c15_i32_143, %c0_i32_144] : memref<32x256xf32, #tpu.memory_space<vmem>> -> memref<1x256xf32, #tpu.memory_space<vmem>>
      %282 = tpu.memref_slice %arg22[%c15_i32] : memref<32x!tpu.dma_semaphore, #tpu.memory_space<semaphore_mem>> -> memref<1x!tpu.dma_semaphore, #tpu.memory_space<semaphore_mem>>
      %283 = tpu.memref_squeeze %282 : memref<1x!tpu.dma_semaphore, #tpu.memory_space<semaphore_mem>> -> memref<!tpu.dma_semaphore, #tpu.memory_space<semaphore_mem>>
      tpu.enqueue_dma source(%280 : memref<1x256xf32, #tpu.memory_space<any>>) target(%281 : memref<1x256xf32, #tpu.memory_space<vmem>>) target_semaphore(%283 : memref<!tpu.dma_semaphore, #tpu.memory_space<semaphore_mem>>)
      %c16_145 = arith.constant 16 : index
      %284 = memref.load %arg1[%c16_145] : memref<32xi32, #tpu.memory_space<smem>>
      %c16_i32 = arith.constant 16 : i32
      %c0_i32_146 = arith.constant 0 : i32
      %285 = tpu.memref_slice %arg2[%284, %c0_i32_146] : memref<64x256xf32, #tpu.memory_space<any>> -> memref<1x256xf32, #tpu.memory_space<any>>
      %c16_i32_147 = arith.constant 16 : i32
      %c0_i32_148 = arith.constant 0 : i32
      %286 = tpu.memref_slice %arg20[%c16_i32_147, %c0_i32_148] : memref<32x256xf32, #tpu.memory_space<vmem>> -> memref<1x256xf32, #tpu.memory_space<vmem>>
      %287 = tpu.memref_slice %arg22[%c16_i32] : memref<32x!tpu.dma_semaphore, #tpu.memory_space<semaphore_mem>> -> memref<1x!tpu.dma_semaphore, #tpu.memory_space<semaphore_mem>>
      %288 = tpu.memref_squeeze %287 : memref<1x!tpu.dma_semaphore, #tpu.memory_space<semaphore_mem>> -> memref<!tpu.dma_semaphore, #tpu.memory_space<semaphore_mem>>
      tpu.enqueue_dma source(%285 : memref<1x256xf32, #tpu.memory_space<any>>) target(%286 : memref<1x256xf32, #tpu.memory_space<vmem>>) target_semaphore(%288 : memref<!tpu.dma_semaphore, #tpu.memory_space<semaphore_mem>>)
      %c17 = arith.constant 17 : index
      %289 = memref.load %arg1[%c17] : memref<32xi32, #tpu.memory_space<smem>>
      %c17_i32 = arith.constant 17 : i32
      %c0_i32_149 = arith.constant 0 : i32
      %290 = tpu.memref_slice %arg2[%289, %c0_i32_149] : memref<64x256xf32, #tpu.memory_space<any>> -> memref<1x256xf32, #tpu.memory_space<any>>
      %c17_i32_150 = arith.constant 17 : i32
      %c0_i32_151 = arith.constant 0 : i32
      %291 = tpu.memref_slice %arg20[%c17_i32_150, %c0_i32_151] : memref<32x256xf32, #tpu.memory_space<vmem>> -> memref<1x256xf32, #tpu.memory_space<vmem>>
      %292 = tpu.memref_slice %arg22[%c17_i32] : memref<32x!tpu.dma_semaphore, #tpu.memory_space<semaphore_mem>> -> memref<1x!tpu.dma_semaphore, #tpu.memory_space<semaphore_mem>>
      %293 = tpu.memref_squeeze %292 : memref<1x!tpu.dma_semaphore, #tpu.memory_space<semaphore_mem>> -> memref<!tpu.dma_semaphore, #tpu.memory_space<semaphore_mem>>
      tpu.enqueue_dma source(%290 : memref<1x256xf32, #tpu.memory_space<any>>) target(%291 : memref<1x256xf32, #tpu.memory_space<vmem>>) target_semaphore(%293 : memref<!tpu.dma_semaphore, #tpu.memory_space<semaphore_mem>>)
      %c18 = arith.constant 18 : index
      %294 = memref.load %arg1[%c18] : memref<32xi32, #tpu.memory_space<smem>>
      %c18_i32 = arith.constant 18 : i32
      %c0_i32_152 = arith.constant 0 : i32
      %295 = tpu.memref_slice %arg2[%294, %c0_i32_152] : memref<64x256xf32, #tpu.memory_space<any>> -> memref<1x256xf32, #tpu.memory_space<any>>
      %c18_i32_153 = arith.constant 18 : i32
      %c0_i32_154 = arith.constant 0 : i32
      %296 = tpu.memref_slice %arg20[%c18_i32_153, %c0_i32_154] : memref<32x256xf32, #tpu.memory_space<vmem>> -> memref<1x256xf32, #tpu.memory_space<vmem>>
      %297 = tpu.memref_slice %arg22[%c18_i32] : memref<32x!tpu.dma_semaphore, #tpu.memory_space<semaphore_mem>> -> memref<1x!tpu.dma_semaphore, #tpu.memory_space<semaphore_mem>>
      %298 = tpu.memref_squeeze %297 : memref<1x!tpu.dma_semaphore, #tpu.memory_space<semaphore_mem>> -> memref<!tpu.dma_semaphore, #tpu.memory_space<semaphore_mem>>
      tpu.enqueue_dma source(%295 : memref<1x256xf32, #tpu.memory_space<any>>) target(%296 : memref<1x256xf32, #tpu.memory_space<vmem>>) target_semaphore(%298 : memref<!tpu.dma_semaphore, #tpu.memory_space<semaphore_mem>>)
      %c19 = arith.constant 19 : index
      %299 = memref.load %arg1[%c19] : memref<32xi32, #tpu.memory_space<smem>>
      %c19_i32 = arith.constant 19 : i32
      %c0_i32_155 = arith.constant 0 : i32
      %300 = tpu.memref_slice %arg2[%299, %c0_i32_155] : memref<64x256xf32, #tpu.memory_space<any>> -> memref<1x256xf32, #tpu.memory_space<any>>
      %c19_i32_156 = arith.constant 19 : i32
      %c0_i32_157 = arith.constant 0 : i32
      %301 = tpu.memref_slice %arg20[%c19_i32_156, %c0_i32_157] : memref<32x256xf32, #tpu.memory_space<vmem>> -> memref<1x256xf32, #tpu.memory_space<vmem>>
      %302 = tpu.memref_slice %arg22[%c19_i32] : memref<32x!tpu.dma_semaphore, #tpu.memory_space<semaphore_mem>> -> memref<1x!tpu.dma_semaphore, #tpu.memory_space<semaphore_mem>>
      %303 = tpu.memref_squeeze %302 : memref<1x!tpu.dma_semaphore, #tpu.memory_space<semaphore_mem>> -> memref<!tpu.dma_semaphore, #tpu.memory_space<semaphore_mem>>
      tpu.enqueue_dma source(%300 : memref<1x256xf32, #tpu.memory_space<any>>) target(%301 : memref<1x256xf32, #tpu.memory_space<vmem>>) target_semaphore(%303 : memref<!tpu.dma_semaphore, #tpu.memory_space<semaphore_mem>>)
      %c20 = arith.constant 20 : index
      %304 = memref.load %arg1[%c20] : memref<32xi32, #tpu.memory_space<smem>>
      %c20_i32 = arith.constant 20 : i32
      %c0_i32_158 = arith.constant 0 : i32
      %305 = tpu.memref_slice %arg2[%304, %c0_i32_158] : memref<64x256xf32, #tpu.memory_space<any>> -> memref<1x256xf32, #tpu.memory_space<any>>
      %c20_i32_159 = arith.constant 20 : i32
      %c0_i32_160 = arith.constant 0 : i32
      %306 = tpu.memref_slice %arg20[%c20_i32_159, %c0_i32_160] : memref<32x256xf32, #tpu.memory_space<vmem>> -> memref<1x256xf32, #tpu.memory_space<vmem>>
      %307 = tpu.memref_slice %arg22[%c20_i32] : memref<32x!tpu.dma_semaphore, #tpu.memory_space<semaphore_mem>> -> memref<1x!tpu.dma_semaphore, #tpu.memory_space<semaphore_mem>>
      %308 = tpu.memref_squeeze %307 : memref<1x!tpu.dma_semaphore, #tpu.memory_space<semaphore_mem>> -> memref<!tpu.dma_semaphore, #tpu.memory_space<semaphore_mem>>
      tpu.enqueue_dma source(%305 : memref<1x256xf32, #tpu.memory_space<any>>) target(%306 : memref<1x256xf32, #tpu.memory_space<vmem>>) target_semaphore(%308 : memref<!tpu.dma_semaphore, #tpu.memory_space<semaphore_mem>>)
      %c21 = arith.constant 21 : index
      %309 = memref.load %arg1[%c21] : memref<32xi32, #tpu.memory_space<smem>>
      %c21_i32 = arith.constant 21 : i32
      %c0_i32_161 = arith.constant 0 : i32
      %310 = tpu.memref_slice %arg2[%309, %c0_i32_161] : memref<64x256xf32, #tpu.memory_space<any>> -> memref<1x256xf32, #tpu.memory_space<any>>
      %c21_i32_162 = arith.constant 21 : i32
      %c0_i32_163 = arith.constant 0 : i32
      %311 = tpu.memref_slice %arg20[%c21_i32_162, %c0_i32_163] : memref<32x256xf32, #tpu.memory_space<vmem>> -> memref<1x256xf32, #tpu.memory_space<vmem>>
      %312 = tpu.memref_slice %arg22[%c21_i32] : memref<32x!tpu.dma_semaphore, #tpu.memory_space<semaphore_mem>> -> memref<1x!tpu.dma_semaphore, #tpu.memory_space<semaphore_mem>>
      %313 = tpu.memref_squeeze %312 : memref<1x!tpu.dma_semaphore, #tpu.memory_space<semaphore_mem>> -> memref<!tpu.dma_semaphore, #tpu.memory_space<semaphore_mem>>
      tpu.enqueue_dma source(%310 : memref<1x256xf32, #tpu.memory_space<any>>) target(%311 : memref<1x256xf32, #tpu.memory_space<vmem>>) target_semaphore(%313 : memref<!tpu.dma_semaphore, #tpu.memory_space<semaphore_mem>>)
      %c22 = arith.constant 22 : index
      %314 = memref.load %arg1[%c22] : memref<32xi32, #tpu.memory_space<smem>>
      %c22_i32 = arith.constant 22 : i32
      %c0_i32_164 = arith.constant 0 : i32
      %315 = tpu.memref_slice %arg2[%314, %c0_i32_164] : memref<64x256xf32, #tpu.memory_space<any>> -> memref<1x256xf32, #tpu.memory_space<any>>
      %c22_i32_165 = arith.constant 22 : i32
      %c0_i32_166 = arith.constant 0 : i32
      %316 = tpu.memref_slice %arg20[%c22_i32_165, %c0_i32_166] : memref<32x256xf32, #tpu.memory_space<vmem>> -> memref<1x256xf32, #tpu.memory_space<vmem>>
      %317 = tpu.memref_slice %arg22[%c22_i32] : memref<32x!tpu.dma_semaphore, #tpu.memory_space<semaphore_mem>> -> memref<1x!tpu.dma_semaphore, #tpu.memory_space<semaphore_mem>>
      %318 = tpu.memref_squeeze %317 : memref<1x!tpu.dma_semaphore, #tpu.memory_space<semaphore_mem>> -> memref<!tpu.dma_semaphore, #tpu.memory_space<semaphore_mem>>
      tpu.enqueue_dma source(%315 : memref<1x256xf32, #tpu.memory_space<any>>) target(%316 : memref<1x256xf32, #tpu.memory_space<vmem>>) target_semaphore(%318 : memref<!tpu.dma_semaphore, #tpu.memory_space<semaphore_mem>>)
      %c23 = arith.constant 23 : index
      %319 = memref.load %arg1[%c23] : memref<32xi32, #tpu.memory_space<smem>>
      %c23_i32 = arith.constant 23 : i32
      %c0_i32_167 = arith.constant 0 : i32
      %320 = tpu.memref_slice %arg2[%319, %c0_i32_167] : memref<64x256xf32, #tpu.memory_space<any>> -> memref<1x256xf32, #tpu.memory_space<any>>
      %c23_i32_168 = arith.constant 23 : i32
      %c0_i32_169 = arith.constant 0 : i32
      %321 = tpu.memref_slice %arg20[%c23_i32_168, %c0_i32_169] : memref<32x256xf32, #tpu.memory_space<vmem>> -> memref<1x256xf32, #tpu.memory_space<vmem>>
      %322 = tpu.memref_slice %arg22[%c23_i32] : memref<32x!tpu.dma_semaphore, #tpu.memory_space<semaphore_mem>> -> memref<1x!tpu.dma_semaphore, #tpu.memory_space<semaphore_mem>>
      %323 = tpu.memref_squeeze %322 : memref<1x!tpu.dma_semaphore, #tpu.memory_space<semaphore_mem>> -> memref<!tpu.dma_semaphore, #tpu.memory_space<semaphore_mem>>
      tpu.enqueue_dma source(%320 : memref<1x256xf32, #tpu.memory_space<any>>) target(%321 : memref<1x256xf32, #tpu.memory_space<vmem>>) target_semaphore(%323 : memref<!tpu.dma_semaphore, #tpu.memory_space<semaphore_mem>>)
      %c24 = arith.constant 24 : index
      %324 = memref.load %arg1[%c24] : memref<32xi32, #tpu.memory_space<smem>>
      %c24_i32 = arith.constant 24 : i32
      %c0_i32_170 = arith.constant 0 : i32
      %325 = tpu.memref_slice %arg2[%324, %c0_i32_170] : memref<64x256xf32, #tpu.memory_space<any>> -> memref<1x256xf32, #tpu.memory_space<any>>
      %c24_i32_171 = arith.constant 24 : i32
      %c0_i32_172 = arith.constant 0 : i32
      %326 = tpu.memref_slice %arg20[%c24_i32_171, %c0_i32_172] : memref<32x256xf32, #tpu.memory_space<vmem>> -> memref<1x256xf32, #tpu.memory_space<vmem>>
      %327 = tpu.memref_slice %arg22[%c24_i32] : memref<32x!tpu.dma_semaphore, #tpu.memory_space<semaphore_mem>> -> memref<1x!tpu.dma_semaphore, #tpu.memory_space<semaphore_mem>>
      %328 = tpu.memref_squeeze %327 : memref<1x!tpu.dma_semaphore, #tpu.memory_space<semaphore_mem>> -> memref<!tpu.dma_semaphore, #tpu.memory_space<semaphore_mem>>
      tpu.enqueue_dma source(%325 : memref<1x256xf32, #tpu.memory_space<any>>) target(%326 : memref<1x256xf32, #tpu.memory_space<vmem>>) target_semaphore(%328 : memref<!tpu.dma_semaphore, #tpu.memory_space<semaphore_mem>>)
      %c25 = arith.constant 25 : index
      %329 = memref.load %arg1[%c25] : memref<32xi32, #tpu.memory_space<smem>>
      %c25_i32 = arith.constant 25 : i32
      %c0_i32_173 = arith.constant 0 : i32
      %330 = tpu.memref_slice %arg2[%329, %c0_i32_173] : memref<64x256xf32, #tpu.memory_space<any>> -> memref<1x256xf32, #tpu.memory_space<any>>
      %c25_i32_174 = arith.constant 25 : i32
      %c0_i32_175 = arith.constant 0 : i32
      %331 = tpu.memref_slice %arg20[%c25_i32_174, %c0_i32_175] : memref<32x256xf32, #tpu.memory_space<vmem>> -> memref<1x256xf32, #tpu.memory_space<vmem>>
      %332 = tpu.memref_slice %arg22[%c25_i32] : memref<32x!tpu.dma_semaphore, #tpu.memory_space<semaphore_mem>> -> memref<1x!tpu.dma_semaphore, #tpu.memory_space<semaphore_mem>>
      %333 = tpu.memref_squeeze %332 : memref<1x!tpu.dma_semaphore, #tpu.memory_space<semaphore_mem>> -> memref<!tpu.dma_semaphore, #tpu.memory_space<semaphore_mem>>
      tpu.enqueue_dma source(%330 : memref<1x256xf32, #tpu.memory_space<any>>) target(%331 : memref<1x256xf32, #tpu.memory_space<vmem>>) target_semaphore(%333 : memref<!tpu.dma_semaphore, #tpu.memory_space<semaphore_mem>>)
      %c26 = arith.constant 26 : index
      %334 = memref.load %arg1[%c26] : memref<32xi32, #tpu.memory_space<smem>>
      %c26_i32 = arith.constant 26 : i32
      %c0_i32_176 = arith.constant 0 : i32
      %335 = tpu.memref_slice %arg2[%334, %c0_i32_176] : memref<64x256xf32, #tpu.memory_space<any>> -> memref<1x256xf32, #tpu.memory_space<any>>
      %c26_i32_177 = arith.constant 26 : i32
      %c0_i32_178 = arith.constant 0 : i32
      %336 = tpu.memref_slice %arg20[%c26_i32_177, %c0_i32_178] : memref<32x256xf32, #tpu.memory_space<vmem>> -> memref<1x256xf32, #tpu.memory_space<vmem>>
      %337 = tpu.memref_slice %arg22[%c26_i32] : memref<32x!tpu.dma_semaphore, #tpu.memory_space<semaphore_mem>> -> memref<1x!tpu.dma_semaphore, #tpu.memory_space<semaphore_mem>>
      %338 = tpu.memref_squeeze %337 : memref<1x!tpu.dma_semaphore, #tpu.memory_space<semaphore_mem>> -> memref<!tpu.dma_semaphore, #tpu.memory_space<semaphore_mem>>
      tpu.enqueue_dma source(%335 : memref<1x256xf32, #tpu.memory_space<any>>) target(%336 : memref<1x256xf32, #tpu.memory_space<vmem>>) target_semaphore(%338 : memref<!tpu.dma_semaphore, #tpu.memory_space<semaphore_mem>>)
      %c27 = arith.constant 27 : index
      %339 = memref.load %arg1[%c27] : memref<32xi32, #tpu.memory_space<smem>>
      %c27_i32 = arith.constant 27 : i32
      %c0_i32_179 = arith.constant 0 : i32
      %340 = tpu.memref_slice %arg2[%339, %c0_i32_179] : memref<64x256xf32, #tpu.memory_space<any>> -> memref<1x256xf32, #tpu.memory_space<any>>
      %c27_i32_180 = arith.constant 27 : i32
      %c0_i32_181 = arith.constant 0 : i32
      %341 = tpu.memref_slice %arg20[%c27_i32_180, %c0_i32_181] : memref<32x256xf32, #tpu.memory_space<vmem>> -> memref<1x256xf32, #tpu.memory_space<vmem>>
      %342 = tpu.memref_slice %arg22[%c27_i32] : memref<32x!tpu.dma_semaphore, #tpu.memory_space<semaphore_mem>> -> memref<1x!tpu.dma_semaphore, #tpu.memory_space<semaphore_mem>>
      %343 = tpu.memref_squeeze %342 : memref<1x!tpu.dma_semaphore, #tpu.memory_space<semaphore_mem>> -> memref<!tpu.dma_semaphore, #tpu.memory_space<semaphore_mem>>
      tpu.enqueue_dma source(%340 : memref<1x256xf32, #tpu.memory_space<any>>) target(%341 : memref<1x256xf32, #tpu.memory_space<vmem>>) target_semaphore(%343 : memref<!tpu.dma_semaphore, #tpu.memory_space<semaphore_mem>>)
      %c28 = arith.constant 28 : index
      %344 = memref.load %arg1[%c28] : memref<32xi32, #tpu.memory_space<smem>>
      %c28_i32 = arith.constant 28 : i32
      %c0_i32_182 = arith.constant 0 : i32
      %345 = tpu.memref_slice %arg2[%344, %c0_i32_182] : memref<64x256xf32, #tpu.memory_space<any>> -> memref<1x256xf32, #tpu.memory_space<any>>
      %c28_i32_183 = arith.constant 28 : i32
      %c0_i32_184 = arith.constant 0 : i32
      %346 = tpu.memref_slice %arg20[%c28_i32_183, %c0_i32_184] : memref<32x256xf32, #tpu.memory_space<vmem>> -> memref<1x256xf32, #tpu.memory_space<vmem>>
      %347 = tpu.memref_slice %arg22[%c28_i32] : memref<32x!tpu.dma_semaphore, #tpu.memory_space<semaphore_mem>> -> memref<1x!tpu.dma_semaphore, #tpu.memory_space<semaphore_mem>>
      %348 = tpu.memref_squeeze %347 : memref<1x!tpu.dma_semaphore, #tpu.memory_space<semaphore_mem>> -> memref<!tpu.dma_semaphore, #tpu.memory_space<semaphore_mem>>
      tpu.enqueue_dma source(%345 : memref<1x256xf32, #tpu.memory_space<any>>) target(%346 : memref<1x256xf32, #tpu.memory_space<vmem>>) target_semaphore(%348 : memref<!tpu.dma_semaphore, #tpu.memory_space<semaphore_mem>>)
      %c29 = arith.constant 29 : index
      %349 = memref.load %arg1[%c29] : memref<32xi32, #tpu.memory_space<smem>>
      %c29_i32 = arith.constant 29 : i32
      %c0_i32_185 = arith.constant 0 : i32
      %350 = tpu.memref_slice %arg2[%349, %c0_i32_185] : memref<64x256xf32, #tpu.memory_space<any>> -> memref<1x256xf32, #tpu.memory_space<any>>
      %c29_i32_186 = arith.constant 29 : i32
      %c0_i32_187 = arith.constant 0 : i32
      %351 = tpu.memref_slice %arg20[%c29_i32_186, %c0_i32_187] : memref<32x256xf32, #tpu.memory_space<vmem>> -> memref<1x256xf32, #tpu.memory_space<vmem>>
      %352 = tpu.memref_slice %arg22[%c29_i32] : memref<32x!tpu.dma_semaphore, #tpu.memory_space<semaphore_mem>> -> memref<1x!tpu.dma_semaphore, #tpu.memory_space<semaphore_mem>>
      %353 = tpu.memref_squeeze %352 : memref<1x!tpu.dma_semaphore, #tpu.memory_space<semaphore_mem>> -> memref<!tpu.dma_semaphore, #tpu.memory_space<semaphore_mem>>
      tpu.enqueue_dma source(%350 : memref<1x256xf32, #tpu.memory_space<any>>) target(%351 : memref<1x256xf32, #tpu.memory_space<vmem>>) target_semaphore(%353 : memref<!tpu.dma_semaphore, #tpu.memory_space<semaphore_mem>>)
      %c30 = arith.constant 30 : index
      %354 = memref.load %arg1[%c30] : memref<32xi32, #tpu.memory_space<smem>>
      %c30_i32 = arith.constant 30 : i32
      %c0_i32_188 = arith.constant 0 : i32
      %355 = tpu.memref_slice %arg2[%354, %c0_i32_188] : memref<64x256xf32, #tpu.memory_space<any>> -> memref<1x256xf32, #tpu.memory_space<any>>
      %c30_i32_189 = arith.constant 30 : i32
      %c0_i32_190 = arith.constant 0 : i32
      %356 = tpu.memref_slice %arg20[%c30_i32_189, %c0_i32_190] : memref<32x256xf32, #tpu.memory_space<vmem>> -> memref<1x256xf32, #tpu.memory_space<vmem>>
      %357 = tpu.memref_slice %arg22[%c30_i32] : memref<32x!tpu.dma_semaphore, #tpu.memory_space<semaphore_mem>> -> memref<1x!tpu.dma_semaphore, #tpu.memory_space<semaphore_mem>>
      %358 = tpu.memref_squeeze %357 : memref<1x!tpu.dma_semaphore, #tpu.memory_space<semaphore_mem>> -> memref<!tpu.dma_semaphore, #tpu.memory_space<semaphore_mem>>
      tpu.enqueue_dma source(%355 : memref<1x256xf32, #tpu.memory_space<any>>) target(%356 : memref<1x256xf32, #tpu.memory_space<vmem>>) target_semaphore(%358 : memref<!tpu.dma_semaphore, #tpu.memory_space<semaphore_mem>>)
      %c31 = arith.constant 31 : index
      %359 = memref.load %arg1[%c31] : memref<32xi32, #tpu.memory_space<smem>>
      %c31_i32 = arith.constant 31 : i32
      %c0_i32_191 = arith.constant 0 : i32
      %360 = tpu.memref_slice %arg2[%359, %c0_i32_191] : memref<64x256xf32, #tpu.memory_space<any>> -> memref<1x256xf32, #tpu.memory_space<any>>
      %c31_i32_192 = arith.constant 31 : i32
      %c0_i32_193 = arith.constant 0 : i32
      %361 = tpu.memref_slice %arg20[%c31_i32_192, %c0_i32_193] : memref<32x256xf32, #tpu.memory_space<vmem>> -> memref<1x256xf32, #tpu.memory_space<vmem>>
      %362 = tpu.memref_slice %arg22[%c31_i32] : memref<32x!tpu.dma_semaphore, #tpu.memory_space<semaphore_mem>> -> memref<1x!tpu.dma_semaphore, #tpu.memory_space<semaphore_mem>>
      %363 = tpu.memref_squeeze %362 : memref<1x!tpu.dma_semaphore, #tpu.memory_space<semaphore_mem>> -> memref<!tpu.dma_semaphore, #tpu.memory_space<semaphore_mem>>
      tpu.enqueue_dma source(%360 : memref<1x256xf32, #tpu.memory_space<any>>) target(%361 : memref<1x256xf32, #tpu.memory_space<vmem>>) target_semaphore(%363 : memref<!tpu.dma_semaphore, #tpu.memory_space<semaphore_mem>>)
      %c0_i32_194 = arith.constant 0 : i32
      %c0_i32_195 = arith.constant 0 : i32
      %364 = tpu.memref_slice %arg2[%204, %c0_i32_195] : memref<64x256xf32, #tpu.memory_space<any>> -> memref<1x256xf32, #tpu.memory_space<any>>
      %c0_i32_196 = arith.constant 0 : i32
      %c0_i32_197 = arith.constant 0 : i32
      %365 = tpu.memref_slice %arg20[%c0_i32_196, %c0_i32_197] : memref<32x256xf32, #tpu.memory_space<vmem>> -> memref<1x256xf32, #tpu.memory_space<vmem>>
      %366 = tpu.memref_slice %arg22[%c0_i32_194] : memref<32x!tpu.dma_semaphore, #tpu.memory_space<semaphore_mem>> -> memref<1x!tpu.dma_semaphore, #tpu.memory_space<semaphore_mem>>
      %367 = tpu.memref_squeeze %366 : memref<1x!tpu.dma_semaphore, #tpu.memory_space<semaphore_mem>> -> memref<!tpu.dma_semaphore, #tpu.memory_space<semaphore_mem>>
      tpu.wait_dma2 semaphore(%367 : memref<!tpu.dma_semaphore, #tpu.memory_space<semaphore_mem>>) src(%364 : memref<1x256xf32, #tpu.memory_space<any>>) dst(%365 : memref<1x256xf32, #tpu.memory_space<vmem>>)
      %c1_i32_198 = arith.constant 1 : i32
      %c0_i32_199 = arith.constant 0 : i32
      %368 = tpu.memref_slice %arg2[%209, %c0_i32_199] : memref<64x256xf32, #tpu.memory_space<any>> -> memref<1x256xf32, #tpu.memory_space<any>>
      %c1_i32_200 = arith.constant 1 : i32
      %c0_i32_201 = arith.constant 0 : i32
      %369 = tpu.memref_slice %arg20[%c1_i32_200, %c0_i32_201] : memref<32x256xf32, #tpu.memory_space<vmem>> -> memref<1x256xf32, #tpu.memory_space<vmem>>
      %370 = tpu.memref_slice %arg22[%c1_i32_198] : memref<32x!tpu.dma_semaphore, #tpu.memory_space<semaphore_mem>> -> memref<1x!tpu.dma_semaphore, #tpu.memory_space<semaphore_mem>>
      %371 = tpu.memref_squeeze %370 : memref<1x!tpu.dma_semaphore, #tpu.memory_space<semaphore_mem>> -> memref<!tpu.dma_semaphore, #tpu.memory_space<semaphore_mem>>
      tpu.wait_dma2 semaphore(%371 : memref<!tpu.dma_semaphore, #tpu.memory_space<semaphore_mem>>) src(%368 : memref<1x256xf32, #tpu.memory_space<any>>) dst(%369 : memref<1x256xf32, #tpu.memory_space<vmem>>)
      %c2_i32_202 = arith.constant 2 : i32
      %c0_i32_203 = arith.constant 0 : i32
      %372 = tpu.memref_slice %arg2[%214, %c0_i32_203] : memref<64x256xf32, #tpu.memory_space<any>> -> memref<1x256xf32, #tpu.memory_space<any>>
      %c2_i32_204 = arith.constant 2 : i32
      %c0_i32_205 = arith.constant 0 : i32
      %373 = tpu.memref_slice %arg20[%c2_i32_204, %c0_i32_205] : memref<32x256xf32, #tpu.memory_space<vmem>> -> memref<1x256xf32, #tpu.memory_space<vmem>>
      %374 = tpu.memref_slice %arg22[%c2_i32_202] : memref<32x!tpu.dma_semaphore, #tpu.memory_space<semaphore_mem>> -> memref<1x!tpu.dma_semaphore, #tpu.memory_space<semaphore_mem>>
      %375 = tpu.memref_squeeze %374 : memref<1x!tpu.dma_semaphore, #tpu.memory_space<semaphore_mem>> -> memref<!tpu.dma_semaphore, #tpu.memory_space<semaphore_mem>>
      tpu.wait_dma2 semaphore(%375 : memref<!tpu.dma_semaphore, #tpu.memory_space<semaphore_mem>>) src(%372 : memref<1x256xf32, #tpu.memory_space<any>>) dst(%373 : memref<1x256xf32, #tpu.memory_space<vmem>>)
      %c3_i32_206 = arith.constant 3 : i32
      %c0_i32_207 = arith.constant 0 : i32
      %376 = tpu.memref_slice %arg2[%219, %c0_i32_207] : memref<64x256xf32, #tpu.memory_space<any>> -> memref<1x256xf32, #tpu.memory_space<any>>
      %c3_i32_208 = arith.constant 3 : i32
      %c0_i32_209 = arith.constant 0 : i32
      %377 = tpu.memref_slice %arg20[%c3_i32_208, %c0_i32_209] : memref<32x256xf32, #tpu.memory_space<vmem>> -> memref<1x256xf32, #tpu.memory_space<vmem>>
      %378 = tpu.memref_slice %arg22[%c3_i32_206] : memref<32x!tpu.dma_semaphore, #tpu.memory_space<semaphore_mem>> -> memref<1x!tpu.dma_semaphore, #tpu.memory_space<semaphore_mem>>
      %379 = tpu.memref_squeeze %378 : memref<1x!tpu.dma_semaphore, #tpu.memory_space<semaphore_mem>> -> memref<!tpu.dma_semaphore, #tpu.memory_space<semaphore_mem>>
      tpu.wait_dma2 semaphore(%379 : memref<!tpu.dma_semaphore, #tpu.memory_space<semaphore_mem>>) src(%376 : memref<1x256xf32, #tpu.memory_space<any>>) dst(%377 : memref<1x256xf32, #tpu.memory_space<vmem>>)
      %c4_i32_210 = arith.constant 4 : i32
      %c0_i32_211 = arith.constant 0 : i32
      %380 = tpu.memref_slice %arg2[%224, %c0_i32_211] : memref<64x256xf32, #tpu.memory_space<any>> -> memref<1x256xf32, #tpu.memory_space<any>>
      %c4_i32_212 = arith.constant 4 : i32
      %c0_i32_213 = arith.constant 0 : i32
      %381 = tpu.memref_slice %arg20[%c4_i32_212, %c0_i32_213] : memref<32x256xf32, #tpu.memory_space<vmem>> -> memref<1x256xf32, #tpu.memory_space<vmem>>
      %382 = tpu.memref_slice %arg22[%c4_i32_210] : memref<32x!tpu.dma_semaphore, #tpu.memory_space<semaphore_mem>> -> memref<1x!tpu.dma_semaphore, #tpu.memory_space<semaphore_mem>>
      %383 = tpu.memref_squeeze %382 : memref<1x!tpu.dma_semaphore, #tpu.memory_space<semaphore_mem>> -> memref<!tpu.dma_semaphore, #tpu.memory_space<semaphore_mem>>
      tpu.wait_dma2 semaphore(%383 : memref<!tpu.dma_semaphore, #tpu.memory_space<semaphore_mem>>) src(%380 : memref<1x256xf32, #tpu.memory_space<any>>) dst(%381 : memref<1x256xf32, #tpu.memory_space<vmem>>)
      %c5_i32_214 = arith.constant 5 : i32
      %c0_i32_215 = arith.constant 0 : i32
      %384 = tpu.memref_slice %arg2[%229, %c0_i32_215] : memref<64x256xf32, #tpu.memory_space<any>> -> memref<1x256xf32, #tpu.memory_space<any>>
      %c5_i32_216 = arith.constant 5 : i32
      %c0_i32_217 = arith.constant 0 : i32
      %385 = tpu.memref_slice %arg20[%c5_i32_216, %c0_i32_217] : memref<32x256xf32, #tpu.memory_space<vmem>> -> memref<1x256xf32, #tpu.memory_space<vmem>>
      %386 = tpu.memref_slice %arg22[%c5_i32_214] : memref<32x!tpu.dma_semaphore, #tpu.memory_space<semaphore_mem>> -> memref<1x!tpu.dma_semaphore, #tpu.memory_space<semaphore_mem>>
      %387 = tpu.memref_squeeze %386 : memref<1x!tpu.dma_semaphore, #tpu.memory_space<semaphore_mem>> -> memref<!tpu.dma_semaphore, #tpu.memory_space<semaphore_mem>>
      tpu.wait_dma2 semaphore(%387 : memref<!tpu.dma_semaphore, #tpu.memory_space<semaphore_mem>>) src(%384 : memref<1x256xf32, #tpu.memory_space<any>>) dst(%385 : memref<1x256xf32, #tpu.memory_space<vmem>>)
      %c6_i32_218 = arith.constant 6 : i32
      %c0_i32_219 = arith.constant 0 : i32
      %388 = tpu.memref_slice %arg2[%234, %c0_i32_219] : memref<64x256xf32, #tpu.memory_space<any>> -> memref<1x256xf32, #tpu.memory_space<any>>
      %c6_i32_220 = arith.constant 6 : i32
      %c0_i32_221 = arith.constant 0 : i32
      %389 = tpu.memref_slice %arg20[%c6_i32_220, %c0_i32_221] : memref<32x256xf32, #tpu.memory_space<vmem>> -> memref<1x256xf32, #tpu.memory_space<vmem>>
      %390 = tpu.memref_slice %arg22[%c6_i32_218] : memref<32x!tpu.dma_semaphore, #tpu.memory_space<semaphore_mem>> -> memref<1x!tpu.dma_semaphore, #tpu.memory_space<semaphore_mem>>
      %391 = tpu.memref_squeeze %390 : memref<1x!tpu.dma_semaphore, #tpu.memory_space<semaphore_mem>> -> memref<!tpu.dma_semaphore, #tpu.memory_space<semaphore_mem>>
      tpu.wait_dma2 semaphore(%391 : memref<!tpu.dma_semaphore, #tpu.memory_space<semaphore_mem>>) src(%388 : memref<1x256xf32, #tpu.memory_space<any>>) dst(%389 : memref<1x256xf32, #tpu.memory_space<vmem>>)
      %c7_i32_222 = arith.constant 7 : i32
      %c0_i32_223 = arith.constant 0 : i32
      %392 = tpu.memref_slice %arg2[%239, %c0_i32_223] : memref<64x256xf32, #tpu.memory_space<any>> -> memref<1x256xf32, #tpu.memory_space<any>>
      %c7_i32_224 = arith.constant 7 : i32
      %c0_i32_225 = arith.constant 0 : i32
      %393 = tpu.memref_slice %arg20[%c7_i32_224, %c0_i32_225] : memref<32x256xf32, #tpu.memory_space<vmem>> -> memref<1x256xf32, #tpu.memory_space<vmem>>
      %394 = tpu.memref_slice %arg22[%c7_i32_222] : memref<32x!tpu.dma_semaphore, #tpu.memory_space<semaphore_mem>> -> memref<1x!tpu.dma_semaphore, #tpu.memory_space<semaphore_mem>>
      %395 = tpu.memref_squeeze %394 : memref<1x!tpu.dma_semaphore, #tpu.memory_space<semaphore_mem>> -> memref<!tpu.dma_semaphore, #tpu.memory_space<semaphore_mem>>
      tpu.wait_dma2 semaphore(%395 : memref<!tpu.dma_semaphore, #tpu.memory_space<semaphore_mem>>) src(%392 : memref<1x256xf32, #tpu.memory_space<any>>) dst(%393 : memref<1x256xf32, #tpu.memory_space<vmem>>)
      %c8_i32_226 = arith.constant 8 : i32
      %c0_i32_227 = arith.constant 0 : i32
      %396 = tpu.memref_slice %arg2[%244, %c0_i32_227] : memref<64x256xf32, #tpu.memory_space<any>> -> memref<1x256xf32, #tpu.memory_space<any>>
      %c8_i32_228 = arith.constant 8 : i32
      %c0_i32_229 = arith.constant 0 : i32
      %397 = tpu.memref_slice %arg20[%c8_i32_228, %c0_i32_229] : memref<32x256xf32, #tpu.memory_space<vmem>> -> memref<1x256xf32, #tpu.memory_space<vmem>>
      %398 = tpu.memref_slice %arg22[%c8_i32_226] : memref<32x!tpu.dma_semaphore, #tpu.memory_space<semaphore_mem>> -> memref<1x!tpu.dma_semaphore, #tpu.memory_space<semaphore_mem>>
      %399 = tpu.memref_squeeze %398 : memref<1x!tpu.dma_semaphore, #tpu.memory_space<semaphore_mem>> -> memref<!tpu.dma_semaphore, #tpu.memory_space<semaphore_mem>>
      tpu.wait_dma2 semaphore(%399 : memref<!tpu.dma_semaphore, #tpu.memory_space<semaphore_mem>>) src(%396 : memref<1x256xf32, #tpu.memory_space<any>>) dst(%397 : memref<1x256xf32, #tpu.memory_space<vmem>>)
      %c9_i32_230 = arith.constant 9 : i32
      %c0_i32_231 = arith.constant 0 : i32
      %400 = tpu.memref_slice %arg2[%249, %c0_i32_231] : memref<64x256xf32, #tpu.memory_space<any>> -> memref<1x256xf32, #tpu.memory_space<any>>
      %c9_i32_232 = arith.constant 9 : i32
      %c0_i32_233 = arith.constant 0 : i32
      %401 = tpu.memref_slice %arg20[%c9_i32_232, %c0_i32_233] : memref<32x256xf32, #tpu.memory_space<vmem>> -> memref<1x256xf32, #tpu.memory_space<vmem>>
      %402 = tpu.memref_slice %arg22[%c9_i32_230] : memref<32x!tpu.dma_semaphore, #tpu.memory_space<semaphore_mem>> -> memref<1x!tpu.dma_semaphore, #tpu.memory_space<semaphore_mem>>
      %403 = tpu.memref_squeeze %402 : memref<1x!tpu.dma_semaphore, #tpu.memory_space<semaphore_mem>> -> memref<!tpu.dma_semaphore, #tpu.memory_space<semaphore_mem>>
      tpu.wait_dma2 semaphore(%403 : memref<!tpu.dma_semaphore, #tpu.memory_space<semaphore_mem>>) src(%400 : memref<1x256xf32, #tpu.memory_space<any>>) dst(%401 : memref<1x256xf32, #tpu.memory_space<vmem>>)
      %c10_i32_234 = arith.constant 10 : i32
      %c0_i32_235 = arith.constant 0 : i32
      %404 = tpu.memref_slice %arg2[%254, %c0_i32_235] : memref<64x256xf32, #tpu.memory_space<any>> -> memref<1x256xf32, #tpu.memory_space<any>>
      %c10_i32_236 = arith.constant 10 : i32
      %c0_i32_237 = arith.constant 0 : i32
      %405 = tpu.memref_slice %arg20[%c10_i32_236, %c0_i32_237] : memref<32x256xf32, #tpu.memory_space<vmem>> -> memref<1x256xf32, #tpu.memory_space<vmem>>
      %406 = tpu.memref_slice %arg22[%c10_i32_234] : memref<32x!tpu.dma_semaphore, #tpu.memory_space<semaphore_mem>> -> memref<1x!tpu.dma_semaphore, #tpu.memory_space<semaphore_mem>>
      %407 = tpu.memref_squeeze %406 : memref<1x!tpu.dma_semaphore, #tpu.memory_space<semaphore_mem>> -> memref<!tpu.dma_semaphore, #tpu.memory_space<semaphore_mem>>
      tpu.wait_dma2 semaphore(%407 : memref<!tpu.dma_semaphore, #tpu.memory_space<semaphore_mem>>) src(%404 : memref<1x256xf32, #tpu.memory_space<any>>) dst(%405 : memref<1x256xf32, #tpu.memory_space<vmem>>)
      %c11_i32_238 = arith.constant 11 : i32
      %c0_i32_239 = arith.constant 0 : i32
      %408 = tpu.memref_slice %arg2[%259, %c0_i32_239] : memref<64x256xf32, #tpu.memory_space<any>> -> memref<1x256xf32, #tpu.memory_space<any>>
      %c11_i32_240 = arith.constant 11 : i32
      %c0_i32_241 = arith.constant 0 : i32
      %409 = tpu.memref_slice %arg20[%c11_i32_240, %c0_i32_241] : memref<32x256xf32, #tpu.memory_space<vmem>> -> memref<1x256xf32, #tpu.memory_space<vmem>>
      %410 = tpu.memref_slice %arg22[%c11_i32_238] : memref<32x!tpu.dma_semaphore, #tpu.memory_space<semaphore_mem>> -> memref<1x!tpu.dma_semaphore, #tpu.memory_space<semaphore_mem>>
      %411 = tpu.memref_squeeze %410 : memref<1x!tpu.dma_semaphore, #tpu.memory_space<semaphore_mem>> -> memref<!tpu.dma_semaphore, #tpu.memory_space<semaphore_mem>>
      tpu.wait_dma2 semaphore(%411 : memref<!tpu.dma_semaphore, #tpu.memory_space<semaphore_mem>>) src(%408 : memref<1x256xf32, #tpu.memory_space<any>>) dst(%409 : memref<1x256xf32, #tpu.memory_space<vmem>>)
      %c12_i32_242 = arith.constant 12 : i32
      %c0_i32_243 = arith.constant 0 : i32
      %412 = tpu.memref_slice %arg2[%264, %c0_i32_243] : memref<64x256xf32, #tpu.memory_space<any>> -> memref<1x256xf32, #tpu.memory_space<any>>
      %c12_i32_244 = arith.constant 12 : i32
      %c0_i32_245 = arith.constant 0 : i32
      %413 = tpu.memref_slice %arg20[%c12_i32_244, %c0_i32_245] : memref<32x256xf32, #tpu.memory_space<vmem>> -> memref<1x256xf32, #tpu.memory_space<vmem>>
      %414 = tpu.memref_slice %arg22[%c12_i32_242] : memref<32x!tpu.dma_semaphore, #tpu.memory_space<semaphore_mem>> -> memref<1x!tpu.dma_semaphore, #tpu.memory_space<semaphore_mem>>
      %415 = tpu.memref_squeeze %414 : memref<1x!tpu.dma_semaphore, #tpu.memory_space<semaphore_mem>> -> memref<!tpu.dma_semaphore, #tpu.memory_space<semaphore_mem>>
      tpu.wait_dma2 semaphore(%415 : memref<!tpu.dma_semaphore, #tpu.memory_space<semaphore_mem>>) src(%412 : memref<1x256xf32, #tpu.memory_space<any>>) dst(%413 : memref<1x256xf32, #tpu.memory_space<vmem>>)
      %c13_i32_246 = arith.constant 13 : i32
      %c0_i32_247 = arith.constant 0 : i32
      %416 = tpu.memref_slice %arg2[%269, %c0_i32_247] : memref<64x256xf32, #tpu.memory_space<any>> -> memref<1x256xf32, #tpu.memory_space<any>>
      %c13_i32_248 = arith.constant 13 : i32
      %c0_i32_249 = arith.constant 0 : i32
      %417 = tpu.memref_slice %arg20[%c13_i32_248, %c0_i32_249] : memref<32x256xf32, #tpu.memory_space<vmem>> -> memref<1x256xf32, #tpu.memory_space<vmem>>
      %418 = tpu.memref_slice %arg22[%c13_i32_246] : memref<32x!tpu.dma_semaphore, #tpu.memory_space<semaphore_mem>> -> memref<1x!tpu.dma_semaphore, #tpu.memory_space<semaphore_mem>>
      %419 = tpu.memref_squeeze %418 : memref<1x!tpu.dma_semaphore, #tpu.memory_space<semaphore_mem>> -> memref<!tpu.dma_semaphore, #tpu.memory_space<semaphore_mem>>
      tpu.wait_dma2 semaphore(%419 : memref<!tpu.dma_semaphore, #tpu.memory_space<semaphore_mem>>) src(%416 : memref<1x256xf32, #tpu.memory_space<any>>) dst(%417 : memref<1x256xf32, #tpu.memory_space<vmem>>)
      %c14_i32_250 = arith.constant 14 : i32
      %c0_i32_251 = arith.constant 0 : i32
      %420 = tpu.memref_slice %arg2[%274, %c0_i32_251] : memref<64x256xf32, #tpu.memory_space<any>> -> memref<1x256xf32, #tpu.memory_space<any>>
      %c14_i32_252 = arith.constant 14 : i32
      %c0_i32_253 = arith.constant 0 : i32
      %421 = tpu.memref_slice %arg20[%c14_i32_252, %c0_i32_253] : memref<32x256xf32, #tpu.memory_space<vmem>> -> memref<1x256xf32, #tpu.memory_space<vmem>>
      %422 = tpu.memref_slice %arg22[%c14_i32_250] : memref<32x!tpu.dma_semaphore, #tpu.memory_space<semaphore_mem>> -> memref<1x!tpu.dma_semaphore, #tpu.memory_space<semaphore_mem>>
      %423 = tpu.memref_squeeze %422 : memref<1x!tpu.dma_semaphore, #tpu.memory_space<semaphore_mem>> -> memref<!tpu.dma_semaphore, #tpu.memory_space<semaphore_mem>>
      tpu.wait_dma2 semaphore(%423 : memref<!tpu.dma_semaphore, #tpu.memory_space<semaphore_mem>>) src(%420 : memref<1x256xf32, #tpu.memory_space<any>>) dst(%421 : memref<1x256xf32, #tpu.memory_space<vmem>>)
      %c15_i32_254 = arith.constant 15 : i32
      %c0_i32_255 = arith.constant 0 : i32
      %424 = tpu.memref_slice %arg2[%279, %c0_i32_255] : memref<64x256xf32, #tpu.memory_space<any>> -> memref<1x256xf32, #tpu.memory_space<any>>
      %c15_i32_256 = arith.constant 15 : i32
      %c0_i32_257 = arith.constant 0 : i32
      %425 = tpu.memref_slice %arg20[%c15_i32_256, %c0_i32_257] : memref<32x256xf32, #tpu.memory_space<vmem>> -> memref<1x256xf32, #tpu.memory_space<vmem>>
      %426 = tpu.memref_slice %arg22[%c15_i32_254] : memref<32x!tpu.dma_semaphore, #tpu.memory_space<semaphore_mem>> -> memref<1x!tpu.dma_semaphore, #tpu.memory_space<semaphore_mem>>
      %427 = tpu.memref_squeeze %426 : memref<1x!tpu.dma_semaphore, #tpu.memory_space<semaphore_mem>> -> memref<!tpu.dma_semaphore, #tpu.memory_space<semaphore_mem>>
      tpu.wait_dma2 semaphore(%427 : memref<!tpu.dma_semaphore, #tpu.memory_space<semaphore_mem>>) src(%424 : memref<1x256xf32, #tpu.memory_space<any>>) dst(%425 : memref<1x256xf32, #tpu.memory_space<vmem>>)
      %c16_i32_258 = arith.constant 16 : i32
      %c0_i32_259 = arith.constant 0 : i32
      %428 = tpu.memref_slice %arg2[%284, %c0_i32_259] : memref<64x256xf32, #tpu.memory_space<any>> -> memref<1x256xf32, #tpu.memory_space<any>>
      %c16_i32_260 = arith.constant 16 : i32
      %c0_i32_261 = arith.constant 0 : i32
      %429 = tpu.memref_slice %arg20[%c16_i32_260, %c0_i32_261] : memref<32x256xf32, #tpu.memory_space<vmem>> -> memref<1x256xf32, #tpu.memory_space<vmem>>
      %430 = tpu.memref_slice %arg22[%c16_i32_258] : memref<32x!tpu.dma_semaphore, #tpu.memory_space<semaphore_mem>> -> memref<1x!tpu.dma_semaphore, #tpu.memory_space<semaphore_mem>>
      %431 = tpu.memref_squeeze %430 : memref<1x!tpu.dma_semaphore, #tpu.memory_space<semaphore_mem>> -> memref<!tpu.dma_semaphore, #tpu.memory_space<semaphore_mem>>
      tpu.wait_dma2 semaphore(%431 : memref<!tpu.dma_semaphore, #tpu.memory_space<semaphore_mem>>) src(%428 : memref<1x256xf32, #tpu.memory_space<any>>) dst(%429 : memref<1x256xf32, #tpu.memory_space<vmem>>)
      %c17_i32_262 = arith.constant 17 : i32
      %c0_i32_263 = arith.constant 0 : i32
      %432 = tpu.memref_slice %arg2[%289, %c0_i32_263] : memref<64x256xf32, #tpu.memory_space<any>> -> memref<1x256xf32, #tpu.memory_space<any>>
      %c17_i32_264 = arith.constant 17 : i32
      %c0_i32_265 = arith.constant 0 : i32
      %433 = tpu.memref_slice %arg20[%c17_i32_264, %c0_i32_265] : memref<32x256xf32, #tpu.memory_space<vmem>> -> memref<1x256xf32, #tpu.memory_space<vmem>>
      %434 = tpu.memref_slice %arg22[%c17_i32_262] : memref<32x!tpu.dma_semaphore, #tpu.memory_space<semaphore_mem>> -> memref<1x!tpu.dma_semaphore, #tpu.memory_space<semaphore_mem>>
      %435 = tpu.memref_squeeze %434 : memref<1x!tpu.dma_semaphore, #tpu.memory_space<semaphore_mem>> -> memref<!tpu.dma_semaphore, #tpu.memory_space<semaphore_mem>>
      tpu.wait_dma2 semaphore(%435 : memref<!tpu.dma_semaphore, #tpu.memory_space<semaphore_mem>>) src(%432 : memref<1x256xf32, #tpu.memory_space<any>>) dst(%433 : memref<1x256xf32, #tpu.memory_space<vmem>>)
      %c18_i32_266 = arith.constant 18 : i32
      %c0_i32_267 = arith.constant 0 : i32
      %436 = tpu.memref_slice %arg2[%294, %c0_i32_267] : memref<64x256xf32, #tpu.memory_space<any>> -> memref<1x256xf32, #tpu.memory_space<any>>
      %c18_i32_268 = arith.constant 18 : i32
      %c0_i32_269 = arith.constant 0 : i32
      %437 = tpu.memref_slice %arg20[%c18_i32_268, %c0_i32_269] : memref<32x256xf32, #tpu.memory_space<vmem>> -> memref<1x256xf32, #tpu.memory_space<vmem>>
      %438 = tpu.memref_slice %arg22[%c18_i32_266] : memref<32x!tpu.dma_semaphore, #tpu.memory_space<semaphore_mem>> -> memref<1x!tpu.dma_semaphore, #tpu.memory_space<semaphore_mem>>
      %439 = tpu.memref_squeeze %438 : memref<1x!tpu.dma_semaphore, #tpu.memory_space<semaphore_mem>> -> memref<!tpu.dma_semaphore, #tpu.memory_space<semaphore_mem>>
      tpu.wait_dma2 semaphore(%439 : memref<!tpu.dma_semaphore, #tpu.memory_space<semaphore_mem>>) src(%436 : memref<1x256xf32, #tpu.memory_space<any>>) dst(%437 : memref<1x256xf32, #tpu.memory_space<vmem>>)
      %c19_i32_270 = arith.constant 19 : i32
      %c0_i32_271 = arith.constant 0 : i32
      %440 = tpu.memref_slice %arg2[%299, %c0_i32_271] : memref<64x256xf32, #tpu.memory_space<any>> -> memref<1x256xf32, #tpu.memory_space<any>>
      %c19_i32_272 = arith.constant 19 : i32
      %c0_i32_273 = arith.constant 0 : i32
      %441 = tpu.memref_slice %arg20[%c19_i32_272, %c0_i32_273] : memref<32x256xf32, #tpu.memory_space<vmem>> -> memref<1x256xf32, #tpu.memory_space<vmem>>
      %442 = tpu.memref_slice %arg22[%c19_i32_270] : memref<32x!tpu.dma_semaphore, #tpu.memory_space<semaphore_mem>> -> memref<1x!tpu.dma_semaphore, #tpu.memory_space<semaphore_mem>>
      %443 = tpu.memref_squeeze %442 : memref<1x!tpu.dma_semaphore, #tpu.memory_space<semaphore_mem>> -> memref<!tpu.dma_semaphore, #tpu.memory_space<semaphore_mem>>
      tpu.wait_dma2 semaphore(%443 : memref<!tpu.dma_semaphore, #tpu.memory_space<semaphore_mem>>) src(%440 : memref<1x256xf32, #tpu.memory_space<any>>) dst(%441 : memref<1x256xf32, #tpu.memory_space<vmem>>)
      %c20_i32_274 = arith.constant 20 : i32
      %c0_i32_275 = arith.constant 0 : i32
      %444 = tpu.memref_slice %arg2[%304, %c0_i32_275] : memref<64x256xf32, #tpu.memory_space<any>> -> memref<1x256xf32, #tpu.memory_space<any>>
      %c20_i32_276 = arith.constant 20 : i32
      %c0_i32_277 = arith.constant 0 : i32
      %445 = tpu.memref_slice %arg20[%c20_i32_276, %c0_i32_277] : memref<32x256xf32, #tpu.memory_space<vmem>> -> memref<1x256xf32, #tpu.memory_space<vmem>>
      %446 = tpu.memref_slice %arg22[%c20_i32_274] : memref<32x!tpu.dma_semaphore, #tpu.memory_space<semaphore_mem>> -> memref<1x!tpu.dma_semaphore, #tpu.memory_space<semaphore_mem>>
      %447 = tpu.memref_squeeze %446 : memref<1x!tpu.dma_semaphore, #tpu.memory_space<semaphore_mem>> -> memref<!tpu.dma_semaphore, #tpu.memory_space<semaphore_mem>>
      tpu.wait_dma2 semaphore(%447 : memref<!tpu.dma_semaphore, #tpu.memory_space<semaphore_mem>>) src(%444 : memref<1x256xf32, #tpu.memory_space<any>>) dst(%445 : memref<1x256xf32, #tpu.memory_space<vmem>>)
      %c21_i32_278 = arith.constant 21 : i32
      %c0_i32_279 = arith.constant 0 : i32
      %448 = tpu.memref_slice %arg2[%309, %c0_i32_279] : memref<64x256xf32, #tpu.memory_space<any>> -> memref<1x256xf32, #tpu.memory_space<any>>
      %c21_i32_280 = arith.constant 21 : i32
      %c0_i32_281 = arith.constant 0 : i32
      %449 = tpu.memref_slice %arg20[%c21_i32_280, %c0_i32_281] : memref<32x256xf32, #tpu.memory_space<vmem>> -> memref<1x256xf32, #tpu.memory_space<vmem>>
      %450 = tpu.memref_slice %arg22[%c21_i32_278] : memref<32x!tpu.dma_semaphore, #tpu.memory_space<semaphore_mem>> -> memref<1x!tpu.dma_semaphore, #tpu.memory_space<semaphore_mem>>
      %451 = tpu.memref_squeeze %450 : memref<1x!tpu.dma_semaphore, #tpu.memory_space<semaphore_mem>> -> memref<!tpu.dma_semaphore, #tpu.memory_space<semaphore_mem>>
      tpu.wait_dma2 semaphore(%451 : memref<!tpu.dma_semaphore, #tpu.memory_space<semaphore_mem>>) src(%448 : memref<1x256xf32, #tpu.memory_space<any>>) dst(%449 : memref<1x256xf32, #tpu.memory_space<vmem>>)
      %c22_i32_282 = arith.constant 22 : i32
      %c0_i32_283 = arith.constant 0 : i32
      %452 = tpu.memref_slice %arg2[%314, %c0_i32_283] : memref<64x256xf32, #tpu.memory_space<any>> -> memref<1x256xf32, #tpu.memory_space<any>>
      %c22_i32_284 = arith.constant 22 : i32
      %c0_i32_285 = arith.constant 0 : i32
      %453 = tpu.memref_slice %arg20[%c22_i32_284, %c0_i32_285] : memref<32x256xf32, #tpu.memory_space<vmem>> -> memref<1x256xf32, #tpu.memory_space<vmem>>
      %454 = tpu.memref_slice %arg22[%c22_i32_282] : memref<32x!tpu.dma_semaphore, #tpu.memory_space<semaphore_mem>> -> memref<1x!tpu.dma_semaphore, #tpu.memory_space<semaphore_mem>>
      %455 = tpu.memref_squeeze %454 : memref<1x!tpu.dma_semaphore, #tpu.memory_space<semaphore_mem>> -> memref<!tpu.dma_semaphore, #tpu.memory_space<semaphore_mem>>
      tpu.wait_dma2 semaphore(%455 : memref<!tpu.dma_semaphore, #tpu.memory_space<semaphore_mem>>) src(%452 : memref<1x256xf32, #tpu.memory_space<any>>) dst(%453 : memref<1x256xf32, #tpu.memory_space<vmem>>)
      %c23_i32_286 = arith.constant 23 : i32
      %c0_i32_287 = arith.constant 0 : i32
      %456 = tpu.memref_slice %arg2[%319, %c0_i32_287] : memref<64x256xf32, #tpu.memory_space<any>> -> memref<1x256xf32, #tpu.memory_space<any>>
      %c23_i32_288 = arith.constant 23 : i32
      %c0_i32_289 = arith.constant 0 : i32
      %457 = tpu.memref_slice %arg20[%c23_i32_288, %c0_i32_289] : memref<32x256xf32, #tpu.memory_space<vmem>> -> memref<1x256xf32, #tpu.memory_space<vmem>>
      %458 = tpu.memref_slice %arg22[%c23_i32_286] : memref<32x!tpu.dma_semaphore, #tpu.memory_space<semaphore_mem>> -> memref<1x!tpu.dma_semaphore, #tpu.memory_space<semaphore_mem>>
      %459 = tpu.memref_squeeze %458 : memref<1x!tpu.dma_semaphore, #tpu.memory_space<semaphore_mem>> -> memref<!tpu.dma_semaphore, #tpu.memory_space<semaphore_mem>>
      tpu.wait_dma2 semaphore(%459 : memref<!tpu.dma_semaphore, #tpu.memory_space<semaphore_mem>>) src(%456 : memref<1x256xf32, #tpu.memory_space<any>>) dst(%457 : memref<1x256xf32, #tpu.memory_space<vmem>>)
      %c24_i32_290 = arith.constant 24 : i32
      %c0_i32_291 = arith.constant 0 : i32
      %460 = tpu.memref_slice %arg2[%324, %c0_i32_291] : memref<64x256xf32, #tpu.memory_space<any>> -> memref<1x256xf32, #tpu.memory_space<any>>
      %c24_i32_292 = arith.constant 24 : i32
      %c0_i32_293 = arith.constant 0 : i32
      %461 = tpu.memref_slice %arg20[%c24_i32_292, %c0_i32_293] : memref<32x256xf32, #tpu.memory_space<vmem>> -> memref<1x256xf32, #tpu.memory_space<vmem>>
      %462 = tpu.memref_slice %arg22[%c24_i32_290] : memref<32x!tpu.dma_semaphore, #tpu.memory_space<semaphore_mem>> -> memref<1x!tpu.dma_semaphore, #tpu.memory_space<semaphore_mem>>
      %463 = tpu.memref_squeeze %462 : memref<1x!tpu.dma_semaphore, #tpu.memory_space<semaphore_mem>> -> memref<!tpu.dma_semaphore, #tpu.memory_space<semaphore_mem>>
      tpu.wait_dma2 semaphore(%463 : memref<!tpu.dma_semaphore, #tpu.memory_space<semaphore_mem>>) src(%460 : memref<1x256xf32, #tpu.memory_space<any>>) dst(%461 : memref<1x256xf32, #tpu.memory_space<vmem>>)
      %c25_i32_294 = arith.constant 25 : i32
      %c0_i32_295 = arith.constant 0 : i32
      %464 = tpu.memref_slice %arg2[%329, %c0_i32_295] : memref<64x256xf32, #tpu.memory_space<any>> -> memref<1x256xf32, #tpu.memory_space<any>>
      %c25_i32_296 = arith.constant 25 : i32
      %c0_i32_297 = arith.constant 0 : i32
      %465 = tpu.memref_slice %arg20[%c25_i32_296, %c0_i32_297] : memref<32x256xf32, #tpu.memory_space<vmem>> -> memref<1x256xf32, #tpu.memory_space<vmem>>
      %466 = tpu.memref_slice %arg22[%c25_i32_294] : memref<32x!tpu.dma_semaphore, #tpu.memory_space<semaphore_mem>> -> memref<1x!tpu.dma_semaphore, #tpu.memory_space<semaphore_mem>>
      %467 = tpu.memref_squeeze %466 : memref<1x!tpu.dma_semaphore, #tpu.memory_space<semaphore_mem>> -> memref<!tpu.dma_semaphore, #tpu.memory_space<semaphore_mem>>
      tpu.wait_dma2 semaphore(%467 : memref<!tpu.dma_semaphore, #tpu.memory_space<semaphore_mem>>) src(%464 : memref<1x256xf32, #tpu.memory_space<any>>) dst(%465 : memref<1x256xf32, #tpu.memory_space<vmem>>)
      %c26_i32_298 = arith.constant 26 : i32
      %c0_i32_299 = arith.constant 0 : i32
      %468 = tpu.memref_slice %arg2[%334, %c0_i32_299] : memref<64x256xf32, #tpu.memory_space<any>> -> memref<1x256xf32, #tpu.memory_space<any>>
      %c26_i32_300 = arith.constant 26 : i32
      %c0_i32_301 = arith.constant 0 : i32
      %469 = tpu.memref_slice %arg20[%c26_i32_300, %c0_i32_301] : memref<32x256xf32, #tpu.memory_space<vmem>> -> memref<1x256xf32, #tpu.memory_space<vmem>>
      %470 = tpu.memref_slice %arg22[%c26_i32_298] : memref<32x!tpu.dma_semaphore, #tpu.memory_space<semaphore_mem>> -> memref<1x!tpu.dma_semaphore, #tpu.memory_space<semaphore_mem>>
      %471 = tpu.memref_squeeze %470 : memref<1x!tpu.dma_semaphore, #tpu.memory_space<semaphore_mem>> -> memref<!tpu.dma_semaphore, #tpu.memory_space<semaphore_mem>>
      tpu.wait_dma2 semaphore(%471 : memref<!tpu.dma_semaphore, #tpu.memory_space<semaphore_mem>>) src(%468 : memref<1x256xf32, #tpu.memory_space<any>>) dst(%469 : memref<1x256xf32, #tpu.memory_space<vmem>>)
      %c27_i32_302 = arith.constant 27 : i32
      %c0_i32_303 = arith.constant 0 : i32
      %472 = tpu.memref_slice %arg2[%339, %c0_i32_303] : memref<64x256xf32, #tpu.memory_space<any>> -> memref<1x256xf32, #tpu.memory_space<any>>
      %c27_i32_304 = arith.constant 27 : i32
      %c0_i32_305 = arith.constant 0 : i32
      %473 = tpu.memref_slice %arg20[%c27_i32_304, %c0_i32_305] : memref<32x256xf32, #tpu.memory_space<vmem>> -> memref<1x256xf32, #tpu.memory_space<vmem>>
      %474 = tpu.memref_slice %arg22[%c27_i32_302] : memref<32x!tpu.dma_semaphore, #tpu.memory_space<semaphore_mem>> -> memref<1x!tpu.dma_semaphore, #tpu.memory_space<semaphore_mem>>
      %475 = tpu.memref_squeeze %474 : memref<1x!tpu.dma_semaphore, #tpu.memory_space<semaphore_mem>> -> memref<!tpu.dma_semaphore, #tpu.memory_space<semaphore_mem>>
      tpu.wait_dma2 semaphore(%475 : memref<!tpu.dma_semaphore, #tpu.memory_space<semaphore_mem>>) src(%472 : memref<1x256xf32, #tpu.memory_space<any>>) dst(%473 : memref<1x256xf32, #tpu.memory_space<vmem>>)
      %c28_i32_306 = arith.constant 28 : i32
      %c0_i32_307 = arith.constant 0 : i32
      %476 = tpu.memref_slice %arg2[%344, %c0_i32_307] : memref<64x256xf32, #tpu.memory_space<any>> -> memref<1x256xf32, #tpu.memory_space<any>>
      %c28_i32_308 = arith.constant 28 : i32
      %c0_i32_309 = arith.constant 0 : i32
      %477 = tpu.memref_slice %arg20[%c28_i32_308, %c0_i32_309] : memref<32x256xf32, #tpu.memory_space<vmem>> -> memref<1x256xf32, #tpu.memory_space<vmem>>
      %478 = tpu.memref_slice %arg22[%c28_i32_306] : memref<32x!tpu.dma_semaphore, #tpu.memory_space<semaphore_mem>> -> memref<1x!tpu.dma_semaphore, #tpu.memory_space<semaphore_mem>>
      %479 = tpu.memref_squeeze %478 : memref<1x!tpu.dma_semaphore, #tpu.memory_space<semaphore_mem>> -> memref<!tpu.dma_semaphore, #tpu.memory_space<semaphore_mem>>
      tpu.wait_dma2 semaphore(%479 : memref<!tpu.dma_semaphore, #tpu.memory_space<semaphore_mem>>) src(%476 : memref<1x256xf32, #tpu.memory_space<any>>) dst(%477 : memref<1x256xf32, #tpu.memory_space<vmem>>)
      %c29_i32_310 = arith.constant 29 : i32
      %c0_i32_311 = arith.constant 0 : i32
      %480 = tpu.memref_slice %arg2[%349, %c0_i32_311] : memref<64x256xf32, #tpu.memory_space<any>> -> memref<1x256xf32, #tpu.memory_space<any>>
      %c29_i32_312 = arith.constant 29 : i32
      %c0_i32_313 = arith.constant 0 : i32
      %481 = tpu.memref_slice %arg20[%c29_i32_312, %c0_i32_313] : memref<32x256xf32, #tpu.memory_space<vmem>> -> memref<1x256xf32, #tpu.memory_space<vmem>>
      %482 = tpu.memref_slice %arg22[%c29_i32_310] : memref<32x!tpu.dma_semaphore, #tpu.memory_space<semaphore_mem>> -> memref<1x!tpu.dma_semaphore, #tpu.memory_space<semaphore_mem>>
      %483 = tpu.memref_squeeze %482 : memref<1x!tpu.dma_semaphore, #tpu.memory_space<semaphore_mem>> -> memref<!tpu.dma_semaphore, #tpu.memory_space<semaphore_mem>>
      tpu.wait_dma2 semaphore(%483 : memref<!tpu.dma_semaphore, #tpu.memory_space<semaphore_mem>>) src(%480 : memref<1x256xf32, #tpu.memory_space<any>>) dst(%481 : memref<1x256xf32, #tpu.memory_space<vmem>>)
      %c30_i32_314 = arith.constant 30 : i32
      %c0_i32_315 = arith.constant 0 : i32
      %484 = tpu.memref_slice %arg2[%354, %c0_i32_315] : memref<64x256xf32, #tpu.memory_space<any>> -> memref<1x256xf32, #tpu.memory_space<any>>
      %c30_i32_316 = arith.constant 30 : i32
      %c0_i32_317 = arith.constant 0 : i32
      %485 = tpu.memref_slice %arg20[%c30_i32_316, %c0_i32_317] : memref<32x256xf32, #tpu.memory_space<vmem>> -> memref<1x256xf32, #tpu.memory_space<vmem>>
      %486 = tpu.memref_slice %arg22[%c30_i32_314] : memref<32x!tpu.dma_semaphore, #tpu.memory_space<semaphore_mem>> -> memref<1x!tpu.dma_semaphore, #tpu.memory_space<semaphore_mem>>
      %487 = tpu.memref_squeeze %486 : memref<1x!tpu.dma_semaphore, #tpu.memory_space<semaphore_mem>> -> memref<!tpu.dma_semaphore, #tpu.memory_space<semaphore_mem>>
      tpu.wait_dma2 semaphore(%487 : memref<!tpu.dma_semaphore, #tpu.memory_space<semaphore_mem>>) src(%484 : memref<1x256xf32, #tpu.memory_space<any>>) dst(%485 : memref<1x256xf32, #tpu.memory_space<vmem>>)
      %c31_i32_318 = arith.constant 31 : i32
      %c0_i32_319 = arith.constant 0 : i32
      %488 = tpu.memref_slice %arg2[%359, %c0_i32_319] : memref<64x256xf32, #tpu.memory_space<any>> -> memref<1x256xf32, #tpu.memory_space<any>>
      %c31_i32_320 = arith.constant 31 : i32
      %c0_i32_321 = arith.constant 0 : i32
      %489 = tpu.memref_slice %arg20[%c31_i32_320, %c0_i32_321] : memref<32x256xf32, #tpu.memory_space<vmem>> -> memref<1x256xf32, #tpu.memory_space<vmem>>
      %490 = tpu.memref_slice %arg22[%c31_i32_318] : memref<32x!tpu.dma_semaphore, #tpu.memory_space<semaphore_mem>> -> memref<1x!tpu.dma_semaphore, #tpu.memory_space<semaphore_mem>>
      %491 = tpu.memref_squeeze %490 : memref<1x!tpu.dma_semaphore, #tpu.memory_space<semaphore_mem>> -> memref<!tpu.dma_semaphore, #tpu.memory_space<semaphore_mem>>
      tpu.wait_dma2 semaphore(%491 : memref<!tpu.dma_semaphore, #tpu.memory_space<semaphore_mem>>) src(%488 : memref<1x256xf32, #tpu.memory_space<any>>) dst(%489 : memref<1x256xf32, #tpu.memory_space<vmem>>)
      %c0_322 = arith.constant 0 : index
      %c0_323 = arith.constant 0 : index
      %492 = vector.load %arg20[%c0_322, %c0_323] : memref<32x256xf32, #tpu.memory_space<vmem>>, vector<32x256xf32>
      %493 = vector.shape_cast %492 : vector<32x256xf32> to vector<2x16x256xf32>
      %c0_324 = arith.constant 0 : index
      %c0_325 = arith.constant 0 : index
      %494 = vector.load %arg3[%c0_324, %c0_325] : memref<16x256xf32, #tpu.memory_space<vmem>>, vector<16x256xf32>
      %495 = vector.shape_cast %494 : vector<16x256xf32> to vector<1x16x256xf32>
      %496 = vector.broadcast %495 : vector<1x16x256xf32> to vector<2x16x256xf32>
      %497 = arith.addf %493, %496 : vector<2x16x256xf32>
      %498 = vector.shape_cast %497 : vector<2x16x256xf32> to vector<32x256xf32>
      %c0_326 = arith.constant 0 : index
      %c0_327 = arith.constant 0 : index
      %499 = vector.load %arg20[%c0_326, %c0_327] : memref<32x256xf32, #tpu.memory_space<vmem>>, vector<32x256xf32>
      tpu.vector_store %arg20[%c0_326, %c0_327], %498 {strides = array<i32>} : memref<32x256xf32, #tpu.memory_space<vmem>>, vector<32x256xf32>,
    } else {
    }
    %c0 = arith.constant 0 : index
    %c0_1 = arith.constant 0 : index
    %3 = vector.load %arg20[%c0, %c0_1] : memref<32x256xf32, #tpu.memory_space<vmem>>, vector<32x256xf32>
    %c0_2 = arith.constant 0 : index
    %c0_3 = arith.constant 0 : index
    %c0_4 = arith.constant 0 : index
    %4 = vector.load %arg5[%c0_2, %c0_3, %c0_4] : memref<1x1x256xf32, #tpu.memory_space<vmem>>, vector<1x1x256xf32>
    %5 = vector.shape_cast %4 : vector<1x1x256xf32> to vector<1x256xf32>
    %c0_5 = arith.constant 0 : index
    %c0_6 = arith.constant 0 : index
    %c0_7 = arith.constant 0 : index
    %6 = vector.load %arg6[%c0_5, %c0_6, %c0_7] : memref<1x1x256xf32, #tpu.memory_space<vmem>>, vector<1x1x256xf32>
    %7 = vector.shape_cast %6 : vector<1x1x256xf32> to vector<1x256xf32>
    %cst = arith.constant dense<0.000000e+00> : vector<32xf32>
    %8 = vector.multi_reduction <add>, %3, %cst [1] : vector<32x256xf32> to vector<32xf32>
    %9 = vector.shape_cast %8 : vector<32xf32> to vector<32x1xf32>
    %cst_8 = arith.constant 2.560000e+02 : f32
    %10 = vector.broadcast %cst_8 : f32 to vector<32x1xf32>
    %11 = arith.divf %9, %10 : vector<32x1xf32>
    %12 = vector.broadcast %11 : vector<32x1xf32> to vector<32x256xf32>
    %13 = arith.subf %3, %12 : vector<32x256xf32>
    %14 = arith.mulf %13, %13 : vector<32x256xf32>
    %cst_9 = arith.constant dense<0.000000e+00> : vector<32xf32>
    %15 = vector.multi_reduction <add>, %14, %cst_9 [1] : vector<32x256xf32> to vector<32xf32>
    %16 = vector.shape_cast %15 : vector<32xf32> to vector<32x1xf32>
    %cst_10 = arith.constant 2.560000e+02 : f32
    %17 = vector.broadcast %cst_10 : f32 to vector<32x1xf32>
    %18 = arith.divf %16, %17 : vector<32x1xf32>
    %19 = vector.broadcast %11 : vector<32x1xf32> to vector<32x256xf32>
    %20 = arith.subf %3, %19 : vector<32x256xf32>
    %cst_11 = arith.constant 9.99999974E-6 : f32
    %21 = vector.broadcast %cst_11 : f32 to vector<32x1xf32>
    %22 = arith.addf %18, %21 : vector<32x1xf32>
    %23 = math.rsqrt %22 : vector<32x1xf32>
    %24 = vector.broadcast %23 : vector<32x1xf32> to vector<32x256xf32>
    %25 = arith.mulf %20, %24 : vector<32x256xf32>
    %26 = vector.broadcast %5 : vector<1x256xf32> to vector<32x256xf32>
    %27 = arith.mulf %25, %26 : vector<32x256xf32>
    %28 = vector.broadcast %7 : vector<1x256xf32> to vector<32x256xf32>
    %29 = arith.addf %27, %28 : vector<32x256xf32>
    %30 = arith.truncf %29 : vector<32x256xf32> to vector<32x256xbf16>
    %c0_12 = arith.constant 0 : index
    %c0_13 = arith.constant 0 : index
    %c0_14 = arith.constant 0 : index
    %31 = vector.load %arg7[%c0_12, %c0_13, %c0_14] : memref<1x256x768xbf16, #tpu.memory_space<vmem>>, vector<1x256x768xbf16>
    %32 = vector.shape_cast %31 : vector<1x256x768xbf16> to vector<256x768xbf16>
    %cst_15 = arith.constant dense<0.000000e+00> : vector<32x768xf32>
    %33 = tpu.matmul %30, %32, %cst_15 {dimension_numbers = #tpu.dot_dimension_numbers<[1], [0], [0], [1], [0, 0, 1, 1], [], []>} : vector<32x256xbf16>, vector<256x768xbf16>, vector<32x768xf32> -> vector<32x768xf32>
    %c0_16 = arith.constant 0 : index
    %c0_17 = arith.constant 0 : index
    %c0_18 = arith.constant 0 : index
    %34 = vector.load %arg8[%c0_16, %c0_17, %c0_18] : memref<1x1x768xf32, #tpu.memory_space<vmem>>, vector<1x1x768xf32>
    %35 = vector.shape_cast %34 : vector<1x1x768xf32> to vector<1x768xf32>
    %36 = vector.broadcast %35 : vector<1x768xf32> to vector<32x768xf32>
    %37 = arith.addf %33, %36 : vector<32x768xf32>
    %38 = vector.extract_strided_slice %37 {offsets = [0, 0], sizes = [16, 128], strides = [1, 1]} : vector<32x768xf32> to vector<16x128xf32>
    %cst_19 = arith.constant 0.0883883461 : f32
    %39 = vector.broadcast %cst_19 : f32 to vector<16x128xf32>
    %40 = arith.mulf %38, %39 : vector<16x128xf32>
    %41 = vector.extract_strided_slice %37 {offsets = [0, 256], sizes = [16, 128], strides = [1, 1]} : vector<32x768xf32> to vector<16x128xf32>
    %42 = vector.extract_strided_slice %37 {offsets = [0, 512], sizes = [16, 128], strides = [1, 1]} : vector<32x768xf32> to vector<16x128xf32>
    %43 = arith.truncf %40 : vector<16x128xf32> to vector<16x128xbf16>
    %44 = arith.truncf %41 : vector<16x128xf32> to vector<16x128xbf16>
    %cst_20 = arith.constant dense<0.000000e+00> : vector<16x16xf32>
    %45 = tpu.matmul %43, %44, %cst_20 {dimension_numbers = #tpu.dot_dimension_numbers<[1], [1], [0], [0], [0, 0, 1, 0], [], []>} : vector<16x128xbf16>, vector<16x128xbf16>, vector<16x16xf32> -> vector<16x16xf32>
    %c0_21 = arith.constant 0 : index
    %c0_22 = arith.constant 0 : index
    %46 = vector.load %arg4[%c0_21, %c0_22] : memref<16x16xf32, #tpu.memory_space<vmem>>, vector<16x16xf32>
    %47 = arith.addf %45, %46 : vector<16x16xf32>
    %cst_23 = arith.constant dense<0xFF800000> : vector<16xf32>
    %48 = vector.multi_reduction <maximumf>, %47, %cst_23 [1] : vector<16x16xf32> to vector<16xf32>
    %49 = vector.shape_cast %48 : vector<16xf32> to vector<16x1xf32>
    %50 = vector.broadcast %49 : vector<16x1xf32> to vector<16x16xf32>
    %51 = arith.subf %47, %50 : vector<16x16xf32>
    %52 = math.exp %51 : vector<16x16xf32>
    %cst_24 = arith.constant dense<0.000000e+00> : vector<16xf32>
    %53 = vector.multi_reduction <add>, %52, %cst_24 [1] : vector<16x16xf32> to vector<16xf32>
    %54 = vector.shape_cast %53 : vector<16xf32> to vector<16x1xf32>
    %55 = tpu.reciprocal %54 {approx = true} : vector<16x1xf32> -> vector<16x1xf32>
    %56 = vector.broadcast %55 : vector<16x1xf32> to vector<16x16xf32>
    %57 = arith.mulf %52, %56 : vector<16x16xf32>
    %58 = arith.truncf %57 : vector<16x16xf32> to vector<16x16xbf16>
    %59 = arith.truncf %42 : vector<16x128xf32> to vector<16x128xbf16>
    %cst_25 = arith.constant dense<0.000000e+00> : vector<16x128xf32>
    %60 = tpu.matmul %58, %59, %cst_25 {dimension_numbers = #tpu.dot_dimension_numbers<[1], [0], [0], [1], [0, 0, 1, 1], [], []>} : vector<16x16xbf16>, vector<16x128xbf16>, vector<16x128xf32> -> vector<16x128xf32>
    %c0_26 = arith.constant 0 : index
    %c0_27 = arith.constant 0 : index
    %61 = vector.load %arg21[%c0_26, %c0_27] : memref<32x256xf32, #tpu.memory_space<vmem>>, vector<16x128xf32>
    tpu.vector_store %arg21[%c0_26, %c0_27], %60 {strides = array<i32>} : memref<32x256xf32, #tpu.memory_space<vmem>>, vector<16x128xf32>,
    %62 = vector.extract_strided_slice %37 {offsets = [0, 128], sizes = [16, 128], strides = [1, 1]} : vector<32x768xf32> to vector<16x128xf32>
    %cst_28 = arith.constant 0.0883883461 : f32
    %63 = vector.broadcast %cst_28 : f32 to vector<16x128xf32>
    %64 = arith.mulf %62, %63 : vector<16x128xf32>
    %65 = vector.extract_strided_slice %37 {offsets = [0, 384], sizes = [16, 128], strides = [1, 1]} : vector<32x768xf32> to vector<16x128xf32>
    %66 = vector.extract_strided_slice %37 {offsets = [0, 640], sizes = [16, 128], strides = [1, 1]} : vector<32x768xf32> to vector<16x128xf32>
    %67 = arith.truncf %64 : vector<16x128xf32> to vector<16x128xbf16>
    %68 = arith.truncf %65 : vector<16x128xf32> to vector<16x128xbf16>
    %cst_29 = arith.constant dense<0.000000e+00> : vector<16x16xf32>
    %69 = tpu.matmul %67, %68, %cst_29 {dimension_numbers = #tpu.dot_dimension_numbers<[1], [1], [0], [0], [0, 0, 1, 0], [], []>} : vector<16x128xbf16>, vector<16x128xbf16>, vector<16x16xf32> -> vector<16x16xf32>
    %c0_30 = arith.constant 0 : index
    %c0_31 = arith.constant 0 : index
    %70 = vector.load %arg4[%c0_30, %c0_31] : memref<16x16xf32, #tpu.memory_space<vmem>>, vector<16x16xf32>
    %71 = arith.addf %69, %70 : vector<16x16xf32>
    %cst_32 = arith.constant dense<0xFF800000> : vector<16xf32>
    %72 = vector.multi_reduction <maximumf>, %71, %cst_32 [1] : vector<16x16xf32> to vector<16xf32>
    %73 = vector.shape_cast %72 : vector<16xf32> to vector<16x1xf32>
    %74 = vector.broadcast %73 : vector<16x1xf32> to vector<16x16xf32>
    %75 = arith.subf %71, %74 : vector<16x16xf32>
    %76 = math.exp %75 : vector<16x16xf32>
    %cst_33 = arith.constant dense<0.000000e+00> : vector<16xf32>
    %77 = vector.multi_reduction <add>, %76, %cst_33 [1] : vector<16x16xf32> to vector<16xf32>
    %78 = vector.shape_cast %77 : vector<16xf32> to vector<16x1xf32>
    %79 = tpu.reciprocal %78 {approx = true} : vector<16x1xf32> -> vector<16x1xf32>
    %80 = vector.broadcast %79 : vector<16x1xf32> to vector<16x16xf32>
    %81 = arith.mulf %76, %80 : vector<16x16xf32>
    %82 = arith.truncf %81 : vector<16x16xf32> to vector<16x16xbf16>
    %83 = arith.truncf %66 : vector<16x128xf32> to vector<16x128xbf16>
    %cst_34 = arith.constant dense<0.000000e+00> : vector<16x128xf32>
    %84 = tpu.matmul %82, %83, %cst_34 {dimension_numbers = #tpu.dot_dimension_numbers<[1], [0], [0], [1], [0, 0, 1, 1], [], []>} : vector<16x16xbf16>, vector<16x128xbf16>, vector<16x128xf32> -> vector<16x128xf32>
    %c0_35 = arith.constant 0 : index
    %c128 = arith.constant 128 : index
    %85 = vector.load %arg21[%c0_35, %c128] : memref<32x256xf32, #tpu.memory_space<vmem>>, vector<16x128xf32>
    tpu.vector_store %arg21[%c0_35, %c128], %84 {strides = array<i32>} : memref<32x256xf32, #tpu.memory_space<vmem>>, vector<16x128xf32>,
    %86 = vector.extract_strided_slice %37 {offsets = [16, 0], sizes = [16, 128], strides = [1, 1]} : vector<32x768xf32> to vector<16x128xf32>
    %cst_36 = arith.constant 0.0883883461 : f32
    %87 = vector.broadcast %cst_36 : f32 to vector<16x128xf32>
    %88 = arith.mulf %86, %87 : vector<16x128xf32>
    %89 = vector.extract_strided_slice %37 {offsets = [16, 256], sizes = [16, 128], strides = [1, 1]} : vector<32x768xf32> to vector<16x128xf32>
    %90 = vector.extract_strided_slice %37 {offsets = [16, 512], sizes = [16, 128], strides = [1, 1]} : vector<32x768xf32> to vector<16x128xf32>
    %91 = arith.truncf %88 : vector<16x128xf32> to vector<16x128xbf16>
    %92 = arith.truncf %89 : vector<16x128xf32> to vector<16x128xbf16>
    %cst_37 = arith.constant dense<0.000000e+00> : vector<16x16xf32>
    %93 = tpu.matmul %91, %92, %cst_37 {dimension_numbers = #tpu.dot_dimension_numbers<[1], [1], [0], [0], [0, 0, 1, 0], [], []>} : vector<16x128xbf16>, vector<16x128xbf16>, vector<16x16xf32> -> vector<16x16xf32>
    %c0_38 = arith.constant 0 : index
    %c0_39 = arith.constant 0 : index
    %94 = vector.load %arg4[%c0_38, %c0_39] : memref<16x16xf32, #tpu.memory_space<vmem>>, vector<16x16xf32>
    %95 = arith.addf %93, %94 : vector<16x16xf32>
    %cst_40 = arith.constant dense<0xFF800000> : vector<16xf32>
    %96 = vector.multi_reduction <maximumf>, %95, %cst_40 [1] : vector<16x16xf32> to vector<16xf32>
    %97 = vector.shape_cast %96 : vector<16xf32> to vector<16x1xf32>
    %98 = vector.broadcast %97 : vector<16x1xf32> to vector<16x16xf32>
    %99 = arith.subf %95, %98 : vector<16x16xf32>
    %100 = math.exp %99 : vector<16x16xf32>
    %cst_41 = arith.constant dense<0.000000e+00> : vector<16xf32>
    %101 = vector.multi_reduction <add>, %100, %cst_41 [1] : vector<16x16xf32> to vector<16xf32>
    %102 = vector.shape_cast %101 : vector<16xf32> to vector<16x1xf32>
    %103 = tpu.reciprocal %102 {approx = true} : vector<16x1xf32> -> vector<16x1xf32>
    %104 = vector.broadcast %103 : vector<16x1xf32> to vector<16x16xf32>
    %105 = arith.mulf %100, %104 : vector<16x16xf32>
    %106 = arith.truncf %105 : vector<16x16xf32> to vector<16x16xbf16>
    %107 = arith.truncf %90 : vector<16x128xf32> to vector<16x128xbf16>
    %cst_42 = arith.constant dense<0.000000e+00> : vector<16x128xf32>
    %108 = tpu.matmul %106, %107, %cst_42 {dimension_numbers = #tpu.dot_dimension_numbers<[1], [0], [0], [1], [0, 0, 1, 1], [], []>} : vector<16x16xbf16>, vector<16x128xbf16>, vector<16x128xf32> -> vector<16x128xf32>
    %c16 = arith.constant 16 : index
    %c0_43 = arith.constant 0 : index
    %109 = vector.load %arg21[%c16, %c0_43] : memref<32x256xf32, #tpu.memory_space<vmem>>, vector<16x128xf32>
    tpu.vector_store %arg21[%c16, %c0_43], %108 {strides = array<i32>} : memref<32x256xf32, #tpu.memory_space<vmem>>, vector<16x128xf32>,
    %110 = vector.extract_strided_slice %37 {offsets = [16, 128], sizes = [16, 128], strides = [1, 1]} : vector<32x768xf32> to vector<16x128xf32>
    %cst_44 = arith.constant 0.0883883461 : f32
    %111 = vector.broadcast %cst_44 : f32 to vector<16x128xf32>
    %112 = arith.mulf %110, %111 : vector<16x128xf32>
    %113 = vector.extract_strided_slice %37 {offsets = [16, 384], sizes = [16, 128], strides = [1, 1]} : vector<32x768xf32> to vector<16x128xf32>
    %114 = vector.extract_strided_slice %37 {offsets = [16, 640], sizes = [16, 128], strides = [1, 1]} : vector<32x768xf32> to vector<16x128xf32>
    %115 = arith.truncf %112 : vector<16x128xf32> to vector<16x128xbf16>
    %116 = arith.truncf %113 : vector<16x128xf32> to vector<16x128xbf16>
    %cst_45 = arith.constant dense<0.000000e+00> : vector<16x16xf32>
    %117 = tpu.matmul %115, %116, %cst_45 {dimension_numbers = #tpu.dot_dimension_numbers<[1], [1], [0], [0], [0, 0, 1, 0], [], []>} : vector<16x128xbf16>, vector<16x128xbf16>, vector<16x16xf32> -> vector<16x16xf32>
    %c0_46 = arith.constant 0 : index
    %c0_47 = arith.constant 0 : index
    %118 = vector.load %arg4[%c0_46, %c0_47] : memref<16x16xf32, #tpu.memory_space<vmem>>, vector<16x16xf32>
    %119 = arith.addf %117, %118 : vector<16x16xf32>
    %cst_48 = arith.constant dense<0xFF800000> : vector<16xf32>
    %120 = vector.multi_reduction <maximumf>, %119, %cst_48 [1] : vector<16x16xf32> to vector<16xf32>
    %121 = vector.shape_cast %120 : vector<16xf32> to vector<16x1xf32>
    %122 = vector.broadcast %121 : vector<16x1xf32> to vector<16x16xf32>
    %123 = arith.subf %119, %122 : vector<16x16xf32>
    %124 = math.exp %123 : vector<16x16xf32>
    %cst_49 = arith.constant dense<0.000000e+00> : vector<16xf32>
    %125 = vector.multi_reduction <add>, %124, %cst_49 [1] : vector<16x16xf32> to vector<16xf32>
    %126 = vector.shape_cast %125 : vector<16xf32> to vector<16x1xf32>
    %127 = tpu.reciprocal %126 {approx = true} : vector<16x1xf32> -> vector<16x1xf32>
    %128 = vector.broadcast %127 : vector<16x1xf32> to vector<16x16xf32>
    %129 = arith.mulf %124, %128 : vector<16x16xf32>
    %130 = arith.truncf %129 : vector<16x16xf32> to vector<16x16xbf16>
    %131 = arith.truncf %114 : vector<16x128xf32> to vector<16x128xbf16>
    %cst_50 = arith.constant dense<0.000000e+00> : vector<16x128xf32>
    %132 = tpu.matmul %130, %131, %cst_50 {dimension_numbers = #tpu.dot_dimension_numbers<[1], [0], [0], [1], [0, 0, 1, 1], [], []>} : vector<16x16xbf16>, vector<16x128xbf16>, vector<16x128xf32> -> vector<16x128xf32>
    %c16_51 = arith.constant 16 : index
    %c128_52 = arith.constant 128 : index
    %133 = vector.load %arg21[%c16_51, %c128_52] : memref<32x256xf32, #tpu.memory_space<vmem>>, vector<16x128xf32>
    tpu.vector_store %arg21[%c16_51, %c128_52], %132 {strides = array<i32>} : memref<32x256xf32, #tpu.memory_space<vmem>>, vector<16x128xf32>,
    %c0_53 = arith.constant 0 : index
    %c0_54 = arith.constant 0 : index
    %134 = vector.load %arg21[%c0_53, %c0_54] : memref<32x256xf32, #tpu.memory_space<vmem>>, vector<32x256xf32>
    %135 = arith.truncf %134 : vector<32x256xf32> to vector<32x256xbf16>
    %c0_55 = arith.constant 0 : index
    %c0_56 = arith.constant 0 : index
    %c0_57 = arith.constant 0 : index
    %136 = vector.load %arg9[%c0_55, %c0_56, %c0_57] : memref<1x256x256xbf16, #tpu.memory_space<vmem>>, vector<1x256x256xbf16>
    %137 = vector.shape_cast %136 : vector<1x256x256xbf16> to vector<256x256xbf16>
    %cst_58 = arith.constant dense<0.000000e+00> : vector<32x256xf32>
    %138 = tpu.matmul %135, %137, %cst_58 {dimension_numbers = #tpu.dot_dimension_numbers<[1], [0], [0], [1], [0, 0, 1, 1], [], []>} : vector<32x256xbf16>, vector<256x256xbf16>, vector<32x256xf32> -> vector<32x256xf32>
    %139 = arith.addf %3, %138 : vector<32x256xf32>
    %c0_59 = arith.constant 0 : index
    %c0_60 = arith.constant 0 : index
    %c0_61 = arith.constant 0 : index
    %140 = vector.load %arg10[%c0_59, %c0_60, %c0_61] : memref<1x1x256xf32, #tpu.memory_space<vmem>>, vector<1x1x256xf32>
    %141 = vector.shape_cast %140 : vector<1x1x256xf32> to vector<1x256xf32>
    %142 = vector.broadcast %141 : vector<1x256xf32> to vector<32x256xf32>
    %143 = arith.addf %139, %142 : vector<32x256xf32>
    %c0_62 = arith.constant 0 : index
    %c0_63 = arith.constant 0 : index
    %c0_64 = arith.constant 0 : index
    %144 = vector.load %arg11[%c0_62, %c0_63, %c0_64] : memref<1x1x256xf32, #tpu.memory_space<vmem>>, vector<1x1x256xf32>
    %145 = vector.shape_cast %144 : vector<1x1x256xf32> to vector<1x256xf32>
    %c0_65 = arith.constant 0 : index
    %c0_66 = arith.constant 0 : index
    %c0_67 = arith.constant 0 : index
    %146 = vector.load %arg12[%c0_65, %c0_66, %c0_67] : memref<1x1x256xf32, #tpu.memory_space<vmem>>, vector<1x1x256xf32>
    %147 = vector.shape_cast %146 : vector<1x1x256xf32> to vector<1x256xf32>
    %cst_68 = arith.constant dense<0.000000e+00> : vector<32xf32>
    %148 = vector.multi_reduction <add>, %143, %cst_68 [1] : vector<32x256xf32> to vector<32xf32>
    %149 = vector.shape_cast %148 : vector<32xf32> to vector<32x1xf32>
    %cst_69 = arith.constant 2.560000e+02 : f32
    %150 = vector.broadcast %cst_69 : f32 to vector<32x1xf32>
    %151 = arith.divf %149, %150 : vector<32x1xf32>
    %152 = vector.broadcast %151 : vector<32x1xf32> to vector<32x256xf32>
    %153 = arith.subf %143, %152 : vector<32x256xf32>
    %154 = arith.mulf %153, %153 : vector<32x256xf32>
    %cst_70 = arith.constant dense<0.000000e+00> : vector<32xf32>
    %155 = vector.multi_reduction <add>, %154, %cst_70 [1] : vector<32x256xf32> to vector<32xf32>
    %156 = vector.shape_cast %155 : vector<32xf32> to vector<32x1xf32>
    %cst_71 = arith.constant 2.560000e+02 : f32
    %157 = vector.broadcast %cst_71 : f32 to vector<32x1xf32>
    %158 = arith.divf %156, %157 : vector<32x1xf32>
    %159 = vector.broadcast %151 : vector<32x1xf32> to vector<32x256xf32>
    %160 = arith.subf %143, %159 : vector<32x256xf32>
    %cst_72 = arith.constant 9.99999974E-6 : f32
    %161 = vector.broadcast %cst_72 : f32 to vector<32x1xf32>
    %162 = arith.addf %158, %161 : vector<32x1xf32>
    %163 = math.rsqrt %162 : vector<32x1xf32>
    %164 = vector.broadcast %163 : vector<32x1xf32> to vector<32x256xf32>
    %165 = arith.mulf %160, %164 : vector<32x256xf32>
    %166 = vector.broadcast %145 : vector<1x256xf32> to vector<32x256xf32>
    %167 = arith.mulf %165, %166 : vector<32x256xf32>
    %168 = vector.broadcast %147 : vector<1x256xf32> to vector<32x256xf32>
    %169 = arith.addf %167, %168 : vector<32x256xf32>
    %170 = arith.truncf %169 : vector<32x256xf32> to vector<32x256xbf16>
    %c0_73 = arith.constant 0 : index
    %c0_74 = arith.constant 0 : index
    %c0_75 = arith.constant 0 : index
    %171 = vector.load %arg13[%c0_73, %c0_74, %c0_75] : memref<1x256x1024xbf16, #tpu.memory_space<vmem>>, vector<1x256x1024xbf16>
    %172 = vector.shape_cast %171 : vector<1x256x1024xbf16> to vector<256x1024xbf16>
    %cst_76 = arith.constant dense<0.000000e+00> : vector<32x1024xf32>
    %173 = tpu.matmul %170, %172, %cst_76 {dimension_numbers = #tpu.dot_dimension_numbers<[1], [0], [0], [1], [0, 0, 1, 1], [], []>} : vector<32x256xbf16>, vector<256x1024xbf16>, vector<32x1024xf32> -> vector<32x1024xf32>
    %c0_77 = arith.constant 0 : index
    %c0_78 = arith.constant 0 : index
    %c0_79 = arith.constant 0 : index
    %174 = vector.load %arg14[%c0_77, %c0_78, %c0_79] : memref<1x1x1024xf32, #tpu.memory_space<vmem>>, vector<1x1x1024xf32>
    %175 = vector.shape_cast %174 : vector<1x1x1024xf32> to vector<1x1024xf32>
    %176 = vector.broadcast %175 : vector<1x1024xf32> to vector<32x1024xf32>
    %177 = arith.addf %173, %176 : vector<32x1024xf32>
    %178 = arith.mulf %177, %177 : vector<32x1024xf32>
    %179 = arith.mulf %177, %178 : vector<32x1024xf32>
    %cst_80 = arith.constant 4.471500e-02 : f32
    %180 = vector.broadcast %cst_80 : f32 to vector<32x1024xf32>
    %181 = arith.mulf %180, %179 : vector<32x1024xf32>
    %182 = arith.addf %177, %181 : vector<32x1024xf32>
    %cst_81 = arith.constant 0.797884583 : f32
    %183 = vector.broadcast %cst_81 : f32 to vector<32x1024xf32>
    %184 = arith.mulf %183, %182 : vector<32x1024xf32>
    %185 = math.tanh %184 : vector<32x1024xf32>
    %cst_82 = arith.constant 1.000000e+00 : f32
    %186 = vector.broadcast %cst_82 : f32 to vector<32x1024xf32>
    %187 = arith.addf %186, %185 : vector<32x1024xf32>
    %cst_83 = arith.constant 5.000000e-01 : f32
    %188 = vector.broadcast %cst_83 : f32 to vector<32x1024xf32>
    %189 = arith.mulf %188, %187 : vector<32x1024xf32>
    %190 = arith.mulf %177, %189 : vector<32x1024xf32>
    %191 = arith.truncf %190 : vector<32x1024xf32> to vector<32x1024xbf16>
    %c0_84 = arith.constant 0 : index
    %c0_85 = arith.constant 0 : index
    %c0_86 = arith.constant 0 : index
    %192 = vector.load %arg15[%c0_84, %c0_85, %c0_86] : memref<1x1024x256xbf16, #tpu.memory_space<vmem>>, vector<1x1024x256xbf16>
    %193 = vector.shape_cast %192 : vector<1x1024x256xbf16> to vector<1024x256xbf16>
    %cst_87 = arith.constant dense<0.000000e+00> : vector<32x256xf32>
    %194 = tpu.matmul %191, %193, %cst_87 {dimension_numbers = #tpu.dot_dimension_numbers<[1], [0], [0], [1], [0, 0, 1, 1], [], []>} : vector<32x1024xbf16>, vector<1024x256xbf16>, vector<32x256xf32> -> vector<32x256xf32>
    %c0_88 = arith.constant 0 : index
    %c0_89 = arith.constant 0 : index
    %c0_90 = arith.constant 0 : index
    %195 = vector.load %arg16[%c0_88, %c0_89, %c0_90] : memref<1x1x256xf32, #tpu.memory_space<vmem>>, vector<1x1x256xf32>
    %196 = vector.shape_cast %195 : vector<1x1x256xf32> to vector<1x256xf32>
    %197 = vector.broadcast %196 : vector<1x256xf32> to vector<32x256xf32>
    %198 = arith.addf %194, %197 : vector<32x256xf32>
    %199 = arith.addf %143, %198 : vector<32x256xf32>
    %c0_91 = arith.constant 0 : index
    %c0_92 = arith.constant 0 : index
    %200 = vector.load %arg20[%c0_91, %c0_92] : memref<32x256xf32, #tpu.memory_space<vmem>>, vector<32x256xf32>
    tpu.vector_store %arg20[%c0_91, %c0_92], %199 {strides = array<i32>} : memref<32x256xf32, #tpu.memory_space<vmem>>, vector<32x256xf32>,
    %c1_i32 = arith.constant 1 : i32
    %201 = arith.cmpi eq, %arg0, %c1_i32 : i32
    %202 = arith.extui %201 : i1 to i32
    %c0_i32_93 = arith.constant 0 : i32
    %203 = arith.cmpi ne, %202, %c0_i32_93 : i32
    scf.if %203 {
      %c0_94 = arith.constant 0 : index
      %c0_95 = arith.constant 0 : index
      %204 = vector.load %arg17[%c0_94, %c0_95] : memref<1x256xf32, #tpu.memory_space<vmem>>, vector<1x256xf32>
      %c0_96 = arith.constant 0 : index
      %c0_97 = arith.constant 0 : index
      %205 = vector.load %arg18[%c0_96, %c0_97] : memref<1x256xf32, #tpu.memory_space<vmem>>, vector<1x256xf32>
      %cst_98 = arith.constant dense<0.000000e+00> : vector<32xf32>
      %206 = vector.multi_reduction <add>, %199, %cst_98 [1] : vector<32x256xf32> to vector<32xf32>
      %207 = vector.shape_cast %206 : vector<32xf32> to vector<32x1xf32>
      %cst_99 = arith.constant 2.560000e+02 : f32
      %208 = vector.broadcast %cst_99 : f32 to vector<32x1xf32>
      %209 = arith.divf %207, %208 : vector<32x1xf32>
      %210 = vector.broadcast %209 : vector<32x1xf32> to vector<32x256xf32>
      %211 = arith.subf %199, %210 : vector<32x256xf32>
      %212 = arith.mulf %211, %211 : vector<32x256xf32>
      %cst_100 = arith.constant dense<0.000000e+00> : vector<32xf32>
      %213 = vector.multi_reduction <add>, %212, %cst_100 [1] : vector<32x256xf32> to vector<32xf32>
      %214 = vector.shape_cast %213 : vector<32xf32> to vector<32x1xf32>
      %cst_101 = arith.constant 2.560000e+02 : f32
      %215 = vector.broadcast %cst_101 : f32 to vector<32x1xf32>
      %216 = arith.divf %214, %215 : vector<32x1xf32>
      %217 = vector.broadcast %209 : vector<32x1xf32> to vector<32x256xf32>
      %218 = arith.subf %199, %217 : vector<32x256xf32>
      %cst_102 = arith.constant 9.99999974E-6 : f32
      %219 = vector.broadcast %cst_102 : f32 to vector<32x1xf32>
      %220 = arith.addf %216, %219 : vector<32x1xf32>
      %221 = math.rsqrt %220 : vector<32x1xf32>
      %222 = vector.broadcast %221 : vector<32x1xf32> to vector<32x256xf32>
      %223 = arith.mulf %218, %222 : vector<32x256xf32>
      %224 = vector.broadcast %204 : vector<1x256xf32> to vector<32x256xf32>
      %225 = arith.mulf %223, %224 : vector<32x256xf32>
      %226 = vector.broadcast %205 : vector<1x256xf32> to vector<32x256xf32>
      %227 = arith.addf %225, %226 : vector<32x256xf32>
      %228 = vector.shape_cast %227 : vector<32x256xf32> to vector<2x16x256xf32>
      %c0_103 = arith.constant 0 : index
      %c0_104 = arith.constant 0 : index
      %c0_105 = arith.constant 0 : index
      %229 = vector.load %arg19[%c0_103, %c0_104, %c0_105] : memref<2x16x256xf32, #tpu.memory_space<vmem>>, vector<2x16x256xf32>
      tpu.vector_store %arg19[%c0_103, %c0_104, %c0_105], %228 {strides = array<i32>} : memref<2x16x256xf32, #tpu.memory_space<vmem>>, vector<2x16x256xf32>,
    } else {
    }
    return
  }
  func.func @transform_1(%arg0: i32, %arg1: memref<32xi32, #tpu.memory_space<smem>>) -> (i32, i32) {
    %c0_i32 = arith.constant 0 : i32
    %c0_i32_0 = arith.constant 0 : i32
    %c0_i32_1 = arith.constant 0 : i32
    return %c0_i32, %c0_i32_0 : i32, i32
  }
  func.func @transform_2(%arg0: i32, %arg1: memref<32xi32, #tpu.memory_space<smem>>) -> (i32, i32) {
    %c0_i32 = arith.constant 0 : i32
    %c0_i32_0 = arith.constant 0 : i32
    %c0_i32_1 = arith.constant 0 : i32
    return %c0_i32, %c0_i32_0 : i32, i32
  }
  func.func @transform_3(%arg0: i32, %arg1: memref<32xi32, #tpu.memory_space<smem>>) -> (i32, i32, i32) {
    %c0_i32 = arith.constant 0 : i32
    %c0_i32_0 = arith.constant 0 : i32
    %c0_i32_1 = arith.constant 0 : i32
    return %arg0, %c0_i32, %c0_i32_0 : i32, i32, i32
  }
  func.func @transform_4(%arg0: i32, %arg1: memref<32xi32, #tpu.memory_space<smem>>) -> (i32, i32, i32) {
    %c0_i32 = arith.constant 0 : i32
    %c0_i32_0 = arith.constant 0 : i32
    %c0_i32_1 = arith.constant 0 : i32
    return %arg0, %c0_i32, %c0_i32_0 : i32, i32, i32
  }
  func.func @transform_5(%arg0: i32, %arg1: memref<32xi32, #tpu.memory_space<smem>>) -> (i32, i32, i32) {
    %c0_i32 = arith.constant 0 : i32
    %c0_i32_0 = arith.constant 0 : i32
    %c0_i32_1 = arith.constant 0 : i32
    return %arg0, %c0_i32, %c0_i32_0 : i32, i32, i32
  }
  func.func @transform_6(%arg0: i32, %arg1: memref<32xi32, #tpu.memory_space<smem>>) -> (i32, i32, i32) {
    %c0_i32 = arith.constant 0 : i32
    %c0_i32_0 = arith.constant 0 : i32
    %c0_i32_1 = arith.constant 0 : i32
    return %arg0, %c0_i32, %c0_i32_0 : i32, i32, i32
  }
  func.func @transform_7(%arg0: i32, %arg1: memref<32xi32, #tpu.memory_space<smem>>) -> (i32, i32, i32) {
    %c0_i32 = arith.constant 0 : i32
    %c0_i32_0 = arith.constant 0 : i32
    %c0_i32_1 = arith.constant 0 : i32
    return %arg0, %c0_i32, %c0_i32_0 : i32, i32, i32
  }
  func.func @transform_8(%arg0: i32, %arg1: memref<32xi32, #tpu.memory_space<smem>>) -> (i32, i32, i32) {
    %c0_i32 = arith.constant 0 : i32
    %c0_i32_0 = arith.constant 0 : i32
    %c0_i32_1 = arith.constant 0 : i32
    return %arg0, %c0_i32, %c0_i32_0 : i32, i32, i32
  }
  func.func @transform_9(%arg0: i32, %arg1: memref<32xi32, #tpu.memory_space<smem>>) -> (i32, i32, i32) {
    %c0_i32 = arith.constant 0 : i32
    %c0_i32_0 = arith.constant 0 : i32
    %c0_i32_1 = arith.constant 0 : i32
    return %arg0, %c0_i32, %c0_i32_0 : i32, i32, i32
  }
  func.func @transform_10(%arg0: i32, %arg1: memref<32xi32, #tpu.memory_space<smem>>) -> (i32, i32, i32) {
    %c0_i32 = arith.constant 0 : i32
    %c0_i32_0 = arith.constant 0 : i32
    %c0_i32_1 = arith.constant 0 : i32
    return %arg0, %c0_i32, %c0_i32_0 : i32, i32, i32
  }
  func.func @transform_11(%arg0: i32, %arg1: memref<32xi32, #tpu.memory_space<smem>>) -> (i32, i32, i32) {
    %c0_i32 = arith.constant 0 : i32
    %c0_i32_0 = arith.constant 0 : i32
    %c0_i32_1 = arith.constant 0 : i32
    return %arg0, %c0_i32, %c0_i32_0 : i32, i32, i32
  }
  func.func @transform_12(%arg0: i32, %arg1: memref<32xi32, #tpu.memory_space<smem>>) -> (i32, i32, i32) {
    %c0_i32 = arith.constant 0 : i32
    %c0_i32_0 = arith.constant 0 : i32
    %c0_i32_1 = arith.constant 0 : i32
    return %arg0, %c0_i32, %c0_i32_0 : i32, i32, i32
  }
  func.func @transform_13(%arg0: i32, %arg1: memref<32xi32, #tpu.memory_space<smem>>) -> (i32, i32, i32) {
    %c0_i32 = arith.constant 0 : i32
    %c0_i32_0 = arith.constant 0 : i32
    %c0_i32_1 = arith.constant 0 : i32
    return %arg0, %c0_i32, %c0_i32_0 : i32, i32, i32
  }
  func.func @transform_14(%arg0: i32, %arg1: memref<32xi32, #tpu.memory_space<smem>>) -> (i32, i32, i32) {
    %c0_i32 = arith.constant 0 : i32
    %c0_i32_0 = arith.constant 0 : i32
    %c0_i32_1 = arith.constant 0 : i32
    return %arg0, %c0_i32, %c0_i32_0 : i32, i32, i32
  }
  func.func @transform_15(%arg0: i32, %arg1: memref<32xi32, #tpu.memory_space<smem>>) -> (i32, i32) {
    %c0_i32 = arith.constant 0 : i32
    %c0_i32_0 = arith.constant 0 : i32
    %c0_i32_1 = arith.constant 0 : i32
    return %c0_i32, %c0_i32_0 : i32, i32
  }
  func.func @transform_16(%arg0: i32, %arg1: memref<32xi32, #tpu.memory_space<smem>>) -> (i32, i32) {
    %c0_i32 = arith.constant 0 : i32
    %c0_i32_0 = arith.constant 0 : i32
    %c0_i32_1 = arith.constant 0 : i32
    return %c0_i32, %c0_i32_0 : i32, i32
  }
  func.func @transform_17(%arg0: i32, %arg1: memref<32xi32, #tpu.memory_space<smem>>) -> (i32, i32, i32) {
    %c0_i32 = arith.constant 0 : i32
    %c0_i32_0 = arith.constant 0 : i32
    %c0_i32_1 = arith.constant 0 : i32
    %c0_i32_2 = arith.constant 0 : i32
    return %c0_i32, %c0_i32_0, %c0_i32_1 : i32, i32, i32
  }
}

</mosaic_0001>

<llo_original>
// kernel: tpu_custom_call.1
$region0: #{tpu_custom_call.1}
  #allocation0 [shape = 'u32[]', space=smem, size = 0x4, offset = 0x4, fixed_abs, tag = 'smem constant byte address 0x4 - core index']
  #allocation1 [shape = 'u32[72,128]{1,0:T(1,128)}', space=vmem, size = 0x9000, scoped, tag = 'internal scratch']
  #allocation2 [shape = 'f32[32,256]{1,0:T(8,128)}', space=vmem, size = 0x8000, scoped, tag = 'scratch operand']
  #allocation3 [shape = 'f32[32,256]{1,0:T(8,128)}', space=vmem, size = 0x8000, scoped, tag = 'scratch operand']
  #allocation4 [shape = 's32[32]{0}', space=sflag, size = 0x80, scoped, tag = 'scratch operand']
  #allocation5 [shape = 's32[1]{0}', space=sflag, size = 0x4, scoped, tag = 'scoped memory for tpu_custom_call.1']
  #allocation6 [shape = 'u8[512]{0}', space=smem, size = 0x200, scoped, tag = 'prefetched SMEM operand 0']
  #allocation22 [shape = 's32[]', space=sflag, size = 0x4, offset = 0, fixed_abs, tag = 'sflag constant byte address 0x0 - dummy sync flag']
  #allocation23 [shape = 's32[]', space=sflag, size = 0x4, offset = 0, fixed_abs, tag = 'sflag constant byte address 0x0 - dummy sync flag']
  #allocation24 [shape = 's32[]', space=sflag, size = 0x4, offset = 0, fixed_abs, tag = 'sflag constant byte address 0x0 - dummy sync flag']
  #allocation25 [shape = 's32[]', space=sflag, size = 0x4, offset = 0, fixed_abs, tag = 'sflag constant byte address 0x0 - dummy sync flag']
  #allocation26 [shape = 's32[]', space=sflag, size = 0x4, offset = 0, fixed_abs, tag = 'sflag constant byte address 0x0 - dummy sync flag']
  #allocation27 [shape = 's32[]', space=sflag, size = 0x4, offset = 0, fixed_abs, tag = 'sflag constant byte address 0x0 - dummy sync flag']
  #allocation28 [shape = 's32[]', space=sflag, size = 0x4, offset = 0, fixed_abs, tag = 'sflag constant byte address 0x0 - dummy sync flag']
  #allocation29 [shape = 's32[]', space=sflag, size = 0x4, offset = 0, fixed_abs, tag = 'sflag constant byte address 0x0 - dummy sync flag']
  #allocation30 [shape = 's32[]', space=sflag, size = 0x4, offset = 0, fixed_abs, tag = 'sflag constant byte address 0x0 - dummy sync flag']
  #allocation31 [shape = 's32[]', space=sflag, size = 0x4, offset = 0, fixed_abs, tag = 'sflag constant byte address 0x0 - dummy sync flag']
  #allocation32 [shape = 's32[]', space=sflag, size = 0x4, offset = 0, fixed_abs, tag = 'sflag constant byte address 0x0 - dummy sync flag']
  #allocation33 [shape = 's32[]', space=sflag, size = 0x4, offset = 0, fixed_abs, tag = 'sflag constant byte address 0x0 - dummy sync flag']
  #allocation34 [shape = 's32[]', space=sflag, size = 0x4, offset = 0, fixed_abs, tag = 'sflag constant byte address 0x0 - dummy sync flag']
  #allocation35 [shape = 's32[]', space=sflag, size = 0x4, offset = 0, fixed_abs, tag = 'sflag constant byte address 0x0 - dummy sync flag']
  #allocation36 [shape = 's32[]', space=sflag, size = 0x4, offset = 0, fixed_abs, tag = 'sflag constant byte address 0x0 - dummy sync flag']
  #allocation37 [shape = 's32[]', space=sflag, size = 0x4, offset = 0, fixed_abs, tag = 'sflag constant byte address 0x0 - dummy sync flag']
  #allocation38 [shape = 's32[]', space=sflag, size = 0x4, offset = 0, fixed_abs, tag = 'sflag constant byte address 0x0 - dummy sync flag']
  #allocation39 [shape = 's32[]', space=sflag, size = 0x4, offset = 0, fixed_abs, tag = 'sflag constant byte address 0x0 - dummy sync flag']
  #allocation40 [shape = 's32[]', space=sflag, size = 0x4, offset = 0, fixed_abs, tag = 'sflag constant byte address 0x0 - dummy sync flag']
  #allocation41 [shape = 's32[]', space=sflag, size = 0x4, offset = 0, fixed_abs, tag = 'sflag constant byte address 0x0 - dummy sync flag']
  #allocation42 [shape = 's32[]', space=sflag, size = 0x4, offset = 0, fixed_abs, tag = 'sflag constant byte address 0x0 - dummy sync flag']
  #allocation43 [shape = 's32[]', space=sflag, size = 0x4, offset = 0, fixed_abs, tag = 'sflag constant byte address 0x0 - dummy sync flag']
  #allocation44 [shape = 's32[]', space=sflag, size = 0x4, offset = 0, fixed_abs, tag = 'sflag constant byte address 0x0 - dummy sync flag']
  #allocation45 [shape = 's32[]', space=sflag, size = 0x4, offset = 0, fixed_abs, tag = 'sflag constant byte address 0x0 - dummy sync flag']
  #allocation46 [shape = 's32[]', space=sflag, size = 0x4, offset = 0, fixed_abs, tag = 'sflag constant byte address 0x0 - dummy sync flag']
  #allocation47 [shape = 's32[]', space=sflag, size = 0x4, offset = 0, fixed_abs, tag = 'sflag constant byte address 0x0 - dummy sync flag']
  #allocation48 [shape = 's32[]', space=sflag, size = 0x4, offset = 0, fixed_abs, tag = 'sflag constant byte address 0x0 - dummy sync flag']
  #allocation49 [shape = 's32[]', space=sflag, size = 0x4, offset = 0, fixed_abs, tag = 'sflag constant byte address 0x0 - dummy sync flag']
  #allocation50 [shape = 's32[]', space=sflag, size = 0x4, offset = 0, fixed_abs, tag = 'sflag constant byte address 0x0 - dummy sync flag']
  #allocation51 [shape = 's32[]', space=sflag, size = 0x4, offset = 0, fixed_abs, tag = 'sflag constant byte address 0x0 - dummy sync flag']
  #allocation52 [shape = 's32[]', space=sflag, size = 0x4, offset = 0, fixed_abs, tag = 'sflag constant byte address 0x0 - dummy sync flag']
  #allocation53 [shape = 's32[]', space=sflag, size = 0x4, offset = 0, fixed_abs, tag = 'sflag constant byte address 0x0 - dummy sync flag']
  %s0 = inlined_call_operand.hbm [shape: s32[32], index: 0, kind: input, shape index: {}]
  %s1 = inlined_call_operand.hbm [shape: f32[64,256], index: 1, kind: input, shape index: {}]
  %s2 = inlined_call_operand.hbm [shape: f32[16,256], index: 2, kind: input, shape index: {}]
  %s3 = inlined_call_operand.hbm [shape: f32[16,16], index: 3, kind: input, shape index: {}]
  %s4 = inlined_call_operand.hbm [shape: f32[2,1,256], index: 4, kind: input, shape index: {}]
  %s5 = inlined_call_operand.vmem [shape: f32[2,1,256], index: 5, kind: input, shape index: {}]
  %s6 = inlined_call_operand.hbm [shape: bf16[2,256,768], index: 6, kind: input, shape index: {}]
  %s7 = inlined_call_operand.hbm [shape: f32[2,1,768], index: 7, kind: input, shape index: {}]
  %s8 = inlined_call_operand.hbm [shape: bf16[2,256,256], index: 8, kind: input, shape index: {}]
  %s9 = inlined_call_operand.vmem [shape: f32[2,1,256], index: 9, kind: input, shape index: {}]
  %s10 = inlined_call_operand.hbm [shape: f32[2,1,256], index: 10, kind: input, shape index: {}]
  %s11 = inlined_call_operand.hbm [shape: f32[2,1,256], index: 11, kind: input, shape index: {}]
  %s12 = inlined_call_operand.hbm [shape: bf16[2,256,1024], index: 12, kind: input, shape index: {}]
  %s13 = inlined_call_operand.hbm [shape: f32[2,1,1024], index: 13, kind: input, shape index: {}]
  %s14 = inlined_call_operand.hbm [shape: bf16[2,1024,256], index: 14, kind: input, shape index: {}]
  %s15 = inlined_call_operand.vmem [shape: f32[2,1,256], index: 15, kind: input, shape index: {}]
  %s16 = inlined_call_operand.vmem [shape: f32[1,256], index: 16, kind: input, shape index: {}]
  %s17 = inlined_call_operand.vmem [shape: f32[1,256], index: 17, kind: input, shape index: {}]
  %s18 = inlined_call_operand.hbm [shape: f32[2,16,256], index: 18, kind: output, shape index: {}]
  %s19 = sld [smem:[#allocation0]]
  $region149: #{tpu_custom_call.1} parent=0
    _
  %s21 = ssub.s32 1, %s19
  %s22 = scalar_select 0, %s21, %s19
  %s24 = sshll.u32 %s0, 4
  %s25 = int_to_ptr.hbm [resolvable:$true] %s24
  %27 = dma.hbm_to_smem %s25, 16, [#allocation6], [#allocation5]
  %29 = dma.done [#allocation5], 16
  %30 = sfence
  $region1: #{tpu_custom_call.1} parent=0
    #allocation7 [shape = 'u8[16384]{0}', space=vmem, size = 0x4000, scoped, tag = 'input window, operand 2, single buffered']
    #allocation8 [shape = 's32[2]{0}', space=sflag, size = 0x8, scoped, tag = 'scoped memory for tpu_custom_call.1']
    #allocation9 [shape = 's32[2]{0}', space=sflag, size = 0x8, scoped, tag = 'scoped memory for tpu_custom_call.1']
    #allocation10 [shape = 'u8[8192]{0}', space=vmem, size = 0x2000, scoped, tag = 'input window, operand 3, single buffered']
    #allocation11 [shape = 's32[1]{0}', space=sflag, size = 0x4, scoped, tag = 'scoped memory for tpu_custom_call.1']
    #allocation12 [shape = 'u8[2048]{0}', space=vmem, size = 0x800, scoped, tag = 'input window, operand 4']
    #allocation13 [shape = 'u8[786432]{0}', space=vmem, size = 0xc0000, scoped, tag = 'input window, operand 6']
    #allocation14 [shape = 'u8[6144]{0}', space=vmem, size = 0x1800, scoped, tag = 'input window, operand 7']
    #allocation15 [shape = 'u8[262144]{0}', space=vmem, size = 0x40000, scoped, tag = 'input window, operand 8']
    #allocation16 [shape = 'u8[2048]{0}', space=vmem, size = 0x800, scoped, tag = 'input window, operand 10']
    #allocation17 [shape = 'u8[2048]{0}', space=vmem, size = 0x800, scoped, tag = 'input window, operand 11']
    #allocation18 [shape = 'u8[1048576]{0}', space=vmem, size = 0x100000, scoped, tag = 'input window, operand 12']
    #allocation19 [shape = 'u8[8192]{0}', space=vmem, size = 0x2000, scoped, tag = 'input window, operand 13']
    #allocation20 [shape = 'u8[1048576]{0}', space=vmem, size = 0x100000, scoped, tag = 'input window, operand 14']
    #allocation21 [shape = 'u8[32768]{0}', space=vmem, size = 0x8000, scoped, tag = 'output window, operand 0, single buffered']
    %31 = vsyncpa [#allocation8], 0
    %32 = vsyncpa [#allocation11], 0
    %33 = vsyncpa [#allocation9], 0
    loop: start=0, step=1, limit=4
    $region2: #{tpu_custom_call.1} parent=1 // loop_pre_header
      _
    $region3: #{tpu_custom_call.1} parent=1 // loop_header
      %s35 = sphi 0, %s39
      %p36 = scmp.ge.s32.totalorder %s35, 4
      %s43 = sphi 0, %s43
      %s45 = sphi 0, %s43
      %s46 = sphi 0, %s45
      %s60 = sphi 0, %s46
      %s64 = sphi 0, %s64
      %s66 = sphi 0, %s64
      %s67 = sphi 0, %s66
      %s81 = sphi 0, %s67
      %s87 = sphi 0, %s89
      %s90 = sphi 0, %s87
      %s91 = sphi 0, %s90
      %s107 = sphi 0, %s91
      %s113 = sphi 0, %s115
      %s116 = sphi 0, %s113
      %s117 = sphi 0, %s116
      %s133 = sphi 0, %s117
      %s139 = sphi 0, %s141
      %s142 = sphi 0, %s139
      %s143 = sphi 0, %s142
      %s159 = sphi 0, %s143
      %s165 = sphi 0, %s167
      %s168 = sphi 0, %s165
      %s169 = sphi 0, %s168
      %s185 = sphi 0, %s169
      %s191 = sphi 0, %s193
      %s194 = sphi 0, %s191
      %s195 = sphi 0, %s194
      %s211 = sphi 0, %s195
      %s217 = sphi 0, %s219
      %s220 = sphi 0, %s217
      %s221 = sphi 0, %s220
      %s237 = sphi 0, %s221
      %s243 = sphi 0, %s245
      %s246 = sphi 0, %s243
      %s247 = sphi 0, %s246
      %s263 = sphi 0, %s247
      %s269 = sphi 0, %s271
      %s272 = sphi 0, %s269
      %s273 = sphi 0, %s272
      %s289 = sphi 0, %s273
      %s295 = sphi 0, %s297
      %s298 = sphi 0, %s295
      %s299 = sphi 0, %s298
      %s315 = sphi 0, %s299
      %s321 = sphi 0, %s323
      %s324 = sphi 0, %s321
      %s325 = sphi 0, %s324
      %s341 = sphi 0, %s325
      %s347 = sphi 0, %s349
      %s350 = sphi 0, %s347
      %s351 = sphi 0, %s350
      %s367 = sphi 0, %s351
      %s373 = sphi 0, %s375
      %s376 = sphi 0, %s373
      %s377 = sphi 0, %s376
      %s393 = sphi 0, %s377
      %s397 = sphi 0, %s397
      %s399 = sphi 0, %s397
      %s400 = sphi 0, %s399
      %s414 = sphi 0, %s400
      %s418 = sphi 0, %s418
      %s420 = sphi 0, %s418
      %s421 = sphi 0, %s420
      %s435 = sphi 0, %s421
      %s439 = sphi 0, %s439
      %s441 = sphi 0, %s439
      %s442 = sphi 0, %s441
      %s456 = sphi 0, %s442
    $region4: #{tpu_custom_call.1} parent=1 // loop_header_branch
      %38 = sbr.rel (%p36) target = $region8
    $region5: #{tpu_custom_call.1} parent=1 // loop_body
      %s40 = ssub.s32 %s35, 1
      %s41 = ssub.s32 %s35, 2
      %s42 = sadd.s32 %s35, 1
      %s44 = sadd.s32 %s43, 1
      %p47 = scmp.eq.s32.totalorder %s35, 1
      %p48 = scmp.ne.s32.totalorder %s43, %s45
      %p49 = scmp.eq.s32.totalorder %s35, 0
      %p50 = por %p48, %p49
      %p51 = scmp.ne.s32.totalorder %s43, %s45
      %p52 = scmp.eq.s32.totalorder %s40, 1
      %p53 = por %p51, %p52
      %p54 = scmp.ne.s32.totalorder %s45, %s46
      %p55 = scmp.eq.s32.totalorder %s40, 0
      %p56 = por %p54, %p55
      %p57 = scmp.ne.s32.totalorder %s45, %s46
      %p58 = scmp.eq.s32.totalorder %s41, 1
      %p59 = por %p57, %p58
      %p61 = scmp.ne.s32.totalorder %s46, %s60
      %p62 = scmp.eq.s32.totalorder %s41, 0
      %p63 = por %p61, %p62
      %s65 = sadd.s32 %s64, 1
      %p68 = scmp.eq.s32.totalorder %s35, 1
      %p69 = scmp.ne.s32.totalorder %s64, %s66
      %p70 = scmp.eq.s32.totalorder %s35, 0
      %p71 = por %p69, %p70
      %p72 = scmp.ne.s32.totalorder %s64, %s66
      %p73 = scmp.eq.s32.totalorder %s40, 1
      %p74 = por %p72, %p73
      %p75 = scmp.ne.s32.totalorder %s66, %s67
      %p76 = scmp.eq.s32.totalorder %s40, 0
      %p77 = por %p75, %p76
      %p78 = scmp.ne.s32.totalorder %s66, %s67
      %p79 = scmp.eq.s32.totalorder %s41, 1
      %p80 = por %p78, %p79
      %p82 = scmp.ne.s32.totalorder %s67, %s81
      %p83 = scmp.eq.s32.totalorder %s41, 0
      %p84 = por %p82, %p83
      %s85 = ssub.s32 %s35, %s42
      %p86 = scmp.eq.s32.totalorder %s85, 0
      %s88 = sadd.s32 %s87, 1
      %s89 = scalar_select %p86, %s87, %s88
      %p92 = pneg %p86
      %p93 = scmp.eq.s32.totalorder %s35, 1
      %p94 = por %p92, %p93
      %p95 = scmp.ne.s32.totalorder %s87, %s90
      %p96 = scmp.eq.s32.totalorder %s35, 0
      %p97 = por %p95, %p96
      %p98 = scmp.ne.s32.totalorder %s87, %s90
      %p99 = scmp.eq.s32.totalorder %s40, 1
      %p100 = por %p98, %p99
      %p101 = scmp.ne.s32.totalorder %s90, %s91
      %p102 = scmp.eq.s32.totalorder %s40, 0
      %p103 = por %p101, %p102
      %p104 = scmp.ne.s32.totalorder %s90, %s91
      %p105 = scmp.eq.s32.totalorder %s41, 1
      %p106 = por %p104, %p105
      %p108 = scmp.ne.s32.totalorder %s91, %s107
      %p109 = scmp.eq.s32.totalorder %s41, 0
      %p110 = por %p108, %p109
      %s111 = ssub.s32 %s35, %s42
      %p112 = scmp.eq.s32.totalorder %s111, 0
      %s114 = sadd.s32 %s113, 1
      %s115 = scalar_select %p112, %s113, %s114
      %p118 = pneg %p112
      %p119 = scmp.eq.s32.totalorder %s35, 1
      %p120 = por %p118, %p119
      %p121 = scmp.ne.s32.totalorder %s113, %s116
      %p122 = scmp.eq.s32.totalorder %s35, 0
      %p123 = por %p121, %p122
      %p124 = scmp.ne.s32.totalorder %s113, %s116
      %p125 = scmp.eq.s32.totalorder %s40, 1
      %p126 = por %p124, %p125
      %p127 = scmp.ne.s32.totalorder %s116, %s117
      %p128 = scmp.eq.s32.totalorder %s40, 0
      %p129 = por %p127, %p128
      %p130 = scmp.ne.s32.totalorder %s116, %s117
      %p131 = scmp.eq.s32.totalorder %s41, 1
      %p132 = por %p130, %p131
      %p134 = scmp.ne.s32.totalorder %s117, %s133
      %p135 = scmp.eq.s32.totalorder %s41, 0
      %p136 = por %p134, %p135
      %s137 = ssub.s32 %s35, %s42
      %p138 = scmp.eq.s32.totalorder %s137, 0
      %s140 = sadd.s32 %s139, 1
      %s141 = scalar_select %p138, %s139, %s140
      %p144 = pneg %p138
      %p145 = scmp.eq.s32.totalorder %s35, 1
      %p146 = por %p144, %p145
      %p147 = scmp.ne.s32.totalorder %s139, %s142
      %p148 = scmp.eq.s32.totalorder %s35, 0
      %p149 = por %p147, %p148
      %p150 = scmp.ne.s32.totalorder %s139, %s142
      %p151 = scmp.eq.s32.totalorder %s40, 1
      %p152 = por %p150, %p151
      %p153 = scmp.ne.s32.totalorder %s142, %s143
      %p154 = scmp.eq.s32.totalorder %s40, 0
      %p155 = por %p153, %p154
      %p156 = scmp.ne.s32.totalorder %s142, %s143
      %p157 = scmp.eq.s32.totalorder %s41, 1
      %p158 = por %p156, %p157
      %p160 = scmp.ne.s32.totalorder %s143, %s159
      %p161 = scmp.eq.s32.totalorder %s41, 0
      %p162 = por %p160, %p161
      %s163 = ssub.s32 %s35, %s42
      %p164 = scmp.eq.s32.totalorder %s163, 0
      %s166 = sadd.s32 %s165, 1
      %s167 = scalar_select %p164, %s165, %s166
      %p170 = pneg %p164
      %p171 = scmp.eq.s32.totalorder %s35, 1
      %p172 = por %p170, %p171
      %p173 = scmp.ne.s32.totalorder %s165, %s168
      %p174 = scmp.eq.s32.totalorder %s35, 0
      %p175 = por %p173, %p174
      %p176 = scmp.ne.s32.totalorder %s165, %s168
      %p177 = scmp.eq.s32.totalorder %s40, 1
      %p178 = por %p176, %p177
      %p179 = scmp.ne.s32.totalorder %s168, %s169
      %p180 = scmp.eq.s32.totalorder %s40, 0
      %p181 = por %p179, %p180
      %p182 = scmp.ne.s32.totalorder %s168, %s169
      %p183 = scmp.eq.s32.totalorder %s41, 1
      %p184 = por %p182, %p183
      %p186 = scmp.ne.s32.totalorder %s169, %s185
      %p187 = scmp.eq.s32.totalorder %s41, 0
      %p188 = por %p186, %p187
      %s189 = ssub.s32 %s35, %s42
      %p190 = scmp.eq.s32.totalorder %s189, 0
      %s192 = sadd.s32 %s191, 1
      %s193 = scalar_select %p190, %s191, %s192
      %p196 = pneg %p190
      %p197 = scmp.eq.s32.totalorder %s35, 1
      %p198 = por %p196, %p197
      %p199 = scmp.ne.s32.totalorder %s191, %s194
      %p200 = scmp.eq.s32.totalorder %s35, 0
      %p201 = por %p199, %p200
      %p202 = scmp.ne.s32.totalorder %s191, %s194
      %p203 = scmp.eq.s32.totalorder %s40, 1
      %p204 = por %p202, %p203
      %p205 = scmp.ne.s32.totalorder %s194, %s195
      %p206 = scmp.eq.s32.totalorder %s40, 0
      %p207 = por %p205, %p206
      %p208 = scmp.ne.s32.totalorder %s194, %s195
      %p209 = scmp.eq.s32.totalorder %s41, 1
      %p210 = por %p208, %p209
      %p212 = scmp.ne.s32.totalorder %s195, %s211
      %p213 = scmp.eq.s32.totalorder %s41, 0
      %p214 = por %p212, %p213
      %s215 = ssub.s32 %s35, %s42
      %p216 = scmp.eq.s32.totalorder %s215, 0
      %s218 = sadd.s32 %s217, 1
      %s219 = scalar_select %p216, %s217, %s218
      %p222 = pneg %p216
      %p223 = scmp.eq.s32.totalorder %s35, 1
      %p224 = por %p222, %p223
      %p225 = scmp.ne.s32.totalorder %s217, %s220
      %p226 = scmp.eq.s32.totalorder %s35, 0
      %p227 = por %p225, %p226
      %p228 = scmp.ne.s32.totalorder %s217, %s220
      %p229 = scmp.eq.s32.totalorder %s40, 1
      %p230 = por %p228, %p229
      %p231 = scmp.ne.s32.totalorder %s220, %s221
      %p232 = scmp.eq.s32.totalorder %s40, 0
      %p233 = por %p231, %p232
      %p234 = scmp.ne.s32.totalorder %s220, %s221
      %p235 = scmp.eq.s32.totalorder %s41, 1
      %p236 = por %p234, %p235
      %p238 = scmp.ne.s32.totalorder %s221, %s237
      %p239 = scmp.eq.s32.totalorder %s41, 0
      %p240 = por %p238, %p239
      %s241 = ssub.s32 %s35, %s42
      %p242 = scmp.eq.s32.totalorder %s241, 0
      %s244 = sadd.s32 %s243, 1
      %s245 = scalar_select %p242, %s243, %s244
      %p248 = pneg %p242
      %p249 = scmp.eq.s32.totalorder %s35, 1
      %p250 = por %p248, %p249
      %p251 = scmp.ne.s32.totalorder %s243, %s246
      %p252 = scmp.eq.s32.totalorder %s35, 0
      %p253 = por %p251, %p252
      %p254 = scmp.ne.s32.totalorder %s243, %s246
      %p255 = scmp.eq.s32.totalorder %s40, 1
      %p256 = por %p254, %p255
      %p257 = scmp.ne.s32.totalorder %s246, %s247
      %p258 = scmp.eq.s32.totalorder %s40, 0
      %p259 = por %p257, %p258
      %p260 = scmp.ne.s32.totalorder %s246, %s247
      %p261 = scmp.eq.s32.totalorder %s41, 1
      %p262 = por %p260, %p261
      %p264 = scmp.ne.s32.totalorder %s247, %s263
      %p265 = scmp.eq.s32.totalorder %s41, 0
      %p266 = por %p264, %p265
      %s267 = ssub.s32 %s35, %s42
      %p268 = scmp.eq.s32.totalorder %s267, 0
      %s270 = sadd.s32 %s269, 1
      %s271 = scalar_select %p268, %s269, %s270
      %p274 = pneg %p268
      %p275 = scmp.eq.s32.totalorder %s35, 1
      %p276 = por %p274, %p275
      %p277 = scmp.ne.s32.totalorder %s269, %s272
      %p278 = scmp.eq.s32.totalorder %s35, 0
      %p279 = por %p277, %p278
      %p280 = scmp.ne.s32.totalorder %s269, %s272
      %p281 = scmp.eq.s32.totalorder %s40, 1
      %p282 = por %p280, %p281
      %p283 = scmp.ne.s32.totalorder %s272, %s273
      %p284 = scmp.eq.s32.totalorder %s40, 0
      %p285 = por %p283, %p284
      %p286 = scmp.ne.s32.totalorder %s272, %s273
      %p287 = scmp.eq.s32.totalorder %s41, 1
      %p288 = por %p286, %p287
      %p290 = scmp.ne.s32.totalorder %s273, %s289
      %p291 = scmp.eq.s32.totalorder %s41, 0
      %p292 = por %p290, %p291
      %s293 = ssub.s32 %s35, %s42
      %p294 = scmp.eq.s32.totalorder %s293, 0
      %s296 = sadd.s32 %s295, 1
      %s297 = scalar_select %p294, %s295, %s296
      %p300 = pneg %p294
      %p301 = scmp.eq.s32.totalorder %s35, 1
      %p302 = por %p300, %p301
      %p303 = scmp.ne.s32.totalorder %s295, %s298
      %p304 = scmp.eq.s32.totalorder %s35, 0
      %p305 = por %p303, %p304
      %p306 = scmp.ne.s32.totalorder %s295, %s298
      %p307 = scmp.eq.s32.totalorder %s40, 1
      %p308 = por %p306, %p307
      %p309 = scmp.ne.s32.totalorder %s298, %s299
      %p310 = scmp.eq.s32.totalorder %s40, 0
      %p311 = por %p309, %p310
      %p312 = scmp.ne.s32.totalorder %s298, %s299
      %p313 = scmp.eq.s32.totalorder %s41, 1
      %p314 = por %p312, %p313
      %p316 = scmp.ne.s32.totalorder %s299, %s315
      %p317 = scmp.eq.s32.totalorder %s41, 0
      %p318 = por %p316, %p317
      %s319 = ssub.s32 %s35, %s42
      %p320 = scmp.eq.s32.totalorder %s319, 0
      %s322 = sadd.s32 %s321, 1
      %s323 = scalar_select %p320, %s321, %s322
      %p326 = pneg %p320
      %p327 = scmp.eq.s32.totalorder %s35, 1
      %p328 = por %p326, %p327
      %p329 = scmp.ne.s32.totalorder %s321, %s324
      %p330 = scmp.eq.s32.totalorder %s35, 0
      %p331 = por %p329, %p330
      %p332 = scmp.ne.s32.totalorder %s321, %s324
      %p333 = scmp.eq.s32.totalorder %s40, 1
      %p334 = por %p332, %p333
      %p335 = scmp.ne.s32.totalorder %s324, %s325
      %p336 = scmp.eq.s32.totalorder %s40, 0
      %p337 = por %p335, %p336
      %p338 = scmp.ne.s32.totalorder %s324, %s325
      %p339 = scmp.eq.s32.totalorder %s41, 1
      %p340 = por %p338, %p339
      %p342 = scmp.ne.s32.totalorder %s325, %s341
      %p343 = scmp.eq.s32.totalorder %s41, 0
      %p344 = por %p342, %p343
      %s345 = ssub.s32 %s35, %s42
      %p346 = scmp.eq.s32.totalorder %s345, 0
      %s348 = sadd.s32 %s347, 1
      %s349 = scalar_select %p346, %s347, %s348
      %p352 = pneg %p346
      %p353 = scmp.eq.s32.totalorder %s35, 1
      %p354 = por %p352, %p353
      %p355 = scmp.ne.s32.totalorder %s347, %s350
      %p356 = scmp.eq.s32.totalorder %s35, 0
      %p357 = por %p355, %p356
      %p358 = scmp.ne.s32.totalorder %s347, %s350
      %p359 = scmp.eq.s32.totalorder %s40, 1
      %p360 = por %p358, %p359
      %p361 = scmp.ne.s32.totalorder %s350, %s351
      %p362 = scmp.eq.s32.totalorder %s40, 0
      %p363 = por %p361, %p362
      %p364 = scmp.ne.s32.totalorder %s350, %s351
      %p365 = scmp.eq.s32.totalorder %s41, 1
      %p366 = por %p364, %p365
      %p368 = scmp.ne.s32.totalorder %s351, %s367
      %p369 = scmp.eq.s32.totalorder %s41, 0
      %p370 = por %p368, %p369
      %s371 = ssub.s32 %s35, %s42
      %p372 = scmp.eq.s32.totalorder %s371, 0
      %s374 = sadd.s32 %s373, 1
      %s375 = scalar_select %p372, %s373, %s374
      %p378 = pneg %p372
      %p379 = scmp.eq.s32.totalorder %s35, 1
      %p380 = por %p378, %p379
      %p381 = scmp.ne.s32.totalorder %s373, %s376
      %p382 = scmp.eq.s32.totalorder %s35, 0
      %p383 = por %p381, %p382
      %p384 = scmp.ne.s32.totalorder %s373, %s376
      %p385 = scmp.eq.s32.totalorder %s40, 1
      %p386 = por %p384, %p385
      %p387 = scmp.ne.s32.totalorder %s376, %s377
      %p388 = scmp.eq.s32.totalorder %s40, 0
      %p389 = por %p387, %p388
      %p390 = scmp.ne.s32.totalorder %s376, %s377
      %p391 = scmp.eq.s32.totalorder %s41, 1
      %p392 = por %p390, %p391
      %p394 = scmp.ne.s32.totalorder %s377, %s393
      %p395 = scmp.eq.s32.totalorder %s41, 0
      %p396 = por %p394, %p395
      %s398 = sadd.s32 %s397, 1
      %p401 = scmp.eq.s32.totalorder %s35, 1
      %p402 = scmp.ne.s32.totalorder %s397, %s399
      %p403 = scmp.eq.s32.totalorder %s35, 0
      %p404 = por %p402, %p403
      %p405 = scmp.ne.s32.totalorder %s397, %s399
      %p406 = scmp.eq.s32.totalorder %s40, 1
      %p407 = por %p405, %p406
      %p408 = scmp.ne.s32.totalorder %s399, %s400
      %p409 = scmp.eq.s32.totalorder %s40, 0
      %p410 = por %p408, %p409
      %p411 = scmp.ne.s32.totalorder %s399, %s400
      %p412 = scmp.eq.s32.totalorder %s41, 1
      %p413 = por %p411, %p412
      %p415 = scmp.ne.s32.totalorder %s400, %s414
      %p416 = scmp.eq.s32.totalorder %s41, 0
      %p417 = por %p415, %p416
      %s419 = sadd.s32 %s418, 1
      %p422 = scmp.eq.s32.totalorder %s35, 1
      %p423 = scmp.ne.s32.totalorder %s418, %s420
      %p424 = scmp.eq.s32.totalorder %s35, 0
      %p425 = por %p423, %p424
      %p426 = scmp.ne.s32.totalorder %s418, %s420
      %p427 = scmp.eq.s32.totalorder %s40, 1
      %p428 = por %p426, %p427
      %p429 = scmp.ne.s32.totalorder %s420, %s421
      %p430 = scmp.eq.s32.totalorder %s40, 0
      %p431 = por %p429, %p430
      %p432 = scmp.ne.s32.totalorder %s420, %s421
      %p433 = scmp.eq.s32.totalorder %s41, 1
      %p434 = por %p432, %p433
      %p436 = scmp.ne.s32.totalorder %s421, %s435
      %p437 = scmp.eq.s32.totalorder %s41, 0
      %p438 = por %p436, %p437
      %s440 = sadd.s32 %s439, 1
      %p443 = scmp.eq.s32.totalorder %s35, 1
      %p444 = scmp.ne.s32.totalorder %s439, %s441
      %p445 = scmp.eq.s32.totalorder %s35, 0
      %p446 = por %p444, %p445
      %p447 = scmp.ne.s32.totalorder %s439, %s441
      %p448 = scmp.eq.s32.totalorder %s40, 1
      %p449 = por %p447, %p448
      %p450 = scmp.ne.s32.totalorder %s441, %s442
      %p451 = scmp.eq.s32.totalorder %s40, 0
      %p452 = por %p450, %p451
      %p453 = scmp.ne.s32.totalorder %s441, %s442
      %p454 = scmp.eq.s32.totalorder %s41, 1
      %p455 = por %p453, %p454
      %p457 = scmp.ne.s32.totalorder %s442, %s456
      %p458 = scmp.eq.s32.totalorder %s41, 0
      %p459 = por %p457, %p458
      %p460 = scmp.le.s32.totalorder 1, %s35
      %p461 = scmp.lt.s32.totalorder %s35, 3
      %p462 = pnand %p460, %p461
      %p463 = pneg %p462
      // Predicated region
      $region9: #{tpu_custom_call.1} parent=5 // pred_check
        _
      $region10: #{tpu_custom_call.1} parent=5 // pred_check_branch
        %465 = sbr.rel (%p462) target = $region12
      $region11: #{tpu_custom_call.1} parent=5 // pred_region
        %s466 = ssub.s32 %s35, 1
        // Predicated region
        $region13: #{tpu_custom_call.1} parent=11 // pred_check
          %p467 = pneg %p56
        $region14: #{tpu_custom_call.1} parent=11 // pred_check_branch
          %469 = sbr.rel (%p467) target = $region16
        $region15: #{tpu_custom_call.1} parent=11 // pred_region
          %471 = vsyncadd [#allocation8], 0
          %s472 = sshll.u32 %s2, 4
          %s473 = int_to_ptr.hbm [resolvable:$true] %s472
          %s474 = sshll.u32 [#allocation7], 4
          %s475 = int_to_ptr.vmem [resolvable:$true] %s474
          %480 = dma.hbm_to_vmem [thread:$0]  %s473, 512, %s475, [#allocation8], 256, 256, 16
        $region16: #{tpu_custom_call.1} parent=11 // pred_fallthru
          _
        // Predicated region
        $region17: #{tpu_custom_call.1} parent=11 // pred_check
          %p481 = pneg %p77
        $region18: #{tpu_custom_call.1} parent=11 // pred_check_branch
          %483 = sbr.rel (%p481) target = $region20
        $region19: #{tpu_custom_call.1} parent=11 // pred_region
          %485 = vsyncadd [#allocation11], 0
          %s486 = sshll.u32 %s3, 4
          %s487 = int_to_ptr.hbm [resolvable:$true] %s486
          %s488 = sshll.u32 [#allocation10], 4
          %s489 = int_to_ptr.vmem [resolvable:$true] %s488
          %494 = dma.hbm_to_vmem [thread:$0]  %s487, 256, %s489, [#allocation11], 128, 128, 8
        $region20: #{tpu_custom_call.1} parent=11 // pred_fallthru
          _
        // Predicated region
        $region21: #{tpu_custom_call.1} parent=11 // pred_check
          %p495 = pneg %p410
        $region22: #{tpu_custom_call.1} parent=11 // pred_check_branch
          %497 = sbr.rel (%p495) target = $region24
        $region23: #{tpu_custom_call.1} parent=11 // pred_region
          _
        $region24: #{tpu_custom_call.1} parent=11 // pred_fallthru
          _
        // Predicated region
        $region25: #{tpu_custom_call.1} parent=11 // pred_check
          %p498 = pneg %p431
        $region26: #{tpu_custom_call.1} parent=11 // pred_check_branch
          %500 = sbr.rel (%p498) target = $region28
        $region27: #{tpu_custom_call.1} parent=11 // pred_region
          _
        $region28: #{tpu_custom_call.1} parent=11 // pred_fallthru
          _
      $region12: #{tpu_custom_call.1} parent=5 // pred_fallthru
        _
      %p501 = scmp.lt.s32.totalorder %s35, 2
      // Predicated region
      $region29: #{tpu_custom_call.1} parent=5 // pred_check
        %p502 = pneg %p501
      $region30: #{tpu_custom_call.1} parent=5 // pred_check_branch
        %504 = sbr.rel (%p502) target = $region32
      $region31: #{tpu_custom_call.1} parent=5 // pred_region
        // Predicated region
        $region33: #{tpu_custom_call.1} parent=31 // pred_check
          %p505 = pneg %p97
        $region34: #{tpu_custom_call.1} parent=31 // pred_check_branch
          %507 = sbr.rel (%p505) target = $region36
        $region35: #{tpu_custom_call.1} parent=31 // pred_region
          %s508 = sand.u32 %s35, 1
          %s509 = scalar_lea.sflag [#allocation8], %s508
          %s510 = sand.u32 %s87, 1
          %s511 = smul.addr %s510, 2
          %s512 = scalar_lea.vmem [#allocation12], %s511
          %514 = vsyncadd %s509, 0
          %s515 = smul.addr %s35, 2
          %s516 = scalar_lea.hbm %s4, %s515
          %s518 = sshll.u32 %s516, 4
          %s519 = int_to_ptr.hbm [resolvable:$true] %s518
          %s520 = sshll.u32 %s512, 4
          %s521 = int_to_ptr.vmem [resolvable:$true] %s520
          %523 = dma.hbm_to_vmem [thread:$0]  %s519, 32, %s521, %s509
        $region36: #{tpu_custom_call.1} parent=31 // pred_fallthru
          _
        // Predicated region
        $region37: #{tpu_custom_call.1} parent=31 // pred_check
          %p524 = pneg %p123
        $region38: #{tpu_custom_call.1} parent=31 // pred_check_branch
          %526 = sbr.rel (%p524) target = $region40
        $region39: #{tpu_custom_call.1} parent=31 // pred_region
          %p527 = scmp.lt.s32.totalorder %s35, 1
          %s528 = scalar_select %p527, %s35, 1
          %s529 = smul.addr %s528, 2
          %s530 = scalar_lea.vmem %s5, %s529
        $region40: #{tpu_custom_call.1} parent=31 // pred_fallthru
          _
        // Predicated region
        $region41: #{tpu_custom_call.1} parent=31 // pred_check
          %p531 = pneg %p149
        $region42: #{tpu_custom_call.1} parent=31 // pred_check_branch
          %533 = sbr.rel (%p531) target = $region44
        $region43: #{tpu_custom_call.1} parent=31 // pred_region
          %s534 = sand.u32 %s35, 1
          %s535 = scalar_lea.sflag [#allocation8], %s534
          %s536 = sand.u32 %s139, 1
          %s537 = smul.addr %s536, 768
          %s538 = scalar_lea.vmem [#allocation13], %s537
          %540 = vsyncadd %s535, 0
          %s541 = smul.addr %s35, 192
          %s542 = smul.addr %s541, 4
          %s543 = scalar_lea.hbm %s6, %s542
          %s544 = sshll.u32 %s543, 4
          %s545 = int_to_ptr.hbm [resolvable:$true] %s544
          %s546 = sshll.u32 %s538, 4
          %s547 = int_to_ptr.vmem [resolvable:$true] %s546
          %552 = dma.hbm_to_vmem [thread:$0]  %s545, 12288, %s547, %s535, 384, 384, 24
        $region44: #{tpu_custom_call.1} parent=31 // pred_fallthru
          _
        // Predicated region
        $region45: #{tpu_custom_call.1} parent=31 // pred_check
          %p553 = pneg %p175
        $region46: #{tpu_custom_call.1} parent=31 // pred_check_branch
          %555 = sbr.rel (%p553) target = $region48
        $region47: #{tpu_custom_call.1} parent=31 // pred_region
          %s556 = sand.u32 %s35, 1
          %s557 = scalar_lea.sflag [#allocation8], %s556
          %s558 = sand.u32 %s165, 1
          %s559 = smul.addr %s558, 6
          %s560 = scalar_lea.vmem [#allocation14], %s559
          %562 = vsyncadd %s557, 0
          %s563 = smul.addr %s35, 6
          %s564 = scalar_lea.hbm %s7, %s563
          %s566 = sshll.u32 %s564, 4
          %s567 = int_to_ptr.hbm [resolvable:$true] %s566
          %s568 = sshll.u32 %s560, 4
          %s569 = int_to_ptr.vmem [resolvable:$true] %s568
          %571 = dma.hbm_to_vmem [thread:$0]  %s567, 96, %s569, %s557
        $region48: #{tpu_custom_call.1} parent=31 // pred_fallthru
          _
        // Predicated region
        $region49: #{tpu_custom_call.1} parent=31 // pred_check
          %p572 = pneg %p201
        $region50: #{tpu_custom_call.1} parent=31 // pred_check_branch
          %574 = sbr.rel (%p572) target = $region52
        $region51: #{tpu_custom_call.1} parent=31 // pred_region
          %s575 = sand.u32 %s35, 1
          %s576 = scalar_lea.sflag [#allocation8], %s575
          %s577 = sand.u32 %s191, 1
          %s578 = smul.addr %s577, 256
          %s579 = scalar_lea.vmem [#allocation15], %s578
          %581 = vsyncadd %s576, 0
          %s582 = smul.addr %s35, 64
          %s583 = smul.addr %s582, 4
          %s584 = scalar_lea.hbm %s8, %s583
          %s585 = sshll.u32 %s584, 4
          %s586 = int_to_ptr.hbm [resolvable:$true] %s585
          %s587 = sshll.u32 %s579, 4
          %s588 = int_to_ptr.vmem [resolvable:$true] %s587
          %593 = dma.hbm_to_vmem [thread:$0]  %s586, 4096, %s588, %s576, 128, 128, 8
        $region52: #{tpu_custom_call.1} parent=31 // pred_fallthru
          _
        // Predicated region
        $region53: #{tpu_custom_call.1} parent=31 // pred_check
          %p594 = pneg %p227
        $region54: #{tpu_custom_call.1} parent=31 // pred_check_branch
          %596 = sbr.rel (%p594) target = $region56
        $region55: #{tpu_custom_call.1} parent=31 // pred_region
          %p597 = scmp.lt.s32.totalorder %s35, 1
          %s598 = scalar_select %p597, %s35, 1
          %s599 = smul.addr %s598, 2
          %s600 = scalar_lea.vmem %s9, %s599
        $region56: #{tpu_custom_call.1} parent=31 // pred_fallthru
          _
        // Predicated region
        $region57: #{tpu_custom_call.1} parent=31 // pred_check
          %p601 = pneg %p253
        $region58: #{tpu_custom_call.1} parent=31 // pred_check_branch
          %603 = sbr.rel (%p601) target = $region60
        $region59: #{tpu_custom_call.1} parent=31 // pred_region
          %s604 = sand.u32 %s35, 1
          %s605 = scalar_lea.sflag [#allocation8], %s604
          %s606 = sand.u32 %s243, 1
          %s607 = smul.addr %s606, 2
          %s608 = scalar_lea.vmem [#allocation16], %s607
          %610 = vsyncadd %s605, 0
          %s611 = smul.addr %s35, 2
          %s612 = scalar_lea.hbm %s10, %s611
          %s614 = sshll.u32 %s612, 4
          %s615 = int_to_ptr.hbm [resolvable:$true] %s614
          %s616 = sshll.u32 %s608, 4
          %s617 = int_to_ptr.vmem [resolvable:$true] %s616
          %619 = dma.hbm_to_vmem [thread:$0]  %s615, 32, %s617, %s605
        $region60: #{tpu_custom_call.1} parent=31 // pred_fallthru
          _
        // Predicated region
        $region61: #{tpu_custom_call.1} parent=31 // pred_check
          %p620 = pneg %p279
        $region62: #{tpu_custom_call.1} parent=31 // pred_check_branch
          %622 = sbr.rel (%p620) target = $region64
        $region63: #{tpu_custom_call.1} parent=31 // pred_region
          %s623 = sand.u32 %s35, 1
          %s624 = scalar_lea.sflag [#allocation8], %s623
          %s625 = sand.u32 %s269, 1
          %s626 = smul.addr %s625, 2
          %s627 = scalar_lea.vmem [#allocation17], %s626
          %629 = vsyncadd %s624, 0
          %s630 = smul.addr %s35, 2
          %s631 = scalar_lea.hbm %s11, %s630
          %s633 = sshll.u32 %s631, 4
          %s634 = int_to_ptr.hbm [resolvable:$true] %s633
          %s635 = sshll.u32 %s627, 4
          %s636 = int_to_ptr.vmem [resolvable:$true] %s635
          %638 = dma.hbm_to_vmem [thread:$0]  %s634, 32, %s636, %s624
        $region64: #{tpu_custom_call.1} parent=31 // pred_fallthru
          _
        // Predicated region
        $region65: #{tpu_custom_call.1} parent=31 // pred_check
          %p639 = pneg %p305
        $region66: #{tpu_custom_call.1} parent=31 // pred_check_branch
          %641 = sbr.rel (%p639) target = $region68
        $region67: #{tpu_custom_call.1} parent=31 // pred_region
          %s642 = sand.u32 %s35, 1
          %s643 = scalar_lea.sflag [#allocation8], %s642
          %s644 = sand.u32 %s295, 1
          %s645 = smul.addr %s644, 1024
          %s646 = scalar_lea.vmem [#allocation18], %s645
          %648 = vsyncadd %s643, 0
          %s649 = smul.addr %s35, 256
          %s650 = smul.addr %s649, 4
          %s651 = scalar_lea.hbm %s12, %s650
          %s652 = sshll.u32 %s651, 4
          %s653 = int_to_ptr.hbm [resolvable:$true] %s652
          %s654 = sshll.u32 %s646, 4
          %s655 = int_to_ptr.vmem [resolvable:$true] %s654
          %660 = dma.hbm_to_vmem [thread:$0]  %s653, 16384, %s655, %s643, 512, 512, 32
        $region68: #{tpu_custom_call.1} parent=31 // pred_fallthru
          _
        // Predicated region
        $region69: #{tpu_custom_call.1} parent=31 // pred_check
          %p661 = pneg %p331
        $region70: #{tpu_custom_call.1} parent=31 // pred_check_branch
          %663 = sbr.rel (%p661) target = $region72
        $region71: #{tpu_custom_call.1} parent=31 // pred_region
          %s664 = sand.u32 %s35, 1
          %s665 = scalar_lea.sflag [#allocation8], %s664
          %s666 = sand.u32 %s321, 1
          %s667 = smul.addr %s666, 8
          %s668 = scalar_lea.vmem [#allocation19], %s667
          %670 = vsyncadd %s665, 0
          %s671 = smul.addr %s35, 8
          %s672 = scalar_lea.hbm %s13, %s671
          %s674 = sshll.u32 %s672, 4
          %s675 = int_to_ptr.hbm [resolvable:$true] %s674
          %s676 = sshll.u32 %s668, 4
          %s677 = int_to_ptr.vmem [resolvable:$true] %s676
          %679 = dma.hbm_to_vmem [thread:$0]  %s675, 128, %s677, %s665
        $region72: #{tpu_custom_call.1} parent=31 // pred_fallthru
          _
        // Predicated region
        $region73: #{tpu_custom_call.1} parent=31 // pred_check
          %p680 = pneg %p357
        $region74: #{tpu_custom_call.1} parent=31 // pred_check_branch
          %682 = sbr.rel (%p680) target = $region76
        $region75: #{tpu_custom_call.1} parent=31 // pred_region
          %s683 = sand.u32 %s35, 1
          %s684 = scalar_lea.sflag [#allocation8], %s683
          %s685 = sand.u32 %s347, 1
          %s686 = smul.addr %s685, 1024
          %s687 = scalar_lea.vmem [#allocation20], %s686
          %689 = vsyncadd %s684, 0
          %s690 = smul.addr %s35, 256
          %s691 = smul.addr %s690, 4
          %s692 = scalar_lea.hbm %s14, %s691
          %s693 = sshll.u32 %s692, 4
          %s694 = int_to_ptr.hbm [resolvable:$true] %s693
          %s695 = sshll.u32 %s687, 4
          %s696 = int_to_ptr.vmem [resolvable:$true] %s695
          %701 = dma.hbm_to_vmem [thread:$0]  %s694, 16384, %s696, %s684, 128, 128, 8
        $region76: #{tpu_custom_call.1} parent=31 // pred_fallthru
          _
        // Predicated region
        $region77: #{tpu_custom_call.1} parent=31 // pred_check
          %p702 = pneg %p383
        $region78: #{tpu_custom_call.1} parent=31 // pred_check_branch
          %704 = sbr.rel (%p702) target = $region80
        $region79: #{tpu_custom_call.1} parent=31 // pred_region
          %p705 = scmp.lt.s32.totalorder %s35, 1
          %s706 = scalar_select %p705, %s35, 1
          %s707 = smul.addr %s706, 2
          %s708 = scalar_lea.vmem %s15, %s707
        $region80: #{tpu_custom_call.1} parent=31 // pred_fallthru
          _
      $region32: #{tpu_custom_call.1} parent=5 // pred_fallthru
        _
      %p709 = scmp.le.s32.totalorder 1, %s35
      %p710 = scmp.lt.s32.totalorder %s35, 3
      %p711 = pnand %p709, %p710
      %p712 = pneg %p711
      // Predicated region
      $region81: #{tpu_custom_call.1} parent=5 // pred_check
        _
      $region82: #{tpu_custom_call.1} parent=5 // pred_check_branch
        %714 = sbr.rel (%p711) target = $region84
      $region83: #{tpu_custom_call.1} parent=5 // pred_region
        %s715 = ssub.s32 %s35, 1
        // Predicated region
        $region85: #{tpu_custom_call.1} parent=83 // pred_check
          %p716 = pneg %p56
        $region86: #{tpu_custom_call.1} parent=83 // pred_check_branch
          %718 = sbr.rel (%p716) target = $region88
        $region87: #{tpu_custom_call.1} parent=83 // pred_region
          %720 = dma.done [#allocation8], 512
        $region88: #{tpu_custom_call.1} parent=83 // pred_fallthru
          _
        // Predicated region
        $region89: #{tpu_custom_call.1} parent=83 // pred_check
          %p721 = pneg %p77
        $region90: #{tpu_custom_call.1} parent=83 // pred_check_branch
          %723 = sbr.rel (%p721) target = $region92
        $region91: #{tpu_custom_call.1} parent=83 // pred_region
          %725 = dma.done [#allocation11], 256
        $region92: #{tpu_custom_call.1} parent=83 // pred_fallthru
          _
        %s726 = sand.u32 %s40, 1
        %s727 = scalar_lea.sflag [#allocation8], %s726
        %s728 = sand.u32 %s90, 1
        %s729 = smul.addr %s728, 2
        %s730 = scalar_lea.vmem [#allocation12], %s729
        // Predicated region
        $region93: #{tpu_custom_call.1} parent=83 // pred_check
          %p731 = pneg %p103
        $region94: #{tpu_custom_call.1} parent=83 // pred_check_branch
          %733 = sbr.rel (%p731) target = $region96
        $region95: #{tpu_custom_call.1} parent=83 // pred_region
          %735 = dma.done %s727, 32
        $region96: #{tpu_custom_call.1} parent=83 // pred_fallthru
          _
        %s736 = sand.u32 %s40, 1
        %s737 = scalar_lea.sflag [#allocation8], %s736
        %s738 = sand.u32 %s142, 1
        %s739 = smul.addr %s738, 768
        %s740 = scalar_lea.vmem [#allocation13], %s739
        // Predicated region
        $region97: #{tpu_custom_call.1} parent=83 // pred_check
          %p741 = pneg %p155
        $region98: #{tpu_custom_call.1} parent=83 // pred_check_branch
          %743 = sbr.rel (%p741) target = $region100
        $region99: #{tpu_custom_call.1} parent=83 // pred_region
          %745 = dma.done %s737, 12288
        $region100: #{tpu_custom_call.1} parent=83 // pred_fallthru
          _
        %s746 = sand.u32 %s40, 1
        %s747 = scalar_lea.sflag [#allocation8], %s746
        %s748 = sand.u32 %s168, 1
        %s749 = smul.addr %s748, 6
        %s750 = scalar_lea.vmem [#allocation14], %s749
        // Predicated region
        $region101: #{tpu_custom_call.1} parent=83 // pred_check
          %p751 = pneg %p181
        $region102: #{tpu_custom_call.1} parent=83 // pred_check_branch
          %753 = sbr.rel (%p751) target = $region104
        $region103: #{tpu_custom_call.1} parent=83 // pred_region
          %755 = dma.done %s747, 96
        $region104: #{tpu_custom_call.1} parent=83 // pred_fallthru
          _
        %s756 = sand.u32 %s40, 1
        %s757 = scalar_lea.sflag [#allocation8], %s756
        %s758 = sand.u32 %s194, 1
        %s759 = smul.addr %s758, 256
        %s760 = scalar_lea.vmem [#allocation15], %s759
        // Predicated region
        $region105: #{tpu_custom_call.1} parent=83 // pred_check
          %p761 = pneg %p207
        $region106: #{tpu_custom_call.1} parent=83 // pred_check_branch
          %763 = sbr.rel (%p761) target = $region108
        $region107: #{tpu_custom_call.1} parent=83 // pred_region
          %765 = dma.done %s757, 4096
        $region108: #{tpu_custom_call.1} parent=83 // pred_fallthru
          _
        %s766 = sand.u32 %s40, 1
        %s767 = scalar_lea.sflag [#allocation8], %s766
        %s768 = sand.u32 %s246, 1
        %s769 = smul.addr %s768, 2
        %s770 = scalar_lea.vmem [#allocation16], %s769
        // Predicated region
        $region109: #{tpu_custom_call.1} parent=83 // pred_check
          %p771 = pneg %p259
        $region110: #{tpu_custom_call.1} parent=83 // pred_check_branch
          %773 = sbr.rel (%p771) target = $region112
        $region111: #{tpu_custom_call.1} parent=83 // pred_region
          %775 = dma.done %s767, 32
        $region112: #{tpu_custom_call.1} parent=83 // pred_fallthru
          _
        %s776 = sand.u32 %s40, 1
        %s777 = scalar_lea.sflag [#allocation8], %s776
        %s778 = sand.u32 %s272, 1
        %s779 = smul.addr %s778, 2
        %s780 = scalar_lea.vmem [#allocation17], %s779
        // Predicated region
        $region113: #{tpu_custom_call.1} parent=83 // pred_check
          %p781 = pneg %p285
        $region114: #{tpu_custom_call.1} parent=83 // pred_check_branch
          %783 = sbr.rel (%p781) target = $region116
        $region115: #{tpu_custom_call.1} parent=83 // pred_region
          %785 = dma.done %s777, 32
        $region116: #{tpu_custom_call.1} parent=83 // pred_fallthru
          _
        %s786 = sand.u32 %s40, 1
        %s787 = scalar_lea.sflag [#allocation8], %s786
        %s788 = sand.u32 %s298, 1
        %s789 = smul.addr %s788, 1024
        %s790 = scalar_lea.vmem [#allocation18], %s789
        // Predicated region
        $region117: #{tpu_custom_call.1} parent=83 // pred_check
          %p791 = pneg %p311
        $region118: #{tpu_custom_call.1} parent=83 // pred_check_branch
          %793 = sbr.rel (%p791) target = $region120
        $region119: #{tpu_custom_call.1} parent=83 // pred_region
          %795 = dma.done %s787, 16384
        $region120: #{tpu_custom_call.1} parent=83 // pred_fallthru
          _
        %s796 = sand.u32 %s40, 1
        %s797 = scalar_lea.sflag [#allocation8], %s796
        %s798 = sand.u32 %s324, 1
        %s799 = smul.addr %s798, 8
        %s800 = scalar_lea.vmem [#allocation19], %s799
        // Predicated region
        $region121: #{tpu_custom_call.1} parent=83 // pred_check
          %p801 = pneg %p337
        $region122: #{tpu_custom_call.1} parent=83 // pred_check_branch
          %803 = sbr.rel (%p801) target = $region124
        $region123: #{tpu_custom_call.1} parent=83 // pred_region
          %805 = dma.done %s797, 128
        $region124: #{tpu_custom_call.1} parent=83 // pred_fallthru
          _
        %s806 = sand.u32 %s40, 1
        %s807 = scalar_lea.sflag [#allocation8], %s806
        %s808 = sand.u32 %s350, 1
        %s809 = smul.addr %s808, 1024
        %s810 = scalar_lea.vmem [#allocation20], %s809
        // Predicated region
        $region125: #{tpu_custom_call.1} parent=83 // pred_check
          %p811 = pneg %p363
        $region126: #{tpu_custom_call.1} parent=83 // pred_check_branch
          %813 = sbr.rel (%p811) target = $region128
        $region127: #{tpu_custom_call.1} parent=83 // pred_region
          %815 = dma.done %s807, 16384
        $region128: #{tpu_custom_call.1} parent=83 // pred_fallthru
          _
        %p816 = pneg %p56
        %p817 = pneg %p53
        %p818 = pneg %p77
        %p819 = pneg %p74
        %s820 = sand.u32 %s40, 1
        %s821 = scalar_lea.sflag [#allocation8], %s820
        %s822 = sand.u32 %s90, 1
        %s823 = smul.addr %s822, 2
        %s824 = scalar_lea.vmem [#allocation12], %s823
        %p825 = pneg %p103
        %p826 = pneg %p100
        %p827 = scmp.lt.s32.totalorder %s40, 1
        %s828 = scalar_select %p827, %s40, 1
        %s829 = smul.addr %s828, 2
        %s830 = scalar_lea.vmem %s5, %s829
        %p831 = pneg %p129
        %p832 = pneg %p126
        %s833 = sand.u32 %s40, 1
        %s834 = scalar_lea.sflag [#allocation8], %s833
        %s835 = sand.u32 %s142, 1
        %s836 = smul.addr %s835, 768
        %s837 = scalar_lea.vmem [#allocation13], %s836
        %p838 = pneg %p155
        %p839 = pneg %p152
        %s840 = sand.u32 %s40, 1
        %s841 = scalar_lea.sflag [#allocation8], %s840
        %s842 = sand.u32 %s168, 1
        %s843 = smul.addr %s842, 6
        %s844 = scalar_lea.vmem [#allocation14], %s843
        %p845 = pneg %p181
        %p846 = pneg %p178
        %s847 = sand.u32 %s40, 1
        %s848 = scalar_lea.sflag [#allocation8], %s847
        %s849 = sand.u32 %s194, 1
        %s850 = smul.addr %s849, 256
        %s851 = scalar_lea.vmem [#allocation15], %s850
        %p852 = pneg %p207
        %p853 = pneg %p204
        %p854 = scmp.lt.s32.totalorder %s40, 1
        %s855 = scalar_select %p854, %s40, 1
        %s856 = smul.addr %s855, 2
        %s857 = scalar_lea.vmem %s9, %s856
        %p858 = pneg %p233
        %p859 = pneg %p230
        %s860 = sand.u32 %s40, 1
        %s861 = scalar_lea.sflag [#allocation8], %s860
        %s862 = sand.u32 %s246, 1
        %s863 = smul.addr %s862, 2
        %s864 = scalar_lea.vmem [#allocation16], %s863
        %p865 = pneg %p259
        %p866 = pneg %p256
        %s867 = sand.u32 %s40, 1
        %s868 = scalar_lea.sflag [#allocation8], %s867
        %s869 = sand.u32 %s272, 1
        %s870 = smul.addr %s869, 2
        %s871 = scalar_lea.vmem [#allocation17], %s870
        %p872 = pneg %p285
        %p873 = pneg %p282
        %s874 = sand.u32 %s40, 1
        %s875 = scalar_lea.sflag [#allocation8], %s874
        %s876 = sand.u32 %s298, 1
        %s877 = smul.addr %s876, 1024
        %s878 = scalar_lea.vmem [#allocation18], %s877
        %p879 = pneg %p311
        %p880 = pneg %p308
        %s881 = sand.u32 %s40, 1
        %s882 = scalar_lea.sflag [#allocation8], %s881
        %s883 = sand.u32 %s324, 1
        %s884 = smul.addr %s883, 8
        %s885 = scalar_lea.vmem [#allocation19], %s884
        %p886 = pneg %p337
        %p887 = pneg %p334
        %s888 = sand.u32 %s40, 1
        %s889 = scalar_lea.sflag [#allocation8], %s888
        %s890 = sand.u32 %s350, 1
        %s891 = smul.addr %s890, 1024
        %s892 = scalar_lea.vmem [#allocation20], %s891
        %p893 = pneg %p363
        %p894 = pneg %p360
        %p895 = scmp.lt.s32.totalorder %s40, 1
        %s896 = scalar_select %p895, %s40, 1
        %s897 = smul.addr %s896, 2
        %s898 = scalar_lea.vmem %s15, %s897
        %p899 = pneg %p389
        %p900 = pneg %p386
        %p901 = pneg %p410
        %p902 = pneg %p407
        %p903 = pneg %p431
        %p904 = pneg %p428
        %p905 = pneg %p452
        %p906 = pneg %p449
        %p907 = scmp.lt.s32.totalorder %s40, 1
        %s908 = scalar_select %p907, %s40, 1
        %s909 = smul.addr %s908, 2
        %s910 = scalar_lea.vmem %s5, %s909
        %p911 = scmp.lt.s32.totalorder %s40, 1
        %s912 = scalar_select %p911, %s40, 1
        %s913 = smul.addr %s912, 2
        %s914 = scalar_lea.vmem %s9, %s913
        %p915 = scmp.lt.s32.totalorder %s40, 1
        %s916 = scalar_select %p915, %s40, 1
        %s917 = smul.addr %s916, 2
        %s918 = scalar_lea.vmem %s15, %s917
        %p920 = scmp.eq.s32.totalorder %s40, 0
        // Predicated region
        $region129: #{tpu_custom_call.1} parent=83 // pred_check
          %p921 = pneg %p920
        $region130: #{tpu_custom_call.1} parent=83 // pred_check_branch
          %923 = sbr.rel (%p921) target = $region132
        $region131: #{tpu_custom_call.1} parent=83 // pred_region
          %s924 = sld [smem:[#allocation6]]
          %s925 = sshrl.u32 %s924, 3
          %s926 = sand.u32 %s924, 7
          %s927 = smul.u32 %s925, 16
          %s928 = sadd.s32 %s926, %s927
          %s929 = scalar_lea.hbm %s1, %s928
          %s930 = sshll.u32 %s929, 4
          %s931 = int_to_ptr.hbm [resolvable:$true] %s930
          %s932 = sshll.u32 [#allocation2], 4
          %s933 = int_to_ptr.vmem [resolvable:$true] %s932
          %937 = dma.hbm_to_vmem [thread:$0]  %s931, 32, %s933, [#allocation4], 128, 128, 1
          %s938 = sld [smem:[#allocation6 + $0x1]]
          %s939 = sshrl.u32 %s938, 3
          %s940 = sand.u32 %s938, 7
          %s941 = smul.u32 %s939, 16
          %s942 = sadd.s32 %s940, %s941
          %s943 = scalar_lea.hbm %s1, %s942
          %s944 = scalar_lea.vmem [#allocation2], 1
          %s945 = scalar_lea.sflag [#allocation4], 1
          %s946 = sshll.u32 %s943, 4
          %s947 = int_to_ptr.hbm [resolvable:$true] %s946
          %s948 = sshll.u32 %s944, 4
          %s949 = int_to_ptr.vmem [resolvable:$true] %s948
          %953 = dma.hbm_to_vmem [thread:$0]  %s947, 32, %s949, %s945, 128, 128, 1
          %s954 = sld [smem:[#allocation6 + $0x2]]
          %s955 = sshrl.u32 %s954, 3
          %s956 = sand.u32 %s954, 7
          %s957 = smul.u32 %s955, 16
          %s958 = sadd.s32 %s956, %s957
          %s959 = scalar_lea.hbm %s1, %s958
          %s960 = scalar_lea.vmem [#allocation2], 2
          %s961 = scalar_lea.sflag [#allocation4], 2
          %s962 = sshll.u32 %s959, 4
          %s963 = int_to_ptr.hbm [resolvable:$true] %s962
          %s964 = sshll.u32 %s960, 4
          %s965 = int_to_ptr.vmem [resolvable:$true] %s964
          %969 = dma.hbm_to_vmem [thread:$0]  %s963, 32, %s965, %s961, 128, 128, 1
          %s970 = sld [smem:[#allocation6 + $0x3]]
          %s971 = sshrl.u32 %s970, 3
          %s972 = sand.u32 %s970, 7
          %s973 = smul.u32 %s971, 16
          %s974 = sadd.s32 %s972, %s973
          %s975 = scalar_lea.hbm %s1, %s974
          %s976 = scalar_lea.vmem [#allocation2], 3
          %s977 = scalar_lea.sflag [#allocation4], 3
          %s978 = sshll.u32 %s975, 4
          %s979 = int_to_ptr.hbm [resolvable:$true] %s978
          %s980 = sshll.u32 %s976, 4
          %s981 = int_to_ptr.vmem [resolvable:$true] %s980
          %985 = dma.hbm_to_vmem [thread:$0]  %s979, 32, %s981, %s977, 128, 128, 1
          %s986 = sld [smem:[#allocation6 + $0x4]]
          %s987 = sshrl.u32 %s986, 3
          %s988 = sand.u32 %s986, 7
          %s989 = smul.u32 %s987, 16
          %s990 = sadd.s32 %s988, %s989
          %s991 = scalar_lea.hbm %s1, %s990
          %s992 = scalar_lea.vmem [#allocation2], 4
          %s993 = scalar_lea.sflag [#allocation4], 4
          %s994 = sshll.u32 %s991, 4
          %s995 = int_to_ptr.hbm [resolvable:$true] %s994
          %s996 = sshll.u32 %s992, 4
          %s997 = int_to_ptr.vmem [resolvable:$true] %s996
          %1001 = dma.hbm_to_vmem [thread:$0]  %s995, 32, %s997, %s993, 128, 128, 1
          %s1002 = sld [smem:[#allocation6 + $0x5]]
          %s1003 = sshrl.u32 %s1002, 3
          %s1004 = sand.u32 %s1002, 7
          %s1005 = smul.u32 %s1003, 16
          %s1006 = sadd.s32 %s1004, %s1005
          %s1007 = scalar_lea.hbm %s1, %s1006
          %s1008 = scalar_lea.vmem [#allocation2], 5
          %s1009 = scalar_lea.sflag [#allocation4], 5
          %s1010 = sshll.u32 %s1007, 4
          %s1011 = int_to_ptr.hbm [resolvable:$true] %s1010
          %s1012 = sshll.u32 %s1008, 4
          %s1013 = int_to_ptr.vmem [resolvable:$true] %s1012
          %1017 = dma.hbm_to_vmem [thread:$0]  %s1011, 32, %s1013, %s1009, 128, 128, 1
          %s1018 = sld [smem:[#allocation6 + $0x6]]
          %s1019 = sshrl.u32 %s1018, 3
          %s1020 = sand.u32 %s1018, 7
          %s1021 = smul.u32 %s1019, 16
          %s1022 = sadd.s32 %s1020, %s1021
          %s1023 = scalar_lea.hbm %s1, %s1022
          %s1024 = scalar_lea.vmem [#allocation2], 6
          %s1025 = scalar_lea.sflag [#allocation4], 6
          %s1026 = sshll.u32 %s1023, 4
          %s1027 = int_to_ptr.hbm [resolvable:$true] %s1026
          %s1028 = sshll.u32 %s1024, 4
          %s1029 = int_to_ptr.vmem [resolvable:$true] %s1028
          %1033 = dma.hbm_to_vmem [thread:$0]  %s1027, 32, %s1029, %s1025, 128, 128, 1
          %s1034 = sld [smem:[#allocation6 + $0x7]]
          %s1035 = sshrl.u32 %s1034, 3
          %s1036 = sand.u32 %s1034, 7
          %s1037 = smul.u32 %s1035, 16
          %s1038 = sadd.s32 %s1036, %s1037
          %s1039 = scalar_lea.hbm %s1, %s1038
          %s1040 = scalar_lea.vmem [#allocation2], 7
          %s1041 = scalar_lea.sflag [#allocation4], 7
          %s1042 = sshll.u32 %s1039, 4
          %s1043 = int_to_ptr.hbm [resolvable:$true] %s1042
          %s1044 = sshll.u32 %s1040, 4
          %s1045 = int_to_ptr.vmem [resolvable:$true] %s1044
          %1049 = dma.hbm_to_vmem [thread:$0]  %s1043, 32, %s1045, %s1041, 128, 128, 1
          %s1050 = sld [smem:[#allocation6 + $0x8]]
          %s1051 = sshrl.u32 %s1050, 3
          %s1052 = sand.u32 %s1050, 7
          %s1053 = smul.u32 %s1051, 16
          %s1054 = sadd.s32 %s1052, %s1053
          %s1055 = scalar_lea.hbm %s1, %s1054
          %s1056 = scalar_lea.vmem [#allocation2], 16
          %s1057 = scalar_lea.sflag [#allocation4], 8
          %s1058 = sshll.u32 %s1055, 4
          %s1059 = int_to_ptr.hbm [resolvable:$true] %s1058
          %s1060 = sshll.u32 %s1056, 4
          %s1061 = int_to_ptr.vmem [resolvable:$true] %s1060
          %1065 = dma.hbm_to_vmem [thread:$0]  %s1059, 32, %s1061, %s1057, 128, 128, 1
          %s1066 = sld [smem:[#allocation6 + $0x9]]
          %s1067 = sshrl.u32 %s1066, 3
          %s1068 = sand.u32 %s1066, 7
          %s1069 = smul.u32 %s1067, 16
          %s1070 = sadd.s32 %s1068, %s1069
          %s1071 = scalar_lea.hbm %s1, %s1070
          %s1072 = scalar_lea.vmem [#allocation2], 17
          %s1073 = scalar_lea.sflag [#allocation4], 9
          %s1074 = sshll.u32 %s1071, 4
          %s1075 = int_to_ptr.hbm [resolvable:$true] %s1074
          %s1076 = sshll.u32 %s1072, 4
          %s1077 = int_to_ptr.vmem [resolvable:$true] %s1076
          %1081 = dma.hbm_to_vmem [thread:$0]  %s1075, 32, %s1077, %s1073, 128, 128, 1
          %s1082 = sld [smem:[#allocation6 + $0xa]]
          %s1083 = sshrl.u32 %s1082, 3
          %s1084 = sand.u32 %s1082, 7
          %s1085 = smul.u32 %s1083, 16
          %s1086 = sadd.s32 %s1084, %s1085
          %s1087 = scalar_lea.hbm %s1, %s1086
          %s1088 = scalar_lea.vmem [#allocation2], 18
          %s1089 = scalar_lea.sflag [#allocation4], 10
          %s1090 = sshll.u32 %s1087, 4
          %s1091 = int_to_ptr.hbm [resolvable:$true] %s1090
          %s1092 = sshll.u32 %s1088, 4
          %s1093 = int_to_ptr.vmem [resolvable:$true] %s1092
          %1097 = dma.hbm_to_vmem [thread:$0]  %s1091, 32, %s1093, %s1089, 128, 128, 1
          %s1098 = sld [smem:[#allocation6 + $0xb]]
          %s1099 = sshrl.u32 %s1098, 3
          %s1100 = sand.u32 %s1098, 7
          %s1101 = smul.u32 %s1099, 16
          %s1102 = sadd.s32 %s1100, %s1101
          %s1103 = scalar_lea.hbm %s1, %s1102
          %s1104 = scalar_lea.vmem [#allocation2], 19
          %s1105 = scalar_lea.sflag [#allocation4], 11
          %s1106 = sshll.u32 %s1103, 4
          %s1107 = int_to_ptr.hbm [resolvable:$true] %s1106
          %s1108 = sshll.u32 %s1104, 4
          %s1109 = int_to_ptr.vmem [resolvable:$true] %s1108
          %1113 = dma.hbm_to_vmem [thread:$0]  %s1107, 32, %s1109, %s1105, 128, 128, 1
          %s1114 = sld [smem:[#allocation6 + $0xc]]
          %s1115 = sshrl.u32 %s1114, 3
          %s1116 = sand.u32 %s1114, 7
          %s1117 = smul.u32 %s1115, 16
          %s1118 = sadd.s32 %s1116, %s1117
          %s1119 = scalar_lea.hbm %s1, %s1118
          %s1120 = scalar_lea.vmem [#allocation2], 20
          %s1121 = scalar_lea.sflag [#allocation4], 12
          %s1122 = sshll.u32 %s1119, 4
          %s1123 = int_to_ptr.hbm [resolvable:$true] %s1122
          %s1124 = sshll.u32 %s1120, 4
          %s1125 = int_to_ptr.vmem [resolvable:$true] %s1124
          %1129 = dma.hbm_to_vmem [thread:$0]  %s1123, 32, %s1125, %s1121, 128, 128, 1
          %s1130 = sld [smem:[#allocation6 + $0xd]]
          %s1131 = sshrl.u32 %s1130, 3
          %s1132 = sand.u32 %s1130, 7
          %s1133 = smul.u32 %s1131, 16
          %s1134 = sadd.s32 %s1132, %s1133
          %s1135 = scalar_lea.hbm %s1, %s1134
          %s1136 = scalar_lea.vmem [#allocation2], 21
          %s1137 = scalar_lea.sflag [#allocation4], 13
          %s1138 = sshll.u32 %s1135, 4
          %s1139 = int_to_ptr.hbm [resolvable:$true] %s1138
          %s1140 = sshll.u32 %s1136, 4
          %s1141 = int_to_ptr.vmem [resolvable:$true] %s1140
          %1145 = dma.hbm_to_vmem [thread:$0]  %s1139, 32, %s1141, %s1137, 128, 128, 1
          %s1146 = sld [smem:[#allocation6 + $0xe]]
          %s1147 = sshrl.u32 %s1146, 3
          %s1148 = sand.u32 %s1146, 7
          %s1149 = smul.u32 %s1147, 16
          %s1150 = sadd.s32 %s1148, %s1149
          %s1151 = scalar_lea.hbm %s1, %s1150
          %s1152 = scalar_lea.vmem [#allocation2], 22
          %s1153 = scalar_lea.sflag [#allocation4], 14
          %s1154 = sshll.u32 %s1151, 4
          %s1155 = int_to_ptr.hbm [resolvable:$true] %s1154
          %s1156 = sshll.u32 %s1152, 4
          %s1157 = int_to_ptr.vmem [resolvable:$true] %s1156
          %1161 = dma.hbm_to_vmem [thread:$0]  %s1155, 32, %s1157, %s1153, 128, 128, 1
          %s1162 = sld [smem:[#allocation6 + $0xf]]
          %s1163 = sshrl.u32 %s1162, 3
          %s1164 = sand.u32 %s1162, 7
          %s1165 = smul.u32 %s1163, 16
          %s1166 = sadd.s32 %s1164, %s1165
          %s1167 = scalar_lea.hbm %s1, %s1166
          %s1168 = scalar_lea.vmem [#allocation2], 23
          %s1169 = scalar_lea.sflag [#allocation4], 15
          %s1170 = sshll.u32 %s1167, 4
          %s1171 = int_to_ptr.hbm [resolvable:$true] %s1170
          %s1172 = sshll.u32 %s1168, 4
          %s1173 = int_to_ptr.vmem [resolvable:$true] %s1172
          %1177 = dma.hbm_to_vmem [thread:$0]  %s1171, 32, %s1173, %s1169, 128, 128, 1
          %s1178 = sld [smem:[#allocation6 + $0x10]]
          %s1179 = sshrl.u32 %s1178, 3
          %s1180 = sand.u32 %s1178, 7
          %s1181 = smul.u32 %s1179, 16
          %s1182 = sadd.s32 %s1180, %s1181
          %s1183 = scalar_lea.hbm %s1, %s1182
          %s1184 = scalar_lea.vmem [#allocation2], 32
          %s1185 = scalar_lea.sflag [#allocation4], 16
          %s1186 = sshll.u32 %s1183, 4
          %s1187 = int_to_ptr.hbm [resolvable:$true] %s1186
          %s1188 = sshll.u32 %s1184, 4
          %s1189 = int_to_ptr.vmem [resolvable:$true] %s1188
          %1193 = dma.hbm_to_vmem [thread:$0]  %s1187, 32, %s1189, %s1185, 128, 128, 1
          %s1194 = sld [smem:[#allocation6 + $0x11]]
          %s1195 = sshrl.u32 %s1194, 3
          %s1196 = sand.u32 %s1194, 7
          %s1197 = smul.u32 %s1195, 16
          %s1198 = sadd.s32 %s1196, %s1197
          %s1199 = scalar_lea.hbm %s1, %s1198
          %s1200 = scalar_lea.vmem [#allocation2], 33
          %s1201 = scalar_lea.sflag [#allocation4], 17
          %s1202 = sshll.u32 %s1199, 4
          %s1203 = int_to_ptr.hbm [resolvable:$true] %s1202
          %s1204 = sshll.u32 %s1200, 4
          %s1205 = int_to_ptr.vmem [resolvable:$true] %s1204
          %1209 = dma.hbm_to_vmem [thread:$0]  %s1203, 32, %s1205, %s1201, 128, 128, 1
          %s1210 = sld [smem:[#allocation6 + $0x12]]
          %s1211 = sshrl.u32 %s1210, 3
          %s1212 = sand.u32 %s1210, 7
          %s1213 = smul.u32 %s1211, 16
          %s1214 = sadd.s32 %s1212, %s1213
          %s1215 = scalar_lea.hbm %s1, %s1214
          %s1216 = scalar_lea.vmem [#allocation2], 34
          %s1217 = scalar_lea.sflag [#allocation4], 18
          %s1218 = sshll.u32 %s1215, 4
          %s1219 = int_to_ptr.hbm [resolvable:$true] %s1218
          %s1220 = sshll.u32 %s1216, 4
          %s1221 = int_to_ptr.vmem [resolvable:$true] %s1220
          %1225 = dma.hbm_to_vmem [thread:$0]  %s1219, 32, %s1221, %s1217, 128, 128, 1
          %s1226 = sld [smem:[#allocation6 + $0x13]]
          %s1227 = sshrl.u32 %s1226, 3
          %s1228 = sand.u32 %s1226, 7
          %s1229 = smul.u32 %s1227, 16
          %s1230 = sadd.s32 %s1228, %s1229
          %s1231 = scalar_lea.hbm %s1, %s1230
          %s1232 = scalar_lea.vmem [#allocation2], 35
          %s1233 = scalar_lea.sflag [#allocation4], 19
          %s1234 = sshll.u32 %s1231, 4
          %s1235 = int_to_ptr.hbm [resolvable:$true] %s1234
          %s1236 = sshll.u32 %s1232, 4
          %s1237 = int_to_ptr.vmem [resolvable:$true] %s1236
          %1241 = dma.hbm_to_vmem [thread:$0]  %s1235, 32, %s1237, %s1233, 128, 128, 1
          %s1242 = sld [smem:[#allocation6 + $0x14]]
          %s1243 = sshrl.u32 %s1242, 3
          %s1244 = sand.u32 %s1242, 7
          %s1245 = smul.u32 %s1243, 16
          %s1246 = sadd.s32 %s1244, %s1245
          %s1247 = scalar_lea.hbm %s1, %s1246
          %s1248 = scalar_lea.vmem [#allocation2], 36
          %s1249 = scalar_lea.sflag [#allocation4], 20
          %s1250 = sshll.u32 %s1247, 4
          %s1251 = int_to_ptr.hbm [resolvable:$true] %s1250
          %s1252 = sshll.u32 %s1248, 4
          %s1253 = int_to_ptr.vmem [resolvable:$true] %s1252
          %1257 = dma.hbm_to_vmem [thread:$0]  %s1251, 32, %s1253, %s1249, 128, 128, 1
          %s1258 = sld [smem:[#allocation6 + $0x15]]
          %s1259 = sshrl.u32 %s1258, 3
          %s1260 = sand.u32 %s1258, 7
          %s1261 = smul.u32 %s1259, 16
          %s1262 = sadd.s32 %s1260, %s1261
          %s1263 = scalar_lea.hbm %s1, %s1262
          %s1264 = scalar_lea.vmem [#allocation2], 37
          %s1265 = scalar_lea.sflag [#allocation4], 21
          %s1266 = sshll.u32 %s1263, 4
          %s1267 = int_to_ptr.hbm [resolvable:$true] %s1266
          %s1268 = sshll.u32 %s1264, 4
          %s1269 = int_to_ptr.vmem [resolvable:$true] %s1268
          %1273 = dma.hbm_to_vmem [thread:$0]  %s1267, 32, %s1269, %s1265, 128, 128, 1
          %s1274 = sld [smem:[#allocation6 + $0x16]]
          %s1275 = sshrl.u32 %s1274, 3
          %s1276 = sand.u32 %s1274, 7
          %s1277 = smul.u32 %s1275, 16
          %s1278 = sadd.s32 %s1276, %s1277
          %s1279 = scalar_lea.hbm %s1, %s1278
          %s1280 = scalar_lea.vmem [#allocation2], 38
          %s1281 = scalar_lea.sflag [#allocation4], 22
          %s1282 = sshll.u32 %s1279, 4
          %s1283 = int_to_ptr.hbm [resolvable:$true] %s1282
          %s1284 = sshll.u32 %s1280, 4
          %s1285 = int_to_ptr.vmem [resolvable:$true] %s1284
          %1289 = dma.hbm_to_vmem [thread:$0]  %s1283, 32, %s1285, %s1281, 128, 128, 1
          %s1290 = sld [smem:[#allocation6 + $0x17]]
          %s1291 = sshrl.u32 %s1290, 3
          %s1292 = sand.u32 %s1290, 7
          %s1293 = smul.u32 %s1291, 16
          %s1294 = sadd.s32 %s1292, %s1293
          %s1295 = scalar_lea.hbm %s1, %s1294
          %s1296 = scalar_lea.vmem [#allocation2], 39
          %s1297 = scalar_lea.sflag [#allocation4], 23
          %s1298 = sshll.u32 %s1295, 4
          %s1299 = int_to_ptr.hbm [resolvable:$true] %s1298
          %s1300 = sshll.u32 %s1296, 4
          %s1301 = int_to_ptr.vmem [resolvable:$true] %s1300
          %1305 = dma.hbm_to_vmem [thread:$0]  %s1299, 32, %s1301, %s1297, 128, 128, 1
          %s1306 = sld [smem:[#allocation6 + $0x18]]
          %s1307 = sshrl.u32 %s1306, 3
          %s1308 = sand.u32 %s1306, 7
          %s1309 = smul.u32 %s1307, 16
          %s1310 = sadd.s32 %s1308, %s1309
          %s1311 = scalar_lea.hbm %s1, %s1310
          %s1312 = scalar_lea.vmem [#allocation2], 48
          %s1313 = scalar_lea.sflag [#allocation4], 24
          %s1314 = sshll.u32 %s1311, 4
          %s1315 = int_to_ptr.hbm [resolvable:$true] %s1314
          %s1316 = sshll.u32 %s1312, 4
          %s1317 = int_to_ptr.vmem [resolvable:$true] %s1316
          %1321 = dma.hbm_to_vmem [thread:$0]  %s1315, 32, %s1317, %s1313, 128, 128, 1
          %s1322 = sld [smem:[#allocation6 + $0x19]]
          %s1323 = sshrl.u32 %s1322, 3
          %s1324 = sand.u32 %s1322, 7
          %s1325 = smul.u32 %s1323, 16
          %s1326 = sadd.s32 %s1324, %s1325
          %s1327 = scalar_lea.hbm %s1, %s1326
          %s1328 = scalar_lea.vmem [#allocation2], 49
          %s1329 = scalar_lea.sflag [#allocation4], 25
          %s1330 = sshll.u32 %s1327, 4
          %s1331 = int_to_ptr.hbm [resolvable:$true] %s1330
          %s1332 = sshll.u32 %s1328, 4
          %s1333 = int_to_ptr.vmem [resolvable:$true] %s1332
          %1337 = dma.hbm_to_vmem [thread:$0]  %s1331, 32, %s1333, %s1329, 128, 128, 1
          %s1338 = sld [smem:[#allocation6 + $0x1a]]
          %s1339 = sshrl.u32 %s1338, 3
          %s1340 = sand.u32 %s1338, 7
          %s1341 = smul.u32 %s1339, 16
          %s1342 = sadd.s32 %s1340, %s1341
          %s1343 = scalar_lea.hbm %s1, %s1342
          %s1344 = scalar_lea.vmem [#allocation2], 50
          %s1345 = scalar_lea.sflag [#allocation4], 26
          %s1346 = sshll.u32 %s1343, 4
          %s1347 = int_to_ptr.hbm [resolvable:$true] %s1346
          %s1348 = sshll.u32 %s1344, 4
          %s1349 = int_to_ptr.vmem [resolvable:$true] %s1348
          %1353 = dma.hbm_to_vmem [thread:$0]  %s1347, 32, %s1349, %s1345, 128, 128, 1
          %s1354 = sld [smem:[#allocation6 + $0x1b]]
          %s1355 = sshrl.u32 %s1354, 3
          %s1356 = sand.u32 %s1354, 7
          %s1357 = smul.u32 %s1355, 16
          %s1358 = sadd.s32 %s1356, %s1357
          %s1359 = scalar_lea.hbm %s1, %s1358
          %s1360 = scalar_lea.vmem [#allocation2], 51
          %s1361 = scalar_lea.sflag [#allocation4], 27
          %s1362 = sshll.u32 %s1359, 4
          %s1363 = int_to_ptr.hbm [resolvable:$true] %s1362
          %s1364 = sshll.u32 %s1360, 4
          %s1365 = int_to_ptr.vmem [resolvable:$true] %s1364
          %1369 = dma.hbm_to_vmem [thread:$0]  %s1363, 32, %s1365, %s1361, 128, 128, 1
          %s1370 = sld [smem:[#allocation6 + $0x1c]]
          %s1371 = sshrl.u32 %s1370, 3
          %s1372 = sand.u32 %s1370, 7
          %s1373 = smul.u32 %s1371, 16
          %s1374 = sadd.s32 %s1372, %s1373
          %s1375 = scalar_lea.hbm %s1, %s1374
          %s1376 = scalar_lea.vmem [#allocation2], 52
          %s1377 = scalar_lea.sflag [#allocation4], 28
          %s1378 = sshll.u32 %s1375, 4
          %s1379 = int_to_ptr.hbm [resolvable:$true] %s1378
          %s1380 = sshll.u32 %s1376, 4
          %s1381 = int_to_ptr.vmem [resolvable:$true] %s1380
          %1385 = dma.hbm_to_vmem [thread:$0]  %s1379, 32, %s1381, %s1377, 128, 128, 1
          %s1386 = sld [smem:[#allocation6 + $0x1d]]
          %s1387 = sshrl.u32 %s1386, 3
          %s1388 = sand.u32 %s1386, 7
          %s1389 = smul.u32 %s1387, 16
          %s1390 = sadd.s32 %s1388, %s1389
          %s1391 = scalar_lea.hbm %s1, %s1390
          %s1392 = scalar_lea.vmem [#allocation2], 53
          %s1393 = scalar_lea.sflag [#allocation4], 29
          %s1394 = sshll.u32 %s1391, 4
          %s1395 = int_to_ptr.hbm [resolvable:$true] %s1394
          %s1396 = sshll.u32 %s1392, 4
          %s1397 = int_to_ptr.vmem [resolvable:$true] %s1396
          %1401 = dma.hbm_to_vmem [thread:$0]  %s1395, 32, %s1397, %s1393, 128, 128, 1
          %s1402 = sld [smem:[#allocation6 + $0x1e]]
          %s1403 = sshrl.u32 %s1402, 3
          %s1404 = sand.u32 %s1402, 7
          %s1405 = smul.u32 %s1403, 16
          %s1406 = sadd.s32 %s1404, %s1405
          %s1407 = scalar_lea.hbm %s1, %s1406
          %s1408 = scalar_lea.vmem [#allocation2], 54
          %s1409 = scalar_lea.sflag [#allocation4], 30
          %s1410 = sshll.u32 %s1407, 4
          %s1411 = int_to_ptr.hbm [resolvable:$true] %s1410
          %s1412 = sshll.u32 %s1408, 4
          %s1413 = int_to_ptr.vmem [resolvable:$true] %s1412
          %1417 = dma.hbm_to_vmem [thread:$0]  %s1411, 32, %s1413, %s1409, 128, 128, 1
          %s1418 = sld [smem:[#allocation6 + $0x1f]]
          %s1419 = sshrl.u32 %s1418, 3
          %s1420 = sand.u32 %s1418, 7
          %s1421 = smul.u32 %s1419, 16
          %s1422 = sadd.s32 %s1420, %s1421
          %s1423 = scalar_lea.hbm %s1, %s1422
          %s1424 = scalar_lea.vmem [#allocation2], 55
          %s1425 = scalar_lea.sflag [#allocation4], 31
          %s1426 = sshll.u32 %s1423, 4
          %s1427 = int_to_ptr.hbm [resolvable:$true] %s1426
          %s1428 = sshll.u32 %s1424, 4
          %s1429 = int_to_ptr.vmem [resolvable:$true] %s1428
          %1433 = dma.hbm_to_vmem [thread:$0]  %s1427, 32, %s1429, %s1425, 128, 128, 1
          %s1434 = smul.u32 1, 2
          %s1435 = sshll.u32 %s1434, 4
          %1436 = dma.done [#allocation4], %s1435
          %s1437 = sshll.u32 %s1434, 4
          %1438 = dma.done %s945, %s1437
          %s1439 = sshll.u32 %s1434, 4
          %1440 = dma.done %s961, %s1439
          %s1441 = sshll.u32 %s1434, 4
          %1442 = dma.done %s977, %s1441
          %s1443 = sshll.u32 %s1434, 4
          %1444 = dma.done %s993, %s1443
          %s1445 = sshll.u32 %s1434, 4
          %1446 = dma.done %s1009, %s1445
          %s1447 = sshll.u32 %s1434, 4
          %1448 = dma.done %s1025, %s1447
          %s1449 = sshll.u32 %s1434, 4
          %1450 = dma.done %s1041, %s1449
          %s1451 = sshll.u32 %s1434, 4
          %1452 = dma.done %s1057, %s1451
          %s1453 = sshll.u32 %s1434, 4
          %1454 = dma.done %s1073, %s1453
          %s1455 = sshll.u32 %s1434, 4
          %1456 = dma.done %s1089, %s1455
          %s1457 = sshll.u32 %s1434, 4
          %1458 = dma.done %s1105, %s1457
          %s1459 = sshll.u32 %s1434, 4
          %1460 = dma.done %s1121, %s1459
          %s1461 = sshll.u32 %s1434, 4
          %1462 = dma.done %s1137, %s1461
          %s1463 = sshll.u32 %s1434, 4
          %1464 = dma.done %s1153, %s1463
          %s1465 = sshll.u32 %s1434, 4
          %1466 = dma.done %s1169, %s1465
          %s1467 = sshll.u32 %s1434, 4
          %1468 = dma.done %s1185, %s1467
          %s1469 = sshll.u32 %s1434, 4
          %1470 = dma.done %s1201, %s1469
          %s1471 = sshll.u32 %s1434, 4
          %1472 = dma.done %s1217, %s1471
          %s1473 = sshll.u32 %s1434, 4
          %1474 = dma.done %s1233, %s1473
          %s1475 = sshll.u32 %s1434, 4
          %1476 = dma.done %s1249, %s1475
          %s1477 = sshll.u32 %s1434, 4
          %1478 = dma.done %s1265, %s1477
          %s1479 = sshll.u32 %s1434, 4
          %1480 = dma.done %s1281, %s1479
          %s1481 = sshll.u32 %s1434, 4
          %1482 = dma.done %s1297, %s1481
          %s1483 = sshll.u32 %s1434, 4
          %1484 = dma.done %s1313, %s1483
          %s1485 = sshll.u32 %s1434, 4
          %1486 = dma.done %s1329, %s1485
          %s1487 = sshll.u32 %s1434, 4
          %1488 = dma.done %s1345, %s1487
          %s1489 = sshll.u32 %s1434, 4
          %1490 = dma.done %s1361, %s1489
          %s1491 = sshll.u32 %s1434, 4
          %1492 = dma.done %s1377, %s1491
          %s1493 = sshll.u32 %s1434, 4
          %1494 = dma.done %s1393, %s1493
          %s1495 = sshll.u32 %s1434, 4
          %1496 = dma.done %s1409, %s1495
          %s1497 = sshll.u32 %s1434, 4
          %1498 = dma.done %s1425, %s1497
          %v1499 = vld [vmem:[#allocation2] sm:$0xff]
          %v1500 = vld [vmem:[#allocation2 + $0x8] sm:$0xff]
          %v1501 = vld [vmem:[#allocation2 + $0x10] sm:$0xff]
          %v1502 = vld [vmem:[#allocation2 + $0x18] sm:$0xff]
          %v1503 = vld [vmem:[#allocation2 + $0x20] sm:$0xff]
          %v1504 = vld [vmem:[#allocation2 + $0x28] sm:$0xff]
          %v1505 = vld [vmem:[#allocation2 + $0x30] sm:$0xff]
          %v1506 = vld [vmem:[#allocation2 + $0x38] sm:$0xff]
          %v1507 = vld [vmem:[#allocation7] sm:$0xff]
          %v1508 = vld [vmem:[#allocation7 + $0x8] sm:$0xff]
          %v1509 = vld [vmem:[#allocation7 + $0x10] sm:$0xff]
          %v1510 = vld [vmem:[#allocation7 + $0x18] sm:$0xff]
          %v1511 = vadd.f32 %v1499, %v1507
          %v1512 = vadd.f32 %v1500, %v1508
          %v1513 = vadd.f32 %v1501, %v1509
          %v1514 = vadd.f32 %v1502, %v1510
          %v1515 = vadd.f32 %v1503, %v1507
          %v1516 = vadd.f32 %v1504, %v1508
          %v1517 = vadd.f32 %v1505, %v1509
          %v1518 = vadd.f32 %v1506, %v1510
          %1519 = vst [vmem:[#allocation2] sm:$0xff] %v1511
          %1520 = vst [vmem:[#allocation2 + $0x8] sm:$0xff] %v1512
          %1521 = vst [vmem:[#allocation2 + $0x10] sm:$0xff] %v1513
          %1522 = vst [vmem:[#allocation2 + $0x18] sm:$0xff] %v1514
          %1523 = vst [vmem:[#allocation2 + $0x20] sm:$0xff] %v1515
          %1524 = vst [vmem:[#allocation2 + $0x28] sm:$0xff] %v1516
          %1525 = vst [vmem:[#allocation2 + $0x30] sm:$0xff] %v1517
          %1526 = vst [vmem:[#allocation2 + $0x38] sm:$0xff] %v1518
        $region132: #{tpu_custom_call.1} parent=83 // pred_fallthru
          _
        %v1527 = vld [vmem:[#allocation2] sm:$0xff]
        %v1528 = vld [vmem:[#allocation2 + $0x8] sm:$0xff]
        %v1529 = vld [vmem:[#allocation2 + $0x10] sm:$0xff]
        %v1530 = vld [vmem:[#allocation2 + $0x18] sm:$0xff]
        %v1531 = vld [vmem:[#allocation2 + $0x20] sm:$0xff]
        %v1532 = vld [vmem:[#allocation2 + $0x28] sm:$0xff]
        %v1533 = vld [vmem:[#allocation2 + $0x30] sm:$0xff]
        %v1534 = vld [vmem:[#allocation2 + $0x38] sm:$0xff]
        %v1535 = vld [vmem:[%s730] sm:$0x3]
        %v1536 = vld [vmem:[%s910] sm:$0x3]
        %v1537 = vadd.f32 %v1527, %v1528
        %1538 = vadd.xlane.f32.xlu0 %v1537
        %v1539 = vpop.xlane.xlu0 %1538
        %v1540 = vadd.f32 %v1529, %v1530
        %1541 = vadd.xlane.f32.xlu0 %v1540
        %v1542 = vpop.xlane.xlu0 %1541
        %v1543 = vadd.f32 %v1531, %v1532
        %1544 = vadd.xlane.f32.xlu0 %v1543
        %v1545 = vpop.xlane.xlu0 %1544
        %v1546 = vadd.f32 %v1533, %v1534
        %1547 = vadd.xlane.f32.xlu0 %v1546
        %v1548 = vpop.xlane.xlu0 %1547
        %v1549 = vrcp.pop 256.0
        %v1550 = vmul.f32 256.0, %v1549
        %v1551 = vsub.f32 1.0, %v1550
        %v1552 = vmul.f32 %v1549, %v1551
        %v1553 = vadd.f32 %v1549, %v1552
        %vm1554 = vweird.f32 %v1549
        %v1555 = vsel %vm1554, %v1549, %v1553
        %v1556 = vmul.f32 %v1539, %v1555
        %v1557 = vmul.f32 %v1542, %v1555
        %v1558 = vmul.f32 %v1545, %v1555
        %v1559 = vmul.f32 %v1548, %v1555
        %v1560 = vsub.f32 %v1527, %v1556
        %v1561 = vsub.f32 %v1528, %v1556
        %v1562 = vsub.f32 %v1529, %v1557
        %v1563 = vsub.f32 %v1530, %v1557
        %v1564 = vsub.f32 %v1531, %v1558
        %v1565 = vsub.f32 %v1532, %v1558
        %v1566 = vsub.f32 %v1533, %v1559
        %v1567 = vsub.f32 %v1534, %v1559
        %v1568 = vmul.f32 %v1560, %v1560
        %v1569 = vmul.f32 %v1561, %v1561
        %v1570 = vmul.f32 %v1562, %v1562
        %v1571 = vmul.f32 %v1563, %v1563
        %v1572 = vmul.f32 %v1564, %v1564
        %v1573 = vmul.f32 %v1565, %v1565
        %v1574 = vmul.f32 %v1566, %v1566
        %v1575 = vmul.f32 %v1567, %v1567
        %v1576 = vadd.f32 %v1568, %v1569
        %1577 = vadd.xlane.f32.xlu0 %v1576
        %v1578 = vpop.xlane.xlu0 %1577
        %v1579 = vadd.f32 %v1570, %v1571
        %1580 = vadd.xlane.f32.xlu0 %v1579
        %v1581 = vpop.xlane.xlu0 %1580
        %v1582 = vadd.f32 %v1572, %v1573
        %1583 = vadd.xlane.f32.xlu0 %v1582
        %v1584 = vpop.xlane.xlu0 %1583
        %v1585 = vadd.f32 %v1574, %v1575
        %1586 = vadd.xlane.f32.xlu0 %v1585
        %v1587 = vpop.xlane.xlu0 %1586
        %v1588 = vmul.f32 %v1578, %v1555
        %v1589 = vmul.f32 %v1581, %v1555
        %v1590 = vmul.f32 %v1584, %v1555
        %v1591 = vmul.f32 %v1587, %v1555
        %v1592 = vadd.f32 %v1588, 1e-05
        %v1593 = vadd.f32 %v1589, 1e-05
        %v1594 = vadd.f32 %v1590, 1e-05
        %v1595 = vadd.f32 %v1591, 1e-05
        %v1596 = vrsqrt.pop %v1592
        %v1597 = vmul.f32 %v1596, %v1592
        %v1598 = vmul.f32 %v1597, %v1596
        %v1599 = vmul.f32 0.5, %v1598
        %v1600 = vsub.f32 1.5, %v1599
        %v1601 = vmul.f32 %v1596, %v1600
        %vm1602 = vweird.f32 %v1592
        %vm1603 = vweird.f32 %v1596
        %vm1604 = vmor %vm1602, %vm1603
        %v1605 = vsel %vm1604, %v1596, %v1601
        %v1606 = vrsqrt.pop %v1593
        %v1607 = vmul.f32 %v1606, %v1593
        %v1608 = vmul.f32 %v1607, %v1606
        %v1609 = vmul.f32 0.5, %v1608
        %v1610 = vsub.f32 1.5, %v1609
        %v1611 = vmul.f32 %v1606, %v1610
        %vm1612 = vweird.f32 %v1593
        %vm1613 = vweird.f32 %v1606
        %vm1614 = vmor %vm1612, %vm1613
        %v1615 = vsel %vm1614, %v1606, %v1611
        %v1616 = vrsqrt.pop %v1594
        %v1617 = vmul.f32 %v1616, %v1594
        %v1618 = vmul.f32 %v1617, %v1616
        %v1619 = vmul.f32 0.5, %v1618
        %v1620 = vsub.f32 1.5, %v1619
        %v1621 = vmul.f32 %v1616, %v1620
        %vm1622 = vweird.f32 %v1594
        %vm1623 = vweird.f32 %v1616
        %vm1624 = vmor %vm1622, %vm1623
        %v1625 = vsel %vm1624, %v1616, %v1621
        %v1626 = vrsqrt.pop %v1595
        %v1627 = vmul.f32 %v1626, %v1595
        %v1628 = vmul.f32 %v1627, %v1626
        %v1629 = vmul.f32 0.5, %v1628
        %v1630 = vsub.f32 1.5, %v1629
        %v1631 = vmul.f32 %v1626, %v1630
        %vm1632 = vweird.f32 %v1595
        %vm1633 = vweird.f32 %v1626
        %vm1634 = vmor %vm1632, %vm1633
        %v1635 = vsel %vm1634, %v1626, %v1631
        %v1636 = vmul.f32 %v1560, %v1605
        %v1637 = vmul.f32 %v1561, %v1605
        %v1638 = vmul.f32 %v1562, %v1615
        %v1639 = vmul.f32 %v1563, %v1615
        %v1640 = vmul.f32 %v1564, %v1625
        %v1641 = vmul.f32 %v1565, %v1625
        %v1642 = vmul.f32 %v1566, %v1635
        %v1643 = vmul.f32 %v1567, %v1635
        %v1645 = vperm.slane %v1535, 0
        %v1646 = vperm.slane %v1535, 1
        %v1649 = vmul.f32 %v1636, %v1645
        %v1650 = vmul.f32 %v1637, %v1646
        %v1651 = vmul.f32 %v1638, %v1645
        %v1652 = vmul.f32 %v1639, %v1646
        %v1653 = vmul.f32 %v1640, %v1645
        %v1654 = vmul.f32 %v1641, %v1646
        %v1655 = vmul.f32 %v1642, %v1645
        %v1656 = vmul.f32 %v1643, %v1646
        %v1658 = vperm.slane %v1536, 0
        %v1659 = vperm.slane %v1536, 1
        %v1662 = vadd.f32 %v1649, %v1658
        %v1663 = vadd.f32 %v1650, %v1659
        %v1664 = vadd.f32 %v1651, %v1658
        %v1665 = vadd.f32 %v1652, %v1659
        %v1666 = vadd.f32 %v1653, %v1658
        %v1667 = vadd.f32 %v1654, %v1659
        %v1668 = vadd.f32 %v1655, %v1658
        %v1669 = vadd.f32 %v1656, %v1659
        %v1670 = vpack.c.bf16 %v1664, %v1662
        %v1671 = vpack.c.bf16 %v1665, %v1663
        %v1672 = vpack.c.bf16 %v1668, %v1666
        %v1673 = vpack.c.bf16 %v1669, %v1667
        %v1674 = vld [vmem:[%s740] sm:$0xff]
        %v1675 = vld [vmem:[%s740 + $0x8] sm:$0xff]
        %v1676 = vld [vmem:[%s740 + $0x10] sm:$0xff]
        %v1677 = vld [vmem:[%s740 + $0x18] sm:$0xff]
        %v1678 = vld [vmem:[%s740 + $0x20] sm:$0xff]
        %v1679 = vld [vmem:[%s740 + $0x28] sm:$0xff]
        %v1680 = vld [vmem:[%s740 + $0x30] sm:$0xff]
        %v1681 = vld [vmem:[%s740 + $0x38] sm:$0xff]
        %v1682 = vld [vmem:[%s740 + $0x40] sm:$0xff]
        %v1683 = vld [vmem:[%s740 + $0x48] sm:$0xff]
        %v1684 = vld [vmem:[%s740 + $0x50] sm:$0xff]
        %v1685 = vld [vmem:[%s740 + $0x58] sm:$0xff]
        %v1686 = vld [vmem:[%s740 + $0x60] sm:$0xff]
        %v1687 = vld [vmem:[%s740 + $0x68] sm:$0xff]
        %v1688 = vld [vmem:[%s740 + $0x70] sm:$0xff]
        %v1689 = vld [vmem:[%s740 + $0x78] sm:$0xff]
        %v1690 = vld [vmem:[%s740 + $0x80] sm:$0xff]
        %v1691 = vld [vmem:[%s740 + $0x88] sm:$0xff]
        %v1692 = vld [vmem:[%s740 + $0x90] sm:$0xff]
        %v1693 = vld [vmem:[%s740 + $0x98] sm:$0xff]
        %v1694 = vld [vmem:[%s740 + $0xa0] sm:$0xff]
        %v1695 = vld [vmem:[%s740 + $0xa8] sm:$0xff]
        %v1696 = vld [vmem:[%s740 + $0xb0] sm:$0xff]
        %v1697 = vld [vmem:[%s740 + $0xb8] sm:$0xff]
        %v1698 = vld [vmem:[%s740 + $0xc0] sm:$0xff]
        %v1699 = vld [vmem:[%s740 + $0xc8] sm:$0xff]
        %v1700 = vld [vmem:[%s740 + $0xd0] sm:$0xff]
        %v1701 = vld [vmem:[%s740 + $0xd8] sm:$0xff]
        %v1702 = vld [vmem:[%s740 + $0xe0] sm:$0xff]
        %v1703 = vld [vmem:[%s740 + $0xe8] sm:$0xff]
        %v1704 = vld [vmem:[%s740 + $0xf0] sm:$0xff]
        %v1705 = vld [vmem:[%s740 + $0xf8] sm:$0xff]
        %v1706 = vld [vmem:[%s740 + $0x100] sm:$0xff]
        %v1707 = vld [vmem:[%s740 + $0x108] sm:$0xff]
        %v1708 = vld [vmem:[%s740 + $0x110] sm:$0xff]
        %v1709 = vld [vmem:[%s740 + $0x118] sm:$0xff]
        %v1710 = vld [vmem:[%s740 + $0x120] sm:$0xff]
        %v1711 = vld [vmem:[%s740 + $0x128] sm:$0xff]
        %v1712 = vld [vmem:[%s740 + $0x130] sm:$0xff]
        %v1713 = vld [vmem:[%s740 + $0x138] sm:$0xff]
        %v1714 = vld [vmem:[%s740 + $0x140] sm:$0xff]
        %v1715 = vld [vmem:[%s740 + $0x148] sm:$0xff]
        %v1716 = vld [vmem:[%s740 + $0x150] sm:$0xff]
        %v1717 = vld [vmem:[%s740 + $0x158] sm:$0xff]
        %v1718 = vld [vmem:[%s740 + $0x160] sm:$0xff]
        %v1719 = vld [vmem:[%s740 + $0x168] sm:$0xff]
        %v1720 = vld [vmem:[%s740 + $0x170] sm:$0xff]
        %v1721 = vld [vmem:[%s740 + $0x178] sm:$0xff]
        %v1722 = vld [vmem:[%s740 + $0x180] sm:$0xff]
        %v1723 = vld [vmem:[%s740 + $0x188] sm:$0xff]
        %v1724 = vld [vmem:[%s740 + $0x190] sm:$0xff]
        %v1725 = vld [vmem:[%s740 + $0x198] sm:$0xff]
        %v1726 = vld [vmem:[%s740 + $0x1a0] sm:$0xff]
        %v1727 = vld [vmem:[%s740 + $0x1a8] sm:$0xff]
        %v1728 = vld [vmem:[%s740 + $0x1b0] sm:$0xff]
        %v1729 = vld [vmem:[%s740 + $0x1b8] sm:$0xff]
        %v1730 = vld [vmem:[%s740 + $0x1c0] sm:$0xff]
        %v1731 = vld [vmem:[%s740 + $0x1c8] sm:$0xff]
        %v1732 = vld [vmem:[%s740 + $0x1d0] sm:$0xff]
        %v1733 = vld [vmem:[%s740 + $0x1d8] sm:$0xff]
        %v1734 = vld [vmem:[%s740 + $0x1e0] sm:$0xff]
        %v1735 = vld [vmem:[%s740 + $0x1e8] sm:$0xff]
        %v1736 = vld [vmem:[%s740 + $0x1f0] sm:$0xff]
        %v1737 = vld [vmem:[%s740 + $0x1f8] sm:$0xff]
        %v1738 = vld [vmem:[%s740 + $0x200] sm:$0xff]
        %v1739 = vld [vmem:[%s740 + $0x208] sm:$0xff]
        %v1740 = vld [vmem:[%s740 + $0x210] sm:$0xff]
        %v1741 = vld [vmem:[%s740 + $0x218] sm:$0xff]
        %v1742 = vld [vmem:[%s740 + $0x220] sm:$0xff]
        %v1743 = vld [vmem:[%s740 + $0x228] sm:$0xff]
        %v1744 = vld [vmem:[%s740 + $0x230] sm:$0xff]
        %v1745 = vld [vmem:[%s740 + $0x238] sm:$0xff]
        %v1746 = vld [vmem:[%s740 + $0x240] sm:$0xff]
        %v1747 = vld [vmem:[%s740 + $0x248] sm:$0xff]
        %v1748 = vld [vmem:[%s740 + $0x250] sm:$0xff]
        %v1749 = vld [vmem:[%s740 + $0x258] sm:$0xff]
        %v1750 = vld [vmem:[%s740 + $0x260] sm:$0xff]
        %v1751 = vld [vmem:[%s740 + $0x268] sm:$0xff]
        %v1752 = vld [vmem:[%s740 + $0x270] sm:$0xff]
        %v1753 = vld [vmem:[%s740 + $0x278] sm:$0xff]
        %v1754 = vld [vmem:[%s740 + $0x280] sm:$0xff]
        %v1755 = vld [vmem:[%s740 + $0x288] sm:$0xff]
        %v1756 = vld [vmem:[%s740 + $0x290] sm:$0xff]
        %v1757 = vld [vmem:[%s740 + $0x298] sm:$0xff]
        %v1758 = vld [vmem:[%s740 + $0x2a0] sm:$0xff]
        %v1759 = vld [vmem:[%s740 + $0x2a8] sm:$0xff]
        %v1760 = vld [vmem:[%s740 + $0x2b0] sm:$0xff]
        %v1761 = vld [vmem:[%s740 + $0x2b8] sm:$0xff]
        %v1762 = vld [vmem:[%s740 + $0x2c0] sm:$0xff]
        %v1763 = vld [vmem:[%s740 + $0x2c8] sm:$0xff]
        %v1764 = vld [vmem:[%s740 + $0x2d0] sm:$0xff]
        %v1765 = vld [vmem:[%s740 + $0x2d8] sm:$0xff]
        %v1766 = vld [vmem:[%s740 + $0x2e0] sm:$0xff]
        %v1767 = vld [vmem:[%s740 + $0x2e8] sm:$0xff]
        %v1768 = vld [vmem:[%s740 + $0x2f0] sm:$0xff]
        %v1769 = vld [vmem:[%s740 + $0x2f8] sm:$0xff]
        %v1770 = vld [vmem:[%s750] sm:$0x3f]
        %v1772 = vperm.slane %v1770, 0
        %v1773 = vperm.slane %v1770, 1
        %v1774 = vperm.slane %v1770, 2
        %v1775 = vperm.slane %v1770, 3
        %v1776 = vperm.slane %v1770, 4
        %v1777 = vperm.slane %v1770, 5
        %v1880 = vunpack.c.l.b16 %v1674
        %v1881 = vunpack.c.h.b16 %v1674
        %v1882 = vunpack.c.l.b16 %v1675
        %v1883 = vunpack.c.h.b16 %v1675
        %v1884 = vunpack.c.l.b16 %v1676
        %v1885 = vunpack.c.h.b16 %v1676
        %v1886 = vunpack.c.l.b16 %v1677
        %v1887 = vunpack.c.h.b16 %v1677
        %v1888 = vunpack.c.l.b16 %v1678
        %v1889 = vunpack.c.h.b16 %v1678
        %v1890 = vunpack.c.l.b16 %v1679
        %v1891 = vunpack.c.h.b16 %v1679
        %v1892 = vunpack.c.l.b16 %v1680
        %v1893 = vunpack.c.h.b16 %v1680
        %v1894 = vunpack.c.l.b16 %v1681
        %v1895 = vunpack.c.h.b16 %v1681
        %v1896 = vunpack.c.l.b16 %v1682
        %v1897 = vunpack.c.h.b16 %v1682
        %v1898 = vunpack.c.l.b16 %v1683
        %v1899 = vunpack.c.h.b16 %v1683
        %v1900 = vunpack.c.l.b16 %v1684
        %v1901 = vunpack.c.h.b16 %v1684
        %v1902 = vunpack.c.l.b16 %v1685
        %v1903 = vunpack.c.h.b16 %v1685
        %v1904 = vunpack.c.l.b16 %v1686
        %v1905 = vunpack.c.h.b16 %v1686
        %v1906 = vunpack.c.l.b16 %v1687
        %v1907 = vunpack.c.h.b16 %v1687
        %v1908 = vunpack.c.l.b16 %v1688
        %v1909 = vunpack.c.h.b16 %v1688
        %v1910 = vunpack.c.l.b16 %v1689
        %v1911 = vunpack.c.h.b16 %v1689
        %v1912 = vunpack.c.l.b16 %v1690
        %v1913 = vunpack.c.h.b16 %v1690
        %v1914 = vunpack.c.l.b16 %v1691
        %v1915 = vunpack.c.h.b16 %v1691
        %v1916 = vunpack.c.l.b16 %v1692
        %v1917 = vunpack.c.h.b16 %v1692
        %v1918 = vunpack.c.l.b16 %v1693
        %v1919 = vunpack.c.h.b16 %v1693
        %v1920 = vunpack.c.l.b16 %v1694
        %v1921 = vunpack.c.h.b16 %v1694
        %v1922 = vunpack.c.l.b16 %v1695
        %v1923 = vunpack.c.h.b16 %v1695
        %v1924 = vunpack.c.l.b16 %v1696
        %v1925 = vunpack.c.h.b16 %v1696
        %v1926 = vunpack.c.l.b16 %v1697
        %v1927 = vunpack.c.h.b16 %v1697
        %v1928 = vunpack.c.l.b16 %v1698
        %v1929 = vunpack.c.h.b16 %v1698
        %v1930 = vunpack.c.l.b16 %v1699
        %v1931 = vunpack.c.h.b16 %v1699
        %v1932 = vunpack.c.l.b16 %v1700
        %v1933 = vunpack.c.h.b16 %v1700
        %v1934 = vunpack.c.l.b16 %v1701
        %v1935 = vunpack.c.h.b16 %v1701
        %v1936 = vunpack.c.l.b16 %v1702
        %v1937 = vunpack.c.h.b16 %v1702
        %v1938 = vunpack.c.l.b16 %v1703
        %v1939 = vunpack.c.h.b16 %v1703
        %v1940 = vunpack.c.l.b16 %v1704
        %v1941 = vunpack.c.h.b16 %v1704
        %v1942 = vunpack.c.l.b16 %v1705
        %v1943 = vunpack.c.h.b16 %v1705
        %v1944 = vunpack.c.l.b16 %v1706
        %v1945 = vunpack.c.h.b16 %v1706
        %v1946 = vunpack.c.l.b16 %v1707
        %v1947 = vunpack.c.h.b16 %v1707
        %v1948 = vunpack.c.l.b16 %v1708
        %v1949 = vunpack.c.h.b16 %v1708
        %v1950 = vunpack.c.l.b16 %v1709
        %v1951 = vunpack.c.h.b16 %v1709
        %v1952 = vunpack.c.l.b16 %v1710
        %v1953 = vunpack.c.h.b16 %v1710
        %v1954 = vunpack.c.l.b16 %v1711
        %v1955 = vunpack.c.h.b16 %v1711
        %v1956 = vunpack.c.l.b16 %v1712
        %v1957 = vunpack.c.h.b16 %v1712
        %v1958 = vunpack.c.l.b16 %v1713
        %v1959 = vunpack.c.h.b16 %v1713
        %v1960 = vunpack.c.l.b16 %v1714
        %v1961 = vunpack.c.h.b16 %v1714
        %v1962 = vunpack.c.l.b16 %v1715
        %v1963 = vunpack.c.h.b16 %v1715
        %v1964 = vunpack.c.l.b16 %v1716
        %v1965 = vunpack.c.h.b16 %v1716
        %v1966 = vunpack.c.l.b16 %v1717
        %v1967 = vunpack.c.h.b16 %v1717
        %v1968 = vunpack.c.l.b16 %v1718
        %v1969 = vunpack.c.h.b16 %v1718
        %v1970 = vunpack.c.l.b16 %v1719
        %v1971 = vunpack.c.h.b16 %v1719
        %v1972 = vunpack.c.l.b16 %v1720
        %v1973 = vunpack.c.h.b16 %v1720
        %v1974 = vunpack.c.l.b16 %v1721
        %v1975 = vunpack.c.h.b16 %v1721
        %v1976 = vunpack.c.l.b16 %v1722
        %v1977 = vunpack.c.h.b16 %v1722
        %v1978 = vunpack.c.l.b16 %v1723
        %v1979 = vunpack.c.h.b16 %v1723
        %v1980 = vunpack.c.l.b16 %v1724
        %v1981 = vunpack.c.h.b16 %v1724
        %v1982 = vunpack.c.l.b16 %v1725
        %v1983 = vunpack.c.h.b16 %v1725
        %v1984 = vunpack.c.l.b16 %v1726
        %v1985 = vunpack.c.h.b16 %v1726
        %v1986 = vunpack.c.l.b16 %v1727
        %v1987 = vunpack.c.h.b16 %v1727
        %v1988 = vunpack.c.l.b16 %v1728
        %v1989 = vunpack.c.h.b16 %v1728
        %v1990 = vunpack.c.l.b16 %v1729
        %v1991 = vunpack.c.h.b16 %v1729
        %v1992 = vunpack.c.l.b16 %v1730
        %v1993 = vunpack.c.h.b16 %v1730
        %v1994 = vunpack.c.l.b16 %v1731
        %v1995 = vunpack.c.h.b16 %v1731
        %v1996 = vunpack.c.l.b16 %v1732
        %v1997 = vunpack.c.h.b16 %v1732
        %v1998 = vunpack.c.l.b16 %v1733
        %v1999 = vunpack.c.h.b16 %v1733
        %v2000 = vunpack.c.l.b16 %v1734
        %v2001 = vunpack.c.h.b16 %v1734
        %v2002 = vunpack.c.l.b16 %v1735
        %v2003 = vunpack.c.h.b16 %v1735
        %v2004 = vunpack.c.l.b16 %v1736
        %v2005 = vunpack.c.h.b16 %v1736
        %v2006 = vunpack.c.l.b16 %v1737
        %v2007 = vunpack.c.h.b16 %v1737
        %v2008 = vunpack.c.l.b16 %v1738
        %v2009 = vunpack.c.h.b16 %v1738
        %v2010 = vunpack.c.l.b16 %v1739
        %v2011 = vunpack.c.h.b16 %v1739
        %v2012 = vunpack.c.l.b16 %v1740
        %v2013 = vunpack.c.h.b16 %v1740
        %v2014 = vunpack.c.l.b16 %v1741
        %v2015 = vunpack.c.h.b16 %v1741
        %v2016 = vunpack.c.l.b16 %v1742
        %v2017 = vunpack.c.h.b16 %v1742
        %v2018 = vunpack.c.l.b16 %v1743
        %v2019 = vunpack.c.h.b16 %v1743
        %v2020 = vunpack.c.l.b16 %v1744
        %v2021 = vunpack.c.h.b16 %v1744
        %v2022 = vunpack.c.l.b16 %v1745
        %v2023 = vunpack.c.h.b16 %v1745
        %v2024 = vunpack.c.l.b16 %v1746
        %v2025 = vunpack.c.h.b16 %v1746
        %v2026 = vunpack.c.l.b16 %v1747
        %v2027 = vunpack.c.h.b16 %v1747
        %v2028 = vunpack.c.l.b16 %v1748
        %v2029 = vunpack.c.h.b16 %v1748
        %v2030 = vunpack.c.l.b16 %v1749
        %v2031 = vunpack.c.h.b16 %v1749
        %v2032 = vunpack.c.l.b16 %v1750
        %v2033 = vunpack.c.h.b16 %v1750
        %v2034 = vunpack.c.l.b16 %v1751
        %v2035 = vunpack.c.h.b16 %v1751
        %v2036 = vunpack.c.l.b16 %v1752
        %v2037 = vunpack.c.h.b16 %v1752
        %v2038 = vunpack.c.l.b16 %v1753
        %v2039 = vunpack.c.h.b16 %v1753
        %v2040 = vunpack.c.l.b16 %v1754
        %v2041 = vunpack.c.h.b16 %v1754
        %v2042 = vunpack.c.l.b16 %v1755
        %v2043 = vunpack.c.h.b16 %v1755
        %v2044 = vunpack.c.l.b16 %v1756
        %v2045 = vunpack.c.h.b16 %v1756
        %v2046 = vunpack.c.l.b16 %v1757
        %v2047 = vunpack.c.h.b16 %v1757
        %v2048 = vunpack.c.l.b16 %v1758
        %v2049 = vunpack.c.h.b16 %v1758
        %v2050 = vunpack.c.l.b16 %v1759
        %v2051 = vunpack.c.h.b16 %v1759
        %v2052 = vunpack.c.l.b16 %v1760
        %v2053 = vunpack.c.h.b16 %v1760
        %v2054 = vunpack.c.l.b16 %v1761
        %v2055 = vunpack.c.h.b16 %v1761
        %v2056 = vunpack.c.l.b16 %v1762
        %v2057 = vunpack.c.h.b16 %v1762
        %v2058 = vunpack.c.l.b16 %v1763
        %v2059 = vunpack.c.h.b16 %v1763
        %v2060 = vunpack.c.l.b16 %v1764
        %v2061 = vunpack.c.h.b16 %v1764
        %v2062 = vunpack.c.l.b16 %v1765
        %v2063 = vunpack.c.h.b16 %v1765
        %v2064 = vunpack.c.l.b16 %v1766
        %v2065 = vunpack.c.h.b16 %v1766
        %v2066 = vunpack.c.l.b16 %v1767
        %v2067 = vunpack.c.h.b16 %v1767
        %v2068 = vunpack.c.l.b16 %v1768
        %v2069 = vunpack.c.h.b16 %v1768
        %v2070 = vunpack.c.l.b16 %v1769
        %v2071 = vunpack.c.h.b16 %v1769
        %v2072 = vpack.c.b16 %v1886, %v1880
        %v2073 = vpack.c.b16 %v1887, %v1881
        %v2074 = vpack.c.b16 %v1888, %v1882
        %v2075 = vpack.c.b16 %v1889, %v1883
        %v2076 = vpack.c.b16 %v1890, %v1884
        %v2077 = vpack.c.b16 %v1891, %v1885
        %v2078 = vpack.c.b16 %v1898, %v1892
        %v2079 = vpack.c.b16 %v1899, %v1893
        %v2080 = vpack.c.b16 %v1900, %v1894
        %v2081 = vpack.c.b16 %v1901, %v1895
        %v2082 = vpack.c.b16 %v1902, %v1896
        %v2083 = vpack.c.b16 %v1903, %v1897
        %v2084 = vpack.c.b16 %v1910, %v1904
        %v2085 = vpack.c.b16 %v1911, %v1905
        %v2086 = vpack.c.b16 %v1912, %v1906
        %v2087 = vpack.c.b16 %v1913, %v1907
        %v2088 = vpack.c.b16 %v1914, %v1908
        %v2089 = vpack.c.b16 %v1915, %v1909
        %v2090 = vpack.c.b16 %v1922, %v1916
        %v2091 = vpack.c.b16 %v1923, %v1917
        %v2092 = vpack.c.b16 %v1924, %v1918
        %v2093 = vpack.c.b16 %v1925, %v1919
        %v2094 = vpack.c.b16 %v1926, %v1920
        %v2095 = vpack.c.b16 %v1927, %v1921
        %v2096 = vpack.c.b16 %v1934, %v1928
        %v2097 = vpack.c.b16 %v1935, %v1929
        %v2098 = vpack.c.b16 %v1936, %v1930
        %v2099 = vpack.c.b16 %v1937, %v1931
        %v2100 = vpack.c.b16 %v1938, %v1932
        %v2101 = vpack.c.b16 %v1939, %v1933
        %v2102 = vpack.c.b16 %v1946, %v1940
        %v2103 = vpack.c.b16 %v1947, %v1941
        %v2104 = vpack.c.b16 %v1948, %v1942
        %v2105 = vpack.c.b16 %v1949, %v1943
        %v2106 = vpack.c.b16 %v1950, %v1944
        %v2107 = vpack.c.b16 %v1951, %v1945
        %v2108 = vpack.c.b16 %v1958, %v1952
        %v2109 = vpack.c.b16 %v1959, %v1953
        %v2110 = vpack.c.b16 %v1960, %v1954
        %v2111 = vpack.c.b16 %v1961, %v1955
        %v2112 = vpack.c.b16 %v1962, %v1956
        %v2113 = vpack.c.b16 %v1963, %v1957
        %v2114 = vpack.c.b16 %v1970, %v1964
        %v2115 = vpack.c.b16 %v1971, %v1965
        %v2116 = vpack.c.b16 %v1972, %v1966
        %v2117 = vpack.c.b16 %v1973, %v1967
        %v2118 = vpack.c.b16 %v1974, %v1968
        %v2119 = vpack.c.b16 %v1975, %v1969
        %v2120 = vpack.c.b16 %v1982, %v1976
        %v2121 = vpack.c.b16 %v1983, %v1977
        %v2122 = vpack.c.b16 %v1984, %v1978
        %v2123 = vpack.c.b16 %v1985, %v1979
        %v2124 = vpack.c.b16 %v1986, %v1980
        %v2125 = vpack.c.b16 %v1987, %v1981
        %v2126 = vpack.c.b16 %v1994, %v1988
        %v2127 = vpack.c.b16 %v1995, %v1989
        %v2128 = vpack.c.b16 %v1996, %v1990
        %v2129 = vpack.c.b16 %v1997, %v1991
        %v2130 = vpack.c.b16 %v1998, %v1992
        %v2131 = vpack.c.b16 %v1999, %v1993
        %v2132 = vpack.c.b16 %v2006, %v2000
        %v2133 = vpack.c.b16 %v2007, %v2001
        %v2134 = vpack.c.b16 %v2008, %v2002
        %v2135 = vpack.c.b16 %v2009, %v2003
        %v2136 = vpack.c.b16 %v2010, %v2004
        %v2137 = vpack.c.b16 %v2011, %v2005
        %v2138 = vpack.c.b16 %v2018, %v2012
        %v2139 = vpack.c.b16 %v2019, %v2013
        %v2140 = vpack.c.b16 %v2020, %v2014
        %v2141 = vpack.c.b16 %v2021, %v2015
        %v2142 = vpack.c.b16 %v2022, %v2016
        %v2143 = vpack.c.b16 %v2023, %v2017
        %v2144 = vpack.c.b16 %v2030, %v2024
        %v2145 = vpack.c.b16 %v2031, %v2025
        %v2146 = vpack.c.b16 %v2032, %v2026
        %v2147 = vpack.c.b16 %v2033, %v2027
        %v2148 = vpack.c.b16 %v2034, %v2028
        %v2149 = vpack.c.b16 %v2035, %v2029
        %v2150 = vpack.c.b16 %v2042, %v2036
        %v2151 = vpack.c.b16 %v2043, %v2037
        %v2152 = vpack.c.b16 %v2044, %v2038
        %v2153 = vpack.c.b16 %v2045, %v2039
        %v2154 = vpack.c.b16 %v2046, %v2040
        %v2155 = vpack.c.b16 %v2047, %v2041
        %v2156 = vpack.c.b16 %v2054, %v2048
        %v2157 = vpack.c.b16 %v2055, %v2049
        %v2158 = vpack.c.b16 %v2056, %v2050
        %v2159 = vpack.c.b16 %v2057, %v2051
        %v2160 = vpack.c.b16 %v2058, %v2052
        %v2161 = vpack.c.b16 %v2059, %v2053
        %v2162 = vpack.c.b16 %v2066, %v2060
        %v2163 = vpack.c.b16 %v2067, %v2061
        %v2164 = vpack.c.b16 %v2068, %v2062
        %v2165 = vpack.c.b16 %v2069, %v2063
        %v2166 = vpack.c.b16 %v2070, %v2064
        %v2167 = vpack.c.b16 %v2071, %v2065
        %2264 = vmatpush.bf16.msra.mxu0 %v2114
        %2265 = vmatpush.bf16.msra.mxu0 %v2108
        %2266 = vmatpush.bf16.msra.mxu0 %v2102
        %2267 = vmatpush.bf16.msra.mxu0 %v2096
        %2268 = vmatpush.bf16.msra.mxu0 %v2090
        %2269 = vmatpush.bf16.msra.mxu0 %v2084
        %2270 = vmatpush.bf16.msra.mxu0 %v2078
        %2271 = vmatpush.bf16.msra.mxu0 %v2072
        %2272 = vmatmul.bf16.gmra.mxu0 %v1670
        %v2273 = vpop.f32.mrf.mxu0
        %v2274 = vadd.f32 %v1772, %v2273
        %v2275 = vpop.f32.mrf.mxu0
        %v2276 = vadd.f32 %v1772, %v2275
        %2277 = vmatmul.bf16.gmra.mxu0 %v1672
        %v2278 = vpop.f32.mrf.mxu0
        %v2279 = vadd.f32 %v1772, %v2278
        %v2280 = vpop.f32.mrf.mxu0
        %v2281 = vadd.f32 %v1772, %v2280
        %2282 = vdwg.mxu0
        %2283 = vmatpush.bf16.msra.mxu0 %v2162
        %2284 = vmatpush.bf16.msra.mxu0 %v2156
        %2285 = vmatpush.bf16.msra.mxu0 %v2150
        %2286 = vmatpush.bf16.msra.mxu0 %v2144
        %2287 = vmatpush.bf16.msra.mxu0 %v2138
        %2288 = vmatpush.bf16.msra.mxu0 %v2132
        %2289 = vmatpush.bf16.msra.mxu0 %v2126
        %2290 = vmatpush.bf16.msra.mxu0 %v2120
        %2291 = vmatmul.bf16.gmra.mxu0 %v1671
        %v2292 = vpop.f32.mrf.mxu0
        %v2293 = vadd.f32 %v2274, %v2292
        %v2294 = vpop.f32.mrf.mxu0
        %v2295 = vadd.f32 %v2276, %v2294
        %2296 = vmatmul.bf16.gmra.mxu0 %v1673
        %v2297 = vpop.f32.mrf.mxu0
        %v2298 = vadd.f32 %v2279, %v2297
        %v2299 = vpop.f32.mrf.mxu0
        %v2300 = vadd.f32 %v2281, %v2299
        %2301 = vdwg.mxu0
        %2302 = vmatpush.bf16.msra.mxu0 %v2115
        %2303 = vmatpush.bf16.msra.mxu0 %v2109
        %2304 = vmatpush.bf16.msra.mxu0 %v2103
        %2305 = vmatpush.bf16.msra.mxu0 %v2097
        %2306 = vmatpush.bf16.msra.mxu0 %v2091
        %2307 = vmatpush.bf16.msra.mxu0 %v2085
        %2308 = vmatpush.bf16.msra.mxu0 %v2079
        %2309 = vmatpush.bf16.msra.mxu0 %v2073
        %2310 = vmatmul.bf16.gmra.mxu0 %v1670
        %v2311 = vpop.f32.mrf.mxu0
        %v2312 = vadd.f32 %v1773, %v2311
        %v2313 = vpop.f32.mrf.mxu0
        %v2314 = vadd.f32 %v1773, %v2313
        %2315 = vmatmul.bf16.gmra.mxu0 %v1672
        %v2316 = vpop.f32.mrf.mxu0
        %v2317 = vadd.f32 %v1773, %v2316
        %v2318 = vpop.f32.mrf.mxu0
        %v2319 = vadd.f32 %v1773, %v2318
        %2320 = vdwg.mxu0
        %2321 = vmatpush.bf16.msra.mxu0 %v2163
        %2322 = vmatpush.bf16.msra.mxu0 %v2157
        %2323 = vmatpush.bf16.msra.mxu0 %v2151
        %2324 = vmatpush.bf16.msra.mxu0 %v2145
        %2325 = vmatpush.bf16.msra.mxu0 %v2139
        %2326 = vmatpush.bf16.msra.mxu0 %v2133
        %2327 = vmatpush.bf16.msra.mxu0 %v2127
        %2328 = vmatpush.bf16.msra.mxu0 %v2121
        %2329 = vmatmul.bf16.gmra.mxu0 %v1671
        %v2330 = vpop.f32.mrf.mxu0
        %v2331 = vadd.f32 %v2312, %v2330
        %v2332 = vpop.f32.mrf.mxu0
        %v2333 = vadd.f32 %v2314, %v2332
        %2334 = vmatmul.bf16.gmra.mxu0 %v1673
        %v2335 = vpop.f32.mrf.mxu0
        %v2336 = vadd.f32 %v2317, %v2335
        %v2337 = vpop.f32.mrf.mxu0
        %v2338 = vadd.f32 %v2319, %v2337
        %2339 = vdwg.mxu0
        %2340 = vmatpush.bf16.msra.mxu0 %v2116
        %2341 = vmatpush.bf16.msra.mxu0 %v2110
        %2342 = vmatpush.bf16.msra.mxu0 %v2104
        %2343 = vmatpush.bf16.msra.mxu0 %v2098
        %2344 = vmatpush.bf16.msra.mxu0 %v2092
        %2345 = vmatpush.bf16.msra.mxu0 %v2086
        %2346 = vmatpush.bf16.msra.mxu0 %v2080
        %2347 = vmatpush.bf16.msra.mxu0 %v2074
        %2348 = vmatmul.bf16.gmra.mxu0 %v1670
        %v2349 = vpop.f32.mrf.mxu0
        %v2350 = vadd.f32 %v1774, %v2349
        %v2351 = vpop.f32.mrf.mxu0
        %v2352 = vadd.f32 %v1774, %v2351
        %2353 = vmatmul.bf16.gmra.mxu0 %v1672
        %v2354 = vpop.f32.mrf.mxu0
        %v2355 = vadd.f32 %v1774, %v2354
        %v2356 = vpop.f32.mrf.mxu0
        %v2357 = vadd.f32 %v1774, %v2356
        %2358 = vdwg.mxu0
        %2359 = vmatpush.bf16.msra.mxu0 %v2164
        %2360 = vmatpush.bf16.msra.mxu0 %v2158
        %2361 = vmatpush.bf16.msra.mxu0 %v2152
        %2362 = vmatpush.bf16.msra.mxu0 %v2146
        %2363 = vmatpush.bf16.msra.mxu0 %v2140
        %2364 = vmatpush.bf16.msra.mxu0 %v2134
        %2365 = vmatpush.bf16.msra.mxu0 %v2128
        %2366 = vmatpush.bf16.msra.mxu0 %v2122
        %2367 = vmatmul.bf16.gmra.mxu0 %v1671
        %v2368 = vpop.f32.mrf.mxu0
        %v2369 = vadd.f32 %v2350, %v2368
        %v2370 = vpop.f32.mrf.mxu0
        %v2371 = vadd.f32 %v2352, %v2370
        %2372 = vmatmul.bf16.gmra.mxu0 %v1673
        %v2373 = vpop.f32.mrf.mxu0
        %v2374 = vadd.f32 %v2355, %v2373
        %v2375 = vpop.f32.mrf.mxu0
        %v2376 = vadd.f32 %v2357, %v2375
        %2377 = vdwg.mxu0
        %2378 = vmatpush.bf16.msra.mxu0 %v2117
        %2379 = vmatpush.bf16.msra.mxu0 %v2111
        %2380 = vmatpush.bf16.msra.mxu0 %v2105
        %2381 = vmatpush.bf16.msra.mxu0 %v2099
        %2382 = vmatpush.bf16.msra.mxu0 %v2093
        %2383 = vmatpush.bf16.msra.mxu0 %v2087
        %2384 = vmatpush.bf16.msra.mxu0 %v2081
        %2385 = vmatpush.bf16.msra.mxu0 %v2075
        %2386 = vmatmul.bf16.gmra.mxu0 %v1670
        %v2387 = vpop.f32.mrf.mxu0
        %v2388 = vadd.f32 %v1775, %v2387
        %v2389 = vpop.f32.mrf.mxu0
        %v2390 = vadd.f32 %v1775, %v2389
        %2391 = vmatmul.bf16.gmra.mxu0 %v1672
        %v2392 = vpop.f32.mrf.mxu0
        %v2393 = vadd.f32 %v1775, %v2392
        %v2394 = vpop.f32.mrf.mxu0
        %v2395 = vadd.f32 %v1775, %v2394
        %2396 = vdwg.mxu0
        %2397 = vmatpush.bf16.msra.mxu0 %v2165
        %2398 = vmatpush.bf16.msra.mxu0 %v2159
        %2399 = vmatpush.bf16.msra.mxu0 %v2153
        %2400 = vmatpush.bf16.msra.mxu0 %v2147
        %2401 = vmatpush.bf16.msra.mxu0 %v2141
        %2402 = vmatpush.bf16.msra.mxu0 %v2135
        %2403 = vmatpush.bf16.msra.mxu0 %v2129
        %2404 = vmatpush.bf16.msra.mxu0 %v2123
        %2405 = vmatmul.bf16.gmra.mxu0 %v1671
        %v2406 = vpop.f32.mrf.mxu0
        %v2407 = vadd.f32 %v2388, %v2406
        %v2408 = vpop.f32.mrf.mxu0
        %v2409 = vadd.f32 %v2390, %v2408
        %2410 = vmatmul.bf16.gmra.mxu0 %v1673
        %v2411 = vpop.f32.mrf.mxu0
        %v2412 = vadd.f32 %v2393, %v2411
        %v2413 = vpop.f32.mrf.mxu0
        %v2414 = vadd.f32 %v2395, %v2413
        %2415 = vdwg.mxu0
        %2416 = vmatpush.bf16.msra.mxu0 %v2118
        %2417 = vmatpush.bf16.msra.mxu0 %v2112
        %2418 = vmatpush.bf16.msra.mxu0 %v2106
        %2419 = vmatpush.bf16.msra.mxu0 %v2100
        %2420 = vmatpush.bf16.msra.mxu0 %v2094
        %2421 = vmatpush.bf16.msra.mxu0 %v2088
        %2422 = vmatpush.bf16.msra.mxu0 %v2082
        %2423 = vmatpush.bf16.msra.mxu0 %v2076
        %2424 = vmatmul.bf16.gmra.mxu0 %v1670
        %v2425 = vpop.f32.mrf.mxu0
        %v2426 = vadd.f32 %v1776, %v2425
        %v2427 = vpop.f32.mrf.mxu0
        %v2428 = vadd.f32 %v1776, %v2427
        %2429 = vmatmul.bf16.gmra.mxu0 %v1672
        %v2430 = vpop.f32.mrf.mxu0
        %v2431 = vadd.f32 %v1776, %v2430
        %v2432 = vpop.f32.mrf.mxu0
        %v2433 = vadd.f32 %v1776, %v2432
        %2434 = vdwg.mxu0
        %2435 = vmatpush.bf16.msra.mxu0 %v2166
        %2436 = vmatpush.bf16.msra.mxu0 %v2160
        %2437 = vmatpush.bf16.msra.mxu0 %v2154
        %2438 = vmatpush.bf16.msra.mxu0 %v2148
        %2439 = vmatpush.bf16.msra.mxu0 %v2142
        %2440 = vmatpush.bf16.msra.mxu0 %v2136
        %2441 = vmatpush.bf16.msra.mxu0 %v2130
        %2442 = vmatpush.bf16.msra.mxu0 %v2124
        %2443 = vmatmul.bf16.gmra.mxu0 %v1671
        %v2444 = vpop.f32.mrf.mxu0
        %v2445 = vadd.f32 %v2426, %v2444
        %v2446 = vpop.f32.mrf.mxu0
        %v2447 = vadd.f32 %v2428, %v2446
        %2448 = vmatmul.bf16.gmra.mxu0 %v1673
        %v2449 = vpop.f32.mrf.mxu0
        %v2450 = vadd.f32 %v2431, %v2449
        %v2451 = vpop.f32.mrf.mxu0
        %v2452 = vadd.f32 %v2433, %v2451
        %2453 = vdwg.mxu0
        %2454 = vmatpush.bf16.msra.mxu0 %v2119
        %2455 = vmatpush.bf16.msra.mxu0 %v2113
        %2456 = vmatpush.bf16.msra.mxu0 %v2107
        %2457 = vmatpush.bf16.msra.mxu0 %v2101
        %2458 = vmatpush.bf16.msra.mxu0 %v2095
        %2459 = vmatpush.bf16.msra.mxu0 %v2089
        %2460 = vmatpush.bf16.msra.mxu0 %v2083
        %2461 = vmatpush.bf16.msra.mxu0 %v2077
        %2462 = vmatmul.bf16.gmra.mxu0 %v1670
        %v2463 = vpop.f32.mrf.mxu0
        %v2464 = vadd.f32 %v1777, %v2463
        %v2465 = vpop.f32.mrf.mxu0
        %v2466 = vadd.f32 %v1777, %v2465
        %2467 = vmatmul.bf16.gmra.mxu0 %v1672
        %v2468 = vpop.f32.mrf.mxu0
        %v2469 = vadd.f32 %v1777, %v2468
        %v2470 = vpop.f32.mrf.mxu0
        %v2471 = vadd.f32 %v1777, %v2470
        %2472 = vdwg.mxu0
        %2473 = vmatpush.bf16.msra.mxu0 %v2167
        %2474 = vmatpush.bf16.msra.mxu0 %v2161
        %2475 = vmatpush.bf16.msra.mxu0 %v2155
        %2476 = vmatpush.bf16.msra.mxu0 %v2149
        %2477 = vmatpush.bf16.msra.mxu0 %v2143
        %2478 = vmatpush.bf16.msra.mxu0 %v2137
        %2479 = vmatpush.bf16.msra.mxu0 %v2131
        %2480 = vmatpush.bf16.msra.mxu0 %v2125
        %2481 = vmatmul.bf16.gmra.mxu0 %v1671
        %v2482 = vpop.f32.mrf.mxu0
        %v2483 = vadd.f32 %v2464, %v2482
        %v2484 = vpop.f32.mrf.mxu0
        %v2485 = vadd.f32 %v2466, %v2484
        %2486 = vmatmul.bf16.gmra.mxu0 %v1673
        %v2487 = vpop.f32.mrf.mxu0
        %v2488 = vadd.f32 %v2469, %v2487
        %v2489 = vpop.f32.mrf.mxu0
        %v2490 = vadd.f32 %v2471, %v2489
        %2491 = vdwg.mxu0
        %v2492 = vmul.f32 %v2293, 0.088388346
        %v2493 = vmul.f32 %v2295, 0.088388346
        %v2494 = vpack.c.bf16 %v2493, %v2492
        %v2495 = vpack.c.bf16 %v2371, %v2369
        %v2496 = vld [vmem:[#allocation10] sm:$0xff]
        %v2497 = vld [vmem:[#allocation10 + $0x8] sm:$0xff]
        %2498 = vmatpush.bf16.xpose.msra.mxu0 0
        %2499 = vmatpush.bf16.xpose.msra.mxu0 0
        %2500 = vmatpush.bf16.xpose.msra.mxu0 0
        %2501 = vmatpush.bf16.xpose.msra.mxu0 0
        %2502 = vmatpush.bf16.xpose.msra.mxu0 0
        %2503 = vmatpush.bf16.xpose.msra.mxu0 0
        %2504 = vmatpush.bf16.xpose.msra.mxu0 0
        %2505 = vmatpush.bf16.xpose.msra.mxu0 %v2495
        %2506 = vmatmul.bf16.gmra.mxu0 %v2494
        %v2507 = vpop.f32.mrf.mxu0
        %v2508 = vadd.f32 %v2496, %v2507
        %v2509 = vpop.f32.mrf.mxu0
        %v2510 = vadd.f32 %v2497, %v2509
        %2511 = vdwg.mxu0
        %vm2512 = vcmask 130048
        %v2513 = vsel %vm2512, %v2508, -inf
        %2514 = vmax.xlane.f32.xlu0 %v2513
        %v2515 = vpop.xlane.xlu0 %2514
        %v2516 = vsel %vm2512, %v2510, -inf
        %2517 = vmax.xlane.f32.xlu0 %v2516
        %v2518 = vpop.xlane.xlu0 %2517
        %v2519 = vsub.f32 %v2508, %v2515
        %v2520 = vsub.f32 %v2510, %v2518
        %v2521 = vmul.f32 %v2519, 1.442695
        %v2522 = vpow.pop %v2521
        %v2523 = vmul.f32 %v2520, 1.442695
        %v2524 = vpow.pop %v2523
        %v2525 = vsel %vm2512, %v2522, 0.0
        %2526 = vadd.xlane.f32.xlu0 %v2525
        %v2527 = vpop.xlane.xlu0 %2526
        %v2528 = vsel %vm2512, %v2524, 0.0
        %2529 = vadd.xlane.f32.xlu0 %v2528
        %v2530 = vpop.xlane.xlu0 %2529
        %v2531 = vrcp.pop %v2527
        %v2532 = vrcp.pop %v2530
        %v2533 = vmul.f32 %v2522, %v2531
        %v2534 = vmul.f32 %v2524, %v2532
        %v2535 = vpack.c.bf16 %v2534, %v2533
        %v2536 = vpack.c.bf16 %v2447, %v2445
        %v2538 = vsel %vm2512, %v2535, 0
        %2540 = vmatpush.bf16.msra.mxu0 0
        %2541 = vmatpush.bf16.msra.mxu0 0
        %2542 = vmatpush.bf16.msra.mxu0 0
        %2543 = vmatpush.bf16.msra.mxu0 0
        %2544 = vmatpush.bf16.msra.mxu0 0
        %2545 = vmatpush.bf16.msra.mxu0 0
        %2546 = vmatpush.bf16.msra.mxu0 0
        %2547 = vmatpush.bf16.msra.mxu0 %v2536
        %2548 = vmatmul.bf16.gmra.mxu0 %v2538
        %v2549 = vpop.f32.mrf.mxu0
        %v2550 = vadd.f32 0.0, %v2549
        %v2551 = vpop.f32.mrf.mxu0
        %v2552 = vadd.f32 0.0, %v2551
        %2553 = vdwg.mxu0
        %2554 = vst [vmem:[#allocation3] sm:$0xff] %v2550
        %2555 = vst [vmem:[#allocation3 + $0x10] sm:$0xff] %v2552
        %v2556 = vmul.f32 %v2331, 0.088388346
        %v2557 = vmul.f32 %v2333, 0.088388346
        %v2558 = vpack.c.bf16 %v2557, %v2556
        %v2559 = vpack.c.bf16 %v2409, %v2407
        %v2560 = vld [vmem:[#allocation10] sm:$0xff]
        %v2561 = vld [vmem:[#allocation10 + $0x8] sm:$0xff]
        %2562 = vmatpush.bf16.xpose.msra.mxu0 0
        %2563 = vmatpush.bf16.xpose.msra.mxu0 0
        %2564 = vmatpush.bf16.xpose.msra.mxu0 0
        %2565 = vmatpush.bf16.xpose.msra.mxu0 0
        %2566 = vmatpush.bf16.xpose.msra.mxu0 0
        %2567 = vmatpush.bf16.xpose.msra.mxu0 0
        %2568 = vmatpush.bf16.xpose.msra.mxu0 0
        %2569 = vmatpush.bf16.xpose.msra.mxu0 %v2559
        %2570 = vmatmul.bf16.gmra.mxu0 %v2558
        %v2571 = vpop.f32.mrf.mxu0
        %v2572 = vadd.f32 %v2560, %v2571
        %v2573 = vpop.f32.mrf.mxu0
        %v2574 = vadd.f32 %v2561, %v2573
        %2575 = vdwg.mxu0
        %v2576 = vsel %vm2512, %v2572, -inf
        %2577 = vmax.xlane.f32.xlu0 %v2576
        %v2578 = vpop.xlane.xlu0 %2577
        %v2579 = vsel %vm2512, %v2574, -inf
        %2580 = vmax.xlane.f32.xlu0 %v2579
        %v2581 = vpop.xlane.xlu0 %2580
        %v2582 = vsub.f32 %v2572, %v2578
        %v2583 = vsub.f32 %v2574, %v2581
        %v2584 = vmul.f32 %v2582, 1.442695
        %v2585 = vpow.pop %v2584
        %v2586 = vmul.f32 %v2583, 1.442695
        %v2587 = vpow.pop %v2586
        %v2588 = vsel %vm2512, %v2585, 0.0
        %2589 = vadd.xlane.f32.xlu0 %v2588
        %v2590 = vpop.xlane.xlu0 %2589
        %v2591 = vsel %vm2512, %v2587, 0.0
        %2592 = vadd.xlane.f32.xlu0 %v2591
        %v2593 = vpop.xlane.xlu0 %2592
        %v2594 = vrcp.pop %v2590
        %v2595 = vrcp.pop %v2593
        %v2596 = vmul.f32 %v2585, %v2594
        %v2597 = vmul.f32 %v2587, %v2595
        %v2598 = vpack.c.bf16 %v2597, %v2596
        %v2599 = vpack.c.bf16 %v2485, %v2483
        %v2601 = vsel %vm2512, %v2598, 0
        %2603 = vmatpush.bf16.msra.mxu0 0
        %2604 = vmatpush.bf16.msra.mxu0 0
        %2605 = vmatpush.bf16.msra.mxu0 0
        %2606 = vmatpush.bf16.msra.mxu0 0
        %2607 = vmatpush.bf16.msra.mxu0 0
        %2608 = vmatpush.bf16.msra.mxu0 0
        %2609 = vmatpush.bf16.msra.mxu0 0
        %2610 = vmatpush.bf16.msra.mxu0 %v2599
        %2611 = vmatmul.bf16.gmra.mxu0 %v2601
        %v2612 = vpop.f32.mrf.mxu0
        %v2613 = vadd.f32 0.0, %v2612
        %v2614 = vpop.f32.mrf.mxu0
        %v2615 = vadd.f32 0.0, %v2614
        %2616 = vdwg.mxu0
        %2617 = vst [vmem:[#allocation3 + $0x8] sm:$0xff] %v2613
        %2618 = vst [vmem:[#allocation3 + $0x18] sm:$0xff] %v2615
        %v2619 = vmul.f32 %v2298, 0.088388346
        %v2620 = vmul.f32 %v2300, 0.088388346
        %v2621 = vpack.c.bf16 %v2620, %v2619
        %v2622 = vpack.c.bf16 %v2376, %v2374
        %v2623 = vld [vmem:[#allocation10] sm:$0xff]
        %v2624 = vld [vmem:[#allocation10 + $0x8] sm:$0xff]
        %2625 = vmatpush.bf16.xpose.msra.mxu0 0
        %2626 = vmatpush.bf16.xpose.msra.mxu0 0
        %2627 = vmatpush.bf16.xpose.msra.mxu0 0
        %2628 = vmatpush.bf16.xpose.msra.mxu0 0
        %2629 = vmatpush.bf16.xpose.msra.mxu0 0
        %2630 = vmatpush.bf16.xpose.msra.mxu0 0
        %2631 = vmatpush.bf16.xpose.msra.mxu0 0
        %2632 = vmatpush.bf16.xpose.msra.mxu0 %v2622
        %2633 = vmatmul.bf16.gmra.mxu0 %v2621
        %v2634 = vpop.f32.mrf.mxu0
        %v2635 = vadd.f32 %v2623, %v2634
        %v2636 = vpop.f32.mrf.mxu0
        %v2637 = vadd.f32 %v2624, %v2636
        %2638 = vdwg.mxu0
        %v2639 = vsel %vm2512, %v2635, -inf
        %2640 = vmax.xlane.f32.xlu0 %v2639
        %v2641 = vpop.xlane.xlu0 %2640
        %v2642 = vsel %vm2512, %v2637, -inf
        %2643 = vmax.xlane.f32.xlu0 %v2642
        %v2644 = vpop.xlane.xlu0 %2643
        %v2645 = vsub.f32 %v2635, %v2641
        %v2646 = vsub.f32 %v2637, %v2644
        %v2647 = vmul.f32 %v2645, 1.442695
        %v2648 = vpow.pop %v2647
        %v2649 = vmul.f32 %v2646, 1.442695
        %v2650 = vpow.pop %v2649
        %v2651 = vsel %vm2512, %v2648, 0.0
        %2652 = vadd.xlane.f32.xlu0 %v2651
        %v2653 = vpop.xlane.xlu0 %2652
        %v2654 = vsel %vm2512, %v2650, 0.0
        %2655 = vadd.xlane.f32.xlu0 %v2654
        %v2656 = vpop.xlane.xlu0 %2655
        %v2657 = vrcp.pop %v2653
        %v2658 = vrcp.pop %v2656
        %v2659 = vmul.f32 %v2648, %v2657
        %v2660 = vmul.f32 %v2650, %v2658
        %v2661 = vpack.c.bf16 %v2660, %v2659
        %v2662 = vpack.c.bf16 %v2452, %v2450
        %v2664 = vsel %vm2512, %v2661, 0
        %2666 = vmatpush.bf16.msra.mxu0 0
        %2667 = vmatpush.bf16.msra.mxu0 0
        %2668 = vmatpush.bf16.msra.mxu0 0
        %2669 = vmatpush.bf16.msra.mxu0 0
        %2670 = vmatpush.bf16.msra.mxu0 0
        %2671 = vmatpush.bf16.msra.mxu0 0
        %2672 = vmatpush.bf16.msra.mxu0 0
        %2673 = vmatpush.bf16.msra.mxu0 %v2662
        %2674 = vmatmul.bf16.gmra.mxu0 %v2664
        %v2675 = vpop.f32.mrf.mxu0
        %v2676 = vadd.f32 0.0, %v2675
        %v2677 = vpop.f32.mrf.mxu0
        %v2678 = vadd.f32 0.0, %v2677
        %2679 = vdwg.mxu0
        %2680 = vst [vmem:[#allocation3 + $0x20] sm:$0xff] %v2676
        %2681 = vst [vmem:[#allocation3 + $0x30] sm:$0xff] %v2678
        %v2682 = vmul.f32 %v2336, 0.088388346
        %v2683 = vmul.f32 %v2338, 0.088388346
        %v2684 = vpack.c.bf16 %v2683, %v2682
        %v2685 = vpack.c.bf16 %v2414, %v2412
        %v2686 = vld [vmem:[#allocation10] sm:$0xff]
        %v2687 = vld [vmem:[#allocation10 + $0x8] sm:$0xff]
        %2688 = vmatpush.bf16.xpose.msra.mxu0 0
        %2689 = vmatpush.bf16.xpose.msra.mxu0 0
        %2690 = vmatpush.bf16.xpose.msra.mxu0 0
        %2691 = vmatpush.bf16.xpose.msra.mxu0 0
        %2692 = vmatpush.bf16.xpose.msra.mxu0 0
        %2693 = vmatpush.bf16.xpose.msra.mxu0 0
        %2694 = vmatpush.bf16.xpose.msra.mxu0 0
        %2695 = vmatpush.bf16.xpose.msra.mxu0 %v2685
        %2696 = vmatmul.bf16.gmra.mxu0 %v2684
        %v2697 = vpop.f32.mrf.mxu0
        %v2698 = vadd.f32 %v2686, %v2697
        %v2699 = vpop.f32.mrf.mxu0
        %v2700 = vadd.f32 %v2687, %v2699
        %2701 = vdwg.mxu0
        %v2702 = vsel %vm2512, %v2698, -inf
        %2703 = vmax.xlane.f32.xlu0 %v2702
        %v2704 = vpop.xlane.xlu0 %2703
        %v2705 = vsel %vm2512, %v2700, -inf
        %2706 = vmax.xlane.f32.xlu0 %v2705
        %v2707 = vpop.xlane.xlu0 %2706
        %v2708 = vsub.f32 %v2698, %v2704
        %v2709 = vsub.f32 %v2700, %v2707
        %v2710 = vmul.f32 %v2708, 1.442695
        %v2711 = vpow.pop %v2710
        %v2712 = vmul.f32 %v2709, 1.442695
        %v2713 = vpow.pop %v2712
        %v2714 = vsel %vm2512, %v2711, 0.0
        %2715 = vadd.xlane.f32.xlu0 %v2714
        %v2716 = vpop.xlane.xlu0 %2715
        %v2717 = vsel %vm2512, %v2713, 0.0
        %2718 = vadd.xlane.f32.xlu0 %v2717
        %v2719 = vpop.xlane.xlu0 %2718
        %v2720 = vrcp.pop %v2716
        %v2721 = vrcp.pop %v2719
        %v2722 = vmul.f32 %v2711, %v2720
        %v2723 = vmul.f32 %v2713, %v2721
        %v2724 = vpack.c.bf16 %v2723, %v2722
        %v2725 = vpack.c.bf16 %v2490, %v2488
        %v2727 = vsel %vm2512, %v2724, 0
        %2729 = vmatpush.bf16.msra.mxu0 0
        %2730 = vmatpush.bf16.msra.mxu0 0
        %2731 = vmatpush.bf16.msra.mxu0 0
        %2732 = vmatpush.bf16.msra.mxu0 0
        %2733 = vmatpush.bf16.msra.mxu0 0
        %2734 = vmatpush.bf16.msra.mxu0 0
        %2735 = vmatpush.bf16.msra.mxu0 0
        %2736 = vmatpush.bf16.msra.mxu0 %v2725
        %2737 = vmatmul.bf16.gmra.mxu0 %v2727
        %v2738 = vpop.f32.mrf.mxu0
        %v2739 = vadd.f32 0.0, %v2738
        %v2740 = vpop.f32.mrf.mxu0
        %v2741 = vadd.f32 0.0, %v2740
        %2742 = vdwg.mxu0
        %2743 = vst [vmem:[#allocation3 + $0x28] sm:$0xff] %v2739
        %2744 = vst [vmem:[#allocation3 + $0x38] sm:$0xff] %v2741
        %v2745 = vld [vmem:[#allocation3] sm:$0xff]
        %v2746 = vld [vmem:[#allocation3 + $0x8] sm:$0xff]
        %v2747 = vld [vmem:[#allocation3 + $0x10] sm:$0xff]
        %v2748 = vld [vmem:[#allocation3 + $0x18] sm:$0xff]
        %v2749 = vld [vmem:[#allocation3 + $0x20] sm:$0xff]
        %v2750 = vld [vmem:[#allocation3 + $0x28] sm:$0xff]
        %v2751 = vld [vmem:[#allocation3 + $0x30] sm:$0xff]
        %v2752 = vld [vmem:[#allocation3 + $0x38] sm:$0xff]
        %v2753 = vpack.c.bf16 %v2747, %v2745
        %v2754 = vpack.c.bf16 %v2748, %v2746
        %v2755 = vpack.c.bf16 %v2751, %v2749
        %v2756 = vpack.c.bf16 %v2752, %v2750
        %v2757 = vld [vmem:[%s760] sm:$0xff]
        %v2758 = vld [vmem:[%s760 + $0x8] sm:$0xff]
        %v2759 = vld [vmem:[%s760 + $0x10] sm:$0xff]
        %v2760 = vld [vmem:[%s760 + $0x18] sm:$0xff]
        %v2761 = vld [vmem:[%s760 + $0x20] sm:$0xff]
        %v2762 = vld [vmem:[%s760 + $0x28] sm:$0xff]
        %v2763 = vld [vmem:[%s760 + $0x30] sm:$0xff]
        %v2764 = vld [vmem:[%s760 + $0x38] sm:$0xff]
        %v2765 = vld [vmem:[%s760 + $0x40] sm:$0xff]
        %v2766 = vld [vmem:[%s760 + $0x48] sm:$0xff]
        %v2767 = vld [vmem:[%s760 + $0x50] sm:$0xff]
        %v2768 = vld [vmem:[%s760 + $0x58] sm:$0xff]
        %v2769 = vld [vmem:[%s760 + $0x60] sm:$0xff]
        %v2770 = vld [vmem:[%s760 + $0x68] sm:$0xff]
        %v2771 = vld [vmem:[%s760 + $0x70] sm:$0xff]
        %v2772 = vld [vmem:[%s760 + $0x78] sm:$0xff]
        %v2773 = vld [vmem:[%s760 + $0x80] sm:$0xff]
        %v2774 = vld [vmem:[%s760 + $0x88] sm:$0xff]
        %v2775 = vld [vmem:[%s760 + $0x90] sm:$0xff]
        %v2776 = vld [vmem:[%s760 + $0x98] sm:$0xff]
        %v2777 = vld [vmem:[%s760 + $0xa0] sm:$0xff]
        %v2778 = vld [vmem:[%s760 + $0xa8] sm:$0xff]
        %v2779 = vld [vmem:[%s760 + $0xb0] sm:$0xff]
        %v2780 = vld [vmem:[%s760 + $0xb8] sm:$0xff]
        %v2781 = vld [vmem:[%s760 + $0xc0] sm:$0xff]
        %v2782 = vld [vmem:[%s760 + $0xc8] sm:$0xff]
        %v2783 = vld [vmem:[%s760 + $0xd0] sm:$0xff]
        %v2784 = vld [vmem:[%s760 + $0xd8] sm:$0xff]
        %v2785 = vld [vmem:[%s760 + $0xe0] sm:$0xff]
        %v2786 = vld [vmem:[%s760 + $0xe8] sm:$0xff]
        %v2787 = vld [vmem:[%s760 + $0xf0] sm:$0xff]
        %v2788 = vld [vmem:[%s760 + $0xf8] sm:$0xff]
        %v2821 = vunpack.c.l.b16 %v2757
        %v2822 = vunpack.c.h.b16 %v2757
        %v2823 = vunpack.c.l.b16 %v2758
        %v2824 = vunpack.c.h.b16 %v2758
        %v2825 = vunpack.c.l.b16 %v2759
        %v2826 = vunpack.c.h.b16 %v2759
        %v2827 = vunpack.c.l.b16 %v2760
        %v2828 = vunpack.c.h.b16 %v2760
        %v2829 = vunpack.c.l.b16 %v2761
        %v2830 = vunpack.c.h.b16 %v2761
        %v2831 = vunpack.c.l.b16 %v2762
        %v2832 = vunpack.c.h.b16 %v2762
        %v2833 = vunpack.c.l.b16 %v2763
        %v2834 = vunpack.c.h.b16 %v2763
        %v2835 = vunpack.c.l.b16 %v2764
        %v2836 = vunpack.c.h.b16 %v2764
        %v2837 = vunpack.c.l.b16 %v2765
        %v2838 = vunpack.c.h.b16 %v2765
        %v2839 = vunpack.c.l.b16 %v2766
        %v2840 = vunpack.c.h.b16 %v2766
        %v2841 = vunpack.c.l.b16 %v2767
        %v2842 = vunpack.c.h.b16 %v2767
        %v2843 = vunpack.c.l.b16 %v2768
        %v2844 = vunpack.c.h.b16 %v2768
        %v2845 = vunpack.c.l.b16 %v2769
        %v2846 = vunpack.c.h.b16 %v2769
        %v2847 = vunpack.c.l.b16 %v2770
        %v2848 = vunpack.c.h.b16 %v2770
        %v2849 = vunpack.c.l.b16 %v2771
        %v2850 = vunpack.c.h.b16 %v2771
        %v2851 = vunpack.c.l.b16 %v2772
        %v2852 = vunpack.c.h.b16 %v2772
        %v2853 = vunpack.c.l.b16 %v2773
        %v2854 = vunpack.c.h.b16 %v2773
        %v2855 = vunpack.c.l.b16 %v2774
        %v2856 = vunpack.c.h.b16 %v2774
        %v2857 = vunpack.c.l.b16 %v2775
        %v2858 = vunpack.c.h.b16 %v2775
        %v2859 = vunpack.c.l.b16 %v2776
        %v2860 = vunpack.c.h.b16 %v2776
        %v2861 = vunpack.c.l.b16 %v2777
        %v2862 = vunpack.c.h.b16 %v2777
        %v2863 = vunpack.c.l.b16 %v2778
        %v2864 = vunpack.c.h.b16 %v2778
        %v2865 = vunpack.c.l.b16 %v2779
        %v2866 = vunpack.c.h.b16 %v2779
        %v2867 = vunpack.c.l.b16 %v2780
        %v2868 = vunpack.c.h.b16 %v2780
        %v2869 = vunpack.c.l.b16 %v2781
        %v2870 = vunpack.c.h.b16 %v2781
        %v2871 = vunpack.c.l.b16 %v2782
        %v2872 = vunpack.c.h.b16 %v2782
        %v2873 = vunpack.c.l.b16 %v2783
        %v2874 = vunpack.c.h.b16 %v2783
        %v2875 = vunpack.c.l.b16 %v2784
        %v2876 = vunpack.c.h.b16 %v2784
        %v2877 = vunpack.c.l.b16 %v2785
        %v2878 = vunpack.c.h.b16 %v2785
        %v2879 = vunpack.c.l.b16 %v2786
        %v2880 = vunpack.c.h.b16 %v2786
        %v2881 = vunpack.c.l.b16 %v2787
        %v2882 = vunpack.c.h.b16 %v2787
        %v2883 = vunpack.c.l.b16 %v2788
        %v2884 = vunpack.c.h.b16 %v2788
        %v2885 = vpack.c.b16 %v2823, %v2821
        %v2886 = vpack.c.b16 %v2824, %v2822
        %v2887 = vpack.c.b16 %v2827, %v2825
        %v2888 = vpack.c.b16 %v2828, %v2826
        %v2889 = vpack.c.b16 %v2831, %v2829
        %v2890 = vpack.c.b16 %v2832, %v2830
        %v2891 = vpack.c.b16 %v2835, %v2833
        %v2892 = vpack.c.b16 %v2836, %v2834
        %v2893 = vpack.c.b16 %v2839, %v2837
        %v2894 = vpack.c.b16 %v2840, %v2838
        %v2895 = vpack.c.b16 %v2843, %v2841
        %v2896 = vpack.c.b16 %v2844, %v2842
        %v2897 = vpack.c.b16 %v2847, %v2845
        %v2898 = vpack.c.b16 %v2848, %v2846
        %v2899 = vpack.c.b16 %v2851, %v2849
        %v2900 = vpack.c.b16 %v2852, %v2850
        %v2901 = vpack.c.b16 %v2855, %v2853
        %v2902 = vpack.c.b16 %v2856, %v2854
        %v2903 = vpack.c.b16 %v2859, %v2857
        %v2904 = vpack.c.b16 %v2860, %v2858
        %v2905 = vpack.c.b16 %v2863, %v2861
        %v2906 = vpack.c.b16 %v2864, %v2862
        %v2907 = vpack.c.b16 %v2867, %v2865
        %v2908 = vpack.c.b16 %v2868, %v2866
        %v2909 = vpack.c.b16 %v2871, %v2869
        %v2910 = vpack.c.b16 %v2872, %v2870
        %v2911 = vpack.c.b16 %v2875, %v2873
        %v2912 = vpack.c.b16 %v2876, %v2874
        %v2913 = vpack.c.b16 %v2879, %v2877
        %v2914 = vpack.c.b16 %v2880, %v2878
        %v2915 = vpack.c.b16 %v2883, %v2881
        %v2916 = vpack.c.b16 %v2884, %v2882
        %2949 = vmatpush.bf16.msra.mxu0 %v2899
        %2950 = vmatpush.bf16.msra.mxu0 %v2897
        %2951 = vmatpush.bf16.msra.mxu0 %v2895
        %2952 = vmatpush.bf16.msra.mxu0 %v2893
        %2953 = vmatpush.bf16.msra.mxu0 %v2891
        %2954 = vmatpush.bf16.msra.mxu0 %v2889
        %2955 = vmatpush.bf16.msra.mxu0 %v2887
        %2956 = vmatpush.bf16.msra.mxu0 %v2885
        %2957 = vmatmul.bf16.gmra.mxu0 %v2753
        %v2958 = vpop.f32.mrf.mxu0
        %v2959 = vadd.f32 0.0, %v2958
        %v2960 = vpop.f32.mrf.mxu0
        %v2961 = vadd.f32 0.0, %v2960
        %2962 = vmatmul.bf16.gmra.mxu0 %v2755
        %v2963 = vpop.f32.mrf.mxu0
        %v2964 = vadd.f32 0.0, %v2963
        %v2965 = vpop.f32.mrf.mxu0
        %v2966 = vadd.f32 0.0, %v2965
        %2967 = vdwg.mxu0
        %2968 = vmatpush.bf16.msra.mxu0 %v2915
        %2969 = vmatpush.bf16.msra.mxu0 %v2913
        %2970 = vmatpush.bf16.msra.mxu0 %v2911
        %2971 = vmatpush.bf16.msra.mxu0 %v2909
        %2972 = vmatpush.bf16.msra.mxu0 %v2907
        %2973 = vmatpush.bf16.msra.mxu0 %v2905
        %2974 = vmatpush.bf16.msra.mxu0 %v2903
        %2975 = vmatpush.bf16.msra.mxu0 %v2901
        %2976 = vmatmul.bf16.gmra.mxu0 %v2754
        %v2977 = vpop.f32.mrf.mxu0
        %v2978 = vadd.f32 %v2959, %v2977
        %v2979 = vpop.f32.mrf.mxu0
        %v2980 = vadd.f32 %v2961, %v2979
        %2981 = vmatmul.bf16.gmra.mxu0 %v2756
        %v2982 = vpop.f32.mrf.mxu0
        %v2983 = vadd.f32 %v2964, %v2982
        %v2984 = vpop.f32.mrf.mxu0
        %v2985 = vadd.f32 %v2966, %v2984
        %2986 = vdwg.mxu0
        %2987 = vmatpush.bf16.msra.mxu0 %v2900
        %2988 = vmatpush.bf16.msra.mxu0 %v2898
        %2989 = vmatpush.bf16.msra.mxu0 %v2896
        %2990 = vmatpush.bf16.msra.mxu0 %v2894
        %2991 = vmatpush.bf16.msra.mxu0 %v2892
        %2992 = vmatpush.bf16.msra.mxu0 %v2890
        %2993 = vmatpush.bf16.msra.mxu0 %v2888
        %2994 = vmatpush.bf16.msra.mxu0 %v2886
        %2995 = vmatmul.bf16.gmra.mxu0 %v2753
        %v2996 = vpop.f32.mrf.mxu0
        %v2997 = vadd.f32 0.0, %v2996
        %v2998 = vpop.f32.mrf.mxu0
        %v2999 = vadd.f32 0.0, %v2998
        %3000 = vmatmul.bf16.gmra.mxu0 %v2755
        %v3001 = vpop.f32.mrf.mxu0
        %v3002 = vadd.f32 0.0, %v3001
        %v3003 = vpop.f32.mrf.mxu0
        %v3004 = vadd.f32 0.0, %v3003
        %3005 = vdwg.mxu0
        %3006 = vmatpush.bf16.msra.mxu0 %v2916
        %3007 = vmatpush.bf16.msra.mxu0 %v2914
        %3008 = vmatpush.bf16.msra.mxu0 %v2912
        %3009 = vmatpush.bf16.msra.mxu0 %v2910
        %3010 = vmatpush.bf16.msra.mxu0 %v2908
        %3011 = vmatpush.bf16.msra.mxu0 %v2906
        %3012 = vmatpush.bf16.msra.mxu0 %v2904
        %3013 = vmatpush.bf16.msra.mxu0 %v2902
        %3014 = vmatmul.bf16.gmra.mxu0 %v2754
        %v3015 = vpop.f32.mrf.mxu0
        %v3016 = vadd.f32 %v2997, %v3015
        %v3017 = vpop.f32.mrf.mxu0
        %v3018 = vadd.f32 %v2999, %v3017
        %3019 = vmatmul.bf16.gmra.mxu0 %v2756
        %v3020 = vpop.f32.mrf.mxu0
        %v3021 = vadd.f32 %v3002, %v3020
        %v3022 = vpop.f32.mrf.mxu0
        %v3023 = vadd.f32 %v3004, %v3022
        %3024 = vdwg.mxu0
        %v3025 = vadd.f32 %v1527, %v2978
        %v3026 = vadd.f32 %v1528, %v3016
        %v3027 = vadd.f32 %v1529, %v2980
        %v3028 = vadd.f32 %v1530, %v3018
        %v3029 = vadd.f32 %v1531, %v2983
        %v3030 = vadd.f32 %v1532, %v3021
        %v3031 = vadd.f32 %v1533, %v2985
        %v3032 = vadd.f32 %v1534, %v3023
        %v3033 = vld [vmem:[%s914] sm:$0x3]
        %v3035 = vperm.slane %v3033, 0
        %v3036 = vperm.slane %v3033, 1
        %v3039 = vadd.f32 %v3025, %v3035
        %v3040 = vadd.f32 %v3026, %v3036
        %v3041 = vadd.f32 %v3027, %v3035
        %v3042 = vadd.f32 %v3028, %v3036
        %v3043 = vadd.f32 %v3029, %v3035
        %v3044 = vadd.f32 %v3030, %v3036
        %v3045 = vadd.f32 %v3031, %v3035
        %v3046 = vadd.f32 %v3032, %v3036
        %v3047 = vld [vmem:[%s770] sm:$0x3]
        %v3048 = vld [vmem:[%s780] sm:$0x3]
        %v3049 = vadd.f32 %v3039, %v3040
        %3050 = vadd.xlane.f32.xlu0 %v3049
        %v3051 = vpop.xlane.xlu0 %3050
        %v3052 = vadd.f32 %v3041, %v3042
        %3053 = vadd.xlane.f32.xlu0 %v3052
        %v3054 = vpop.xlane.xlu0 %3053
        %v3055 = vadd.f32 %v3043, %v3044
        %3056 = vadd.xlane.f32.xlu0 %v3055
        %v3057 = vpop.xlane.xlu0 %3056
        %v3058 = vadd.f32 %v3045, %v3046
        %3059 = vadd.xlane.f32.xlu0 %v3058
        %v3060 = vpop.xlane.xlu0 %3059
        %v3061 = vmul.f32 %v3051, %v1555
        %v3062 = vmul.f32 %v3054, %v1555
        %v3063 = vmul.f32 %v3057, %v1555
        %v3064 = vmul.f32 %v3060, %v1555
        %v3065 = vsub.f32 %v3039, %v3061
        %v3066 = vsub.f32 %v3040, %v3061
        %v3067 = vsub.f32 %v3041, %v3062
        %v3068 = vsub.f32 %v3042, %v3062
        %v3069 = vsub.f32 %v3043, %v3063
        %v3070 = vsub.f32 %v3044, %v3063
        %v3071 = vsub.f32 %v3045, %v3064
        %v3072 = vsub.f32 %v3046, %v3064
        %v3073 = vmul.f32 %v3065, %v3065
        %v3074 = vmul.f32 %v3066, %v3066
        %v3075 = vmul.f32 %v3067, %v3067
        %v3076 = vmul.f32 %v3068, %v3068
        %v3077 = vmul.f32 %v3069, %v3069
        %v3078 = vmul.f32 %v3070, %v3070
        %v3079 = vmul.f32 %v3071, %v3071
        %v3080 = vmul.f32 %v3072, %v3072
        %v3081 = vadd.f32 %v3073, %v3074
        %3082 = vadd.xlane.f32.xlu0 %v3081
        %v3083 = vpop.xlane.xlu0 %3082
        %v3084 = vadd.f32 %v3075, %v3076
        %3085 = vadd.xlane.f32.xlu0 %v3084
        %v3086 = vpop.xlane.xlu0 %3085
        %v3087 = vadd.f32 %v3077, %v3078
        %3088 = vadd.xlane.f32.xlu0 %v3087
        %v3089 = vpop.xlane.xlu0 %3088
        %v3090 = vadd.f32 %v3079, %v3080
        %3091 = vadd.xlane.f32.xlu0 %v3090
        %v3092 = vpop.xlane.xlu0 %3091
        %v3093 = vmul.f32 %v3083, %v1555
        %v3094 = vmul.f32 %v3086, %v1555
        %v3095 = vmul.f32 %v3089, %v1555
        %v3096 = vmul.f32 %v3092, %v1555
        %v3097 = vadd.f32 %v3093, 1e-05
        %v3098 = vadd.f32 %v3094, 1e-05
        %v3099 = vadd.f32 %v3095, 1e-05
        %v3100 = vadd.f32 %v3096, 1e-05
        %v3101 = vrsqrt.pop %v3097
        %v3102 = vmul.f32 %v3101, %v3097
        %v3103 = vmul.f32 %v3102, %v3101
        %v3104 = vmul.f32 0.5, %v3103
        %v3105 = vsub.f32 1.5, %v3104
        %v3106 = vmul.f32 %v3101, %v3105
        %vm3107 = vweird.f32 %v3097
        %vm3108 = vweird.f32 %v3101
        %vm3109 = vmor %vm3107, %vm3108
        %v3110 = vsel %vm3109, %v3101, %v3106
        %v3111 = vrsqrt.pop %v3098
        %v3112 = vmul.f32 %v3111, %v3098
        %v3113 = vmul.f32 %v3112, %v3111
        %v3114 = vmul.f32 0.5, %v3113
        %v3115 = vsub.f32 1.5, %v3114
        %v3116 = vmul.f32 %v3111, %v3115
        %vm3117 = vweird.f32 %v3098
        %vm3118 = vweird.f32 %v3111
        %vm3119 = vmor %vm3117, %vm3118
        %v3120 = vsel %vm3119, %v3111, %v3116
        %v3121 = vrsqrt.pop %v3099
        %v3122 = vmul.f32 %v3121, %v3099
        %v3123 = vmul.f32 %v3122, %v3121
        %v3124 = vmul.f32 0.5, %v3123
        %v3125 = vsub.f32 1.5, %v3124
        %v3126 = vmul.f32 %v3121, %v3125
        %vm3127 = vweird.f32 %v3099
        %vm3128 = vweird.f32 %v3121
        %vm3129 = vmor %vm3127, %vm3128
        %v3130 = vsel %vm3129, %v3121, %v3126
        %v3131 = vrsqrt.pop %v3100
        %v3132 = vmul.f32 %v3131, %v3100
        %v3133 = vmul.f32 %v3132, %v3131
        %v3134 = vmul.f32 0.5, %v3133
        %v3135 = vsub.f32 1.5, %v3134
        %v3136 = vmul.f32 %v3131, %v3135
        %vm3137 = vweird.f32 %v3100
        %vm3138 = vweird.f32 %v3131
        %vm3139 = vmor %vm3137, %vm3138
        %v3140 = vsel %vm3139, %v3131, %v3136
        %v3141 = vmul.f32 %v3065, %v3110
        %v3142 = vmul.f32 %v3066, %v3110
        %v3143 = vmul.f32 %v3067, %v3120
        %v3144 = vmul.f32 %v3068, %v3120
        %v3145 = vmul.f32 %v3069, %v3130
        %v3146 = vmul.f32 %v3070, %v3130
        %v3147 = vmul.f32 %v3071, %v3140
        %v3148 = vmul.f32 %v3072, %v3140
        %v3150 = vperm.slane %v3047, 0
        %v3151 = vperm.slane %v3047, 1
        %v3154 = vmul.f32 %v3141, %v3150
        %v3155 = vmul.f32 %v3142, %v3151
        %v3156 = vmul.f32 %v3143, %v3150
        %v3157 = vmul.f32 %v3144, %v3151
        %v3158 = vmul.f32 %v3145, %v3150
        %v3159 = vmul.f32 %v3146, %v3151
        %v3160 = vmul.f32 %v3147, %v3150
        %v3161 = vmul.f32 %v3148, %v3151
        %v3163 = vperm.slane %v3048, 0
        %v3164 = vperm.slane %v3048, 1
        %v3167 = vadd.f32 %v3154, %v3163
        %v3168 = vadd.f32 %v3155, %v3164
        %v3169 = vadd.f32 %v3156, %v3163
        %v3170 = vadd.f32 %v3157, %v3164
        %v3171 = vadd.f32 %v3158, %v3163
        %v3172 = vadd.f32 %v3159, %v3164
        %v3173 = vadd.f32 %v3160, %v3163
        %v3174 = vadd.f32 %v3161, %v3164
        %v3175 = vpack.c.bf16 %v3169, %v3167
        %v3176 = vpack.c.bf16 %v3170, %v3168
        %v3177 = vpack.c.bf16 %v3173, %v3171
        %v3178 = vpack.c.bf16 %v3174, %v3172
        %v3179 = vld [vmem:[%s790] sm:$0xff]
        %v3180 = vld [vmem:[%s790 + $0x8] sm:$0xff]
        %v3181 = vld [vmem:[%s790 + $0x10] sm:$0xff]
        %v3182 = vld [vmem:[%s790 + $0x18] sm:$0xff]
        %v3183 = vld [vmem:[%s790 + $0x20] sm:$0xff]
        %v3184 = vld [vmem:[%s790 + $0x28] sm:$0xff]
        %v3185 = vld [vmem:[%s790 + $0x30] sm:$0xff]
        %v3186 = vld [vmem:[%s790 + $0x38] sm:$0xff]
        %v3187 = vld [vmem:[%s790 + $0x40] sm:$0xff]
        %v3188 = vld [vmem:[%s790 + $0x48] sm:$0xff]
        %v3189 = vld [vmem:[%s790 + $0x50] sm:$0xff]
        %v3190 = vld [vmem:[%s790 + $0x58] sm:$0xff]
        %v3191 = vld [vmem:[%s790 + $0x60] sm:$0xff]
        %v3192 = vld [vmem:[%s790 + $0x68] sm:$0xff]
        %v3193 = vld [vmem:[%s790 + $0x70] sm:$0xff]
        %v3194 = vld [vmem:[%s790 + $0x78] sm:$0xff]
        %v3195 = vld [vmem:[%s790 + $0x80] sm:$0xff]
        %v3196 = vld [vmem:[%s790 + $0x88] sm:$0xff]
        %v3197 = vld [vmem:[%s790 + $0x90] sm:$0xff]
        %v3198 = vld [vmem:[%s790 + $0x98] sm:$0xff]
        %v3199 = vld [vmem:[%s790 + $0xa0] sm:$0xff]
        %v3200 = vld [vmem:[%s790 + $0xa8] sm:$0xff]
        %v3201 = vld [vmem:[%s790 + $0xb0] sm:$0xff]
        %v3202 = vld [vmem:[%s790 + $0xb8] sm:$0xff]
        %v3203 = vld [vmem:[%s790 + $0xc0] sm:$0xff]
        %v3204 = vld [vmem:[%s790 + $0xc8] sm:$0xff]
        %v3205 = vld [vmem:[%s790 + $0xd0] sm:$0xff]
        %v3206 = vld [vmem:[%s790 + $0xd8] sm:$0xff]
        %v3207 = vld [vmem:[%s790 + $0xe0] sm:$0xff]
        %v3208 = vld [vmem:[%s790 + $0xe8] sm:$0xff]
        %v3209 = vld [vmem:[%s790 + $0xf0] sm:$0xff]
        %v3210 = vld [vmem:[%s790 + $0xf8] sm:$0xff]
        %v3211 = vld [vmem:[%s790 + $0x100] sm:$0xff]
        %v3212 = vld [vmem:[%s790 + $0x108] sm:$0xff]
        %v3213 = vld [vmem:[%s790 + $0x110] sm:$0xff]
        %v3214 = vld [vmem:[%s790 + $0x118] sm:$0xff]
        %v3215 = vld [vmem:[%s790 + $0x120] sm:$0xff]
        %v3216 = vld [vmem:[%s790 + $0x128] sm:$0xff]
        %v3217 = vld [vmem:[%s790 + $0x130] sm:$0xff]
        %v3218 = vld [vmem:[%s790 + $0x138] sm:$0xff]
        %v3219 = vld [vmem:[%s790 + $0x140] sm:$0xff]
        %v3220 = vld [vmem:[%s790 + $0x148] sm:$0xff]
        %v3221 = vld [vmem:[%s790 + $0x150] sm:$0xff]
        %v3222 = vld [vmem:[%s790 + $0x158] sm:$0xff]
        %v3223 = vld [vmem:[%s790 + $0x160] sm:$0xff]
        %v3224 = vld [vmem:[%s790 + $0x168] sm:$0xff]
        %v3225 = vld [vmem:[%s790 + $0x170] sm:$0xff]
        %v3226 = vld [vmem:[%s790 + $0x178] sm:$0xff]
        %v3227 = vld [vmem:[%s790 + $0x180] sm:$0xff]
        %v3228 = vld [vmem:[%s790 + $0x188] sm:$0xff]
        %v3229 = vld [vmem:[%s790 + $0x190] sm:$0xff]
        %v3230 = vld [vmem:[%s790 + $0x198] sm:$0xff]
        %v3231 = vld [vmem:[%s790 + $0x1a0] sm:$0xff]
        %v3232 = vld [vmem:[%s790 + $0x1a8] sm:$0xff]
        %v3233 = vld [vmem:[%s790 + $0x1b0] sm:$0xff]
        %v3234 = vld [vmem:[%s790 + $0x1b8] sm:$0xff]
        %v3235 = vld [vmem:[%s790 + $0x1c0] sm:$0xff]
        %v3236 = vld [vmem:[%s790 + $0x1c8] sm:$0xff]
        %v3237 = vld [vmem:[%s790 + $0x1d0] sm:$0xff]
        %v3238 = vld [vmem:[%s790 + $0x1d8] sm:$0xff]
        %v3239 = vld [vmem:[%s790 + $0x1e0] sm:$0xff]
        %v3240 = vld [vmem:[%s790 + $0x1e8] sm:$0xff]
        %v3241 = vld [vmem:[%s790 + $0x1f0] sm:$0xff]
        %v3242 = vld [vmem:[%s790 + $0x1f8] sm:$0xff]
        %v3243 = vld [vmem:[%s790 + $0x200] sm:$0xff]
        %v3244 = vld [vmem:[%s790 + $0x208] sm:$0xff]
        %v3245 = vld [vmem:[%s790 + $0x210] sm:$0xff]
        %v3246 = vld [vmem:[%s790 + $0x218] sm:$0xff]
        %v3247 = vld [vmem:[%s790 + $0x220] sm:$0xff]
        %v3248 = vld [vmem:[%s790 + $0x228] sm:$0xff]
        %v3249 = vld [vmem:[%s790 + $0x230] sm:$0xff]
        %v3250 = vld [vmem:[%s790 + $0x238] sm:$0xff]
        %v3251 = vld [vmem:[%s790 + $0x240] sm:$0xff]
        %v3252 = vld [vmem:[%s790 + $0x248] sm:$0xff]
        %v3253 = vld [vmem:[%s790 + $0x250] sm:$0xff]
        %v3254 = vld [vmem:[%s790 + $0x258] sm:$0xff]
        %v3255 = vld [vmem:[%s790 + $0x260] sm:$0xff]
        %v3256 = vld [vmem:[%s790 + $0x268] sm:$0xff]
        %v3257 = vld [vmem:[%s790 + $0x270] sm:$0xff]
        %v3258 = vld [vmem:[%s790 + $0x278] sm:$0xff]
        %v3259 = vld [vmem:[%s790 + $0x280] sm:$0xff]
        %v3260 = vld [vmem:[%s790 + $0x288] sm:$0xff]
        %v3261 = vld [vmem:[%s790 + $0x290] sm:$0xff]
        %v3262 = vld [vmem:[%s790 + $0x298] sm:$0xff]
        %v3263 = vld [vmem:[%s790 + $0x2a0] sm:$0xff]
        %v3264 = vld [vmem:[%s790 + $0x2a8] sm:$0xff]
        %v3265 = vld [vmem:[%s790 + $0x2b0] sm:$0xff]
        %v3266 = vld [vmem:[%s790 + $0x2b8] sm:$0xff]
        %v3267 = vld [vmem:[%s790 + $0x2c0] sm:$0xff]
        %v3268 = vld [vmem:[%s790 + $0x2c8] sm:$0xff]
        %v3269 = vld [vmem:[%s790 + $0x2d0] sm:$0xff]
        %v3270 = vld [vmem:[%s790 + $0x2d8] sm:$0xff]
        %v3271 = vld [vmem:[%s790 + $0x2e0] sm:$0xff]
        %v3272 = vld [vmem:[%s790 + $0x2e8] sm:$0xff]
        %v3273 = vld [vmem:[%s790 + $0x2f0] sm:$0xff]
        %v3274 = vld [vmem:[%s790 + $0x2f8] sm:$0xff]
        %v3275 = vld [vmem:[%s790 + $0x300] sm:$0xff]
        %v3276 = vld [vmem:[%s790 + $0x308] sm:$0xff]
        %v3277 = vld [vmem:[%s790 + $0x310] sm:$0xff]
        %v3278 = vld [vmem:[%s790 + $0x318] sm:$0xff]
        %v3279 = vld [vmem:[%s790 + $0x320] sm:$0xff]
        %v3280 = vld [vmem:[%s790 + $0x328] sm:$0xff]
        %v3281 = vld [vmem:[%s790 + $0x330] sm:$0xff]
        %v3282 = vld [vmem:[%s790 + $0x338] sm:$0xff]
        %v3283 = vld [vmem:[%s790 + $0x340] sm:$0xff]
        %v3284 = vld [vmem:[%s790 + $0x348] sm:$0xff]
        %v3285 = vld [vmem:[%s790 + $0x350] sm:$0xff]
        %v3286 = vld [vmem:[%s790 + $0x358] sm:$0xff]
        %v3287 = vld [vmem:[%s790 + $0x360] sm:$0xff]
        %v3288 = vld [vmem:[%s790 + $0x368] sm:$0xff]
        %v3289 = vld [vmem:[%s790 + $0x370] sm:$0xff]
        %v3290 = vld [vmem:[%s790 + $0x378] sm:$0xff]
        %v3291 = vld [vmem:[%s790 + $0x380] sm:$0xff]
        %v3292 = vld [vmem:[%s790 + $0x388] sm:$0xff]
        %v3293 = vld [vmem:[%s790 + $0x390] sm:$0xff]
        %v3294 = vld [vmem:[%s790 + $0x398] sm:$0xff]
        %v3295 = vld [vmem:[%s790 + $0x3a0] sm:$0xff]
        %v3296 = vld [vmem:[%s790 + $0x3a8] sm:$0xff]
        %v3297 = vld [vmem:[%s790 + $0x3b0] sm:$0xff]
        %v3298 = vld [vmem:[%s790 + $0x3b8] sm:$0xff]
        %v3299 = vld [vmem:[%s790 + $0x3c0] sm:$0xff]
        %v3300 = vld [vmem:[%s790 + $0x3c8] sm:$0xff]
        %v3301 = vld [vmem:[%s790 + $0x3d0] sm:$0xff]
        %v3302 = vld [vmem:[%s790 + $0x3d8] sm:$0xff]
        %v3303 = vld [vmem:[%s790 + $0x3e0] sm:$0xff]
        %v3304 = vld [vmem:[%s790 + $0x3e8] sm:$0xff]
        %v3305 = vld [vmem:[%s790 + $0x3f0] sm:$0xff]
        %v3306 = vld [vmem:[%s790 + $0x3f8] sm:$0xff]
        %v3307 = vld [vmem:[%s800] sm:$0xff]
        %v3309 = vperm.slane %v3307, 0
        %v3310 = vperm.slane %v3307, 1
        %v3311 = vperm.slane %v3307, 2
        %v3312 = vperm.slane %v3307, 3
        %v3313 = vperm.slane %v3307, 4
        %v3314 = vperm.slane %v3307, 5
        %v3315 = vperm.slane %v3307, 6
        %v3316 = vperm.slane %v3307, 7
        %v3453 = vunpack.c.l.b16 %v3179
        %v3454 = vunpack.c.h.b16 %v3179
        %v3455 = vunpack.c.l.b16 %v3180
        %v3456 = vunpack.c.h.b16 %v3180
        %v3457 = vunpack.c.l.b16 %v3181
        %v3458 = vunpack.c.h.b16 %v3181
        %v3459 = vunpack.c.l.b16 %v3182
        %v3460 = vunpack.c.h.b16 %v3182
        %v3461 = vunpack.c.l.b16 %v3183
        %v3462 = vunpack.c.h.b16 %v3183
        %v3463 = vunpack.c.l.b16 %v3184
        %v3464 = vunpack.c.h.b16 %v3184
        %v3465 = vunpack.c.l.b16 %v3185
        %v3466 = vunpack.c.h.b16 %v3185
        %v3467 = vunpack.c.l.b16 %v3186
        %v3468 = vunpack.c.h.b16 %v3186
        %v3469 = vunpack.c.l.b16 %v3187
        %v3470 = vunpack.c.h.b16 %v3187
        %v3471 = vunpack.c.l.b16 %v3188
        %v3472 = vunpack.c.h.b16 %v3188
        %v3473 = vunpack.c.l.b16 %v3189
        %v3474 = vunpack.c.h.b16 %v3189
        %v3475 = vunpack.c.l.b16 %v3190
        %v3476 = vunpack.c.h.b16 %v3190
        %v3477 = vunpack.c.l.b16 %v3191
        %v3478 = vunpack.c.h.b16 %v3191
        %v3479 = vunpack.c.l.b16 %v3192
        %v3480 = vunpack.c.h.b16 %v3192
        %v3481 = vunpack.c.l.b16 %v3193
        %v3482 = vunpack.c.h.b16 %v3193
        %v3483 = vunpack.c.l.b16 %v3194
        %v3484 = vunpack.c.h.b16 %v3194
        %v3485 = vunpack.c.l.b16 %v3195
        %v3486 = vunpack.c.h.b16 %v3195
        %v3487 = vunpack.c.l.b16 %v3196
        %v3488 = vunpack.c.h.b16 %v3196
        %v3489 = vunpack.c.l.b16 %v3197
        %v3490 = vunpack.c.h.b16 %v3197
        %v3491 = vunpack.c.l.b16 %v3198
        %v3492 = vunpack.c.h.b16 %v3198
        %v3493 = vunpack.c.l.b16 %v3199
        %v3494 = vunpack.c.h.b16 %v3199
        %v3495 = vunpack.c.l.b16 %v3200
        %v3496 = vunpack.c.h.b16 %v3200
        %v3497 = vunpack.c.l.b16 %v3201
        %v3498 = vunpack.c.h.b16 %v3201
        %v3499 = vunpack.c.l.b16 %v3202
        %v3500 = vunpack.c.h.b16 %v3202
        %v3501 = vunpack.c.l.b16 %v3203
        %v3502 = vunpack.c.h.b16 %v3203
        %v3503 = vunpack.c.l.b16 %v3204
        %v3504 = vunpack.c.h.b16 %v3204
        %v3505 = vunpack.c.l.b16 %v3205
        %v3506 = vunpack.c.h.b16 %v3205
        %v3507 = vunpack.c.l.b16 %v3206
        %v3508 = vunpack.c.h.b16 %v3206
        %v3509 = vunpack.c.l.b16 %v3207
        %v3510 = vunpack.c.h.b16 %v3207
        %v3511 = vunpack.c.l.b16 %v3208
        %v3512 = vunpack.c.h.b16 %v3208
        %v3513 = vunpack.c.l.b16 %v3209
        %v3514 = vunpack.c.h.b16 %v3209
        %v3515 = vunpack.c.l.b16 %v3210
        %v3516 = vunpack.c.h.b16 %v3210
        %v3517 = vunpack.c.l.b16 %v3211
        %v3518 = vunpack.c.h.b16 %v3211
        %v3519 = vunpack.c.l.b16 %v3212
        %v3520 = vunpack.c.h.b16 %v3212
        %v3521 = vunpack.c.l.b16 %v3213
        %v3522 = vunpack.c.h.b16 %v3213
        %v3523 = vunpack.c.l.b16 %v3214
        %v3524 = vunpack.c.h.b16 %v3214
        %v3525 = vunpack.c.l.b16 %v3215
        %v3526 = vunpack.c.h.b16 %v3215
        %v3527 = vunpack.c.l.b16 %v3216
        %v3528 = vunpack.c.h.b16 %v3216
        %v3529 = vunpack.c.l.b16 %v3217
        %v3530 = vunpack.c.h.b16 %v3217
        %v3531 = vunpack.c.l.b16 %v3218
        %v3532 = vunpack.c.h.b16 %v3218
        %v3533 = vunpack.c.l.b16 %v3219
        %v3534 = vunpack.c.h.b16 %v3219
        %v3535 = vunpack.c.l.b16 %v3220
        %v3536 = vunpack.c.h.b16 %v3220
        %v3537 = vunpack.c.l.b16 %v3221
        %v3538 = vunpack.c.h.b16 %v3221
        %v3539 = vunpack.c.l.b16 %v3222
        %v3540 = vunpack.c.h.b16 %v3222
        %v3541 = vunpack.c.l.b16 %v3223
        %v3542 = vunpack.c.h.b16 %v3223
        %v3543 = vunpack.c.l.b16 %v3224
        %v3544 = vunpack.c.h.b16 %v3224
        %v3545 = vunpack.c.l.b16 %v3225
        %v3546 = vunpack.c.h.b16 %v3225
        %v3547 = vunpack.c.l.b16 %v3226
        %v3548 = vunpack.c.h.b16 %v3226
        %v3549 = vunpack.c.l.b16 %v3227
        %v3550 = vunpack.c.h.b16 %v3227
        %v3551 = vunpack.c.l.b16 %v3228
        %v3552 = vunpack.c.h.b16 %v3228
        %v3553 = vunpack.c.l.b16 %v3229
        %v3554 = vunpack.c.h.b16 %v3229
        %v3555 = vunpack.c.l.b16 %v3230
        %v3556 = vunpack.c.h.b16 %v3230
        %v3557 = vunpack.c.l.b16 %v3231
        %v3558 = vunpack.c.h.b16 %v3231
        %v3559 = vunpack.c.l.b16 %v3232
        %v3560 = vunpack.c.h.b16 %v3232
        %v3561 = vunpack.c.l.b16 %v3233
        %v3562 = vunpack.c.h.b16 %v3233
        %v3563 = vunpack.c.l.b16 %v3234
        %v3564 = vunpack.c.h.b16 %v3234
        %v3565 = vunpack.c.l.b16 %v3235
        %v3566 = vunpack.c.h.b16 %v3235
        %v3567 = vunpack.c.l.b16 %v3236
        %v3568 = vunpack.c.h.b16 %v3236
        %v3569 = vunpack.c.l.b16 %v3237
        %v3570 = vunpack.c.h.b16 %v3237
        %v3571 = vunpack.c.l.b16 %v3238
        %v3572 = vunpack.c.h.b16 %v3238
        %v3573 = vunpack.c.l.b16 %v3239
        %v3574 = vunpack.c.h.b16 %v3239
        %v3575 = vunpack.c.l.b16 %v3240
        %v3576 = vunpack.c.h.b16 %v3240
        %v3577 = vunpack.c.l.b16 %v3241
        %v3578 = vunpack.c.h.b16 %v3241
        %v3579 = vunpack.c.l.b16 %v3242
        %v3580 = vunpack.c.h.b16 %v3242
        %v3581 = vunpack.c.l.b16 %v3243
        %v3582 = vunpack.c.h.b16 %v3243
        %v3583 = vunpack.c.l.b16 %v3244
        %v3584 = vunpack.c.h.b16 %v3244
        %v3585 = vunpack.c.l.b16 %v3245
        %v3586 = vunpack.c.h.b16 %v3245
        %v3587 = vunpack.c.l.b16 %v3246
        %v3588 = vunpack.c.h.b16 %v3246
        %v3589 = vunpack.c.l.b16 %v3247
        %v3590 = vunpack.c.h.b16 %v3247
        %v3591 = vunpack.c.l.b16 %v3248
        %v3592 = vunpack.c.h.b16 %v3248
        %v3593 = vunpack.c.l.b16 %v3249
        %v3594 = vunpack.c.h.b16 %v3249
        %v3595 = vunpack.c.l.b16 %v3250
        %v3596 = vunpack.c.h.b16 %v3250
        %v3597 = vunpack.c.l.b16 %v3251
        %v3598 = vunpack.c.h.b16 %v3251
        %v3599 = vunpack.c.l.b16 %v3252
        %v3600 = vunpack.c.h.b16 %v3252
        %v3601 = vunpack.c.l.b16 %v3253
        %v3602 = vunpack.c.h.b16 %v3253
        %v3603 = vunpack.c.l.b16 %v3254
        %v3604 = vunpack.c.h.b16 %v3254
        %v3605 = vunpack.c.l.b16 %v3255
        %v3606 = vunpack.c.h.b16 %v3255
        %v3607 = vunpack.c.l.b16 %v3256
        %v3608 = vunpack.c.h.b16 %v3256
        %v3609 = vunpack.c.l.b16 %v3257
        %v3610 = vunpack.c.h.b16 %v3257
        %v3611 = vunpack.c.l.b16 %v3258
        %v3612 = vunpack.c.h.b16 %v3258
        %v3613 = vunpack.c.l.b16 %v3259
        %v3614 = vunpack.c.h.b16 %v3259
        %v3615 = vunpack.c.l.b16 %v3260
        %v3616 = vunpack.c.h.b16 %v3260
        %v3617 = vunpack.c.l.b16 %v3261
        %v3618 = vunpack.c.h.b16 %v3261
        %v3619 = vunpack.c.l.b16 %v3262
        %v3620 = vunpack.c.h.b16 %v3262
        %v3621 = vunpack.c.l.b16 %v3263
        %v3622 = vunpack.c.h.b16 %v3263
        %v3623 = vunpack.c.l.b16 %v3264
        %v3624 = vunpack.c.h.b16 %v3264
        %v3625 = vunpack.c.l.b16 %v3265
        %v3626 = vunpack.c.h.b16 %v3265
        %v3627 = vunpack.c.l.b16 %v3266
        %v3628 = vunpack.c.h.b16 %v3266
        %v3629 = vunpack.c.l.b16 %v3267
        %v3630 = vunpack.c.h.b16 %v3267
        %v3631 = vunpack.c.l.b16 %v3268
        %v3632 = vunpack.c.h.b16 %v3268
        %v3633 = vunpack.c.l.b16 %v3269
        %v3634 = vunpack.c.h.b16 %v3269
        %v3635 = vunpack.c.l.b16 %v3270
        %v3636 = vunpack.c.h.b16 %v3270
        %v3637 = vunpack.c.l.b16 %v3271
        %v3638 = vunpack.c.h.b16 %v3271
        %v3639 = vunpack.c.l.b16 %v3272
        %v3640 = vunpack.c.h.b16 %v3272
        %v3641 = vunpack.c.l.b16 %v3273
        %v3642 = vunpack.c.h.b16 %v3273
        %v3643 = vunpack.c.l.b16 %v3274
        %v3644 = vunpack.c.h.b16 %v3274
        %v3645 = vunpack.c.l.b16 %v3275
        %v3646 = vunpack.c.h.b16 %v3275
        %v3647 = vunpack.c.l.b16 %v3276
        %v3648 = vunpack.c.h.b16 %v3276
        %v3649 = vunpack.c.l.b16 %v3277
        %v3650 = vunpack.c.h.b16 %v3277
        %v3651 = vunpack.c.l.b16 %v3278
        %v3652 = vunpack.c.h.b16 %v3278
        %v3653 = vunpack.c.l.b16 %v3279
        %v3654 = vunpack.c.h.b16 %v3279
        %v3655 = vunpack.c.l.b16 %v3280
        %v3656 = vunpack.c.h.b16 %v3280
        %v3657 = vunpack.c.l.b16 %v3281
        %v3658 = vunpack.c.h.b16 %v3281
        %v3659 = vunpack.c.l.b16 %v3282
        %v3660 = vunpack.c.h.b16 %v3282
        %v3661 = vunpack.c.l.b16 %v3283
        %v3662 = vunpack.c.h.b16 %v3283
        %v3663 = vunpack.c.l.b16 %v3284
        %v3664 = vunpack.c.h.b16 %v3284
        %v3665 = vunpack.c.l.b16 %v3285
        %v3666 = vunpack.c.h.b16 %v3285
        %v3667 = vunpack.c.l.b16 %v3286
        %v3668 = vunpack.c.h.b16 %v3286
        %v3669 = vunpack.c.l.b16 %v3287
        %v3670 = vunpack.c.h.b16 %v3287
        %v3671 = vunpack.c.l.b16 %v3288
        %v3672 = vunpack.c.h.b16 %v3288
        %v3673 = vunpack.c.l.b16 %v3289
        %v3674 = vunpack.c.h.b16 %v3289
        %v3675 = vunpack.c.l.b16 %v3290
        %v3676 = vunpack.c.h.b16 %v3290
        %v3677 = vunpack.c.l.b16 %v3291
        %v3678 = vunpack.c.h.b16 %v3291
        %v3679 = vunpack.c.l.b16 %v3292
        %v3680 = vunpack.c.h.b16 %v3292
        %v3681 = vunpack.c.l.b16 %v3293
        %v3682 = vunpack.c.h.b16 %v3293
        %v3683 = vunpack.c.l.b16 %v3294
        %v3684 = vunpack.c.h.b16 %v3294
        %v3685 = vunpack.c.l.b16 %v3295
        %v3686 = vunpack.c.h.b16 %v3295
        %v3687 = vunpack.c.l.b16 %v3296
        %v3688 = vunpack.c.h.b16 %v3296
        %v3689 = vunpack.c.l.b16 %v3297
        %v3690 = vunpack.c.h.b16 %v3297
        %v3691 = vunpack.c.l.b16 %v3298
        %v3692 = vunpack.c.h.b16 %v3298
        %v3693 = vunpack.c.l.b16 %v3299
        %v3694 = vunpack.c.h.b16 %v3299
        %v3695 = vunpack.c.l.b16 %v3300
        %v3696 = vunpack.c.h.b16 %v3300
        %v3697 = vunpack.c.l.b16 %v3301
        %v3698 = vunpack.c.h.b16 %v3301
        %v3699 = vunpack.c.l.b16 %v3302
        %v3700 = vunpack.c.h.b16 %v3302
        %v3701 = vunpack.c.l.b16 %v3303
        %v3702 = vunpack.c.h.b16 %v3303
        %v3703 = vunpack.c.l.b16 %v3304
        %v3704 = vunpack.c.h.b16 %v3304
        %v3705 = vunpack.c.l.b16 %v3305
        %v3706 = vunpack.c.h.b16 %v3305
        %v3707 = vunpack.c.l.b16 %v3306
        %v3708 = vunpack.c.h.b16 %v3306
        %v3709 = vpack.c.b16 %v3461, %v3453
        %v3710 = vpack.c.b16 %v3462, %v3454
        %v3711 = vpack.c.b16 %v3463, %v3455
        %v3712 = vpack.c.b16 %v3464, %v3456
        %v3713 = vpack.c.b16 %v3465, %v3457
        %v3714 = vpack.c.b16 %v3466, %v3458
        %v3715 = vpack.c.b16 %v3467, %v3459
        %v3716 = vpack.c.b16 %v3468, %v3460
        %v3717 = vpack.c.b16 %v3477, %v3469
        %v3718 = vpack.c.b16 %v3478, %v3470
        %v3719 = vpack.c.b16 %v3479, %v3471
        %v3720 = vpack.c.b16 %v3480, %v3472
        %v3721 = vpack.c.b16 %v3481, %v3473
        %v3722 = vpack.c.b16 %v3482, %v3474
        %v3723 = vpack.c.b16 %v3483, %v3475
        %v3724 = vpack.c.b16 %v3484, %v3476
        %v3725 = vpack.c.b16 %v3493, %v3485
        %v3726 = vpack.c.b16 %v3494, %v3486
        %v3727 = vpack.c.b16 %v3495, %v3487
        %v3728 = vpack.c.b16 %v3496, %v3488
        %v3729 = vpack.c.b16 %v3497, %v3489
        %v3730 = vpack.c.b16 %v3498, %v3490
        %v3731 = vpack.c.b16 %v3499, %v3491
        %v3732 = vpack.c.b16 %v3500, %v3492
        %v3733 = vpack.c.b16 %v3509, %v3501
        %v3734 = vpack.c.b16 %v3510, %v3502
        %v3735 = vpack.c.b16 %v3511, %v3503
        %v3736 = vpack.c.b16 %v3512, %v3504
        %v3737 = vpack.c.b16 %v3513, %v3505
        %v3738 = vpack.c.b16 %v3514, %v3506
        %v3739 = vpack.c.b16 %v3515, %v3507
        %v3740 = vpack.c.b16 %v3516, %v3508
        %v3741 = vpack.c.b16 %v3525, %v3517
        %v3742 = vpack.c.b16 %v3526, %v3518
        %v3743 = vpack.c.b16 %v3527, %v3519
        %v3744 = vpack.c.b16 %v3528, %v3520
        %v3745 = vpack.c.b16 %v3529, %v3521
        %v3746 = vpack.c.b16 %v3530, %v3522
        %v3747 = vpack.c.b16 %v3531, %v3523
        %v3748 = vpack.c.b16 %v3532, %v3524
        %v3749 = vpack.c.b16 %v3541, %v3533
        %v3750 = vpack.c.b16 %v3542, %v3534
        %v3751 = vpack.c.b16 %v3543, %v3535
        %v3752 = vpack.c.b16 %v3544, %v3536
        %v3753 = vpack.c.b16 %v3545, %v3537
        %v3754 = vpack.c.b16 %v3546, %v3538
        %v3755 = vpack.c.b16 %v3547, %v3539
        %v3756 = vpack.c.b16 %v3548, %v3540
        %v3757 = vpack.c.b16 %v3557, %v3549
        %v3758 = vpack.c.b16 %v3558, %v3550
        %v3759 = vpack.c.b16 %v3559, %v3551
        %v3760 = vpack.c.b16 %v3560, %v3552
        %v3761 = vpack.c.b16 %v3561, %v3553
        %v3762 = vpack.c.b16 %v3562, %v3554
        %v3763 = vpack.c.b16 %v3563, %v3555
        %v3764 = vpack.c.b16 %v3564, %v3556
        %v3765 = vpack.c.b16 %v3573, %v3565
        %v3766 = vpack.c.b16 %v3574, %v3566
        %v3767 = vpack.c.b16 %v3575, %v3567
        %v3768 = vpack.c.b16 %v3576, %v3568
        %v3769 = vpack.c.b16 %v3577, %v3569
        %v3770 = vpack.c.b16 %v3578, %v3570
        %v3771 = vpack.c.b16 %v3579, %v3571
        %v3772 = vpack.c.b16 %v3580, %v3572
        %v3773 = vpack.c.b16 %v3589, %v3581
        %v3774 = vpack.c.b16 %v3590, %v3582
        %v3775 = vpack.c.b16 %v3591, %v3583
        %v3776 = vpack.c.b16 %v3592, %v3584
        %v3777 = vpack.c.b16 %v3593, %v3585
        %v3778 = vpack.c.b16 %v3594, %v3586
        %v3779 = vpack.c.b16 %v3595, %v3587
        %v3780 = vpack.c.b16 %v3596, %v3588
        %v3781 = vpack.c.b16 %v3605, %v3597
        %v3782 = vpack.c.b16 %v3606, %v3598
        %v3783 = vpack.c.b16 %v3607, %v3599
        %v3784 = vpack.c.b16 %v3608, %v3600
        %v3785 = vpack.c.b16 %v3609, %v3601
        %v3786 = vpack.c.b16 %v3610, %v3602
        %v3787 = vpack.c.b16 %v3611, %v3603
        %v3788 = vpack.c.b16 %v3612, %v3604
        %v3789 = vpack.c.b16 %v3621, %v3613
        %v3790 = vpack.c.b16 %v3622, %v3614
        %v3791 = vpack.c.b16 %v3623, %v3615
        %v3792 = vpack.c.b16 %v3624, %v3616
        %v3793 = vpack.c.b16 %v3625, %v3617
        %v3794 = vpack.c.b16 %v3626, %v3618
        %v3795 = vpack.c.b16 %v3627, %v3619
        %v3796 = vpack.c.b16 %v3628, %v3620
        %v3797 = vpack.c.b16 %v3637, %v3629
        %v3798 = vpack.c.b16 %v3638, %v3630
        %v3799 = vpack.c.b16 %v3639, %v3631
        %v3800 = vpack.c.b16 %v3640, %v3632
        %v3801 = vpack.c.b16 %v3641, %v3633
        %v3802 = vpack.c.b16 %v3642, %v3634
        %v3803 = vpack.c.b16 %v3643, %v3635
        %v3804 = vpack.c.b16 %v3644, %v3636
        %v3805 = vpack.c.b16 %v3653, %v3645
        %v3806 = vpack.c.b16 %v3654, %v3646
        %v3807 = vpack.c.b16 %v3655, %v3647
        %v3808 = vpack.c.b16 %v3656, %v3648
        %v3809 = vpack.c.b16 %v3657, %v3649
        %v3810 = vpack.c.b16 %v3658, %v3650
        %v3811 = vpack.c.b16 %v3659, %v3651
        %v3812 = vpack.c.b16 %v3660, %v3652
        %v3813 = vpack.c.b16 %v3669, %v3661
        %v3814 = vpack.c.b16 %v3670, %v3662
        %v3815 = vpack.c.b16 %v3671, %v3663
        %v3816 = vpack.c.b16 %v3672, %v3664
        %v3817 = vpack.c.b16 %v3673, %v3665
        %v3818 = vpack.c.b16 %v3674, %v3666
        %v3819 = vpack.c.b16 %v3675, %v3667
        %v3820 = vpack.c.b16 %v3676, %v3668
        %v3821 = vpack.c.b16 %v3685, %v3677
        %v3822 = vpack.c.b16 %v3686, %v3678
        %v3823 = vpack.c.b16 %v3687, %v3679
        %v3824 = vpack.c.b16 %v3688, %v3680
        %v3825 = vpack.c.b16 %v3689, %v3681
        %v3826 = vpack.c.b16 %v3690, %v3682
        %v3827 = vpack.c.b16 %v3691, %v3683
        %v3828 = vpack.c.b16 %v3692, %v3684
        %v3829 = vpack.c.b16 %v3701, %v3693
        %v3830 = vpack.c.b16 %v3702, %v3694
        %v3831 = vpack.c.b16 %v3703, %v3695
        %v3832 = vpack.c.b16 %v3704, %v3696
        %v3833 = vpack.c.b16 %v3705, %v3697
        %v3834 = vpack.c.b16 %v3706, %v3698
        %v3835 = vpack.c.b16 %v3707, %v3699
        %v3836 = vpack.c.b16 %v3708, %v3700
        %3965 = vmatpush.bf16.msra.mxu0 %v3765
        %3966 = vmatpush.bf16.msra.mxu0 %v3757
        %3967 = vmatpush.bf16.msra.mxu0 %v3749
        %3968 = vmatpush.bf16.msra.mxu0 %v3741
        %3969 = vmatpush.bf16.msra.mxu0 %v3733
        %3970 = vmatpush.bf16.msra.mxu0 %v3725
        %3971 = vmatpush.bf16.msra.mxu0 %v3717
        %3972 = vmatpush.bf16.msra.mxu0 %v3709
        %3973 = vmatmul.bf16.gmra.mxu0 %v3175
        %v3974 = vpop.f32.mrf.mxu0
        %v3975 = vadd.f32 %v3309, %v3974
        %v3976 = vpop.f32.mrf.mxu0
        %v3977 = vadd.f32 %v3309, %v3976
        %3978 = vmatmul.bf16.gmra.mxu0 %v3177
        %v3979 = vpop.f32.mrf.mxu0
        %v3980 = vadd.f32 %v3309, %v3979
        %v3981 = vpop.f32.mrf.mxu0
        %v3982 = vadd.f32 %v3309, %v3981
        %3983 = vdwg.mxu0
        %3984 = vmatpush.bf16.msra.mxu0 %v3829
        %3985 = vmatpush.bf16.msra.mxu0 %v3821
        %3986 = vmatpush.bf16.msra.mxu0 %v3813
        %3987 = vmatpush.bf16.msra.mxu0 %v3805
        %3988 = vmatpush.bf16.msra.mxu0 %v3797
        %3989 = vmatpush.bf16.msra.mxu0 %v3789
        %3990 = vmatpush.bf16.msra.mxu0 %v3781
        %3991 = vmatpush.bf16.msra.mxu0 %v3773
        %3992 = vmatmul.bf16.gmra.mxu0 %v3176
        %v3993 = vpop.f32.mrf.mxu0
        %v3994 = vadd.f32 %v3975, %v3993
        %v3995 = vpop.f32.mrf.mxu0
        %v3996 = vadd.f32 %v3977, %v3995
        %3997 = vmatmul.bf16.gmra.mxu0 %v3178
        %v3998 = vpop.f32.mrf.mxu0
        %v3999 = vadd.f32 %v3980, %v3998
        %v4000 = vpop.f32.mrf.mxu0
        %v4001 = vadd.f32 %v3982, %v4000
        %4002 = vdwg.mxu0
        %4003 = vmatpush.bf16.msra.mxu0 %v3766
        %4004 = vmatpush.bf16.msra.mxu0 %v3758
        %4005 = vmatpush.bf16.msra.mxu0 %v3750
        %4006 = vmatpush.bf16.msra.mxu0 %v3742
        %4007 = vmatpush.bf16.msra.mxu0 %v3734
        %4008 = vmatpush.bf16.msra.mxu0 %v3726
        %4009 = vmatpush.bf16.msra.mxu0 %v3718
        %4010 = vmatpush.bf16.msra.mxu0 %v3710
        %4011 = vmatmul.bf16.gmra.mxu0 %v3175
        %v4012 = vpop.f32.mrf.mxu0
        %v4013 = vadd.f32 %v3310, %v4012
        %v4014 = vpop.f32.mrf.mxu0
        %v4015 = vadd.f32 %v3310, %v4014
        %4016 = vmatmul.bf16.gmra.mxu0 %v3177
        %v4017 = vpop.f32.mrf.mxu0
        %v4018 = vadd.f32 %v3310, %v4017
        %v4019 = vpop.f32.mrf.mxu0
        %v4020 = vadd.f32 %v3310, %v4019
        %4021 = vdwg.mxu0
        %4022 = vmatpush.bf16.msra.mxu0 %v3830
        %4023 = vmatpush.bf16.msra.mxu0 %v3822
        %4024 = vmatpush.bf16.msra.mxu0 %v3814
        %4025 = vmatpush.bf16.msra.mxu0 %v3806
        %4026 = vmatpush.bf16.msra.mxu0 %v3798
        %4027 = vmatpush.bf16.msra.mxu0 %v3790
        %4028 = vmatpush.bf16.msra.mxu0 %v3782
        %4029 = vmatpush.bf16.msra.mxu0 %v3774
        %4030 = vmatmul.bf16.gmra.mxu0 %v3176
        %v4031 = vpop.f32.mrf.mxu0
        %v4032 = vadd.f32 %v4013, %v4031
        %v4033 = vpop.f32.mrf.mxu0
        %v4034 = vadd.f32 %v4015, %v4033
        %4035 = vmatmul.bf16.gmra.mxu0 %v3178
        %v4036 = vpop.f32.mrf.mxu0
        %v4037 = vadd.f32 %v4018, %v4036
        %v4038 = vpop.f32.mrf.mxu0
        %v4039 = vadd.f32 %v4020, %v4038
        %4040 = vdwg.mxu0
        %4041 = vmatpush.bf16.msra.mxu0 %v3767
        %4042 = vmatpush.bf16.msra.mxu0 %v3759
        %4043 = vmatpush.bf16.msra.mxu0 %v3751
        %4044 = vmatpush.bf16.msra.mxu0 %v3743
        %4045 = vmatpush.bf16.msra.mxu0 %v3735
        %4046 = vmatpush.bf16.msra.mxu0 %v3727
        %4047 = vmatpush.bf16.msra.mxu0 %v3719
        %4048 = vmatpush.bf16.msra.mxu0 %v3711
        %4049 = vmatmul.bf16.gmra.mxu0 %v3175
        %v4050 = vpop.f32.mrf.mxu0
        %v4051 = vadd.f32 %v3311, %v4050
        %v4052 = vpop.f32.mrf.mxu0
        %v4053 = vadd.f32 %v3311, %v4052
        %4054 = vmatmul.bf16.gmra.mxu0 %v3177
        %v4055 = vpop.f32.mrf.mxu0
        %v4056 = vadd.f32 %v3311, %v4055
        %v4057 = vpop.f32.mrf.mxu0
        %v4058 = vadd.f32 %v3311, %v4057
        %4059 = vdwg.mxu0
        %4060 = vmatpush.bf16.msra.mxu0 %v3831
        %4061 = vmatpush.bf16.msra.mxu0 %v3823
        %4062 = vmatpush.bf16.msra.mxu0 %v3815
        %4063 = vmatpush.bf16.msra.mxu0 %v3807
        %4064 = vmatpush.bf16.msra.mxu0 %v3799
        %4065 = vmatpush.bf16.msra.mxu0 %v3791
        %4066 = vmatpush.bf16.msra.mxu0 %v3783
        %4067 = vmatpush.bf16.msra.mxu0 %v3775
        %4068 = vmatmul.bf16.gmra.mxu0 %v3176
        %v4069 = vpop.f32.mrf.mxu0
        %v4070 = vadd.f32 %v4051, %v4069
        %v4071 = vpop.f32.mrf.mxu0
        %v4072 = vadd.f32 %v4053, %v4071
        %4073 = vmatmul.bf16.gmra.mxu0 %v3178
        %v4074 = vpop.f32.mrf.mxu0
        %v4075 = vadd.f32 %v4056, %v4074
        %v4076 = vpop.f32.mrf.mxu0
        %v4077 = vadd.f32 %v4058, %v4076
        %4078 = vdwg.mxu0
        %4079 = vmatpush.bf16.msra.mxu0 %v3768
        %4080 = vmatpush.bf16.msra.mxu0 %v3760
        %4081 = vmatpush.bf16.msra.mxu0 %v3752
        %4082 = vmatpush.bf16.msra.mxu0 %v3744
        %4083 = vmatpush.bf16.msra.mxu0 %v3736
        %4084 = vmatpush.bf16.msra.mxu0 %v3728
        %4085 = vmatpush.bf16.msra.mxu0 %v3720
        %4086 = vmatpush.bf16.msra.mxu0 %v3712
        %4087 = vmatmul.bf16.gmra.mxu0 %v3175
        %v4088 = vpop.f32.mrf.mxu0
        %v4089 = vadd.f32 %v3312, %v4088
        %v4090 = vpop.f32.mrf.mxu0
        %v4091 = vadd.f32 %v3312, %v4090
        %4092 = vmatmul.bf16.gmra.mxu0 %v3177
        %v4093 = vpop.f32.mrf.mxu0
        %v4094 = vadd.f32 %v3312, %v4093
        %v4095 = vpop.f32.mrf.mxu0
        %v4096 = vadd.f32 %v3312, %v4095
        %4097 = vdwg.mxu0
        %4098 = vmatpush.bf16.msra.mxu0 %v3832
        %4099 = vmatpush.bf16.msra.mxu0 %v3824
        %4100 = vmatpush.bf16.msra.mxu0 %v3816
        %4101 = vmatpush.bf16.msra.mxu0 %v3808
        %4102 = vmatpush.bf16.msra.mxu0 %v3800
        %4103 = vmatpush.bf16.msra.mxu0 %v3792
        %4104 = vmatpush.bf16.msra.mxu0 %v3784
        %4105 = vmatpush.bf16.msra.mxu0 %v3776
        %4106 = vmatmul.bf16.gmra.mxu0 %v3176
        %v4107 = vpop.f32.mrf.mxu0
        %v4108 = vadd.f32 %v4089, %v4107
        %v4109 = vpop.f32.mrf.mxu0
        %v4110 = vadd.f32 %v4091, %v4109
        %4111 = vmatmul.bf16.gmra.mxu0 %v3178
        %v4112 = vpop.f32.mrf.mxu0
        %v4113 = vadd.f32 %v4094, %v4112
        %v4114 = vpop.f32.mrf.mxu0
        %v4115 = vadd.f32 %v4096, %v4114
        %4116 = vdwg.mxu0
        %4117 = vmatpush.bf16.msra.mxu0 %v3769
        %4118 = vmatpush.bf16.msra.mxu0 %v3761
        %4119 = vmatpush.bf16.msra.mxu0 %v3753
        %4120 = vmatpush.bf16.msra.mxu0 %v3745
        %4121 = vmatpush.bf16.msra.mxu0 %v3737
        %4122 = vmatpush.bf16.msra.mxu0 %v3729
        %4123 = vmatpush.bf16.msra.mxu0 %v3721
        %4124 = vmatpush.bf16.msra.mxu0 %v3713
        %4125 = vmatmul.bf16.gmra.mxu0 %v3175
        %v4126 = vpop.f32.mrf.mxu0
        %v4127 = vadd.f32 %v3313, %v4126
        %v4128 = vpop.f32.mrf.mxu0
        %v4129 = vadd.f32 %v3313, %v4128
        %4130 = vmatmul.bf16.gmra.mxu0 %v3177
        %v4131 = vpop.f32.mrf.mxu0
        %v4132 = vadd.f32 %v3313, %v4131
        %v4133 = vpop.f32.mrf.mxu0
        %v4134 = vadd.f32 %v3313, %v4133
        %4135 = vdwg.mxu0
        %4136 = vmatpush.bf16.msra.mxu0 %v3833
        %4137 = vmatpush.bf16.msra.mxu0 %v3825
        %4138 = vmatpush.bf16.msra.mxu0 %v3817
        %4139 = vmatpush.bf16.msra.mxu0 %v3809
        %4140 = vmatpush.bf16.msra.mxu0 %v3801
        %4141 = vmatpush.bf16.msra.mxu0 %v3793
        %4142 = vmatpush.bf16.msra.mxu0 %v3785
        %4143 = vmatpush.bf16.msra.mxu0 %v3777
        %4144 = vmatmul.bf16.gmra.mxu0 %v3176
        %v4145 = vpop.f32.mrf.mxu0
        %v4146 = vadd.f32 %v4127, %v4145
        %v4147 = vpop.f32.mrf.mxu0
        %v4148 = vadd.f32 %v4129, %v4147
        %4149 = vmatmul.bf16.gmra.mxu0 %v3178
        %v4150 = vpop.f32.mrf.mxu0
        %v4151 = vadd.f32 %v4132, %v4150
        %v4152 = vpop.f32.mrf.mxu0
        %v4153 = vadd.f32 %v4134, %v4152
        %4154 = vdwg.mxu0
        %4155 = vmatpush.bf16.msra.mxu0 %v3770
        %4156 = vmatpush.bf16.msra.mxu0 %v3762
        %4157 = vmatpush.bf16.msra.mxu0 %v3754
        %4158 = vmatpush.bf16.msra.mxu0 %v3746
        %4159 = vmatpush.bf16.msra.mxu0 %v3738
        %4160 = vmatpush.bf16.msra.mxu0 %v3730
        %4161 = vmatpush.bf16.msra.mxu0 %v3722
        %4162 = vmatpush.bf16.msra.mxu0 %v3714
        %4163 = vmatmul.bf16.gmra.mxu0 %v3175
        %v4164 = vpop.f32.mrf.mxu0
        %v4165 = vadd.f32 %v3314, %v4164
        %v4166 = vpop.f32.mrf.mxu0
        %v4167 = vadd.f32 %v3314, %v4166
        %4168 = vmatmul.bf16.gmra.mxu0 %v3177
        %v4169 = vpop.f32.mrf.mxu0
        %v4170 = vadd.f32 %v3314, %v4169
        %v4171 = vpop.f32.mrf.mxu0
        %v4172 = vadd.f32 %v3314, %v4171
        %4173 = vdwg.mxu0
        %4174 = vmatpush.bf16.msra.mxu0 %v3834
        %4175 = vmatpush.bf16.msra.mxu0 %v3826
        %4176 = vmatpush.bf16.msra.mxu0 %v3818
        %4177 = vmatpush.bf16.msra.mxu0 %v3810
        %4178 = vmatpush.bf16.msra.mxu0 %v3802
        %4179 = vmatpush.bf16.msra.mxu0 %v3794
        %4180 = vmatpush.bf16.msra.mxu0 %v3786
        %4181 = vmatpush.bf16.msra.mxu0 %v3778
        %4182 = vmatmul.bf16.gmra.mxu0 %v3176
        %v4183 = vpop.f32.mrf.mxu0
        %v4184 = vadd.f32 %v4165, %v4183
        %v4185 = vpop.f32.mrf.mxu0
        %v4186 = vadd.f32 %v4167, %v4185
        %4187 = vmatmul.bf16.gmra.mxu0 %v3178
        %v4188 = vpop.f32.mrf.mxu0
        %v4189 = vadd.f32 %v4170, %v4188
        %v4190 = vpop.f32.mrf.mxu0
        %v4191 = vadd.f32 %v4172, %v4190
        %4192 = vdwg.mxu0
        %4193 = vmatpush.bf16.msra.mxu0 %v3771
        %4194 = vmatpush.bf16.msra.mxu0 %v3763
        %4195 = vmatpush.bf16.msra.mxu0 %v3755
        %4196 = vmatpush.bf16.msra.mxu0 %v3747
        %4197 = vmatpush.bf16.msra.mxu0 %v3739
        %4198 = vmatpush.bf16.msra.mxu0 %v3731
        %4199 = vmatpush.bf16.msra.mxu0 %v3723
        %4200 = vmatpush.bf16.msra.mxu0 %v3715
        %4201 = vmatmul.bf16.gmra.mxu0 %v3175
        %v4202 = vpop.f32.mrf.mxu0
        %v4203 = vadd.f32 %v3315, %v4202
        %v4204 = vpop.f32.mrf.mxu0
        %v4205 = vadd.f32 %v3315, %v4204
        %4206 = vmatmul.bf16.gmra.mxu0 %v3177
        %v4207 = vpop.f32.mrf.mxu0
        %v4208 = vadd.f32 %v3315, %v4207
        %v4209 = vpop.f32.mrf.mxu0
        %v4210 = vadd.f32 %v3315, %v4209
        %4211 = vdwg.mxu0
        %4212 = vmatpush.bf16.msra.mxu0 %v3835
        %4213 = vmatpush.bf16.msra.mxu0 %v3827
        %4214 = vmatpush.bf16.msra.mxu0 %v3819
        %4215 = vmatpush.bf16.msra.mxu0 %v3811
        %4216 = vmatpush.bf16.msra.mxu0 %v3803
        %4217 = vmatpush.bf16.msra.mxu0 %v3795
        %4218 = vmatpush.bf16.msra.mxu0 %v3787
        %4219 = vmatpush.bf16.msra.mxu0 %v3779
        %4220 = vmatmul.bf16.gmra.mxu0 %v3176
        %v4221 = vpop.f32.mrf.mxu0
        %v4222 = vadd.f32 %v4203, %v4221
        %v4223 = vpop.f32.mrf.mxu0
        %v4224 = vadd.f32 %v4205, %v4223
        %4225 = vmatmul.bf16.gmra.mxu0 %v3178
        %v4226 = vpop.f32.mrf.mxu0
        %v4227 = vadd.f32 %v4208, %v4226
        %v4228 = vpop.f32.mrf.mxu0
        %v4229 = vadd.f32 %v4210, %v4228
        %4230 = vdwg.mxu0
        %4231 = vmatpush.bf16.msra.mxu0 %v3772
        %4232 = vmatpush.bf16.msra.mxu0 %v3764
        %4233 = vmatpush.bf16.msra.mxu0 %v3756
        %4234 = vmatpush.bf16.msra.mxu0 %v3748
        %4235 = vmatpush.bf16.msra.mxu0 %v3740
        %4236 = vmatpush.bf16.msra.mxu0 %v3732
        %4237 = vmatpush.bf16.msra.mxu0 %v3724
        %4238 = vmatpush.bf16.msra.mxu0 %v3716
        %4239 = vmatmul.bf16.gmra.mxu0 %v3175
        %v4240 = vpop.f32.mrf.mxu0
        %v4241 = vadd.f32 %v3316, %v4240
        %v4242 = vpop.f32.mrf.mxu0
        %v4243 = vadd.f32 %v3316, %v4242
        %4244 = vmatmul.bf16.gmra.mxu0 %v3177
        %v4245 = vpop.f32.mrf.mxu0
        %v4246 = vadd.f32 %v3316, %v4245
        %v4247 = vpop.f32.mrf.mxu0
        %v4248 = vadd.f32 %v3316, %v4247
        %4249 = vdwg.mxu0
        %4250 = vmatpush.bf16.msra.mxu0 %v3836
        %4251 = vmatpush.bf16.msra.mxu0 %v3828
        %4252 = vmatpush.bf16.msra.mxu0 %v3820
        %4253 = vmatpush.bf16.msra.mxu0 %v3812
        %4254 = vmatpush.bf16.msra.mxu0 %v3804
        %4255 = vmatpush.bf16.msra.mxu0 %v3796
        %4256 = vmatpush.bf16.msra.mxu0 %v3788
        %4257 = vmatpush.bf16.msra.mxu0 %v3780
        %4258 = vmatmul.bf16.gmra.mxu0 %v3176
        %v4259 = vpop.f32.mrf.mxu0
        %v4260 = vadd.f32 %v4241, %v4259
        %v4261 = vpop.f32.mrf.mxu0
        %v4262 = vadd.f32 %v4243, %v4261
        %4263 = vmatmul.bf16.gmra.mxu0 %v3178
        %v4264 = vpop.f32.mrf.mxu0
        %v4265 = vadd.f32 %v4246, %v4264
        %v4266 = vpop.f32.mrf.mxu0
        %v4267 = vadd.f32 %v4248, %v4266
        %4268 = vdwg.mxu0
        %v4269 = vmul.f32 %v3994, %v3994
        %v4270 = vmul.f32 %v4032, %v4032
        %v4271 = vmul.f32 %v4070, %v4070
        %v4272 = vmul.f32 %v4108, %v4108
        %v4273 = vmul.f32 %v4146, %v4146
        %v4274 = vmul.f32 %v4184, %v4184
        %v4275 = vmul.f32 %v4222, %v4222
        %v4276 = vmul.f32 %v4260, %v4260
        %v4277 = vmul.f32 %v3996, %v3996
        %v4278 = vmul.f32 %v4034, %v4034
        %v4279 = vmul.f32 %v4072, %v4072
        %v4280 = vmul.f32 %v4110, %v4110
        %v4281 = vmul.f32 %v4148, %v4148
        %v4282 = vmul.f32 %v4186, %v4186
        %v4283 = vmul.f32 %v4224, %v4224
        %v4284 = vmul.f32 %v4262, %v4262
        %v4285 = vmul.f32 %v3999, %v3999
        %v4286 = vmul.f32 %v4037, %v4037
        %v4287 = vmul.f32 %v4075, %v4075
        %v4288 = vmul.f32 %v4113, %v4113
        %v4289 = vmul.f32 %v4151, %v4151
        %v4290 = vmul.f32 %v4189, %v4189
        %v4291 = vmul.f32 %v4227, %v4227
        %v4292 = vmul.f32 %v4265, %v4265
        %v4293 = vmul.f32 %v4001, %v4001
        %v4294 = vmul.f32 %v4039, %v4039
        %v4295 = vmul.f32 %v4077, %v4077
        %v4296 = vmul.f32 %v4115, %v4115
        %v4297 = vmul.f32 %v4153, %v4153
        %v4298 = vmul.f32 %v4191, %v4191
        %v4299 = vmul.f32 %v4229, %v4229
        %v4300 = vmul.f32 %v4267, %v4267
        %v4301 = vmul.f32 %v3994, %v4269
        %v4302 = vmul.f32 %v4032, %v4270
        %v4303 = vmul.f32 %v4070, %v4271
        %v4304 = vmul.f32 %v4108, %v4272
        %v4305 = vmul.f32 %v4146, %v4273
        %v4306 = vmul.f32 %v4184, %v4274
        %v4307 = vmul.f32 %v4222, %v4275
        %v4308 = vmul.f32 %v4260, %v4276
        %v4309 = vmul.f32 %v3996, %v4277
        %v4310 = vmul.f32 %v4034, %v4278
        %v4311 = vmul.f32 %v4072, %v4279
        %v4312 = vmul.f32 %v4110, %v4280
        %v4313 = vmul.f32 %v4148, %v4281
        %v4314 = vmul.f32 %v4186, %v4282
        %v4315 = vmul.f32 %v4224, %v4283
        %v4316 = vmul.f32 %v4262, %v4284
        %v4317 = vmul.f32 %v3999, %v4285
        %v4318 = vmul.f32 %v4037, %v4286
        %v4319 = vmul.f32 %v4075, %v4287
        %v4320 = vmul.f32 %v4113, %v4288
        %v4321 = vmul.f32 %v4151, %v4289
        %v4322 = vmul.f32 %v4189, %v4290
        %v4323 = vmul.f32 %v4227, %v4291
        %v4324 = vmul.f32 %v4265, %v4292
        %v4325 = vmul.f32 %v4001, %v4293
        %v4326 = vmul.f32 %v4039, %v4294
        %v4327 = vmul.f32 %v4077, %v4295
        %v4328 = vmul.f32 %v4115, %v4296
        %v4329 = vmul.f32 %v4153, %v4297
        %v4330 = vmul.f32 %v4191, %v4298
        %v4331 = vmul.f32 %v4229, %v4299
        %v4332 = vmul.f32 %v4267, %v4300
        %v4333 = vmul.f32 %v4301, 0.044715
        %v4334 = vmul.f32 %v4302, 0.044715
        %v4335 = vmul.f32 %v4303, 0.044715
        %v4336 = vmul.f32 %v4304, 0.044715
        %v4337 = vmul.f32 %v4305, 0.044715
        %v4338 = vmul.f32 %v4306, 0.044715
        %v4339 = vmul.f32 %v4307, 0.044715
        %v4340 = vmul.f32 %v4308, 0.044715
        %v4341 = vmul.f32 %v4309, 0.044715
        %v4342 = vmul.f32 %v4310, 0.044715
        %v4343 = vmul.f32 %v4311, 0.044715
        %v4344 = vmul.f32 %v4312, 0.044715
        %v4345 = vmul.f32 %v4313, 0.044715
        %v4346 = vmul.f32 %v4314, 0.044715
        %v4347 = vmul.f32 %v4315, 0.044715
        %v4348 = vmul.f32 %v4316, 0.044715
        %v4349 = vmul.f32 %v4317, 0.044715
        %v4350 = vmul.f32 %v4318, 0.044715
        %v4351 = vmul.f32 %v4319, 0.044715
        %v4352 = vmul.f32 %v4320, 0.044715
        %v4353 = vmul.f32 %v4321, 0.044715
        %v4354 = vmul.f32 %v4322, 0.044715
        %v4355 = vmul.f32 %v4323, 0.044715
        %v4356 = vmul.f32 %v4324, 0.044715
        %v4357 = vmul.f32 %v4325, 0.044715
        %v4358 = vmul.f32 %v4326, 0.044715
        %v4359 = vmul.f32 %v4327, 0.044715
        %v4360 = vmul.f32 %v4328, 0.044715
        %v4361 = vmul.f32 %v4329, 0.044715
        %v4362 = vmul.f32 %v4330, 0.044715
        %v4363 = vmul.f32 %v4331, 0.044715
        %v4364 = vmul.f32 %v4332, 0.044715
        %v4365 = vadd.f32 %v3994, %v4333
        %v4366 = vadd.f32 %v4032, %v4334
        %v4367 = vadd.f32 %v4070, %v4335
        %v4368 = vadd.f32 %v4108, %v4336
        %v4369 = vadd.f32 %v4146, %v4337
        %v4370 = vadd.f32 %v4184, %v4338
        %v4371 = vadd.f32 %v4222, %v4339
        %v4372 = vadd.f32 %v4260, %v4340
        %v4373 = vadd.f32 %v3996, %v4341
        %v4374 = vadd.f32 %v4034, %v4342
        %v4375 = vadd.f32 %v4072, %v4343
        %v4376 = vadd.f32 %v4110, %v4344
        %v4377 = vadd.f32 %v4148, %v4345
        %v4378 = vadd.f32 %v4186, %v4346
        %v4379 = vadd.f32 %v4224, %v4347
        %v4380 = vadd.f32 %v4262, %v4348
        %v4381 = vadd.f32 %v3999, %v4349
        %v4382 = vadd.f32 %v4037, %v4350
        %v4383 = vadd.f32 %v4075, %v4351
        %v4384 = vadd.f32 %v4113, %v4352
        %v4385 = vadd.f32 %v4151, %v4353
        %v4386 = vadd.f32 %v4189, %v4354
        %v4387 = vadd.f32 %v4227, %v4355
        %v4388 = vadd.f32 %v4265, %v4356
        %v4389 = vadd.f32 %v4001, %v4357
        %v4390 = vadd.f32 %v4039, %v4358
        %v4391 = vadd.f32 %v4077, %v4359
        %v4392 = vadd.f32 %v4115, %v4360
        %v4393 = vadd.f32 %v4153, %v4361
        %v4394 = vadd.f32 %v4191, %v4362
        %v4395 = vadd.f32 %v4229, %v4363
        %v4396 = vadd.f32 %v4267, %v4364
        %v4397 = vmul.f32 %v4365, 0.7978846
        %v4398 = vmul.f32 %v4366, 0.7978846
        %v4399 = vmul.f32 %v4367, 0.7978846
        %v4400 = vmul.f32 %v4368, 0.7978846
        %v4401 = vmul.f32 %v4369, 0.7978846
        %v4402 = vmul.f32 %v4370, 0.7978846
        %v4403 = vmul.f32 %v4371, 0.7978846
        %v4404 = vmul.f32 %v4372, 0.7978846
        %v4405 = vmul.f32 %v4373, 0.7978846
        %v4406 = vmul.f32 %v4374, 0.7978846
        %v4407 = vmul.f32 %v4375, 0.7978846
        %v4408 = vmul.f32 %v4376, 0.7978846
        %v4409 = vmul.f32 %v4377, 0.7978846
        %v4410 = vmul.f32 %v4378, 0.7978846
        %v4411 = vmul.f32 %v4379, 0.7978846
        %v4412 = vmul.f32 %v4380, 0.7978846
        %v4413 = vmul.f32 %v4381, 0.7978846
        %v4414 = vmul.f32 %v4382, 0.7978846
        %v4415 = vmul.f32 %v4383, 0.7978846
        %v4416 = vmul.f32 %v4384, 0.7978846
        %v4417 = vmul.f32 %v4385, 0.7978846
        %v4418 = vmul.f32 %v4386, 0.7978846
        %v4419 = vmul.f32 %v4387, 0.7978846
        %v4420 = vmul.f32 %v4388, 0.7978846
        %v4421 = vmul.f32 %v4389, 0.7978846
        %v4422 = vmul.f32 %v4390, 0.7978846
        %v4423 = vmul.f32 %v4391, 0.7978846
        %v4424 = vmul.f32 %v4392, 0.7978846
        %v4425 = vmul.f32 %v4393, 0.7978846
        %v4426 = vmul.f32 %v4394, 0.7978846
        %v4427 = vmul.f32 %v4395, 0.7978846
        %v4428 = vmul.f32 %v4396, 0.7978846
        %v4429 = vtanh.pop %v4397
        %v4430 = vtanh.pop %v4398
        %v4431 = vtanh.pop %v4399
        %v4432 = vtanh.pop %v4400
        %v4433 = vtanh.pop %v4401
        %v4434 = vtanh.pop %v4402
        %v4435 = vtanh.pop %v4403
        %v4436 = vtanh.pop %v4404
        %v4437 = vtanh.pop %v4405
        %v4438 = vtanh.pop %v4406
        %v4439 = vtanh.pop %v4407
        %v4440 = vtanh.pop %v4408
        %v4441 = vtanh.pop %v4409
        %v4442 = vtanh.pop %v4410
        %v4443 = vtanh.pop %v4411
        %v4444 = vtanh.pop %v4412
        %v4445 = vtanh.pop %v4413
        %v4446 = vtanh.pop %v4414
        %v4447 = vtanh.pop %v4415
        %v4448 = vtanh.pop %v4416
        %v4449 = vtanh.pop %v4417
        %v4450 = vtanh.pop %v4418
        %v4451 = vtanh.pop %v4419
        %v4452 = vtanh.pop %v4420
        %v4453 = vtanh.pop %v4421
        %v4454 = vtanh.pop %v4422
        %v4455 = vtanh.pop %v4423
        %v4456 = vtanh.pop %v4424
        %v4457 = vtanh.pop %v4425
        %v4458 = vtanh.pop %v4426
        %v4459 = vtanh.pop %v4427
        %v4460 = vtanh.pop %v4428
        %v4461 = vadd.f32 %v4429, 1.0
        %v4462 = vadd.f32 %v4430, 1.0
        %v4463 = vadd.f32 %v4431, 1.0
        %v4464 = vadd.f32 %v4432, 1.0
        %v4465 = vadd.f32 %v4433, 1.0
        %v4466 = vadd.f32 %v4434, 1.0
        %v4467 = vadd.f32 %v4435, 1.0
        %v4468 = vadd.f32 %v4436, 1.0
        %v4469 = vadd.f32 %v4437, 1.0
        %v4470 = vadd.f32 %v4438, 1.0
        %v4471 = vadd.f32 %v4439, 1.0
        %v4472 = vadd.f32 %v4440, 1.0
        %v4473 = vadd.f32 %v4441, 1.0
        %v4474 = vadd.f32 %v4442, 1.0
        %v4475 = vadd.f32 %v4443, 1.0
        %v4476 = vadd.f32 %v4444, 1.0
        %v4477 = vadd.f32 %v4445, 1.0
        %v4478 = vadd.f32 %v4446, 1.0
        %v4479 = vadd.f32 %v4447, 1.0
        %v4480 = vadd.f32 %v4448, 1.0
        %v4481 = vadd.f32 %v4449, 1.0
        %v4482 = vadd.f32 %v4450, 1.0
        %v4483 = vadd.f32 %v4451, 1.0
        %v4484 = vadd.f32 %v4452, 1.0
        %v4485 = vadd.f32 %v4453, 1.0
        %v4486 = vadd.f32 %v4454, 1.0
        %v4487 = vadd.f32 %v4455, 1.0
        %v4488 = vadd.f32 %v4456, 1.0
        %v4489 = vadd.f32 %v4457, 1.0
        %v4490 = vadd.f32 %v4458, 1.0
        %v4491 = vadd.f32 %v4459, 1.0
        %v4492 = vadd.f32 %v4460, 1.0
        %v4493 = vmul.f32 %v4461, 0.5
        %v4494 = vmul.f32 %v4462, 0.5
        %v4495 = vmul.f32 %v4463, 0.5
        %v4496 = vmul.f32 %v4464, 0.5
        %v4497 = vmul.f32 %v4465, 0.5
        %v4498 = vmul.f32 %v4466, 0.5
        %v4499 = vmul.f32 %v4467, 0.5
        %v4500 = vmul.f32 %v4468, 0.5
        %v4501 = vmul.f32 %v4469, 0.5
        %v4502 = vmul.f32 %v4470, 0.5
        %v4503 = vmul.f32 %v4471, 0.5
        %v4504 = vmul.f32 %v4472, 0.5
        %v4505 = vmul.f32 %v4473, 0.5
        %v4506 = vmul.f32 %v4474, 0.5
        %v4507 = vmul.f32 %v4475, 0.5
        %v4508 = vmul.f32 %v4476, 0.5
        %v4509 = vmul.f32 %v4477, 0.5
        %v4510 = vmul.f32 %v4478, 0.5
        %v4511 = vmul.f32 %v4479, 0.5
        %v4512 = vmul.f32 %v4480, 0.5
        %v4513 = vmul.f32 %v4481, 0.5
        %v4514 = vmul.f32 %v4482, 0.5
        %v4515 = vmul.f32 %v4483, 0.5
        %v4516 = vmul.f32 %v4484, 0.5
        %v4517 = vmul.f32 %v4485, 0.5
        %v4518 = vmul.f32 %v4486, 0.5
        %v4519 = vmul.f32 %v4487, 0.5
        %v4520 = vmul.f32 %v4488, 0.5
        %v4521 = vmul.f32 %v4489, 0.5
        %v4522 = vmul.f32 %v4490, 0.5
        %v4523 = vmul.f32 %v4491, 0.5
        %v4524 = vmul.f32 %v4492, 0.5
        %v4525 = vmul.f32 %v3994, %v4493
        %v4526 = vmul.f32 %v4032, %v4494
        %v4527 = vmul.f32 %v4070, %v4495
        %v4528 = vmul.f32 %v4108, %v4496
        %v4529 = vmul.f32 %v4146, %v4497
        %v4530 = vmul.f32 %v4184, %v4498
        %v4531 = vmul.f32 %v4222, %v4499
        %v4532 = vmul.f32 %v4260, %v4500
        %v4533 = vmul.f32 %v3996, %v4501
        %v4534 = vmul.f32 %v4034, %v4502
        %v4535 = vmul.f32 %v4072, %v4503
        %v4536 = vmul.f32 %v4110, %v4504
        %v4537 = vmul.f32 %v4148, %v4505
        %v4538 = vmul.f32 %v4186, %v4506
        %v4539 = vmul.f32 %v4224, %v4507
        %v4540 = vmul.f32 %v4262, %v4508
        %v4541 = vmul.f32 %v3999, %v4509
        %v4542 = vmul.f32 %v4037, %v4510
        %v4543 = vmul.f32 %v4075, %v4511
        %v4544 = vmul.f32 %v4113, %v4512
        %v4545 = vmul.f32 %v4151, %v4513
        %v4546 = vmul.f32 %v4189, %v4514
        %v4547 = vmul.f32 %v4227, %v4515
        %v4548 = vmul.f32 %v4265, %v4516
        %v4549 = vmul.f32 %v4001, %v4517
        %v4550 = vmul.f32 %v4039, %v4518
        %v4551 = vmul.f32 %v4077, %v4519
        %v4552 = vmul.f32 %v4115, %v4520
        %v4553 = vmul.f32 %v4153, %v4521
        %v4554 = vmul.f32 %v4191, %v4522
        %v4555 = vmul.f32 %v4229, %v4523
        %v4556 = vmul.f32 %v4267, %v4524
        %v4557 = vpack.c.bf16 %v4533, %v4525
        %v4558 = vpack.c.bf16 %v4534, %v4526
        %v4559 = vpack.c.bf16 %v4535, %v4527
        %v4560 = vpack.c.bf16 %v4536, %v4528
        %v4561 = vpack.c.bf16 %v4537, %v4529
        %v4562 = vpack.c.bf16 %v4538, %v4530
        %v4563 = vpack.c.bf16 %v4539, %v4531
        %v4564 = vpack.c.bf16 %v4540, %v4532
        %v4565 = vpack.c.bf16 %v4549, %v4541
        %v4566 = vpack.c.bf16 %v4550, %v4542
        %v4567 = vpack.c.bf16 %v4551, %v4543
        %v4568 = vpack.c.bf16 %v4552, %v4544
        %v4569 = vpack.c.bf16 %v4553, %v4545
        %v4570 = vpack.c.bf16 %v4554, %v4546
        %v4571 = vpack.c.bf16 %v4555, %v4547
        %v4572 = vpack.c.bf16 %v4556, %v4548
        %v4573 = vld [vmem:[%s810] sm:$0xff]
        %v4574 = vld [vmem:[%s810 + $0x8] sm:$0xff]
        %v4575 = vld [vmem:[%s810 + $0x10] sm:$0xff]
        %v4576 = vld [vmem:[%s810 + $0x18] sm:$0xff]
        %v4577 = vld [vmem:[%s810 + $0x20] sm:$0xff]
        %v4578 = vld [vmem:[%s810 + $0x28] sm:$0xff]
        %v4579 = vld [vmem:[%s810 + $0x30] sm:$0xff]
        %v4580 = vld [vmem:[%s810 + $0x38] sm:$0xff]
        %v4581 = vld [vmem:[%s810 + $0x40] sm:$0xff]
        %v4582 = vld [vmem:[%s810 + $0x48] sm:$0xff]
        %v4583 = vld [vmem:[%s810 + $0x50] sm:$0xff]
        %v4584 = vld [vmem:[%s810 + $0x58] sm:$0xff]
        %v4585 = vld [vmem:[%s810 + $0x60] sm:$0xff]
        %v4586 = vld [vmem:[%s810 + $0x68] sm:$0xff]
        %v4587 = vld [vmem:[%s810 + $0x70] sm:$0xff]
        %v4588 = vld [vmem:[%s810 + $0x78] sm:$0xff]
        %v4589 = vld [vmem:[%s810 + $0x80] sm:$0xff]
        %v4590 = vld [vmem:[%s810 + $0x88] sm:$0xff]
        %v4591 = vld [vmem:[%s810 + $0x90] sm:$0xff]
        %v4592 = vld [vmem:[%s810 + $0x98] sm:$0xff]
        %v4593 = vld [vmem:[%s810 + $0xa0] sm:$0xff]
        %v4594 = vld [vmem:[%s810 + $0xa8] sm:$0xff]
        %v4595 = vld [vmem:[%s810 + $0xb0] sm:$0xff]
        %v4596 = vld [vmem:[%s810 + $0xb8] sm:$0xff]
        %v4597 = vld [vmem:[%s810 + $0xc0] sm:$0xff]
        %v4598 = vld [vmem:[%s810 + $0xc8] sm:$0xff]
        %v4599 = vld [vmem:[%s810 + $0xd0] sm:$0xff]
        %v4600 = vld [vmem:[%s810 + $0xd8] sm:$0xff]
        %v4601 = vld [vmem:[%s810 + $0xe0] sm:$0xff]
        %v4602 = vld [vmem:[%s810 + $0xe8] sm:$0xff]
        %v4603 = vld [vmem:[%s810 + $0xf0] sm:$0xff]
        %v4604 = vld [vmem:[%s810 + $0xf8] sm:$0xff]
        %v4605 = vld [vmem:[%s810 + $0x100] sm:$0xff]
        %v4606 = vld [vmem:[%s810 + $0x108] sm:$0xff]
        %v4607 = vld [vmem:[%s810 + $0x110] sm:$0xff]
        %v4608 = vld [vmem:[%s810 + $0x118] sm:$0xff]
        %v4609 = vld [vmem:[%s810 + $0x120] sm:$0xff]
        %v4610 = vld [vmem:[%s810 + $0x128] sm:$0xff]
        %v4611 = vld [vmem:[%s810 + $0x130] sm:$0xff]
        %v4612 = vld [vmem:[%s810 + $0x138] sm:$0xff]
        %v4613 = vld [vmem:[%s810 + $0x140] sm:$0xff]
        %v4614 = vld [vmem:[%s810 + $0x148] sm:$0xff]
        %v4615 = vld [vmem:[%s810 + $0x150] sm:$0xff]
        %v4616 = vld [vmem:[%s810 + $0x158] sm:$0xff]
        %v4617 = vld [vmem:[%s810 + $0x160] sm:$0xff]
        %v4618 = vld [vmem:[%s810 + $0x168] sm:$0xff]
        %v4619 = vld [vmem:[%s810 + $0x170] sm:$0xff]
        %v4620 = vld [vmem:[%s810 + $0x178] sm:$0xff]
        %v4621 = vld [vmem:[%s810 + $0x180] sm:$0xff]
        %v4622 = vld [vmem:[%s810 + $0x188] sm:$0xff]
        %v4623 = vld [vmem:[%s810 + $0x190] sm:$0xff]
        %v4624 = vld [vmem:[%s810 + $0x198] sm:$0xff]
        %v4625 = vld [vmem:[%s810 + $0x1a0] sm:$0xff]
        %v4626 = vld [vmem:[%s810 + $0x1a8] sm:$0xff]
        %v4627 = vld [vmem:[%s810 + $0x1b0] sm:$0xff]
        %v4628 = vld [vmem:[%s810 + $0x1b8] sm:$0xff]
        %v4629 = vld [vmem:[%s810 + $0x1c0] sm:$0xff]
        %v4630 = vld [vmem:[%s810 + $0x1c8] sm:$0xff]
        %v4631 = vld [vmem:[%s810 + $0x1d0] sm:$0xff]
        %v4632 = vld [vmem:[%s810 + $0x1d8] sm:$0xff]
        %v4633 = vld [vmem:[%s810 + $0x1e0] sm:$0xff]
        %v4634 = vld [vmem:[%s810 + $0x1e8] sm:$0xff]
        %v4635 = vld [vmem:[%s810 + $0x1f0] sm:$0xff]
        %v4636 = vld [vmem:[%s810 + $0x1f8] sm:$0xff]
        %v4637 = vld [vmem:[%s810 + $0x200] sm:$0xff]
        %v4638 = vld [vmem:[%s810 + $0x208] sm:$0xff]
        %v4639 = vld [vmem:[%s810 + $0x210] sm:$0xff]
        %v4640 = vld [vmem:[%s810 + $0x218] sm:$0xff]
        %v4641 = vld [vmem:[%s810 + $0x220] sm:$0xff]
        %v4642 = vld [vmem:[%s810 + $0x228] sm:$0xff]
        %v4643 = vld [vmem:[%s810 + $0x230] sm:$0xff]
        %v4644 = vld [vmem:[%s810 + $0x238] sm:$0xff]
        %v4645 = vld [vmem:[%s810 + $0x240] sm:$0xff]
        %v4646 = vld [vmem:[%s810 + $0x248] sm:$0xff]
        %v4647 = vld [vmem:[%s810 + $0x250] sm:$0xff]
        %v4648 = vld [vmem:[%s810 + $0x258] sm:$0xff]
        %v4649 = vld [vmem:[%s810 + $0x260] sm:$0xff]
        %v4650 = vld [vmem:[%s810 + $0x268] sm:$0xff]
        %v4651 = vld [vmem:[%s810 + $0x270] sm:$0xff]
        %v4652 = vld [vmem:[%s810 + $0x278] sm:$0xff]
        %v4653 = vld [vmem:[%s810 + $0x280] sm:$0xff]
        %v4654 = vld [vmem:[%s810 + $0x288] sm:$0xff]
        %v4655 = vld [vmem:[%s810 + $0x290] sm:$0xff]
        %v4656 = vld [vmem:[%s810 + $0x298] sm:$0xff]
        %v4657 = vld [vmem:[%s810 + $0x2a0] sm:$0xff]
        %v4658 = vld [vmem:[%s810 + $0x2a8] sm:$0xff]
        %v4659 = vld [vmem:[%s810 + $0x2b0] sm:$0xff]
        %v4660 = vld [vmem:[%s810 + $0x2b8] sm:$0xff]
        %v4661 = vld [vmem:[%s810 + $0x2c0] sm:$0xff]
        %v4662 = vld [vmem:[%s810 + $0x2c8] sm:$0xff]
        %v4663 = vld [vmem:[%s810 + $0x2d0] sm:$0xff]
        %v4664 = vld [vmem:[%s810 + $0x2d8] sm:$0xff]
        %v4665 = vld [vmem:[%s810 + $0x2e0] sm:$0xff]
        %v4666 = vld [vmem:[%s810 + $0x2e8] sm:$0xff]
        %v4667 = vld [vmem:[%s810 + $0x2f0] sm:$0xff]
        %v4668 = vld [vmem:[%s810 + $0x2f8] sm:$0xff]
        %v4669 = vld [vmem:[%s810 + $0x300] sm:$0xff]
        %v4670 = vld [vmem:[%s810 + $0x308] sm:$0xff]
        %v4671 = vld [vmem:[%s810 + $0x310] sm:$0xff]
        %v4672 = vld [vmem:[%s810 + $0x318] sm:$0xff]
        %v4673 = vld [vmem:[%s810 + $0x320] sm:$0xff]
        %v4674 = vld [vmem:[%s810 + $0x328] sm:$0xff]
        %v4675 = vld [vmem:[%s810 + $0x330] sm:$0xff]
        %v4676 = vld [vmem:[%s810 + $0x338] sm:$0xff]
        %v4677 = vld [vmem:[%s810 + $0x340] sm:$0xff]
        %v4678 = vld [vmem:[%s810 + $0x348] sm:$0xff]
        %v4679 = vld [vmem:[%s810 + $0x350] sm:$0xff]
        %v4680 = vld [vmem:[%s810 + $0x358] sm:$0xff]
        %v4681 = vld [vmem:[%s810 + $0x360] sm:$0xff]
        %v4682 = vld [vmem:[%s810 + $0x368] sm:$0xff]
        %v4683 = vld [vmem:[%s810 + $0x370] sm:$0xff]
        %v4684 = vld [vmem:[%s810 + $0x378] sm:$0xff]
        %v4685 = vld [vmem:[%s810 + $0x380] sm:$0xff]
        %v4686 = vld [vmem:[%s810 + $0x388] sm:$0xff]
        %v4687 = vld [vmem:[%s810 + $0x390] sm:$0xff]
        %v4688 = vld [vmem:[%s810 + $0x398] sm:$0xff]
        %v4689 = vld [vmem:[%s810 + $0x3a0] sm:$0xff]
        %v4690 = vld [vmem:[%s810 + $0x3a8] sm:$0xff]
        %v4691 = vld [vmem:[%s810 + $0x3b0] sm:$0xff]
        %v4692 = vld [vmem:[%s810 + $0x3b8] sm:$0xff]
        %v4693 = vld [vmem:[%s810 + $0x3c0] sm:$0xff]
        %v4694 = vld [vmem:[%s810 + $0x3c8] sm:$0xff]
        %v4695 = vld [vmem:[%s810 + $0x3d0] sm:$0xff]
        %v4696 = vld [vmem:[%s810 + $0x3d8] sm:$0xff]
        %v4697 = vld [vmem:[%s810 + $0x3e0] sm:$0xff]
        %v4698 = vld [vmem:[%s810 + $0x3e8] sm:$0xff]
        %v4699 = vld [vmem:[%s810 + $0x3f0] sm:$0xff]
        %v4700 = vld [vmem:[%s810 + $0x3f8] sm:$0xff]
        %v4701 = vld [vmem:[%s918] sm:$0x3]
        %v4703 = vperm.slane %v4701, 0
        %v4704 = vperm.slane %v4701, 1
        %v4835 = vunpack.c.l.b16 %v4573
        %v4836 = vunpack.c.h.b16 %v4573
        %v4837 = vunpack.c.l.b16 %v4574
        %v4838 = vunpack.c.h.b16 %v4574
        %v4839 = vunpack.c.l.b16 %v4575
        %v4840 = vunpack.c.h.b16 %v4575
        %v4841 = vunpack.c.l.b16 %v4576
        %v4842 = vunpack.c.h.b16 %v4576
        %v4843 = vunpack.c.l.b16 %v4577
        %v4844 = vunpack.c.h.b16 %v4577
        %v4845 = vunpack.c.l.b16 %v4578
        %v4846 = vunpack.c.h.b16 %v4578
        %v4847 = vunpack.c.l.b16 %v4579
        %v4848 = vunpack.c.h.b16 %v4579
        %v4849 = vunpack.c.l.b16 %v4580
        %v4850 = vunpack.c.h.b16 %v4580
        %v4851 = vunpack.c.l.b16 %v4581
        %v4852 = vunpack.c.h.b16 %v4581
        %v4853 = vunpack.c.l.b16 %v4582
        %v4854 = vunpack.c.h.b16 %v4582
        %v4855 = vunpack.c.l.b16 %v4583
        %v4856 = vunpack.c.h.b16 %v4583
        %v4857 = vunpack.c.l.b16 %v4584
        %v4858 = vunpack.c.h.b16 %v4584
        %v4859 = vunpack.c.l.b16 %v4585
        %v4860 = vunpack.c.h.b16 %v4585
        %v4861 = vunpack.c.l.b16 %v4586
        %v4862 = vunpack.c.h.b16 %v4586
        %v4863 = vunpack.c.l.b16 %v4587
        %v4864 = vunpack.c.h.b16 %v4587
        %v4865 = vunpack.c.l.b16 %v4588
        %v4866 = vunpack.c.h.b16 %v4588
        %v4867 = vunpack.c.l.b16 %v4589
        %v4868 = vunpack.c.h.b16 %v4589
        %v4869 = vunpack.c.l.b16 %v4590
        %v4870 = vunpack.c.h.b16 %v4590
        %v4871 = vunpack.c.l.b16 %v4591
        %v4872 = vunpack.c.h.b16 %v4591
        %v4873 = vunpack.c.l.b16 %v4592
        %v4874 = vunpack.c.h.b16 %v4592
        %v4875 = vunpack.c.l.b16 %v4593
        %v4876 = vunpack.c.h.b16 %v4593
        %v4877 = vunpack.c.l.b16 %v4594
        %v4878 = vunpack.c.h.b16 %v4594
        %v4879 = vunpack.c.l.b16 %v4595
        %v4880 = vunpack.c.h.b16 %v4595
        %v4881 = vunpack.c.l.b16 %v4596
        %v4882 = vunpack.c.h.b16 %v4596
        %v4883 = vunpack.c.l.b16 %v4597
        %v4884 = vunpack.c.h.b16 %v4597
        %v4885 = vunpack.c.l.b16 %v4598
        %v4886 = vunpack.c.h.b16 %v4598
        %v4887 = vunpack.c.l.b16 %v4599
        %v4888 = vunpack.c.h.b16 %v4599
        %v4889 = vunpack.c.l.b16 %v4600
        %v4890 = vunpack.c.h.b16 %v4600
        %v4891 = vunpack.c.l.b16 %v4601
        %v4892 = vunpack.c.h.b16 %v4601
        %v4893 = vunpack.c.l.b16 %v4602
        %v4894 = vunpack.c.h.b16 %v4602
        %v4895 = vunpack.c.l.b16 %v4603
        %v4896 = vunpack.c.h.b16 %v4603
        %v4897 = vunpack.c.l.b16 %v4604
        %v4898 = vunpack.c.h.b16 %v4604
        %v4899 = vunpack.c.l.b16 %v4605
        %v4900 = vunpack.c.h.b16 %v4605
        %v4901 = vunpack.c.l.b16 %v4606
        %v4902 = vunpack.c.h.b16 %v4606
        %v4903 = vunpack.c.l.b16 %v4607
        %v4904 = vunpack.c.h.b16 %v4607
        %v4905 = vunpack.c.l.b16 %v4608
        %v4906 = vunpack.c.h.b16 %v4608
        %v4907 = vunpack.c.l.b16 %v4609
        %v4908 = vunpack.c.h.b16 %v4609
        %v4909 = vunpack.c.l.b16 %v4610
        %v4910 = vunpack.c.h.b16 %v4610
        %v4911 = vunpack.c.l.b16 %v4611
        %v4912 = vunpack.c.h.b16 %v4611
        %v4913 = vunpack.c.l.b16 %v4612
        %v4914 = vunpack.c.h.b16 %v4612
        %v4915 = vunpack.c.l.b16 %v4613
        %v4916 = vunpack.c.h.b16 %v4613
        %v4917 = vunpack.c.l.b16 %v4614
        %v4918 = vunpack.c.h.b16 %v4614
        %v4919 = vunpack.c.l.b16 %v4615
        %v4920 = vunpack.c.h.b16 %v4615
        %v4921 = vunpack.c.l.b16 %v4616
        %v4922 = vunpack.c.h.b16 %v4616
        %v4923 = vunpack.c.l.b16 %v4617
        %v4924 = vunpack.c.h.b16 %v4617
        %v4925 = vunpack.c.l.b16 %v4618
        %v4926 = vunpack.c.h.b16 %v4618
        %v4927 = vunpack.c.l.b16 %v4619
        %v4928 = vunpack.c.h.b16 %v4619
        %v4929 = vunpack.c.l.b16 %v4620
        %v4930 = vunpack.c.h.b16 %v4620
        %v4931 = vunpack.c.l.b16 %v4621
        %v4932 = vunpack.c.h.b16 %v4621
        %v4933 = vunpack.c.l.b16 %v4622
        %v4934 = vunpack.c.h.b16 %v4622
        %v4935 = vunpack.c.l.b16 %v4623
        %v4936 = vunpack.c.h.b16 %v4623
        %v4937 = vunpack.c.l.b16 %v4624
        %v4938 = vunpack.c.h.b16 %v4624
        %v4939 = vunpack.c.l.b16 %v4625
        %v4940 = vunpack.c.h.b16 %v4625
        %v4941 = vunpack.c.l.b16 %v4626
        %v4942 = vunpack.c.h.b16 %v4626
        %v4943 = vunpack.c.l.b16 %v4627
        %v4944 = vunpack.c.h.b16 %v4627
        %v4945 = vunpack.c.l.b16 %v4628
        %v4946 = vunpack.c.h.b16 %v4628
        %v4947 = vunpack.c.l.b16 %v4629
        %v4948 = vunpack.c.h.b16 %v4629
        %v4949 = vunpack.c.l.b16 %v4630
        %v4950 = vunpack.c.h.b16 %v4630
        %v4951 = vunpack.c.l.b16 %v4631
        %v4952 = vunpack.c.h.b16 %v4631
        %v4953 = vunpack.c.l.b16 %v4632
        %v4954 = vunpack.c.h.b16 %v4632
        %v4955 = vunpack.c.l.b16 %v4633
        %v4956 = vunpack.c.h.b16 %v4633
        %v4957 = vunpack.c.l.b16 %v4634
        %v4958 = vunpack.c.h.b16 %v4634
        %v4959 = vunpack.c.l.b16 %v4635
        %v4960 = vunpack.c.h.b16 %v4635
        %v4961 = vunpack.c.l.b16 %v4636
        %v4962 = vunpack.c.h.b16 %v4636
        %v4963 = vunpack.c.l.b16 %v4637
        %v4964 = vunpack.c.h.b16 %v4637
        %v4965 = vunpack.c.l.b16 %v4638
        %v4966 = vunpack.c.h.b16 %v4638
        %v4967 = vunpack.c.l.b16 %v4639
        %v4968 = vunpack.c.h.b16 %v4639
        %v4969 = vunpack.c.l.b16 %v4640
        %v4970 = vunpack.c.h.b16 %v4640
        %v4971 = vunpack.c.l.b16 %v4641
        %v4972 = vunpack.c.h.b16 %v4641
        %v4973 = vunpack.c.l.b16 %v4642
        %v4974 = vunpack.c.h.b16 %v4642
        %v4975 = vunpack.c.l.b16 %v4643
        %v4976 = vunpack.c.h.b16 %v4643
        %v4977 = vunpack.c.l.b16 %v4644
        %v4978 = vunpack.c.h.b16 %v4644
        %v4979 = vunpack.c.l.b16 %v4645
        %v4980 = vunpack.c.h.b16 %v4645
        %v4981 = vunpack.c.l.b16 %v4646
        %v4982 = vunpack.c.h.b16 %v4646
        %v4983 = vunpack.c.l.b16 %v4647
        %v4984 = vunpack.c.h.b16 %v4647
        %v4985 = vunpack.c.l.b16 %v4648
        %v4986 = vunpack.c.h.b16 %v4648
        %v4987 = vunpack.c.l.b16 %v4649
        %v4988 = vunpack.c.h.b16 %v4649
        %v4989 = vunpack.c.l.b16 %v4650
        %v4990 = vunpack.c.h.b16 %v4650
        %v4991 = vunpack.c.l.b16 %v4651
        %v4992 = vunpack.c.h.b16 %v4651
        %v4993 = vunpack.c.l.b16 %v4652
        %v4994 = vunpack.c.h.b16 %v4652
        %v4995 = vunpack.c.l.b16 %v4653
        %v4996 = vunpack.c.h.b16 %v4653
        %v4997 = vunpack.c.l.b16 %v4654
        %v4998 = vunpack.c.h.b16 %v4654
        %v4999 = vunpack.c.l.b16 %v4655
        %v5000 = vunpack.c.h.b16 %v4655
        %v5001 = vunpack.c.l.b16 %v4656
        %v5002 = vunpack.c.h.b16 %v4656
        %v5003 = vunpack.c.l.b16 %v4657
        %v5004 = vunpack.c.h.b16 %v4657
        %v5005 = vunpack.c.l.b16 %v4658
        %v5006 = vunpack.c.h.b16 %v4658
        %v5007 = vunpack.c.l.b16 %v4659
        %v5008 = vunpack.c.h.b16 %v4659
        %v5009 = vunpack.c.l.b16 %v4660
        %v5010 = vunpack.c.h.b16 %v4660
        %v5011 = vunpack.c.l.b16 %v4661
        %v5012 = vunpack.c.h.b16 %v4661
        %v5013 = vunpack.c.l.b16 %v4662
        %v5014 = vunpack.c.h.b16 %v4662
        %v5015 = vunpack.c.l.b16 %v4663
        %v5016 = vunpack.c.h.b16 %v4663
        %v5017 = vunpack.c.l.b16 %v4664
        %v5018 = vunpack.c.h.b16 %v4664
        %v5019 = vunpack.c.l.b16 %v4665
        %v5020 = vunpack.c.h.b16 %v4665
        %v5021 = vunpack.c.l.b16 %v4666
        %v5022 = vunpack.c.h.b16 %v4666
        %v5023 = vunpack.c.l.b16 %v4667
        %v5024 = vunpack.c.h.b16 %v4667
        %v5025 = vunpack.c.l.b16 %v4668
        %v5026 = vunpack.c.h.b16 %v4668
        %v5027 = vunpack.c.l.b16 %v4669
        %v5028 = vunpack.c.h.b16 %v4669
        %v5029 = vunpack.c.l.b16 %v4670
        %v5030 = vunpack.c.h.b16 %v4670
        %v5031 = vunpack.c.l.b16 %v4671
        %v5032 = vunpack.c.h.b16 %v4671
        %v5033 = vunpack.c.l.b16 %v4672
        %v5034 = vunpack.c.h.b16 %v4672
        %v5035 = vunpack.c.l.b16 %v4673
        %v5036 = vunpack.c.h.b16 %v4673
        %v5037 = vunpack.c.l.b16 %v4674
        %v5038 = vunpack.c.h.b16 %v4674
        %v5039 = vunpack.c.l.b16 %v4675
        %v5040 = vunpack.c.h.b16 %v4675
        %v5041 = vunpack.c.l.b16 %v4676
        %v5042 = vunpack.c.h.b16 %v4676
        %v5043 = vunpack.c.l.b16 %v4677
        %v5044 = vunpack.c.h.b16 %v4677
        %v5045 = vunpack.c.l.b16 %v4678
        %v5046 = vunpack.c.h.b16 %v4678
        %v5047 = vunpack.c.l.b16 %v4679
        %v5048 = vunpack.c.h.b16 %v4679
        %v5049 = vunpack.c.l.b16 %v4680
        %v5050 = vunpack.c.h.b16 %v4680
        %v5051 = vunpack.c.l.b16 %v4681
        %v5052 = vunpack.c.h.b16 %v4681
        %v5053 = vunpack.c.l.b16 %v4682
        %v5054 = vunpack.c.h.b16 %v4682
        %v5055 = vunpack.c.l.b16 %v4683
        %v5056 = vunpack.c.h.b16 %v4683
        %v5057 = vunpack.c.l.b16 %v4684
        %v5058 = vunpack.c.h.b16 %v4684
        %v5059 = vunpack.c.l.b16 %v4685
        %v5060 = vunpack.c.h.b16 %v4685
        %v5061 = vunpack.c.l.b16 %v4686
        %v5062 = vunpack.c.h.b16 %v4686
        %v5063 = vunpack.c.l.b16 %v4687
        %v5064 = vunpack.c.h.b16 %v4687
        %v5065 = vunpack.c.l.b16 %v4688
        %v5066 = vunpack.c.h.b16 %v4688
        %v5067 = vunpack.c.l.b16 %v4689
        %v5068 = vunpack.c.h.b16 %v4689
        %v5069 = vunpack.c.l.b16 %v4690
        %v5070 = vunpack.c.h.b16 %v4690
        %v5071 = vunpack.c.l.b16 %v4691
        %v5072 = vunpack.c.h.b16 %v4691
        %v5073 = vunpack.c.l.b16 %v4692
        %v5074 = vunpack.c.h.b16 %v4692
        %v5075 = vunpack.c.l.b16 %v4693
        %v5076 = vunpack.c.h.b16 %v4693
        %v5077 = vunpack.c.l.b16 %v4694
        %v5078 = vunpack.c.h.b16 %v4694
        %v5079 = vunpack.c.l.b16 %v4695
        %v5080 = vunpack.c.h.b16 %v4695
        %v5081 = vunpack.c.l.b16 %v4696
        %v5082 = vunpack.c.h.b16 %v4696
        %v5083 = vunpack.c.l.b16 %v4697
        %v5084 = vunpack.c.h.b16 %v4697
        %v5085 = vunpack.c.l.b16 %v4698
        %v5086 = vunpack.c.h.b16 %v4698
        %v5087 = vunpack.c.l.b16 %v4699
        %v5088 = vunpack.c.h.b16 %v4699
        %v5089 = vunpack.c.l.b16 %v4700
        %v5090 = vunpack.c.h.b16 %v4700
        %v5091 = vpack.c.b16 %v4837, %v4835
        %v5092 = vpack.c.b16 %v4838, %v4836
        %v5093 = vpack.c.b16 %v4841, %v4839
        %v5094 = vpack.c.b16 %v4842, %v4840
        %v5095 = vpack.c.b16 %v4845, %v4843
        %v5096 = vpack.c.b16 %v4846, %v4844
        %v5097 = vpack.c.b16 %v4849, %v4847
        %v5098 = vpack.c.b16 %v4850, %v4848
        %v5099 = vpack.c.b16 %v4853, %v4851
        %v5100 = vpack.c.b16 %v4854, %v4852
        %v5101 = vpack.c.b16 %v4857, %v4855
        %v5102 = vpack.c.b16 %v4858, %v4856
        %v5103 = vpack.c.b16 %v4861, %v4859
        %v5104 = vpack.c.b16 %v4862, %v4860
        %v5105 = vpack.c.b16 %v4865, %v4863
        %v5106 = vpack.c.b16 %v4866, %v4864
        %v5107 = vpack.c.b16 %v4869, %v4867
        %v5108 = vpack.c.b16 %v4870, %v4868
        %v5109 = vpack.c.b16 %v4873, %v4871
        %v5110 = vpack.c.b16 %v4874, %v4872
        %v5111 = vpack.c.b16 %v4877, %v4875
        %v5112 = vpack.c.b16 %v4878, %v4876
        %v5113 = vpack.c.b16 %v4881, %v4879
        %v5114 = vpack.c.b16 %v4882, %v4880
        %v5115 = vpack.c.b16 %v4885, %v4883
        %v5116 = vpack.c.b16 %v4886, %v4884
        %v5117 = vpack.c.b16 %v4889, %v4887
        %v5118 = vpack.c.b16 %v4890, %v4888
        %v5119 = vpack.c.b16 %v4893, %v4891
        %v5120 = vpack.c.b16 %v4894, %v4892
        %v5121 = vpack.c.b16 %v4897, %v4895
        %v5122 = vpack.c.b16 %v4898, %v4896
        %v5123 = vpack.c.b16 %v4901, %v4899
        %v5124 = vpack.c.b16 %v4902, %v4900
        %v5125 = vpack.c.b16 %v4905, %v4903
        %v5126 = vpack.c.b16 %v4906, %v4904
        %v5127 = vpack.c.b16 %v4909, %v4907
        %v5128 = vpack.c.b16 %v4910, %v4908
        %v5129 = vpack.c.b16 %v4913, %v4911
        %v5130 = vpack.c.b16 %v4914, %v4912
        %v5131 = vpack.c.b16 %v4917, %v4915
        %v5132 = vpack.c.b16 %v4918, %v4916
        %v5133 = vpack.c.b16 %v4921, %v4919
        %v5134 = vpack.c.b16 %v4922, %v4920
        %v5135 = vpack.c.b16 %v4925, %v4923
        %v5136 = vpack.c.b16 %v4926, %v4924
        %v5137 = vpack.c.b16 %v4929, %v4927
        %v5138 = vpack.c.b16 %v4930, %v4928
        %v5139 = vpack.c.b16 %v4933, %v4931
        %v5140 = vpack.c.b16 %v4934, %v4932
        %v5141 = vpack.c.b16 %v4937, %v4935
        %v5142 = vpack.c.b16 %v4938, %v4936
        %v5143 = vpack.c.b16 %v4941, %v4939
        %v5144 = vpack.c.b16 %v4942, %v4940
        %v5145 = vpack.c.b16 %v4945, %v4943
        %v5146 = vpack.c.b16 %v4946, %v4944
        %v5147 = vpack.c.b16 %v4949, %v4947
        %v5148 = vpack.c.b16 %v4950, %v4948
        %v5149 = vpack.c.b16 %v4953, %v4951
        %v5150 = vpack.c.b16 %v4954, %v4952
        %v5151 = vpack.c.b16 %v4957, %v4955
        %v5152 = vpack.c.b16 %v4958, %v4956
        %v5153 = vpack.c.b16 %v4961, %v4959
        %v5154 = vpack.c.b16 %v4962, %v4960
        %v5155 = vpack.c.b16 %v4965, %v4963
        %v5156 = vpack.c.b16 %v4966, %v4964
        %v5157 = vpack.c.b16 %v4969, %v4967
        %v5158 = vpack.c.b16 %v4970, %v4968
        %v5159 = vpack.c.b16 %v4973, %v4971
        %v5160 = vpack.c.b16 %v4974, %v4972
        %v5161 = vpack.c.b16 %v4977, %v4975
        %v5162 = vpack.c.b16 %v4978, %v4976
        %v5163 = vpack.c.b16 %v4981, %v4979
        %v5164 = vpack.c.b16 %v4982, %v4980
        %v5165 = vpack.c.b16 %v4985, %v4983
        %v5166 = vpack.c.b16 %v4986, %v4984
        %v5167 = vpack.c.b16 %v4989, %v4987
        %v5168 = vpack.c.b16 %v4990, %v4988
        %v5169 = vpack.c.b16 %v4993, %v4991
        %v5170 = vpack.c.b16 %v4994, %v4992
        %v5171 = vpack.c.b16 %v4997, %v4995
        %v5172 = vpack.c.b16 %v4998, %v4996
        %v5173 = vpack.c.b16 %v5001, %v4999
        %v5174 = vpack.c.b16 %v5002, %v5000
        %v5175 = vpack.c.b16 %v5005, %v5003
        %v5176 = vpack.c.b16 %v5006, %v5004
        %v5177 = vpack.c.b16 %v5009, %v5007
        %v5178 = vpack.c.b16 %v5010, %v5008
        %v5179 = vpack.c.b16 %v5013, %v5011
        %v5180 = vpack.c.b16 %v5014, %v5012
        %v5181 = vpack.c.b16 %v5017, %v5015
        %v5182 = vpack.c.b16 %v5018, %v5016
        %v5183 = vpack.c.b16 %v5021, %v5019
        %v5184 = vpack.c.b16 %v5022, %v5020
        %v5185 = vpack.c.b16 %v5025, %v5023
        %v5186 = vpack.c.b16 %v5026, %v5024
        %v5187 = vpack.c.b16 %v5029, %v5027
        %v5188 = vpack.c.b16 %v5030, %v5028
        %v5189 = vpack.c.b16 %v5033, %v5031
        %v5190 = vpack.c.b16 %v5034, %v5032
        %v5191 = vpack.c.b16 %v5037, %v5035
        %v5192 = vpack.c.b16 %v5038, %v5036
        %v5193 = vpack.c.b16 %v5041, %v5039
        %v5194 = vpack.c.b16 %v5042, %v5040
        %v5195 = vpack.c.b16 %v5045, %v5043
        %v5196 = vpack.c.b16 %v5046, %v5044
        %v5197 = vpack.c.b16 %v5049, %v5047
        %v5198 = vpack.c.b16 %v5050, %v5048
        %v5199 = vpack.c.b16 %v5053, %v5051
        %v5200 = vpack.c.b16 %v5054, %v5052
        %v5201 = vpack.c.b16 %v5057, %v5055
        %v5202 = vpack.c.b16 %v5058, %v5056
        %v5203 = vpack.c.b16 %v5061, %v5059
        %v5204 = vpack.c.b16 %v5062, %v5060
        %v5205 = vpack.c.b16 %v5065, %v5063
        %v5206 = vpack.c.b16 %v5066, %v5064
        %v5207 = vpack.c.b16 %v5069, %v5067
        %v5208 = vpack.c.b16 %v5070, %v5068
        %v5209 = vpack.c.b16 %v5073, %v5071
        %v5210 = vpack.c.b16 %v5074, %v5072
        %v5211 = vpack.c.b16 %v5077, %v5075
        %v5212 = vpack.c.b16 %v5078, %v5076
        %v5213 = vpack.c.b16 %v5081, %v5079
        %v5214 = vpack.c.b16 %v5082, %v5080
        %v5215 = vpack.c.b16 %v5085, %v5083
        %v5216 = vpack.c.b16 %v5086, %v5084
        %v5217 = vpack.c.b16 %v5089, %v5087
        %v5218 = vpack.c.b16 %v5090, %v5088
        %5347 = vmatpush.bf16.msra.mxu0 %v5105
        %5348 = vmatpush.bf16.msra.mxu0 %v5103
        %5349 = vmatpush.bf16.msra.mxu0 %v5101
        %5350 = vmatpush.bf16.msra.mxu0 %v5099
        %5351 = vmatpush.bf16.msra.mxu0 %v5097
        %5352 = vmatpush.bf16.msra.mxu0 %v5095
        %5353 = vmatpush.bf16.msra.mxu0 %v5093
        %5354 = vmatpush.bf16.msra.mxu0 %v5091
        %5355 = vmatmul.bf16.gmra.mxu0 %v4557
        %v5356 = vpop.f32.mrf.mxu0
        %v5357 = vadd.f32 %v4703, %v5356
        %v5358 = vpop.f32.mrf.mxu0
        %v5359 = vadd.f32 %v4703, %v5358
        %5360 = vmatmul.bf16.gmra.mxu0 %v4565
        %v5361 = vpop.f32.mrf.mxu0
        %v5362 = vadd.f32 %v4703, %v5361
        %v5363 = vpop.f32.mrf.mxu0
        %v5364 = vadd.f32 %v4703, %v5363
        %5365 = vdwg.mxu0
        %5366 = vmatpush.bf16.msra.mxu0 %v5121
        %5367 = vmatpush.bf16.msra.mxu0 %v5119
        %5368 = vmatpush.bf16.msra.mxu0 %v5117
        %5369 = vmatpush.bf16.msra.mxu0 %v5115
        %5370 = vmatpush.bf16.msra.mxu0 %v5113
        %5371 = vmatpush.bf16.msra.mxu0 %v5111
        %5372 = vmatpush.bf16.msra.mxu0 %v5109
        %5373 = vmatpush.bf16.msra.mxu0 %v5107
        %5374 = vmatmul.bf16.gmra.mxu0 %v4558
        %v5375 = vpop.f32.mrf.mxu0
        %v5376 = vadd.f32 %v5357, %v5375
        %v5377 = vpop.f32.mrf.mxu0
        %v5378 = vadd.f32 %v5359, %v5377
        %5379 = vmatmul.bf16.gmra.mxu0 %v4566
        %v5380 = vpop.f32.mrf.mxu0
        %v5381 = vadd.f32 %v5362, %v5380
        %v5382 = vpop.f32.mrf.mxu0
        %v5383 = vadd.f32 %v5364, %v5382
        %5384 = vdwg.mxu0
        %5385 = vmatpush.bf16.msra.mxu0 %v5137
        %5386 = vmatpush.bf16.msra.mxu0 %v5135
        %5387 = vmatpush.bf16.msra.mxu0 %v5133
        %5388 = vmatpush.bf16.msra.mxu0 %v5131
        %5389 = vmatpush.bf16.msra.mxu0 %v5129
        %5390 = vmatpush.bf16.msra.mxu0 %v5127
        %5391 = vmatpush.bf16.msra.mxu0 %v5125
        %5392 = vmatpush.bf16.msra.mxu0 %v5123
        %5393 = vmatmul.bf16.gmra.mxu0 %v4559
        %v5394 = vpop.f32.mrf.mxu0
        %v5395 = vadd.f32 %v5376, %v5394
        %v5396 = vpop.f32.mrf.mxu0
        %v5397 = vadd.f32 %v5378, %v5396
        %5398 = vmatmul.bf16.gmra.mxu0 %v4567
        %v5399 = vpop.f32.mrf.mxu0
        %v5400 = vadd.f32 %v5381, %v5399
        %v5401 = vpop.f32.mrf.mxu0
        %v5402 = vadd.f32 %v5383, %v5401
        %5403 = vdwg.mxu0
        %5404 = vmatpush.bf16.msra.mxu0 %v5153
        %5405 = vmatpush.bf16.msra.mxu0 %v5151
        %5406 = vmatpush.bf16.msra.mxu0 %v5149
        %5407 = vmatpush.bf16.msra.mxu0 %v5147
        %5408 = vmatpush.bf16.msra.mxu0 %v5145
        %5409 = vmatpush.bf16.msra.mxu0 %v5143
        %5410 = vmatpush.bf16.msra.mxu0 %v5141
        %5411 = vmatpush.bf16.msra.mxu0 %v5139
        %5412 = vmatmul.bf16.gmra.mxu0 %v4560
        %v5413 = vpop.f32.mrf.mxu0
        %v5414 = vadd.f32 %v5395, %v5413
        %v5415 = vpop.f32.mrf.mxu0
        %v5416 = vadd.f32 %v5397, %v5415
        %5417 = vmatmul.bf16.gmra.mxu0 %v4568
        %v5418 = vpop.f32.mrf.mxu0
        %v5419 = vadd.f32 %v5400, %v5418
        %v5420 = vpop.f32.mrf.mxu0
        %v5421 = vadd.f32 %v5402, %v5420
        %5422 = vdwg.mxu0
        %5423 = vmatpush.bf16.msra.mxu0 %v5169
        %5424 = vmatpush.bf16.msra.mxu0 %v5167
        %5425 = vmatpush.bf16.msra.mxu0 %v5165
        %5426 = vmatpush.bf16.msra.mxu0 %v5163
        %5427 = vmatpush.bf16.msra.mxu0 %v5161
        %5428 = vmatpush.bf16.msra.mxu0 %v5159
        %5429 = vmatpush.bf16.msra.mxu0 %v5157
        %5430 = vmatpush.bf16.msra.mxu0 %v5155
        %5431 = vmatmul.bf16.gmra.mxu0 %v4561
        %v5432 = vpop.f32.mrf.mxu0
        %v5433 = vadd.f32 %v5414, %v5432
        %v5434 = vpop.f32.mrf.mxu0
        %v5435 = vadd.f32 %v5416, %v5434
        %5436 = vmatmul.bf16.gmra.mxu0 %v4569
        %v5437 = vpop.f32.mrf.mxu0
        %v5438 = vadd.f32 %v5419, %v5437
        %v5439 = vpop.f32.mrf.mxu0
        %v5440 = vadd.f32 %v5421, %v5439
        %5441 = vdwg.mxu0
        %5442 = vmatpush.bf16.msra.mxu0 %v5185
        %5443 = vmatpush.bf16.msra.mxu0 %v5183
        %5444 = vmatpush.bf16.msra.mxu0 %v5181
        %5445 = vmatpush.bf16.msra.mxu0 %v5179
        %5446 = vmatpush.bf16.msra.mxu0 %v5177
        %5447 = vmatpush.bf16.msra.mxu0 %v5175
        %5448 = vmatpush.bf16.msra.mxu0 %v5173
        %5449 = vmatpush.bf16.msra.mxu0 %v5171
        %5450 = vmatmul.bf16.gmra.mxu0 %v4562
        %v5451 = vpop.f32.mrf.mxu0
        %v5452 = vadd.f32 %v5433, %v5451
        %v5453 = vpop.f32.mrf.mxu0
        %v5454 = vadd.f32 %v5435, %v5453
        %5455 = vmatmul.bf16.gmra.mxu0 %v4570
        %v5456 = vpop.f32.mrf.mxu0
        %v5457 = vadd.f32 %v5438, %v5456
        %v5458 = vpop.f32.mrf.mxu0
        %v5459 = vadd.f32 %v5440, %v5458
        %5460 = vdwg.mxu0
        %5461 = vmatpush.bf16.msra.mxu0 %v5201
        %5462 = vmatpush.bf16.msra.mxu0 %v5199
        %5463 = vmatpush.bf16.msra.mxu0 %v5197
        %5464 = vmatpush.bf16.msra.mxu0 %v5195
        %5465 = vmatpush.bf16.msra.mxu0 %v5193
        %5466 = vmatpush.bf16.msra.mxu0 %v5191
        %5467 = vmatpush.bf16.msra.mxu0 %v5189
        %5468 = vmatpush.bf16.msra.mxu0 %v5187
        %5469 = vmatmul.bf16.gmra.mxu0 %v4563
        %v5470 = vpop.f32.mrf.mxu0
        %v5471 = vadd.f32 %v5452, %v5470
        %v5472 = vpop.f32.mrf.mxu0
        %v5473 = vadd.f32 %v5454, %v5472
        %5474 = vmatmul.bf16.gmra.mxu0 %v4571
        %v5475 = vpop.f32.mrf.mxu0
        %v5476 = vadd.f32 %v5457, %v5475
        %v5477 = vpop.f32.mrf.mxu0
        %v5478 = vadd.f32 %v5459, %v5477
        %5479 = vdwg.mxu0
        %5480 = vmatpush.bf16.msra.mxu0 %v5217
        %5481 = vmatpush.bf16.msra.mxu0 %v5215
        %5482 = vmatpush.bf16.msra.mxu0 %v5213
        %5483 = vmatpush.bf16.msra.mxu0 %v5211
        %5484 = vmatpush.bf16.msra.mxu0 %v5209
        %5485 = vmatpush.bf16.msra.mxu0 %v5207
        %5486 = vmatpush.bf16.msra.mxu0 %v5205
        %5487 = vmatpush.bf16.msra.mxu0 %v5203
        %5488 = vmatmul.bf16.gmra.mxu0 %v4564
        %v5489 = vpop.f32.mrf.mxu0
        %v5490 = vadd.f32 %v5471, %v5489
        %v5491 = vpop.f32.mrf.mxu0
        %v5492 = vadd.f32 %v5473, %v5491
        %5493 = vmatmul.bf16.gmra.mxu0 %v4572
        %v5494 = vpop.f32.mrf.mxu0
        %v5495 = vadd.f32 %v5476, %v5494
        %v5496 = vpop.f32.mrf.mxu0
        %v5497 = vadd.f32 %v5478, %v5496
        %5498 = vdwg.mxu0
        %5499 = vmatpush.bf16.msra.mxu0 %v5106
        %5500 = vmatpush.bf16.msra.mxu0 %v5104
        %5501 = vmatpush.bf16.msra.mxu0 %v5102
        %5502 = vmatpush.bf16.msra.mxu0 %v5100
        %5503 = vmatpush.bf16.msra.mxu0 %v5098
        %5504 = vmatpush.bf16.msra.mxu0 %v5096
        %5505 = vmatpush.bf16.msra.mxu0 %v5094
        %5506 = vmatpush.bf16.msra.mxu0 %v5092
        %5507 = vmatmul.bf16.gmra.mxu0 %v4557
        %v5508 = vpop.f32.mrf.mxu0
        %v5509 = vadd.f32 %v4704, %v5508
        %v5510 = vpop.f32.mrf.mxu0
        %v5511 = vadd.f32 %v4704, %v5510
        %5512 = vmatmul.bf16.gmra.mxu0 %v4565
        %v5513 = vpop.f32.mrf.mxu0
        %v5514 = vadd.f32 %v4704, %v5513
        %v5515 = vpop.f32.mrf.mxu0
        %v5516 = vadd.f32 %v4704, %v5515
        %5517 = vdwg.mxu0
        %5518 = vmatpush.bf16.msra.mxu0 %v5122
        %5519 = vmatpush.bf16.msra.mxu0 %v5120
        %5520 = vmatpush.bf16.msra.mxu0 %v5118
        %5521 = vmatpush.bf16.msra.mxu0 %v5116
        %5522 = vmatpush.bf16.msra.mxu0 %v5114
        %5523 = vmatpush.bf16.msra.mxu0 %v5112
        %5524 = vmatpush.bf16.msra.mxu0 %v5110
        %5525 = vmatpush.bf16.msra.mxu0 %v5108
        %5526 = vmatmul.bf16.gmra.mxu0 %v4558
        %v5527 = vpop.f32.mrf.mxu0
        %v5528 = vadd.f32 %v5509, %v5527
        %v5529 = vpop.f32.mrf.mxu0
        %v5530 = vadd.f32 %v5511, %v5529
        %5531 = vmatmul.bf16.gmra.mxu0 %v4566
        %v5532 = vpop.f32.mrf.mxu0
        %v5533 = vadd.f32 %v5514, %v5532
        %v5534 = vpop.f32.mrf.mxu0
        %v5535 = vadd.f32 %v5516, %v5534
        %5536 = vdwg.mxu0
        %5537 = vmatpush.bf16.msra.mxu0 %v5138
        %5538 = vmatpush.bf16.msra.mxu0 %v5136
        %5539 = vmatpush.bf16.msra.mxu0 %v5134
        %5540 = vmatpush.bf16.msra.mxu0 %v5132
        %5541 = vmatpush.bf16.msra.mxu0 %v5130
        %5542 = vmatpush.bf16.msra.mxu0 %v5128
        %5543 = vmatpush.bf16.msra.mxu0 %v5126
        %5544 = vmatpush.bf16.msra.mxu0 %v5124
        %5545 = vmatmul.bf16.gmra.mxu0 %v4559
        %v5546 = vpop.f32.mrf.mxu0
        %v5547 = vadd.f32 %v5528, %v5546
        %v5548 = vpop.f32.mrf.mxu0
        %v5549 = vadd.f32 %v5530, %v5548
        %5550 = vmatmul.bf16.gmra.mxu0 %v4567
        %v5551 = vpop.f32.mrf.mxu0
        %v5552 = vadd.f32 %v5533, %v5551
        %v5553 = vpop.f32.mrf.mxu0
        %v5554 = vadd.f32 %v5535, %v5553
        %5555 = vdwg.mxu0
        %5556 = vmatpush.bf16.msra.mxu0 %v5154
        %5557 = vmatpush.bf16.msra.mxu0 %v5152
        %5558 = vmatpush.bf16.msra.mxu0 %v5150
        %5559 = vmatpush.bf16.msra.mxu0 %v5148
        %5560 = vmatpush.bf16.msra.mxu0 %v5146
        %5561 = vmatpush.bf16.msra.mxu0 %v5144
        %5562 = vmatpush.bf16.msra.mxu0 %v5142
        %5563 = vmatpush.bf16.msra.mxu0 %v5140
        %5564 = vmatmul.bf16.gmra.mxu0 %v4560
        %v5565 = vpop.f32.mrf.mxu0
        %v5566 = vadd.f32 %v5547, %v5565
        %v5567 = vpop.f32.mrf.mxu0
        %v5568 = vadd.f32 %v5549, %v5567
        %5569 = vmatmul.bf16.gmra.mxu0 %v4568
        %v5570 = vpop.f32.mrf.mxu0
        %v5571 = vadd.f32 %v5552, %v5570
        %v5572 = vpop.f32.mrf.mxu0
        %v5573 = vadd.f32 %v5554, %v5572
        %5574 = vdwg.mxu0
        %5575 = vmatpush.bf16.msra.mxu0 %v5170
        %5576 = vmatpush.bf16.msra.mxu0 %v5168
        %5577 = vmatpush.bf16.msra.mxu0 %v5166
        %5578 = vmatpush.bf16.msra.mxu0 %v5164
        %5579 = vmatpush.bf16.msra.mxu0 %v5162
        %5580 = vmatpush.bf16.msra.mxu0 %v5160
        %5581 = vmatpush.bf16.msra.mxu0 %v5158
        %5582 = vmatpush.bf16.msra.mxu0 %v5156
        %5583 = vmatmul.bf16.gmra.mxu0 %v4561
        %v5584 = vpop.f32.mrf.mxu0
        %v5585 = vadd.f32 %v5566, %v5584
        %v5586 = vpop.f32.mrf.mxu0
        %v5587 = vadd.f32 %v5568, %v5586
        %5588 = vmatmul.bf16.gmra.mxu0 %v4569
        %v5589 = vpop.f32.mrf.mxu0
        %v5590 = vadd.f32 %v5571, %v5589
        %v5591 = vpop.f32.mrf.mxu0
        %v5592 = vadd.f32 %v5573, %v5591
        %5593 = vdwg.mxu0
        %5594 = vmatpush.bf16.msra.mxu0 %v5186
        %5595 = vmatpush.bf16.msra.mxu0 %v5184
        %5596 = vmatpush.bf16.msra.mxu0 %v5182
        %5597 = vmatpush.bf16.msra.mxu0 %v5180
        %5598 = vmatpush.bf16.msra.mxu0 %v5178
        %5599 = vmatpush.bf16.msra.mxu0 %v5176
        %5600 = vmatpush.bf16.msra.mxu0 %v5174
        %5601 = vmatpush.bf16.msra.mxu0 %v5172
        %5602 = vmatmul.bf16.gmra.mxu0 %v4562
        %v5603 = vpop.f32.mrf.mxu0
        %v5604 = vadd.f32 %v5585, %v5603
        %v5605 = vpop.f32.mrf.mxu0
        %v5606 = vadd.f32 %v5587, %v5605
        %5607 = vmatmul.bf16.gmra.mxu0 %v4570
        %v5608 = vpop.f32.mrf.mxu0
        %v5609 = vadd.f32 %v5590, %v5608
        %v5610 = vpop.f32.mrf.mxu0
        %v5611 = vadd.f32 %v5592, %v5610
        %5612 = vdwg.mxu0
        %5613 = vmatpush.bf16.msra.mxu0 %v5202
        %5614 = vmatpush.bf16.msra.mxu0 %v5200
        %5615 = vmatpush.bf16.msra.mxu0 %v5198
        %5616 = vmatpush.bf16.msra.mxu0 %v5196
        %5617 = vmatpush.bf16.msra.mxu0 %v5194
        %5618 = vmatpush.bf16.msra.mxu0 %v5192
        %5619 = vmatpush.bf16.msra.mxu0 %v5190
        %5620 = vmatpush.bf16.msra.mxu0 %v5188
        %5621 = vmatmul.bf16.gmra.mxu0 %v4563
        %v5622 = vpop.f32.mrf.mxu0
        %v5623 = vadd.f32 %v5604, %v5622
        %v5624 = vpop.f32.mrf.mxu0
        %v5625 = vadd.f32 %v5606, %v5624
        %5626 = vmatmul.bf16.gmra.mxu0 %v4571
        %v5627 = vpop.f32.mrf.mxu0
        %v5628 = vadd.f32 %v5609, %v5627
        %v5629 = vpop.f32.mrf.mxu0
        %v5630 = vadd.f32 %v5611, %v5629
        %5631 = vdwg.mxu0
        %5632 = vmatpush.bf16.msra.mxu0 %v5218
        %5633 = vmatpush.bf16.msra.mxu0 %v5216
        %5634 = vmatpush.bf16.msra.mxu0 %v5214
        %5635 = vmatpush.bf16.msra.mxu0 %v5212
        %5636 = vmatpush.bf16.msra.mxu0 %v5210
        %5637 = vmatpush.bf16.msra.mxu0 %v5208
        %5638 = vmatpush.bf16.msra.mxu0 %v5206
        %5639 = vmatpush.bf16.msra.mxu0 %v5204
        %5640 = vmatmul.bf16.gmra.mxu0 %v4564
        %v5641 = vpop.f32.mrf.mxu0
        %v5642 = vadd.f32 %v5623, %v5641
        %v5643 = vpop.f32.mrf.mxu0
        %v5644 = vadd.f32 %v5625, %v5643
        %5645 = vmatmul.bf16.gmra.mxu0 %v4572
        %v5646 = vpop.f32.mrf.mxu0
        %v5647 = vadd.f32 %v5628, %v5646
        %v5648 = vpop.f32.mrf.mxu0
        %v5649 = vadd.f32 %v5630, %v5648
        %5650 = vdwg.mxu0
        %v5651 = vadd.f32 %v3039, %v5490
        %v5652 = vadd.f32 %v3040, %v5642
        %v5653 = vadd.f32 %v3041, %v5492
        %v5654 = vadd.f32 %v3042, %v5644
        %v5655 = vadd.f32 %v3043, %v5495
        %v5656 = vadd.f32 %v3044, %v5647
        %v5657 = vadd.f32 %v3045, %v5497
        %v5658 = vadd.f32 %v3046, %v5649
        %5659 = vst [vmem:[#allocation2] sm:$0xff] %v5651
        %5660 = vst [vmem:[#allocation2 + $0x8] sm:$0xff] %v5652
        %5661 = vst [vmem:[#allocation2 + $0x10] sm:$0xff] %v5653
        %5662 = vst [vmem:[#allocation2 + $0x18] sm:$0xff] %v5654
        %5663 = vst [vmem:[#allocation2 + $0x20] sm:$0xff] %v5655
        %5664 = vst [vmem:[#allocation2 + $0x28] sm:$0xff] %v5656
        %5665 = vst [vmem:[#allocation2 + $0x30] sm:$0xff] %v5657
        %5666 = vst [vmem:[#allocation2 + $0x38] sm:$0xff] %v5658
        %p5667 = scmp.eq.s32.totalorder %s40, 1
        // Predicated region
        $region133: #{tpu_custom_call.1} parent=83 // pred_check
          %p5668 = pneg %p5667
        $region134: #{tpu_custom_call.1} parent=83 // pred_check_branch
          %5670 = sbr.rel (%p5668) target = $region136
        $region135: #{tpu_custom_call.1} parent=83 // pred_region
          %v5671 = vld [vmem:[%s16] sm:$0x3]
          %v5672 = vld [vmem:[%s17] sm:$0x3]
          %v5673 = vadd.f32 %v5651, %v5652
          %5674 = vadd.xlane.f32.xlu0 %v5673
          %v5675 = vpop.xlane.xlu0 %5674
          %v5676 = vadd.f32 %v5653, %v5654
          %5677 = vadd.xlane.f32.xlu0 %v5676
          %v5678 = vpop.xlane.xlu0 %5677
          %v5679 = vadd.f32 %v5655, %v5656
          %5680 = vadd.xlane.f32.xlu0 %v5679
          %v5681 = vpop.xlane.xlu0 %5680
          %v5682 = vadd.f32 %v5657, %v5658
          %5683 = vadd.xlane.f32.xlu0 %v5682
          %v5684 = vpop.xlane.xlu0 %5683
          %v5685 = vmul.f32 %v5675, %v1555
          %v5686 = vmul.f32 %v5678, %v1555
          %v5687 = vmul.f32 %v5681, %v1555
          %v5688 = vmul.f32 %v5684, %v1555
          %v5689 = vsub.f32 %v5651, %v5685
          %v5690 = vsub.f32 %v5652, %v5685
          %v5691 = vsub.f32 %v5653, %v5686
          %v5692 = vsub.f32 %v5654, %v5686
          %v5693 = vsub.f32 %v5655, %v5687
          %v5694 = vsub.f32 %v5656, %v5687
          %v5695 = vsub.f32 %v5657, %v5688
          %v5696 = vsub.f32 %v5658, %v5688
          %v5697 = vmul.f32 %v5689, %v5689
          %v5698 = vmul.f32 %v5690, %v5690
          %v5699 = vmul.f32 %v5691, %v5691
          %v5700 = vmul.f32 %v5692, %v5692
          %v5701 = vmul.f32 %v5693, %v5693
          %v5702 = vmul.f32 %v5694, %v5694
          %v5703 = vmul.f32 %v5695, %v5695
          %v5704 = vmul.f32 %v5696, %v5696
          %v5705 = vadd.f32 %v5697, %v5698
          %5706 = vadd.xlane.f32.xlu0 %v5705
          %v5707 = vpop.xlane.xlu0 %5706
          %v5708 = vadd.f32 %v5699, %v5700
          %5709 = vadd.xlane.f32.xlu0 %v5708
          %v5710 = vpop.xlane.xlu0 %5709
          %v5711 = vadd.f32 %v5701, %v5702
          %5712 = vadd.xlane.f32.xlu0 %v5711
          %v5713 = vpop.xlane.xlu0 %5712
          %v5714 = vadd.f32 %v5703, %v5704
          %5715 = vadd.xlane.f32.xlu0 %v5714
          %v5716 = vpop.xlane.xlu0 %5715
          %v5717 = vmul.f32 %v5707, %v1555
          %v5718 = vmul.f32 %v5710, %v1555
          %v5719 = vmul.f32 %v5713, %v1555
          %v5720 = vmul.f32 %v5716, %v1555
          %v5721 = vadd.f32 %v5717, 1e-05
          %v5722 = vadd.f32 %v5718, 1e-05
          %v5723 = vadd.f32 %v5719, 1e-05
          %v5724 = vadd.f32 %v5720, 1e-05
          %v5725 = vrsqrt.pop %v5721
          %v5726 = vmul.f32 %v5725, %v5721
          %v5727 = vmul.f32 %v5726, %v5725
          %v5728 = vmul.f32 0.5, %v5727
          %v5729 = vsub.f32 1.5, %v5728
          %v5730 = vmul.f32 %v5725, %v5729
          %vm5731 = vweird.f32 %v5721
          %vm5732 = vweird.f32 %v5725
          %vm5733 = vmor %vm5731, %vm5732
          %v5734 = vsel %vm5733, %v5725, %v5730
          %v5735 = vrsqrt.pop %v5722
          %v5736 = vmul.f32 %v5735, %v5722
          %v5737 = vmul.f32 %v5736, %v5735
          %v5738 = vmul.f32 0.5, %v5737
          %v5739 = vsub.f32 1.5, %v5738
          %v5740 = vmul.f32 %v5735, %v5739
          %vm5741 = vweird.f32 %v5722
          %vm5742 = vweird.f32 %v5735
          %vm5743 = vmor %vm5741, %vm5742
          %v5744 = vsel %vm5743, %v5735, %v5740
          %v5745 = vrsqrt.pop %v5723
          %v5746 = vmul.f32 %v5745, %v5723
          %v5747 = vmul.f32 %v5746, %v5745
          %v5748 = vmul.f32 0.5, %v5747
          %v5749 = vsub.f32 1.5, %v5748
          %v5750 = vmul.f32 %v5745, %v5749
          %vm5751 = vweird.f32 %v5723
          %vm5752 = vweird.f32 %v5745
          %vm5753 = vmor %vm5751, %vm5752
          %v5754 = vsel %vm5753, %v5745, %v5750
          %v5755 = vrsqrt.pop %v5724
          %v5756 = vmul.f32 %v5755, %v5724
          %v5757 = vmul.f32 %v5756, %v5755
          %v5758 = vmul.f32 0.5, %v5757
          %v5759 = vsub.f32 1.5, %v5758
          %v5760 = vmul.f32 %v5755, %v5759
          %vm5761 = vweird.f32 %v5724
          %vm5762 = vweird.f32 %v5755
          %vm5763 = vmor %vm5761, %vm5762
          %v5764 = vsel %vm5763, %v5755, %v5760
          %v5765 = vmul.f32 %v5689, %v5734
          %v5766 = vmul.f32 %v5690, %v5734
          %v5767 = vmul.f32 %v5691, %v5744
          %v5768 = vmul.f32 %v5692, %v5744
          %v5769 = vmul.f32 %v5693, %v5754
          %v5770 = vmul.f32 %v5694, %v5754
          %v5771 = vmul.f32 %v5695, %v5764
          %v5772 = vmul.f32 %v5696, %v5764
          %v5774 = vperm.slane %v5671, 0
          %v5775 = vperm.slane %v5671, 1
          %v5778 = vmul.f32 %v5765, %v5774
          %v5779 = vmul.f32 %v5766, %v5775
          %v5780 = vmul.f32 %v5767, %v5774
          %v5781 = vmul.f32 %v5768, %v5775
          %v5782 = vmul.f32 %v5769, %v5774
          %v5783 = vmul.f32 %v5770, %v5775
          %v5784 = vmul.f32 %v5771, %v5774
          %v5785 = vmul.f32 %v5772, %v5775
          %v5787 = vperm.slane %v5672, 0
          %v5788 = vperm.slane %v5672, 1
          %v5791 = vadd.f32 %v5778, %v5787
          %v5792 = vadd.f32 %v5779, %v5788
          %v5793 = vadd.f32 %v5780, %v5787
          %v5794 = vadd.f32 %v5781, %v5788
          %v5795 = vadd.f32 %v5782, %v5787
          %v5796 = vadd.f32 %v5783, %v5788
          %v5797 = vadd.f32 %v5784, %v5787
          %v5798 = vadd.f32 %v5785, %v5788
          %5799 = vst [vmem:[#allocation21] sm:$0xff] %v5791
          %5800 = vst [vmem:[#allocation21 + $0x8] sm:$0xff] %v5792
          %5801 = vst [vmem:[#allocation21 + $0x10] sm:$0xff] %v5793
          %5802 = vst [vmem:[#allocation21 + $0x18] sm:$0xff] %v5794
          %5803 = vst [vmem:[#allocation21 + $0x20] sm:$0xff] %v5795
          %5804 = vst [vmem:[#allocation21 + $0x28] sm:$0xff] %v5796
          %5805 = vst [vmem:[#allocation21 + $0x30] sm:$0xff] %v5797
          %5806 = vst [vmem:[#allocation21 + $0x38] sm:$0xff] %v5798
        $region136: #{tpu_custom_call.1} parent=83 // pred_fallthru
          _
        // Predicated region
        $region137: #{tpu_custom_call.1} parent=83 // pred_check
          %p5807 = pneg %p449
        $region138: #{tpu_custom_call.1} parent=83 // pred_check_branch
          %5809 = sbr.rel (%p5807) target = $region140
        $region139: #{tpu_custom_call.1} parent=83 // pred_region
          %5811 = vsyncadd [#allocation9], 0
          %s5812 = sshll.u32 [#allocation21], 4
          %s5813 = int_to_ptr.vmem [resolvable:$true] %s5812
          %s5814 = sshll.u32 %s18, 4
          %s5815 = int_to_ptr.hbm [resolvable:$true] %s5814
          %5820 = dma.vmem_to_hbm [thread:$0]  %s5813, 1024, %s5815, [#allocation9], 256, 256, 16
        $region140: #{tpu_custom_call.1} parent=83 // pred_fallthru
          _
        // Predicated region
        $region141: #{tpu_custom_call.1} parent=83 // pred_check
          %p5821 = pneg %p449
        $region142: #{tpu_custom_call.1} parent=83 // pred_check_branch
          %5823 = sbr.rel (%p5821) target = $region144
        $region143: #{tpu_custom_call.1} parent=83 // pred_region
          %5825 = dma.done [#allocation9], 1024
        $region144: #{tpu_custom_call.1} parent=83 // pred_fallthru
          _
      $region84: #{tpu_custom_call.1} parent=5 // pred_fallthru
        _
      %p5826 = scmp.le.s32.totalorder 2, %s35
      // Predicated region
      $region145: #{tpu_custom_call.1} parent=5 // pred_check
        %p5827 = pneg %p5826
      $region146: #{tpu_custom_call.1} parent=5 // pred_check_branch
        %5829 = sbr.rel (%p5827) target = $region148
      $region147: #{tpu_custom_call.1} parent=5 // pred_region
        %s5830 = ssub.s32 %s35, 2
      $region148: #{tpu_custom_call.1} parent=5 // pred_fallthru
        _
    $region6: #{tpu_custom_call.1} parent=1 // loop_footer
      %s39 = sadd.s32 1, %s35
    $region7: #{tpu_custom_call.1} parent=1 // loop_footer_branch
      %34 = sbr.rel target = $region3
    $region8: #{tpu_custom_call.1} parent=1 // loop_exit
      _
    %5831 = vsyncpa [#allocation8], 1
    %s5832 = scalar_lea.sflag [#allocation8], 1
    %5833 = vsyncpa %s5832, 1
    %5834 = vsyncpa [#allocation11], 1
    %5835 = vsyncpa [#allocation9], 1
    %s5836 = scalar_lea.sflag [#allocation9], 1
    %5837 = vsyncpa %s5836, 1
  %5838 = vsyncmov [#allocation4]
  %s5839 = vpop.sfrf %5838
  %p5840 = scmp.eq.s32.totalorder %s5839, 0
  %p5841 = pneg %p5840
  %5843 = shalt.err (%p5841)
  %s5844 = scalar_lea.sflag [#allocation4], 1
  %5845 = vsyncmov %s5844
  %s5846 = vpop.sfrf %5845
  %p5847 = scmp.eq.s32.totalorder %s5846, 0
  %p5848 = pneg %p5847
  %5850 = shalt.err (%p5848)
  %s5851 = scalar_lea.sflag [#allocation4], 2
  %5852 = vsyncmov %s5851
  %s5853 = vpop.sfrf %5852
  %p5854 = scmp.eq.s32.totalorder %s5853, 0
  %p5855 = pneg %p5854
  %5857 = shalt.err (%p5855)
  %s5858 = scalar_lea.sflag [#allocation4], 3
  %5859 = vsyncmov %s5858
  %s5860 = vpop.sfrf %5859
  %p5861 = scmp.eq.s32.totalorder %s5860, 0
  %p5862 = pneg %p5861
  %5864 = shalt.err (%p5862)
  %s5865 = scalar_lea.sflag [#allocation4], 4
  %5866 = vsyncmov %s5865
  %s5867 = vpop.sfrf %5866
  %p5868 = scmp.eq.s32.totalorder %s5867, 0
  %p5869 = pneg %p5868
  %5871 = shalt.err (%p5869)
  %s5872 = scalar_lea.sflag [#allocation4], 5
  %5873 = vsyncmov %s5872
  %s5874 = vpop.sfrf %5873
  %p5875 = scmp.eq.s32.totalorder %s5874, 0
  %p5876 = pneg %p5875
  %5878 = shalt.err (%p5876)
  %s5879 = scalar_lea.sflag [#allocation4], 6
  %5880 = vsyncmov %s5879
  %s5881 = vpop.sfrf %5880
  %p5882 = scmp.eq.s32.totalorder %s5881, 0
  %p5883 = pneg %p5882
  %5885 = shalt.err (%p5883)
  %s5886 = scalar_lea.sflag [#allocation4], 7
  %5887 = vsyncmov %s5886
  %s5888 = vpop.sfrf %5887
  %p5889 = scmp.eq.s32.totalorder %s5888, 0
  %p5890 = pneg %p5889
  %5892 = shalt.err (%p5890)
  %s5893 = scalar_lea.sflag [#allocation4], 8
  %5894 = vsyncmov %s5893
  %s5895 = vpop.sfrf %5894
  %p5896 = scmp.eq.s32.totalorder %s5895, 0
  %p5897 = pneg %p5896
  %5899 = shalt.err (%p5897)
  %s5900 = scalar_lea.sflag [#allocation4], 9
  %5901 = vsyncmov %s5900
  %s5902 = vpop.sfrf %5901
  %p5903 = scmp.eq.s32.totalorder %s5902, 0
  %p5904 = pneg %p5903
  %5906 = shalt.err (%p5904)
  %s5907 = scalar_lea.sflag [#allocation4], 10
  %5908 = vsyncmov %s5907
  %s5909 = vpop.sfrf %5908
  %p5910 = scmp.eq.s32.totalorder %s5909, 0
  %p5911 = pneg %p5910
  %5913 = shalt.err (%p5911)
  %s5914 = scalar_lea.sflag [#allocation4], 11
  %5915 = vsyncmov %s5914
  %s5916 = vpop.sfrf %5915
  %p5917 = scmp.eq.s32.totalorder %s5916, 0
  %p5918 = pneg %p5917
  %5920 = shalt.err (%p5918)
  %s5921 = scalar_lea.sflag [#allocation4], 12
  %5922 = vsyncmov %s5921
  %s5923 = vpop.sfrf %5922
  %p5924 = scmp.eq.s32.totalorder %s5923, 0
  %p5925 = pneg %p5924
  %5927 = shalt.err (%p5925)
  %s5928 = scalar_lea.sflag [#allocation4], 13
  %5929 = vsyncmov %s5928
  %s5930 = vpop.sfrf %5929
  %p5931 = scmp.eq.s32.totalorder %s5930, 0
  %p5932 = pneg %p5931
  %5934 = shalt.err (%p5932)
  %s5935 = scalar_lea.sflag [#allocation4], 14
  %5936 = vsyncmov %s5935
  %s5937 = vpop.sfrf %5936
  %p5938 = scmp.eq.s32.totalorder %s5937, 0
  %p5939 = pneg %p5938
  %5941 = shalt.err (%p5939)
  %s5942 = scalar_lea.sflag [#allocation4], 15
  %5943 = vsyncmov %s5942
  %s5944 = vpop.sfrf %5943
  %p5945 = scmp.eq.s32.totalorder %s5944, 0
  %p5946 = pneg %p5945
  %5948 = shalt.err (%p5946)
  %s5949 = scalar_lea.sflag [#allocation4], 16
  %5950 = vsyncmov %s5949
  %s5951 = vpop.sfrf %5950
  %p5952 = scmp.eq.s32.totalorder %s5951, 0
  %p5953 = pneg %p5952
  %5955 = shalt.err (%p5953)
  %s5956 = scalar_lea.sflag [#allocation4], 17
  %5957 = vsyncmov %s5956
  %s5958 = vpop.sfrf %5957
  %p5959 = scmp.eq.s32.totalorder %s5958, 0
  %p5960 = pneg %p5959
  %5962 = shalt.err (%p5960)
  %s5963 = scalar_lea.sflag [#allocation4], 18
  %5964 = vsyncmov %s5963
  %s5965 = vpop.sfrf %5964
  %p5966 = scmp.eq.s32.totalorder %s5965, 0
  %p5967 = pneg %p5966
  %5969 = shalt.err (%p5967)
  %s5970 = scalar_lea.sflag [#allocation4], 19
  %5971 = vsyncmov %s5970
  %s5972 = vpop.sfrf %5971
  %p5973 = scmp.eq.s32.totalorder %s5972, 0
  %p5974 = pneg %p5973
  %5976 = shalt.err (%p5974)
  %s5977 = scalar_lea.sflag [#allocation4], 20
  %5978 = vsyncmov %s5977
  %s5979 = vpop.sfrf %5978
  %p5980 = scmp.eq.s32.totalorder %s5979, 0
  %p5981 = pneg %p5980
  %5983 = shalt.err (%p5981)
  %s5984 = scalar_lea.sflag [#allocation4], 21
  %5985 = vsyncmov %s5984
  %s5986 = vpop.sfrf %5985
  %p5987 = scmp.eq.s32.totalorder %s5986, 0
  %p5988 = pneg %p5987
  %5990 = shalt.err (%p5988)
  %s5991 = scalar_lea.sflag [#allocation4], 22
  %5992 = vsyncmov %s5991
  %s5993 = vpop.sfrf %5992
  %p5994 = scmp.eq.s32.totalorder %s5993, 0
  %p5995 = pneg %p5994
  %5997 = shalt.err (%p5995)
  %s5998 = scalar_lea.sflag [#allocation4], 23
  %5999 = vsyncmov %s5998
  %s6000 = vpop.sfrf %5999
  %p6001 = scmp.eq.s32.totalorder %s6000, 0
  %p6002 = pneg %p6001
  %6004 = shalt.err (%p6002)
  %s6005 = scalar_lea.sflag [#allocation4], 24
  %6006 = vsyncmov %s6005
  %s6007 = vpop.sfrf %6006
  %p6008 = scmp.eq.s32.totalorder %s6007, 0
  %p6009 = pneg %p6008
  %6011 = shalt.err (%p6009)
  %s6012 = scalar_lea.sflag [#allocation4], 25
  %6013 = vsyncmov %s6012
  %s6014 = vpop.sfrf %6013
  %p6015 = scmp.eq.s32.totalorder %s6014, 0
  %p6016 = pneg %p6015
  %6018 = shalt.err (%p6016)
  %s6019 = scalar_lea.sflag [#allocation4], 26
  %6020 = vsyncmov %s6019
  %s6021 = vpop.sfrf %6020
  %p6022 = scmp.eq.s32.totalorder %s6021, 0
  %p6023 = pneg %p6022
  %6025 = shalt.err (%p6023)
  %s6026 = scalar_lea.sflag [#allocation4], 27
  %6027 = vsyncmov %s6026
  %s6028 = vpop.sfrf %6027
  %p6029 = scmp.eq.s32.totalorder %s6028, 0
  %p6030 = pneg %p6029
  %6032 = shalt.err (%p6030)
  %s6033 = scalar_lea.sflag [#allocation4], 28
  %6034 = vsyncmov %s6033
  %s6035 = vpop.sfrf %6034
  %p6036 = scmp.eq.s32.totalorder %s6035, 0
  %p6037 = pneg %p6036
  %6039 = shalt.err (%p6037)
  %s6040 = scalar_lea.sflag [#allocation4], 29
  %6041 = vsyncmov %s6040
  %s6042 = vpop.sfrf %6041
  %p6043 = scmp.eq.s32.totalorder %s6042, 0
  %p6044 = pneg %p6043
  %6046 = shalt.err (%p6044)
  %s6047 = scalar_lea.sflag [#allocation4], 30
  %6048 = vsyncmov %s6047
  %s6049 = vpop.sfrf %6048
  %p6050 = scmp.eq.s32.totalorder %s6049, 0
  %p6051 = pneg %p6050
  %6053 = shalt.err (%p6051)
  %s6054 = scalar_lea.sflag [#allocation4], 31
  %6055 = vsyncmov %s6054
  %s6056 = vpop.sfrf %6055
  %p6057 = scmp.eq.s32.totalorder %s6056, 0
  %p6058 = pneg %p6057
  %6060 = shalt.err (%p6058)

</llo_original>
